<compile_context>
chip_gen: v6e
topology: v6e:2x2x1
jax: 0.10.0
libtpu: 0.0.40
codegen_flags: <defaults>
</compile_context>

<pallas_src>
import functools

import jax
import jax.numpy as jnp
from jax import lax
from jax.experimental import pallas as pl
from jax.experimental.pallas import tpu as pltpu

K = 10                      # every conv in SimpleCNN_10K is 10x10, stride 1
SLOPE = 0.02                # LeakyReLU negative_slope
BN_EPS = 1e-5

ENC_CH = [1, 64, 128, 256, 512, 1024, 2048]        # Conv2d(cin, cout, 10, 1, 1)
DEC_CH = [2048, 1024, 512, 256, 128, 64, 32, 1]    # ConvTranspose2d(cin, cout, 10, 1, 1)


def _round_up(x, m):
    return ((x + m - 1) // m) * m


@functools.lru_cache(maxsize=None)
def _vmem_budget_limit():
    """(per-step working-set budget, scoped VMEM limit) derived from the chip."""
    try:
        cap = int(pltpu.get_tpu_info().vmem_capacity_bytes)
    except Exception:
        cap = 128 * 1024 * 1024
    limit = min((3 * cap) // 4, 100 * 1024 * 1024)      # 48 MiB on v7x, 96 MiB on v5e/v6e
    budget = max(limit - 16 * 1024 * 1024, limit // 2)  # 32 MiB on v7x, 80 MiB on v5e/v6e
    return budget, limit


# --------------------------------------------------------------------------- #
# Pallas kernel: row-blocked conv, ky-im2col -> single MXU matmul per step,
# kx folded into the matmul N dimension, fused affine + LeakyReLU epilogue.
# --------------------------------------------------------------------------- #
def _conv_block_kernel(x_ref, h_ref, w_ref, sc_ref, sh_ref, o_ref, *scratch,
                       rb, wp, wo, cob, slope, single_ci):
    """Grid = (row_block, out_channel_block, in_channel_block).

    x_ref  : (rb, wp, cib)        body rows of the zero-padded input (bf16)
    h_ref  : (K, wp, cib)         K-row halo below the body (bf16)
    w_ref  : (K*cib, K*cob)       resident weight tile, [ky*cib+ci, kx*cob+co] (bf16)
    sc_ref : (1, cob)             per-channel scale (folded BatchNorm / 1)
    sh_ref : (1, cob)             per-channel shift (bias)
    o_ref  : (rb, wo, cob)        output rows
    scratch: optional (rb*wp, cob) f32 accumulator (only when cin spans >1 block)
    """
    cib = x_ref.shape[-1]
    m = rb * wp
    me = m + 16                      # slack so every kx-shifted slice stays in range

    # Flatten body + halo into one (rb+K)*wp x cib matrix (rows are padded width).
    xb = jnp.concatenate([x_ref[...].reshape(m, cib),
                          h_ref[...].reshape(K * wp, cib)], axis=0)
    # ky-im2col: column group ky holds the block shifted down by ky rows, so the
    # contraction of the single matmul below runs over (ky, ci) jointly.
    xcat = jnp.concatenate([xb[ky * wp: ky * wp + me, :] for ky in range(K)], axis=1)
    y = jnp.dot(xcat, w_ref[...], preferred_element_type=jnp.float32)   # (me, K*cob)

    # Fold the kx taps: out[p] = sum_kx y[p + kx, kx-th cob chunk].
    total = None
    for kx in range(K):
        t = y[kx:kx + m, kx * cob:(kx + 1) * cob]
        total = t if total is None else total + t

    def finalize(acc):
        a = acc.reshape(rb, wp, cob)[:, :wo, :]
        v = a * sc_ref[...] + sh_ref[...]            # bias / folded BatchNorm
        o_ref[...] = jnp.where(v >= 0.0, v, slope * v).astype(o_ref.dtype)

    if single_ci:
        finalize(total)
    else:
        acc_ref = scratch[0]
        ci = pl.program_id(2)

        @pl.when(ci == 0)
        def _():
            acc_ref[...] = total

        @pl.when(ci > 0)
        def _():
            acc_ref[...] += total

        @pl.when(ci == pl.num_programs(2) - 1)
        def _():
            finalize(acc_ref[...])


def _pick_rb(ho, wo, wp, cib, cob, n_ci, budget, max_rb):
    """Largest row block whose estimated per-step VMEM footprint fits the budget."""
    w_bytes = K * K * cib * cob * 2
    cands = {1, 2, 4, 6, 8, 12, 16, 24, 32, 48, 64, 96, 128}
    cands.add(min(ho, max_rb))
    cands.add(max(1, min(max_rb, (ho + 1) // 2)))
    cands = sorted({c for c in cands if 1 <= c <= max_rb}, reverse=True)
    for rb in cands:
        m = rb * wp
        est = (2 * rb * wp * cib * 2            # body block (bf16, double-buffered)
               + 2 * K * wp * cib * 2           # halo block (double-buffered)
               + 2 * w_bytes                    # resident weight tile (double-buffered)
               + 2 * rb * wo * cob * 4          # output block (double-buffered)
               + (rb + K) * wp * cib * 2        # in-kernel flattened body+halo copy
               + (m + 16) * K * cib * 2         # ky-im2col matrix (bf16)
               + (m + 16) * K * cob * 4         # matmul result (f32)
               + 2 * m * cob * 4                # running total + shifted-add temp
               + (m * cob * 4 if n_ci > 1 else 0))   # accumulator scratch
        if est <= budget:
            return rb
    return 1


def _prepare_weight(w_hwio):
    """(K, K, Cin, Cout) HWIO -> (n_co, n_ci, K*cib, K*cob) bf16 tiles.

    Row index of a tile is ky*cib + ci (contraction side), column index is
    kx*cob + co (folded into the matmul N dimension)."""
    kh, kw_, cin, cout = w_hwio.shape
    assert kh == K and kw_ == K
    cib = cin if cin <= 128 else 128
    cob = cout if cout <= 128 else 128
    assert cin % cib == 0 and cout % cob == 0
    n_ci, n_co = cin // cib, cout // cob
    w = w_hwio.reshape(K, K, n_ci, cib, n_co, cob)
    w = jnp.transpose(w, (4, 2, 0, 3, 1, 5))            # (n_co, n_ci, ky, ci, kx, co)
    return w.reshape(n_co, n_ci, K * cib, K * cob).astype(jnp.bfloat16)


def conv_layer(x, w_blk, sc, sh, *, pad, out_dtype=jnp.bfloat16, rb_override=None):
    """LeakyReLU(scale * conv2d(x, w, stride=1, padding=pad) + shift), HWC layout.

    x: (H, W, Cin);  w_blk: (n_co, n_ci, K*cib, K*cob) bf16 (from _prepare_weight);
    sc/sh: (1, Cout) f32."""
    h, wdt, cin = x.shape
    n_co, n_ci, kcib, kcob = w_blk.shape
    cib, cob = kcib // K, kcob // K
    cout = n_co * cob
    assert n_ci * cib == cin

    ho = h + 2 * pad - K + 1
    wo = wdt + 2 * pad - K + 1
    wp = _round_up(wo + K - 1, 16)            # lane-friendly padded width

    budget, limit = _vmem_budget_limit()
    # Keep the parallel (hb, co) grid >= 2 whenever possible (v7x megacore).
    max_rb = ho if n_co > 1 else max(1, (ho + 1) // 2)
    rb = rb_override or _pick_rb(ho, wo, wp, cib, cob, n_ci, budget, max_rb)
    rb = min(rb, ho)
    n_hb = -(-ho // rb)
    hp = n_hb * rb + K

    xb16 = x.astype(jnp.bfloat16)
    xp = jnp.pad(xb16, ((pad, hp - h - pad), (pad, wp - wdt - pad), (0, 0)))
    # Body rows are read straight out of xp by the BlockSpec; only the K-row halo
    # below each block is gathered (a ~K/rb-sized copy instead of a full 1+K/rb one).
    halo_idx = (jnp.arange(n_hb)[:, None] + 1) * rb + jnp.arange(K)[None, :]
    halo = xp[halo_idx]                               # (n_hb, K, wp, cin)

    kernel = functools.partial(_conv_block_kernel, rb=rb, wp=wp, wo=wo, cob=cob,
                               slope=SLOPE, single_ci=(n_ci == 1))

    out = pl.pallas_call(
        kernel,
        out_shape=jax.ShapeDtypeStruct((n_hb * rb, wo, cout), out_dtype),
        grid_spec=pltpu.PrefetchScalarGridSpec(
            num_scalar_prefetch=0,
            grid=(n_hb, n_co, n_ci),
            in_specs=[
                pl.BlockSpec((rb, wp, cib), lambda hb, co, ci: (hb, 0, ci)),
                pl.BlockSpec((None, K, wp, cib), lambda hb, co, ci: (hb, 0, 0, ci)),
                pl.BlockSpec((None, None, kcib, kcob),
                             lambda hb, co, ci: (co, ci, 0, 0)),
                pl.BlockSpec((1, cob), lambda hb, co, ci: (0, co)),
                pl.BlockSpec((1, cob), lambda hb, co, ci: (0, co)),
            ],
            out_specs=pl.BlockSpec((rb, wo, cob), lambda hb, co, ci: (hb, 0, co)),
            scratch_shapes=([pltpu.VMEM((rb * wp, cob), jnp.float32)]
                            if n_ci > 1 else []),
        ),
        compiler_params=pltpu.CompilerParams(
            dimension_semantics=("parallel", "parallel", "arbitrary"),
            vmem_limit_bytes=limit),
    )(xp, halo, w_blk, sc, sh)
    return out[:ho]


def conv2d_affine_lrelu(x, w_hwio, scale, shift, *, pad, out_dtype=jnp.bfloat16,
                        rb_override=None):
    """Convenience wrapper taking raw HWIO weights (used by the self-check)."""
    w_blk = _prepare_weight(w_hwio)
    cout = w_hwio.shape[3]
    return conv_layer(x, w_blk, scale.reshape(1, cout).astype(jnp.float32),
                      shift.reshape(1, cout).astype(jnp.float32),
                      pad=pad, out_dtype=out_dtype, rb_override=rb_override)


# --------------------------------------------------------------------------- #
# Cheap data-movement glue (plain JAX)
# --------------------------------------------------------------------------- #
def avg_pool2(x):                       # nn.AvgPool2d(2): 2x2 mean, stride 2, floor
    h, w, c = x.shape
    xc = x[:(h // 2) * 2, :(w // 2) * 2, :].astype(jnp.float32)
    return xc.reshape(h // 2, 2, w // 2, 2, c).mean(axis=(1, 3)).astype(x.dtype)


def upsample2(x):                       # nn.Upsample(scale_factor=2), mode='nearest'
    return jnp.repeat(jnp.repeat(x, 2, axis=0), 2, axis=1)


def conv1_bn_lrelu(x, w, scale, shift):
    # TODO(synk): the first conv (Cin=1) stays on lax.conv per the perf review; with
    # channels on lanes a Pallas path would use 1/128 of the lane width.
    y = lax.conv_general_dilated(
        x[None], w, window_strides=(1, 1), padding=[(1, 1), (1, 1)],
        dimension_numbers=('NHWC', 'HWIO', 'NHWC'))[0]
    y = y * scale + shift
    return jnp.where(y >= 0.0, y, SLOPE * y).astype(jnp.bfloat16)


# --------------------------------------------------------------------------- #
# Parameters (deterministic, pre-blocked into matmul-ready tiles)
# --------------------------------------------------------------------------- #
def build_params(key):
    # seqIn: Conv2d(.., 10, 1, 1) [+ BatchNorm2d after conv1] + LeakyReLU + AvgPool2d(2)
    key, kw, kb = jax.random.split(key, 3)
    w1 = jax.random.normal(kw, (K, K, 1, 64), jnp.float32) * (2.0 / (1 * K * K)) ** 0.5
    b1 = jax.random.normal(kb, (64,), jnp.float32) * 0.01
    # TODO(synk): BatchNorm2d folded in inference mode with default running stats;
    # training-mode batch statistics are not computed.
    s = 1.0 / jnp.sqrt(1.0 + BN_EPS)
    conv1 = (w1, jnp.full((64,), s, jnp.float32), b1 * s)

    enc = []
    for i in range(1, 6):
        cin, cout = ENC_CH[i], ENC_CH[i + 1]
        key, kw, kb = jax.random.split(key, 3)
        w = jax.random.normal(kw, (K, K, cin, cout), jnp.float32) * (2.0 / (cin * K * K)) ** 0.5
        b = jax.random.normal(kb, (cout,), jnp.float32) * 0.01
        enc.append((_prepare_weight(w), jnp.ones((1, cout), jnp.float32),
                    b.reshape(1, cout)))

    # seqOut: [Upsample(2)] + ConvTranspose2d(.., 10, 1, 1) + LeakyReLU
    dec = []
    for i in range(7):
        cin, cout = DEC_CH[i], DEC_CH[i + 1]
        key, kw, kb = jax.random.split(key, 3)
        wt = jax.random.normal(kw, (cin, cout, K, K), jnp.float32) * (2.0 / (cin * K * K)) ** 0.5
        b = jax.random.normal(kb, (cout,), jnp.float32) * 0.01
        # ConvTranspose2d(k=10, s=1, p=1) == Conv2d with padding K-1-1=8,
        # spatially flipped kernel and swapped in/out channel axes (stride=1 only).
        w_hwio = jnp.transpose(jnp.flip(wt, axis=(2, 3)), (2, 3, 0, 1))   # (K, K, Cin, Cout)
        dec.append((_prepare_weight(w_hwio), jnp.ones((1, cout), jnp.float32),
                    b.reshape(1, cout)))
    return (conv1, tuple(enc), tuple(dec))


# --------------------------------------------------------------------------- #
# Forward pass
# --------------------------------------------------------------------------- #
def _forward_hwc(conv1, enc, dec, x):
    w0, s0, b0 = conv1
    y = avg_pool2(conv1_bn_lrelu(x, w0, s0, b0))
    for (wb, sc, sh) in enc:
        y = avg_pool2(conv_layer(y, wb, sc, sh, pad=1))
    for i, (wb, sc, sh) in enumerate(dec):
        if i < 6:
            y = upsample2(y)
        y = conv_layer(y, wb, sc, sh, pad=K - 1 - 1)
    return y


@jax.jit
def forward(params, x_nchw):                        # x: (N, 1, H, W) like PyTorch
    conv1, enc, dec = params
    outs = []
    # TODO(synk): per-sample loop; batch could be folded into the row-block grid axis.
    for n in range(x_nchw.shape[0]):
        xi = jnp.transpose(x_nchw[n], (1, 2, 0))    # CHW -> HWC
        yi = _forward_hwc(conv1, enc, dec, xi)
        outs.append(jnp.transpose(yi, (2, 0, 1)))   # HWC -> CHW
    return jnp.stack(outs, axis=0).astype(jnp.float32)


# --------------------------------------------------------------------------- #
# Small correctness self-check of the Pallas conv against lax.conv
# --------------------------------------------------------------------------- #
def _conv_ref(x, w, scale, shift, pad):
    xb = x.astype(jnp.bfloat16).astype(jnp.float32)
    wb = w.astype(jnp.bfloat16).astype(jnp.float32)
    y = lax.conv_general_dilated(
        xb[None], wb, (1, 1), [(pad, pad), (pad, pad)],
        dimension_numbers=('NHWC', 'HWIO', 'NHWC'),
        precision=lax.Precision.HIGHEST)[0]
    y = y * scale + shift
    return jnp.where(y >= 0.0, y, SLOPE * y)


def _self_check(key):
    def run(x, w, pad, rb, name):
        cout = w.shape[3]
        sc = jnp.ones((cout,), jnp.float32)
        sh = jnp.zeros((cout,), jnp.float32)
        out = conv2d_affine_lrelu(x, w, sc, sh, pad=pad, out_dtype=jnp.float32,
                                  rb_override=rb)
        ref = _conv_ref(x, w, sc.reshape(1, cout), sh.reshape(1, cout), pad)
        err = float(jnp.max(jnp.abs(out - ref)))
        tol = 2e-2 * (1.0 + float(jnp.max(jnp.abs(ref))))
        assert err < tol, (name, err, tol)

    ks = jax.random.split(key, 6)
    # (a) multiple input-channel blocks (accumulation) and output-channel blocks.
    xa = jax.random.normal(ks[0], (24, 24, 256), jnp.float32)
    wa = jax.random.normal(ks[1], (K, K, 256, 256), jnp.float32) * 0.01
    run(xa, wa, pad=1, rb=8, name="multi-block")
    # (b) shallow-channel path (cib=64, cob=32) with decoder padding (dec6-like).
    xb = jax.random.normal(ks[2], (16, 16, 64), jnp.float32)
    wb = jax.random.normal(ks[3], (K, K, 64, 32), jnp.float32) * 0.02
    run(xb, wb, pad=8, rb=8, name="shallow")
    # (c) cout==1 final ConvTranspose path.
    xc = jax.random.normal(ks[4], (20, 20, 32), jnp.float32)
    wc = jax.random.normal(ks[5], (K, K, 32, 1), jnp.float32) * 0.03
    run(xc, wc, pad=8, rb=8, name="cout1")


if __name__ == "__main__":
    key = jax.random.PRNGKey(0)
    kp, kx, kt = jax.random.split(key, 3)

    _self_check(kt)

    params = build_params(kp)
    # NOTE: the six Conv2d(k=10, p=1) + AvgPool2d(2) encoder stages require an input
    # of at least 505x505; 512 is the smallest convenient size and, like the PyTorch
    # module, round-trips to a 512x512 single-channel output.
    x = jax.random.normal(kx, (1, 1, 512, 512), jnp.float32)

    y = jax.block_until_ready(forward(params, x))
    assert y.shape == (1, 1, 512, 512), y.shape
    assert bool(jnp.all(jnp.isfinite(y)))
    print("KERNEL_OK")
</pallas_src>

<mosaic_0001>
module attributes {stable_mosaic.version = 11 : i64} {
  func.func @_conv_block_kernel(%arg0: i32, %arg1: i32, %arg2: i32, %arg3: memref<8x32x128xbf16, #tpu.memory_space<vmem>>, %arg4: memref<1x10x32x128xbf16, #tpu.memory_space<vmem>>, %arg5: memref<1x1x1280x1280xbf16, #tpu.memory_space<vmem>>, %arg6: memref<1x128xf32, #tpu.memory_space<vmem>>, %arg7: memref<1x128xf32, #tpu.memory_space<vmem>>, %arg8: memref<8x17x128xf32, #tpu.memory_space<vmem>>, %arg9: memref<256x128xf32, #tpu.memory_space<vmem>>) attributes {dimension_semantics = [#tpu.dimension_semantics<parallel>, #tpu.dimension_semantics<parallel>, #tpu.dimension_semantics<arbitrary>], iteration_bounds = array<i64: 3, 2, 2>, scalar_prefetch = 0 : i64, scratch_operands = 1 : i64, tpu.core_type = #tpu.core_type<tc>, window_params = [{transform_indices = @transform_0, window_bounds = array<i64: 8, 32, 128>}, {transform_indices = @transform_1, window_bounds = array<i64: 1, 10, 32, 128>}, {transform_indices = @transform_2, window_bounds = array<i64: 1, 1, 1280, 1280>}, {transform_indices = @transform_3, window_bounds = array<i64: 1, 128>}, {transform_indices = @transform_4, window_bounds = array<i64: 1, 128>}, {transform_indices = @transform_5, window_bounds = array<i64: 8, 17, 128>}]} {
    %c0 = arith.constant 0 : index
    %c0_0 = arith.constant 0 : index
    %c0_1 = arith.constant 0 : index
    %0 = vector.load %arg3[%c0, %c0_0, %c0_1] : memref<8x32x128xbf16, #tpu.memory_space<vmem>>, vector<8x32x128xbf16>
    %1 = vector.shape_cast %0 : vector<8x32x128xbf16> to vector<256x128xbf16>
    %c0_2 = arith.constant 0 : index
    %c0_3 = arith.constant 0 : index
    %c0_4 = arith.constant 0 : index
    %c0_5 = arith.constant 0 : index
    %2 = vector.load %arg4[%c0_2, %c0_3, %c0_4, %c0_5] : memref<1x10x32x128xbf16, #tpu.memory_space<vmem>>, vector<1x10x32x128xbf16>
    %3 = vector.shape_cast %2 : vector<1x10x32x128xbf16> to vector<10x32x128xbf16>
    %4 = vector.shape_cast %3 : vector<10x32x128xbf16> to vector<320x128xbf16>
    %5 = tpu.concatenate %1, %4 in 0 : vector<256x128xbf16>, vector<320x128xbf16> -> vector<576x128xbf16>
    %6 = vector.extract_strided_slice %5 {offsets = [0, 0], sizes = [272, 128], strides = [1, 1]} : vector<576x128xbf16> to vector<272x128xbf16>
    %7 = vector.extract_strided_slice %5 {offsets = [32, 0], sizes = [272, 128], strides = [1, 1]} : vector<576x128xbf16> to vector<272x128xbf16>
    %8 = vector.extract_strided_slice %5 {offsets = [64, 0], sizes = [272, 128], strides = [1, 1]} : vector<576x128xbf16> to vector<272x128xbf16>
    %9 = vector.extract_strided_slice %5 {offsets = [96, 0], sizes = [272, 128], strides = [1, 1]} : vector<576x128xbf16> to vector<272x128xbf16>
    %10 = vector.extract_strided_slice %5 {offsets = [128, 0], sizes = [272, 128], strides = [1, 1]} : vector<576x128xbf16> to vector<272x128xbf16>
    %11 = vector.extract_strided_slice %5 {offsets = [160, 0], sizes = [272, 128], strides = [1, 1]} : vector<576x128xbf16> to vector<272x128xbf16>
    %12 = vector.extract_strided_slice %5 {offsets = [192, 0], sizes = [272, 128], strides = [1, 1]} : vector<576x128xbf16> to vector<272x128xbf16>
    %13 = vector.extract_strided_slice %5 {offsets = [224, 0], sizes = [272, 128], strides = [1, 1]} : vector<576x128xbf16> to vector<272x128xbf16>
    %14 = vector.extract_strided_slice %5 {offsets = [256, 0], sizes = [272, 128], strides = [1, 1]} : vector<576x128xbf16> to vector<272x128xbf16>
    %15 = vector.extract_strided_slice %5 {offsets = [288, 0], sizes = [272, 128], strides = [1, 1]} : vector<576x128xbf16> to vector<272x128xbf16>
    %16 = tpu.concatenate %6, %7, %8, %9, %10, %11, %12, %13, %14, %15 in 1 : vector<272x128xbf16>, vector<272x128xbf16>, vector<272x128xbf16>, vector<272x128xbf16>, vector<272x128xbf16>, vector<272x128xbf16>, vector<272x128xbf16>, vector<272x128xbf16>, vector<272x128xbf16>, vector<272x128xbf16> -> vector<272x1280xbf16>
    %c0_6 = arith.constant 0 : index
    %c0_7 = arith.constant 0 : index
    %c0_8 = arith.constant 0 : index
    %c0_9 = arith.constant 0 : index
    %17 = vector.load %arg5[%c0_6, %c0_7, %c0_8, %c0_9] : memref<1x1x1280x1280xbf16, #tpu.memory_space<vmem>>, vector<1x1x1280x1280xbf16>
    %18 = vector.shape_cast %17 : vector<1x1x1280x1280xbf16> to vector<1280x1280xbf16>
    %cst = arith.constant dense<0.000000e+00> : vector<272x1280xf32>
    %19 = tpu.matmul %16, %18, %cst {dimension_numbers = #tpu.dot_dimension_numbers<[1], [0], [0], [1], [0, 0, 1, 1], [], []>} : vector<272x1280xbf16>, vector<1280x1280xbf16>, vector<272x1280xf32> -> vector<272x1280xf32>
    %20 = vector.extract_strided_slice %19 {offsets = [0, 0], sizes = [256, 128], strides = [1, 1]} : vector<272x1280xf32> to vector<256x128xf32>
    %21 = vector.extract_strided_slice %19 {offsets = [1, 128], sizes = [256, 128], strides = [1, 1]} : vector<272x1280xf32> to vector<256x128xf32>
    %22 = arith.addf %20, %21 : vector<256x128xf32>
    %23 = vector.extract_strided_slice %19 {offsets = [2, 256], sizes = [256, 128], strides = [1, 1]} : vector<272x1280xf32> to vector<256x128xf32>
    %24 = arith.addf %22, %23 : vector<256x128xf32>
    %25 = vector.extract_strided_slice %19 {offsets = [3, 384], sizes = [256, 128], strides = [1, 1]} : vector<272x1280xf32> to vector<256x128xf32>
    %26 = arith.addf %24, %25 : vector<256x128xf32>
    %27 = vector.extract_strided_slice %19 {offsets = [4, 512], sizes = [256, 128], strides = [1, 1]} : vector<272x1280xf32> to vector<256x128xf32>
    %28 = arith.addf %26, %27 : vector<256x128xf32>
    %29 = vector.extract_strided_slice %19 {offsets = [5, 640], sizes = [256, 128], strides = [1, 1]} : vector<272x1280xf32> to vector<256x128xf32>
    %30 = arith.addf %28, %29 : vector<256x128xf32>
    %31 = vector.extract_strided_slice %19 {offsets = [6, 768], sizes = [256, 128], strides = [1, 1]} : vector<272x1280xf32> to vector<256x128xf32>
    %32 = arith.addf %30, %31 : vector<256x128xf32>
    %33 = vector.extract_strided_slice %19 {offsets = [7, 896], sizes = [256, 128], strides = [1, 1]} : vector<272x1280xf32> to vector<256x128xf32>
    %34 = arith.addf %32, %33 : vector<256x128xf32>
    %35 = vector.extract_strided_slice %19 {offsets = [8, 1024], sizes = [256, 128], strides = [1, 1]} : vector<272x1280xf32> to vector<256x128xf32>
    %36 = arith.addf %34, %35 : vector<256x128xf32>
    %37 = vector.extract_strided_slice %19 {offsets = [9, 1152], sizes = [256, 128], strides = [1, 1]} : vector<272x1280xf32> to vector<256x128xf32>
    %38 = arith.addf %36, %37 : vector<256x128xf32>
    %c0_i32 = arith.constant 0 : i32
    %39 = arith.cmpi eq, %arg2, %c0_i32 : i32
    %40 = arith.extui %39 : i1 to i32
    %c0_i32_10 = arith.constant 0 : i32
    %41 = arith.cmpi ne, %40, %c0_i32_10 : i32
    scf.if %41 {
      %c0_14 = arith.constant 0 : index
      %c0_15 = arith.constant 0 : index
      %48 = vector.load %arg9[%c0_14, %c0_15] : memref<256x128xf32, #tpu.memory_space<vmem>>, vector<256x128xf32>
      tpu.vector_store %arg9[%c0_14, %c0_15], %38 {strides = array<i32>} : memref<256x128xf32, #tpu.memory_space<vmem>>, vector<256x128xf32>,
    } else {
    }
    %c0_i32_11 = arith.constant 0 : i32
    %42 = arith.cmpi sgt, %arg2, %c0_i32_11 : i32
    %43 = arith.extui %42 : i1 to i32
    %c0_i32_12 = arith.constant 0 : i32
    %44 = arith.cmpi ne, %43, %c0_i32_12 : i32
    scf.if %44 {
      %c0_14 = arith.constant 0 : index
      %c0_15 = arith.constant 0 : index
      %48 = vector.load %arg9[%c0_14, %c0_15] : memref<256x128xf32, #tpu.memory_space<vmem>>, vector<256x128xf32>
      %49 = arith.addf %48, %38 : vector<256x128xf32>
      %c0_16 = arith.constant 0 : index
      %c0_17 = arith.constant 0 : index
      %50 = vector.load %arg9[%c0_16, %c0_17] : memref<256x128xf32, #tpu.memory_space<vmem>>, vector<256x128xf32>
      tpu.vector_store %arg9[%c0_16, %c0_17], %49 {strides = array<i32>} : memref<256x128xf32, #tpu.memory_space<vmem>>, vector<256x128xf32>,
    } else {
    }
    %c1_i32 = arith.constant 1 : i32
    %45 = arith.cmpi eq, %arg2, %c1_i32 : i32
    %46 = arith.extui %45 : i1 to i32
    %c0_i32_13 = arith.constant 0 : i32
    %47 = arith.cmpi ne, %46, %c0_i32_13 : i32
    scf.if %47 {
      %c0_14 = arith.constant 0 : index
      %c0_15 = arith.constant 0 : index
      %48 = vector.load %arg9[%c0_14, %c0_15] : memref<256x128xf32, #tpu.memory_space<vmem>>, vector<256x128xf32>
      %49 = vector.shape_cast %48 : vector<256x128xf32> to vector<8x32x128xf32>
      %50 = vector.extract_strided_slice %49 {offsets = [0, 0, 0], sizes = [8, 17, 128], strides = [1, 1, 1]} : vector<8x32x128xf32> to vector<8x17x128xf32>
      %c0_16 = arith.constant 0 : index
      %c0_17 = arith.constant 0 : index
      %51 = vector.load %arg6[%c0_16, %c0_17] : memref<1x128xf32, #tpu.memory_space<vmem>>, vector<1x128xf32>
      %52 = vector.shape_cast %51 : vector<1x128xf32> to vector<1x1x128xf32>
      %53 = vector.broadcast %52 : vector<1x1x128xf32> to vector<8x17x128xf32>
      %54 = arith.mulf %50, %53 : vector<8x17x128xf32>
      %c0_18 = arith.constant 0 : index
      %c0_19 = arith.constant 0 : index
      %55 = vector.load %arg7[%c0_18, %c0_19] : memref<1x128xf32, #tpu.memory_space<vmem>>, vector<1x128xf32>
      %56 = vector.shape_cast %55 : vector<1x128xf32> to vector<1x1x128xf32>
      %57 = vector.broadcast %56 : vector<1x1x128xf32> to vector<8x17x128xf32>
      %58 = arith.addf %54, %57 : vector<8x17x128xf32>
      %cst_20 = arith.constant 0.000000e+00 : f32
      %59 = vector.broadcast %cst_20 : f32 to vector<8x17x128xf32>
      %60 = arith.cmpf oge, %58, %59 : vector<8x17x128xf32>
      %cst_21 = arith.constant 2.000000e-02 : f32
      %61 = vector.broadcast %cst_21 : f32 to vector<8x17x128xf32>
      %62 = arith.mulf %61, %58 : vector<8x17x128xf32>
      %63 = arith.select %60, %58, %62 : vector<8x17x128xi1>, vector<8x17x128xf32>
      %c0_22 = arith.constant 0 : index
      %c0_23 = arith.constant 0 : index
      %c0_24 = arith.constant 0 : index
      %64 = vector.load %arg8[%c0_22, %c0_23, %c0_24] : memref<8x17x128xf32, #tpu.memory_space<vmem>>, vector<8x17x128xf32>
      tpu.vector_store %arg8[%c0_22, %c0_23, %c0_24], %63 {strides = array<i32>} : memref<8x17x128xf32, #tpu.memory_space<vmem>>, vector<8x17x128xf32>,
    } else {
    }
    return
  }
  func.func @transform_0(%arg0: i32, %arg1: i32, %arg2: i32) -> (i32, i32, i32) {
    %c0_i32 = arith.constant 0 : i32
    %c0_i32_0 = arith.constant 0 : i32
    return %arg0, %c0_i32, %arg2 : i32, i32, i32
  }
  func.func @transform_1(%arg0: i32, %arg1: i32, %arg2: i32) -> (i32, i32, i32, i32) {
    %c0_i32 = arith.constant 0 : i32
    %c0_i32_0 = arith.constant 0 : i32
    %c0_i32_1 = arith.constant 0 : i32
    return %arg0, %c0_i32, %c0_i32_0, %arg2 : i32, i32, i32, i32
  }
  func.func @transform_2(%arg0: i32, %arg1: i32, %arg2: i32) -> (i32, i32, i32, i32) {
    %c0_i32 = arith.constant 0 : i32
    %c0_i32_0 = arith.constant 0 : i32
    %c0_i32_1 = arith.constant 0 : i32
    return %arg1, %arg2, %c0_i32, %c0_i32_0 : i32, i32, i32, i32
  }
  func.func @transform_3(%arg0: i32, %arg1: i32, %arg2: i32) -> (i32, i32) {
    %c0_i32 = arith.constant 0 : i32
    %c0_i32_0 = arith.constant 0 : i32
    return %c0_i32, %arg1 : i32, i32
  }
  func.func @transform_4(%arg0: i32, %arg1: i32, %arg2: i32) -> (i32, i32) {
    %c0_i32 = arith.constant 0 : i32
    %c0_i32_0 = arith.constant 0 : i32
    return %c0_i32, %arg1 : i32, i32
  }
  func.func @transform_5(%arg0: i32, %arg1: i32, %arg2: i32) -> (i32, i32, i32) {
    %c0_i32 = arith.constant 0 : i32
    %c0_i32_0 = arith.constant 0 : i32
    return %arg0, %c0_i32, %arg1 : i32, i32, i32
  }
}

</mosaic_0001>

<llo_original>
// kernel: tpu_custom_call.1
$region0: #{tpu_custom_call.1}
  #allocation0 [shape = 'u32[]', space=smem, size = 0x4, offset = 0x4, fixed_abs, tag = 'smem constant byte address 0x4 - core index']
  #allocation1 [shape = 'u32[144,128]{1,0:T(1,128)}', space=vmem, size = 0x12000, scoped, tag = 'internal scratch']
  #allocation2 [shape = 'f32[256,128]{1,0:T(8,128)}', space=vmem, size = 0x20000, scoped, tag = 'scratch operand']
  %s0 = inlined_call_operand.hbm [shape: bf16[34,32,256], index: 0, kind: input, shape index: {}]
  %s1 = inlined_call_operand.hbm [shape: bf16[3,10,32,256], index: 1, kind: input, shape index: {}]
  %s2 = inlined_call_operand.hbm [shape: bf16[2,2,1280,1280], index: 2, kind: input, shape index: {}]
  %s3 = inlined_call_operand.hbm [shape: f32[1,256], index: 3, kind: input, shape index: {}]
  %s4 = inlined_call_operand.hbm [shape: f32[1,256], index: 4, kind: input, shape index: {}]
  %s5 = inlined_call_operand.vmem [shape: f32[24,17,256], index: 5, kind: output, shape index: {}]
  %s6 = sld [smem:[#allocation0]]
  $region119: #{tpu_custom_call.1} parent=0
    _
  %s8 = ssub.s32 1, %s6
  %s9 = scalar_select 0, %s8, %s6
  $region1: #{tpu_custom_call.1} parent=0
    #allocation3 [shape = 'u8[131072]{0}', space=vmem, size = 0x20000, scoped, tag = 'input window, operand 0']
    #allocation4 [shape = 's32[2]{0}', space=sflag, size = 0x8, scoped, tag = 'scoped memory for tpu_custom_call.1']
    #allocation5 [shape = 'u8[163840]{0}', space=vmem, size = 0x28000, scoped, tag = 'input window, operand 1']
    #allocation6 [shape = 's32[2]{0}', space=sflag, size = 0x8, scoped, tag = 'scoped memory for tpu_custom_call.1']
    #allocation7 [shape = 'u8[6553600]{0}', space=vmem, size = 0x640000, scoped, tag = 'input window, operand 2']
    #allocation8 [shape = 'u8[1024]{0}', space=vmem, size = 0x400, scoped, tag = 'input window, operand 3']
    #allocation9 [shape = 's32[2]{0}', space=sflag, size = 0x8, scoped, tag = 'scoped memory for tpu_custom_call.1']
    #allocation10 [shape = 'u8[1024]{0}', space=vmem, size = 0x400, scoped, tag = 'input window, operand 4']
    #allocation11 [shape = 'u8[196608]{0}', space=vmem, size = 0x30000, scoped, tag = 'output window, operand 0']
    %10 = vsyncpa [#allocation4], 0
    %s11 = scalar_lea.sflag [#allocation4], 1
    %12 = vsyncpa %s11, 0
    %13 = vsyncpa [#allocation6], 0
    %s14 = scalar_lea.sflag [#allocation6], 1
    %15 = vsyncpa %s14, 0
    %16 = vsyncpa [#allocation9], 0
    %s17 = scalar_lea.sflag [#allocation9], 1
    %18 = vsyncpa %s17, 0
    loop: start=0, step=1, limit=14
    $region2: #{tpu_custom_call.1} parent=1 // loop_pre_header
      _
    $region3: #{tpu_custom_call.1} parent=1 // loop_header
      %s20 = sphi 0, %s24
      %p21 = scmp.ge.s32.totalorder %s20, 14
      %s27 = sphi 0, %s46
      %s28 = sphi 0, %s42
      %s29 = sphi 0, %s38
      %s30 = sphi 0, %s27
      %s31 = sphi 0, %s28
      %s32 = sphi 0, %s29
      %s33 = sphi 0, %s30
      %s34 = sphi 0, %s31
      %s35 = sphi 0, %s32
      %s51 = sphi 0, %s53
      %s54 = sphi 0, %s51
      %s55 = sphi 0, %s54
      %s71 = sphi 0, %s55
      %s79 = sphi 0, %s81
      %s82 = sphi 0, %s79
      %s83 = sphi 0, %s82
      %s99 = sphi 0, %s83
      %s107 = sphi 0, %s109
      %s110 = sphi 0, %s107
      %s111 = sphi 0, %s110
      %s127 = sphi 0, %s111
      %s133 = sphi 0, %s135
      %s136 = sphi 0, %s133
      %s137 = sphi 0, %s136
      %s153 = sphi 0, %s137
      %s159 = sphi 0, %s161
      %s162 = sphi 0, %s159
      %s163 = sphi 0, %s162
      %s179 = sphi 0, %s163
      %s187 = sphi 0, %s189
      %s190 = sphi 0, %s187
      %s191 = sphi 0, %s190
      %s207 = sphi 0, %s191
    $region4: #{tpu_custom_call.1} parent=1 // loop_header_branch
      %23 = sbr.rel (%p21) target = $region8
    $region5: #{tpu_custom_call.1} parent=1 // loop_body
      %s25 = ssub.s32 %s20, 1
      %s26 = ssub.s32 %s20, 2
      %s36 = sadd.s32 1, %s29
      %p37 = scmp.ge.s32.totalorder %s36, 2
      %s38 = scalar_select %p37, 0, %s36
      %s39 = sadd.s32 1, %s28
      %s40 = scalar_select %p37, %s39, %s28
      %p41 = scmp.ge.s32.totalorder %s40, 2
      %s42 = scalar_select %p41, 0, %s40
      %s43 = sadd.s32 1, %s27
      %s44 = scalar_select %p41, %s43, %s27
      %p45 = scmp.ge.s32.totalorder %s44, 3
      %s46 = scalar_select %p45, 0, %s44
      %s47 = ssub.s32 %s27, %s46
      %s48 = ssub.s32 %s29, %s38
      %s49 = sor.u32 %s47, %s48
      %p50 = scmp.eq.s32.totalorder %s49, 0
      %s52 = sadd.s32 %s51, 1
      %s53 = scalar_select %p50, %s51, %s52
      %p56 = pneg %p50
      %p57 = scmp.eq.s32.totalorder %s20, 11
      %p58 = por %p56, %p57
      %p59 = scmp.ne.s32.totalorder %s51, %s54
      %p60 = scmp.eq.s32.totalorder %s20, 0
      %p61 = por %p59, %p60
      %p62 = scmp.ne.s32.totalorder %s51, %s54
      %p63 = scmp.eq.s32.totalorder %s25, 11
      %p64 = por %p62, %p63
      %p65 = scmp.ne.s32.totalorder %s54, %s55
      %p66 = scmp.eq.s32.totalorder %s25, 0
      %p67 = por %p65, %p66
      %p68 = scmp.ne.s32.totalorder %s54, %s55
      %p69 = scmp.eq.s32.totalorder %s26, 11
      %p70 = por %p68, %p69
      %p72 = scmp.ne.s32.totalorder %s55, %s71
      %p73 = scmp.eq.s32.totalorder %s26, 0
      %p74 = por %p72, %p73
      %s75 = ssub.s32 %s27, %s46
      %s76 = ssub.s32 %s29, %s38
      %s77 = sor.u32 %s75, %s76
      %p78 = scmp.eq.s32.totalorder %s77, 0
      %s80 = sadd.s32 %s79, 1
      %s81 = scalar_select %p78, %s79, %s80
      %p84 = pneg %p78
      %p85 = scmp.eq.s32.totalorder %s20, 11
      %p86 = por %p84, %p85
      %p87 = scmp.ne.s32.totalorder %s79, %s82
      %p88 = scmp.eq.s32.totalorder %s20, 0
      %p89 = por %p87, %p88
      %p90 = scmp.ne.s32.totalorder %s79, %s82
      %p91 = scmp.eq.s32.totalorder %s25, 11
      %p92 = por %p90, %p91
      %p93 = scmp.ne.s32.totalorder %s82, %s83
      %p94 = scmp.eq.s32.totalorder %s25, 0
      %p95 = por %p93, %p94
      %p96 = scmp.ne.s32.totalorder %s82, %s83
      %p97 = scmp.eq.s32.totalorder %s26, 11
      %p98 = por %p96, %p97
      %p100 = scmp.ne.s32.totalorder %s83, %s99
      %p101 = scmp.eq.s32.totalorder %s26, 0
      %p102 = por %p100, %p101
      %s103 = ssub.s32 %s28, %s42
      %s104 = ssub.s32 %s29, %s38
      %s105 = sor.u32 %s103, %s104
      %p106 = scmp.eq.s32.totalorder %s105, 0
      %s108 = sadd.s32 %s107, 1
      %s109 = scalar_select %p106, %s107, %s108
      %p112 = pneg %p106
      %p113 = scmp.eq.s32.totalorder %s20, 11
      %p114 = por %p112, %p113
      %p115 = scmp.ne.s32.totalorder %s107, %s110
      %p116 = scmp.eq.s32.totalorder %s20, 0
      %p117 = por %p115, %p116
      %p118 = scmp.ne.s32.totalorder %s107, %s110
      %p119 = scmp.eq.s32.totalorder %s25, 11
      %p120 = por %p118, %p119
      %p121 = scmp.ne.s32.totalorder %s110, %s111
      %p122 = scmp.eq.s32.totalorder %s25, 0
      %p123 = por %p121, %p122
      %p124 = scmp.ne.s32.totalorder %s110, %s111
      %p125 = scmp.eq.s32.totalorder %s26, 11
      %p126 = por %p124, %p125
      %p128 = scmp.ne.s32.totalorder %s111, %s127
      %p129 = scmp.eq.s32.totalorder %s26, 0
      %p130 = por %p128, %p129
      %s131 = ssub.s32 %s28, %s42
      %p132 = scmp.eq.s32.totalorder %s131, 0
      %s134 = sadd.s32 %s133, 1
      %s135 = scalar_select %p132, %s133, %s134
      %p138 = pneg %p132
      %p139 = scmp.eq.s32.totalorder %s20, 11
      %p140 = por %p138, %p139
      %p141 = scmp.ne.s32.totalorder %s133, %s136
      %p142 = scmp.eq.s32.totalorder %s20, 0
      %p143 = por %p141, %p142
      %p144 = scmp.ne.s32.totalorder %s133, %s136
      %p145 = scmp.eq.s32.totalorder %s25, 11
      %p146 = por %p144, %p145
      %p147 = scmp.ne.s32.totalorder %s136, %s137
      %p148 = scmp.eq.s32.totalorder %s25, 0
      %p149 = por %p147, %p148
      %p150 = scmp.ne.s32.totalorder %s136, %s137
      %p151 = scmp.eq.s32.totalorder %s26, 11
      %p152 = por %p150, %p151
      %p154 = scmp.ne.s32.totalorder %s137, %s153
      %p155 = scmp.eq.s32.totalorder %s26, 0
      %p156 = por %p154, %p155
      %s157 = ssub.s32 %s28, %s42
      %p158 = scmp.eq.s32.totalorder %s157, 0
      %s160 = sadd.s32 %s159, 1
      %s161 = scalar_select %p158, %s159, %s160
      %p164 = pneg %p158
      %p165 = scmp.eq.s32.totalorder %s20, 11
      %p166 = por %p164, %p165
      %p167 = scmp.ne.s32.totalorder %s159, %s162
      %p168 = scmp.eq.s32.totalorder %s20, 0
      %p169 = por %p167, %p168
      %p170 = scmp.ne.s32.totalorder %s159, %s162
      %p171 = scmp.eq.s32.totalorder %s25, 11
      %p172 = por %p170, %p171
      %p173 = scmp.ne.s32.totalorder %s162, %s163
      %p174 = scmp.eq.s32.totalorder %s25, 0
      %p175 = por %p173, %p174
      %p176 = scmp.ne.s32.totalorder %s162, %s163
      %p177 = scmp.eq.s32.totalorder %s26, 11
      %p178 = por %p176, %p177
      %p180 = scmp.ne.s32.totalorder %s163, %s179
      %p181 = scmp.eq.s32.totalorder %s26, 0
      %p182 = por %p180, %p181
      %s183 = ssub.s32 %s27, %s46
      %s184 = ssub.s32 %s28, %s42
      %s185 = sor.u32 %s183, %s184
      %p186 = scmp.eq.s32.totalorder %s185, 0
      %s188 = sadd.s32 %s187, 1
      %s189 = scalar_select %p186, %s187, %s188
      %p192 = pneg %p186
      %p193 = scmp.eq.s32.totalorder %s20, 11
      %p194 = por %p192, %p193
      %p195 = scmp.ne.s32.totalorder %s187, %s190
      %p196 = scmp.eq.s32.totalorder %s20, 0
      %p197 = por %p195, %p196
      %p198 = scmp.ne.s32.totalorder %s187, %s190
      %p199 = scmp.eq.s32.totalorder %s25, 11
      %p200 = por %p198, %p199
      %p201 = scmp.ne.s32.totalorder %s190, %s191
      %p202 = scmp.eq.s32.totalorder %s25, 0
      %p203 = por %p201, %p202
      %p204 = scmp.ne.s32.totalorder %s190, %s191
      %p205 = scmp.eq.s32.totalorder %s26, 11
      %p206 = por %p204, %p205
      %p208 = scmp.ne.s32.totalorder %s191, %s207
      %p209 = scmp.eq.s32.totalorder %s26, 0
      %p210 = por %p208, %p209
      %p211 = scmp.le.s32.totalorder 1, %s20
      %p212 = scmp.lt.s32.totalorder %s20, 13
      %p213 = pnand %p211, %p212
      %p214 = pneg %p213
      // Predicated region
      $region9: #{tpu_custom_call.1} parent=5 // pred_check
        _
      $region10: #{tpu_custom_call.1} parent=5 // pred_check_branch
        %216 = sbr.rel (%p213) target = $region12
      $region11: #{tpu_custom_call.1} parent=5 // pred_region
        %s217 = ssub.s32 %s20, 1
      $region12: #{tpu_custom_call.1} parent=5 // pred_fallthru
        _
      %p218 = scmp.lt.s32.totalorder %s20, 12
      // Predicated region
      $region13: #{tpu_custom_call.1} parent=5 // pred_check
        %p219 = pneg %p218
      $region14: #{tpu_custom_call.1} parent=5 // pred_check_branch
        %221 = sbr.rel (%p219) target = $region16
      $region15: #{tpu_custom_call.1} parent=5 // pred_region
        // Predicated region
        $region17: #{tpu_custom_call.1} parent=15 // pred_check
          %p222 = pneg %p61
        $region18: #{tpu_custom_call.1} parent=15 // pred_check_branch
          %224 = sbr.rel (%p222) target = $region20
        $region19: #{tpu_custom_call.1} parent=15 // pred_region
          %s225 = sand.u32 %s51, 1
          %s226 = scalar_lea.sflag [#allocation4], %s225
          %s227 = sand.u32 %s51, 1
          %s228 = smul.addr %s227, 128
          %s229 = scalar_lea.vmem [#allocation3], %s228
          %s230 = smul.u32 8, %s27
          %s231 = ssub.s32 34, %s230
          %p232 = scmp.lt.s32.totalorder %s231, 8
          %s233 = scalar_select %p232, %s231, 8
          %s234 = smul.u32 64, %s233
          %s235 = smul.u32 %s234, 4
          %s237 = ssub.s32 2048, %s235
          %238 = vsyncadd %s226, %s237
          %p239 = scmp.ne.s32.totalorder 0, %s235
          %s240 = smul.addr %s230, 8
          %s241 = sadd.s32 %s29, %s240
          %s242 = smul.addr %s241, 64
          %s243 = scalar_lea.hbm %s0, %s242
          %s244 = smul.u32 %s233, 4
          %s245 = smul.u32 4, %s244
          %s246 = sshll.u32 %s229, 4
          %s247 = int_to_ptr.vmem [resolvable:$true] %s246
          %s248 = sshll.u32 %s245, 4
          %252 = dma.hbm_to_vmem [thread:$0]  (%p239), %s243, %s248, %s247, %s226, 128, 64, 4
        $region20: #{tpu_custom_call.1} parent=15 // pred_fallthru
          _
        // Predicated region
        $region21: #{tpu_custom_call.1} parent=15 // pred_check
          %p253 = pneg %p89
        $region22: #{tpu_custom_call.1} parent=15 // pred_check_branch
          %255 = sbr.rel (%p253) target = $region24
        $region23: #{tpu_custom_call.1} parent=15 // pred_region
          %s256 = sand.u32 %s20, 1
          %s257 = scalar_lea.sflag [#allocation6], %s256
          %s258 = sand.u32 %s79, 1
          %s259 = smul.addr %s258, 160
          %s260 = scalar_lea.vmem [#allocation5], %s259
          %s262 = ssub.s32 2560, 2560
          %263 = vsyncadd %s257, %s262
          %s264 = smul.addr %s27, 80
          %s265 = sadd.s32 %s29, %s264
          %s266 = smul.addr %s265, 64
          %s267 = scalar_lea.hbm %s1, %s266
          %s268 = sshll.u32 %s260, 4
          %s269 = int_to_ptr.vmem [resolvable:$true] %s268
          %274 = dma.hbm_to_vmem [thread:$0]  %s267, 2560, %s269, %s257, 128, 64, 4
        $region24: #{tpu_custom_call.1} parent=15 // pred_fallthru
          _
        // Predicated region
        $region25: #{tpu_custom_call.1} parent=15 // pred_check
          %p275 = pneg %p117
        $region26: #{tpu_custom_call.1} parent=15 // pred_check_branch
          %277 = sbr.rel (%p275) target = $region28
        $region27: #{tpu_custom_call.1} parent=15 // pred_region
          %s278 = sand.u32 %s20, 1
          %s279 = scalar_lea.sflag [#allocation6], %s278
          %s280 = sand.u32 %s107, 1
          %s281 = smul.addr %s280, 6400
          %s282 = scalar_lea.vmem [#allocation7], %s281
          %s284 = ssub.s32 102400, 102400
          %285 = vsyncadd %s279, %s284
          %s286 = smul.addr %s29, 1600
          %s287 = smul.addr %s28, 3200
          %s288 = sadd.s32 %s286, %s287
          %s289 = smul.addr %s288, 64
          %s290 = scalar_lea.hbm %s2, %s289
          %s291 = sshll.u32 %s282, 4
          %s292 = int_to_ptr.vmem [resolvable:$true] %s291
          %297 = dma.hbm_to_vmem [thread:$0]  %s290, 102400, %s292, %s279, 640, 640, 40
        $region28: #{tpu_custom_call.1} parent=15 // pred_fallthru
          _
        // Predicated region
        $region29: #{tpu_custom_call.1} parent=15 // pred_check
          %p298 = pneg %p143
        $region30: #{tpu_custom_call.1} parent=15 // pred_check_branch
          %300 = sbr.rel (%p298) target = $region32
        $region31: #{tpu_custom_call.1} parent=15 // pred_region
          %s301 = sand.u32 %s20, 1
          %s302 = scalar_lea.sflag [#allocation9], %s301
          %s303 = sand.u32 %s133, 1
          %s304 = scalar_lea.vmem [#allocation8], %s303
          %s306 = ssub.s32 16, 16
          %307 = vsyncadd %s302, %s306
          %s308 = smul.addr %s28, 16
          %s309 = scalar_lea.hbm %s3, %s308
          %s311 = sshll.u32 %s304, 4
          %s312 = int_to_ptr.vmem [resolvable:$true] %s311
          %314 = dma.hbm_to_vmem [thread:$0]  %s309, 16, %s312, %s302
        $region32: #{tpu_custom_call.1} parent=15 // pred_fallthru
          _
        // Predicated region
        $region33: #{tpu_custom_call.1} parent=15 // pred_check
          %p315 = pneg %p169
        $region34: #{tpu_custom_call.1} parent=15 // pred_check_branch
          %317 = sbr.rel (%p315) target = $region36
        $region35: #{tpu_custom_call.1} parent=15 // pred_region
          %s318 = sand.u32 %s20, 1
          %s319 = scalar_lea.sflag [#allocation9], %s318
          %s320 = sand.u32 %s159, 1
          %s321 = scalar_lea.vmem [#allocation10], %s320
          %s323 = ssub.s32 16, 16
          %324 = vsyncadd %s319, %s323
          %s325 = smul.addr %s28, 16
          %s326 = scalar_lea.hbm %s4, %s325
          %s328 = sshll.u32 %s321, 4
          %s329 = int_to_ptr.vmem [resolvable:$true] %s328
          %331 = dma.hbm_to_vmem [thread:$0]  %s326, 16, %s329, %s319
        $region36: #{tpu_custom_call.1} parent=15 // pred_fallthru
          _
      $region16: #{tpu_custom_call.1} parent=5 // pred_fallthru
        _
      %p332 = scmp.le.s32.totalorder 1, %s20
      %p333 = scmp.lt.s32.totalorder %s20, 13
      %p334 = pnand %p332, %p333
      %p335 = pneg %p334
      // Predicated region
      $region37: #{tpu_custom_call.1} parent=5 // pred_check
        _
      $region38: #{tpu_custom_call.1} parent=5 // pred_check_branch
        %337 = sbr.rel (%p334) target = $region40
      $region39: #{tpu_custom_call.1} parent=5 // pred_region
        %s338 = ssub.s32 %s20, 1
        %s339 = sand.u32 %s54, 1
        %s340 = scalar_lea.sflag [#allocation4], %s339
        %s341 = sand.u32 %s54, 1
        %s342 = smul.addr %s341, 128
        %s343 = scalar_lea.vmem [#allocation3], %s342
        // Predicated region
        $region41: #{tpu_custom_call.1} parent=39 // pred_check
          %p344 = pneg %p67
        $region42: #{tpu_custom_call.1} parent=39 // pred_check_branch
          %346 = sbr.rel (%p344) target = $region44
        $region43: #{tpu_custom_call.1} parent=39 // pred_region
          %347 = dma.done %s340, 2048
        $region44: #{tpu_custom_call.1} parent=39 // pred_fallthru
          _
        %s348 = sand.u32 %s25, 1
        %s349 = scalar_lea.sflag [#allocation6], %s348
        %s350 = sand.u32 %s82, 1
        %s351 = smul.addr %s350, 160
        %s352 = scalar_lea.vmem [#allocation5], %s351
        // Predicated region
        $region45: #{tpu_custom_call.1} parent=39 // pred_check
          %p353 = pneg %p95
        $region46: #{tpu_custom_call.1} parent=39 // pred_check_branch
          %355 = sbr.rel (%p353) target = $region48
        $region47: #{tpu_custom_call.1} parent=39 // pred_region
          %356 = dma.done %s349, 2560
        $region48: #{tpu_custom_call.1} parent=39 // pred_fallthru
          _
        %s357 = sand.u32 %s25, 1
        %s358 = scalar_lea.sflag [#allocation6], %s357
        %s359 = sand.u32 %s110, 1
        %s360 = smul.addr %s359, 6400
        %s361 = scalar_lea.vmem [#allocation7], %s360
        // Predicated region
        $region49: #{tpu_custom_call.1} parent=39 // pred_check
          %p362 = pneg %p123
        $region50: #{tpu_custom_call.1} parent=39 // pred_check_branch
          %364 = sbr.rel (%p362) target = $region52
        $region51: #{tpu_custom_call.1} parent=39 // pred_region
          %365 = dma.done %s358, 102400
        $region52: #{tpu_custom_call.1} parent=39 // pred_fallthru
          _
        %s366 = sand.u32 %s25, 1
        %s367 = scalar_lea.sflag [#allocation9], %s366
        %s368 = sand.u32 %s136, 1
        %s369 = scalar_lea.vmem [#allocation8], %s368
        // Predicated region
        $region53: #{tpu_custom_call.1} parent=39 // pred_check
          %p370 = pneg %p149
        $region54: #{tpu_custom_call.1} parent=39 // pred_check_branch
          %372 = sbr.rel (%p370) target = $region56
        $region55: #{tpu_custom_call.1} parent=39 // pred_region
          %373 = dma.done %s367, 16
        $region56: #{tpu_custom_call.1} parent=39 // pred_fallthru
          _
        %s374 = sand.u32 %s25, 1
        %s375 = scalar_lea.sflag [#allocation9], %s374
        %s376 = sand.u32 %s162, 1
        %s377 = scalar_lea.vmem [#allocation10], %s376
        // Predicated region
        $region57: #{tpu_custom_call.1} parent=39 // pred_check
          %p378 = pneg %p175
        $region58: #{tpu_custom_call.1} parent=39 // pred_check_branch
          %380 = sbr.rel (%p378) target = $region60
        $region59: #{tpu_custom_call.1} parent=39 // pred_region
          %381 = dma.done %s375, 16
        $region60: #{tpu_custom_call.1} parent=39 // pred_fallthru
          _
        %s382 = sand.u32 %s54, 1
        %s383 = scalar_lea.sflag [#allocation4], %s382
        %s384 = sand.u32 %s54, 1
        %s385 = smul.addr %s384, 128
        %s386 = scalar_lea.vmem [#allocation3], %s385
        %p387 = pneg %p67
        %p388 = pneg %p64
        %s389 = sand.u32 %s25, 1
        %s390 = scalar_lea.sflag [#allocation6], %s389
        %s391 = sand.u32 %s82, 1
        %s392 = smul.addr %s391, 160
        %s393 = scalar_lea.vmem [#allocation5], %s392
        %p394 = pneg %p95
        %p395 = pneg %p92
        %s396 = sand.u32 %s25, 1
        %s397 = scalar_lea.sflag [#allocation6], %s396
        %s398 = sand.u32 %s110, 1
        %s399 = smul.addr %s398, 6400
        %s400 = scalar_lea.vmem [#allocation7], %s399
        %p401 = pneg %p123
        %p402 = pneg %p120
        %s403 = sand.u32 %s25, 1
        %s404 = scalar_lea.sflag [#allocation9], %s403
        %s405 = sand.u32 %s136, 1
        %s406 = scalar_lea.vmem [#allocation8], %s405
        %p407 = pneg %p149
        %p408 = pneg %p146
        %s409 = sand.u32 %s25, 1
        %s410 = scalar_lea.sflag [#allocation9], %s409
        %s411 = sand.u32 %s162, 1
        %s412 = scalar_lea.vmem [#allocation10], %s411
        %p413 = pneg %p175
        %p414 = pneg %p172
        %p415 = pneg %p203
        %p416 = pneg %p200
        %s417 = sand.u32 %s190, 1
        %s418 = sand.u32 %s190, 1
        %s419 = smul.addr %s418, 192
        %s420 = scalar_lea.vmem [#allocation11], %s419
        %s421 = smul.u32 8, %s30
        %s422 = ssub.s32 34, %s421
        %p423 = scmp.lt.s32.totalorder %s422, 8
        %s424 = scalar_select %p423, %s422, 8
        %s425 = smul.u32 64, %s424
        %s426 = smul.u32 %s425, 4
        %s427 = smul.u32 8, %s30
        %v428 = vld [vmem:[%s343] sm:$0xf]
        %v429 = vld [vmem:[%s343 + $0x4] sm:$0xf]
        %v430 = vld [vmem:[%s343 + $0x8] sm:$0xf]
        %v431 = vld [vmem:[%s343 + $0xc] sm:$0xf]
        %v432 = vld [vmem:[%s343 + $0x10] sm:$0xf]
        %v433 = vld [vmem:[%s343 + $0x14] sm:$0xf]
        %v434 = vld [vmem:[%s343 + $0x18] sm:$0xf]
        %v435 = vld [vmem:[%s343 + $0x1c] sm:$0xf]
        %v436 = vld [vmem:[%s343 + $0x20] sm:$0xf]
        %v437 = vld [vmem:[%s343 + $0x24] sm:$0xf]
        %v438 = vld [vmem:[%s343 + $0x28] sm:$0xf]
        %v439 = vld [vmem:[%s343 + $0x2c] sm:$0xf]
        %v440 = vld [vmem:[%s343 + $0x30] sm:$0xf]
        %v441 = vld [vmem:[%s343 + $0x34] sm:$0xf]
        %v442 = vld [vmem:[%s343 + $0x38] sm:$0xf]
        %v443 = vld [vmem:[%s343 + $0x3c] sm:$0xf]
        %v444 = vld [vmem:[%s343 + $0x40] sm:$0xf]
        %v445 = vld [vmem:[%s343 + $0x44] sm:$0xf]
        %v446 = vld [vmem:[%s343 + $0x48] sm:$0xf]
        %v447 = vld [vmem:[%s343 + $0x4c] sm:$0xf]
        %v448 = vld [vmem:[%s343 + $0x50] sm:$0xf]
        %v449 = vld [vmem:[%s343 + $0x54] sm:$0xf]
        %v450 = vld [vmem:[%s343 + $0x58] sm:$0xf]
        %v451 = vld [vmem:[%s343 + $0x5c] sm:$0xf]
        %v452 = vld [vmem:[%s343 + $0x60] sm:$0xf]
        %v453 = vld [vmem:[%s343 + $0x64] sm:$0xf]
        %v454 = vld [vmem:[%s343 + $0x68] sm:$0xf]
        %v455 = vld [vmem:[%s343 + $0x6c] sm:$0xf]
        %v456 = vld [vmem:[%s343 + $0x70] sm:$0xf]
        %v457 = vld [vmem:[%s343 + $0x74] sm:$0xf]
        %v458 = vld [vmem:[%s343 + $0x78] sm:$0xf]
        %v459 = vld [vmem:[%s343 + $0x7c] sm:$0xf]
        %v460 = vld [vmem:[%s352] sm:$0xf]
        %v461 = vld [vmem:[%s352 + $0x4] sm:$0xf]
        %v462 = vld [vmem:[%s352 + $0x8] sm:$0xf]
        %v463 = vld [vmem:[%s352 + $0xc] sm:$0xf]
        %v464 = vld [vmem:[%s352 + $0x10] sm:$0xf]
        %v465 = vld [vmem:[%s352 + $0x14] sm:$0xf]
        %v466 = vld [vmem:[%s352 + $0x18] sm:$0xf]
        %v467 = vld [vmem:[%s352 + $0x1c] sm:$0xf]
        %v468 = vld [vmem:[%s352 + $0x20] sm:$0xf]
        %v469 = vld [vmem:[%s352 + $0x24] sm:$0xf]
        %v470 = vld [vmem:[%s352 + $0x28] sm:$0xf]
        %v471 = vld [vmem:[%s352 + $0x2c] sm:$0xf]
        %v472 = vld [vmem:[%s352 + $0x30] sm:$0xf]
        %v473 = vld [vmem:[%s352 + $0x34] sm:$0xf]
        %v474 = vld [vmem:[%s352 + $0x38] sm:$0xf]
        %v475 = vld [vmem:[%s352 + $0x3c] sm:$0xf]
        %v476 = vld [vmem:[%s352 + $0x40] sm:$0xf]
        %v477 = vld [vmem:[%s352 + $0x44] sm:$0xf]
        %v478 = vld [vmem:[%s352 + $0x48] sm:$0xf]
        %v479 = vld [vmem:[%s352 + $0x4c] sm:$0xf]
        %v480 = vld [vmem:[%s352 + $0x50] sm:$0xf]
        %v481 = vld [vmem:[%s352 + $0x54] sm:$0xf]
        %v482 = vld [vmem:[%s352 + $0x58] sm:$0xf]
        %v483 = vld [vmem:[%s352 + $0x5c] sm:$0xf]
        %v484 = vld [vmem:[%s352 + $0x60] sm:$0xf]
        %v485 = vld [vmem:[%s352 + $0x64] sm:$0xf]
        %v486 = vld [vmem:[%s352 + $0x68] sm:$0xf]
        %v487 = vld [vmem:[%s352 + $0x6c] sm:$0xf]
        %v488 = vld [vmem:[%s352 + $0x70] sm:$0xf]
        %v489 = vld [vmem:[%s352 + $0x74] sm:$0xf]
        %v490 = vld [vmem:[%s352 + $0x78] sm:$0xf]
        %v491 = vld [vmem:[%s352 + $0x7c] sm:$0xf]
        %v492 = vld [vmem:[%s352 + $0x80] sm:$0xf]
        %v493 = vld [vmem:[%s352 + $0x84] sm:$0xf]
        %v494 = vld [vmem:[%s352 + $0x88] sm:$0xf]
        %v495 = vld [vmem:[%s352 + $0x8c] sm:$0xf]
        %v496 = vld [vmem:[%s352 + $0x90] sm:$0xf]
        %v497 = vld [vmem:[%s352 + $0x94] sm:$0xf]
        %v530 = vunpack.c.l.b16 %v428
        %v531 = vunpack.c.l.b16 %v429
        %v532 = vunpack.c.l.b16 %v430
        %v533 = vunpack.c.l.b16 %v431
        %v534 = vunpack.c.l.b16 %v432
        %v535 = vunpack.c.l.b16 %v433
        %v536 = vunpack.c.l.b16 %v434
        %v537 = vunpack.c.l.b16 %v435
        %v538 = vunpack.c.l.b16 %v436
        %v539 = vunpack.c.l.b16 %v437
        %v540 = vunpack.c.l.b16 %v438
        %v541 = vunpack.c.l.b16 %v439
        %v542 = vunpack.c.l.b16 %v440
        %v543 = vunpack.c.l.b16 %v441
        %v544 = vunpack.c.l.b16 %v442
        %v545 = vunpack.c.l.b16 %v443
        %v546 = vunpack.c.l.b16 %v444
        %v547 = vunpack.c.l.b16 %v445
        %v548 = vunpack.c.l.b16 %v446
        %v549 = vunpack.c.l.b16 %v447
        %v550 = vunpack.c.l.b16 %v448
        %v551 = vunpack.c.l.b16 %v449
        %v552 = vunpack.c.l.b16 %v450
        %v553 = vunpack.c.l.b16 %v451
        %v554 = vunpack.c.l.b16 %v452
        %v555 = vunpack.c.l.b16 %v453
        %v556 = vunpack.c.l.b16 %v454
        %v557 = vunpack.c.l.b16 %v455
        %v558 = vunpack.c.l.b16 %v456
        %v559 = vunpack.c.l.b16 %v457
        %v560 = vunpack.c.l.b16 %v458
        %v561 = vunpack.c.l.b16 %v459
        %v562 = vpack.c.b16 %v531, %v530
        %v563 = vpack.c.b16 %v533, %v532
        %v564 = vpack.c.b16 %v535, %v534
        %v565 = vpack.c.b16 %v537, %v536
        %v566 = vpack.c.b16 %v539, %v538
        %v567 = vpack.c.b16 %v541, %v540
        %v568 = vpack.c.b16 %v543, %v542
        %v569 = vpack.c.b16 %v545, %v544
        %v570 = vpack.c.b16 %v547, %v546
        %v571 = vpack.c.b16 %v549, %v548
        %v572 = vpack.c.b16 %v551, %v550
        %v573 = vpack.c.b16 %v553, %v552
        %v574 = vpack.c.b16 %v555, %v554
        %v575 = vpack.c.b16 %v557, %v556
        %v576 = vpack.c.b16 %v559, %v558
        %v577 = vpack.c.b16 %v561, %v560
        %v632 = vunpack.c.l.b16 %v460
        %v633 = vunpack.c.l.b16 %v461
        %v634 = vunpack.c.l.b16 %v462
        %v635 = vunpack.c.l.b16 %v463
        %v636 = vunpack.c.l.b16 %v464
        %v637 = vunpack.c.l.b16 %v465
        %v638 = vunpack.c.l.b16 %v466
        %v639 = vunpack.c.l.b16 %v467
        %v640 = vunpack.c.l.b16 %v468
        %v641 = vunpack.c.l.b16 %v469
        %v642 = vunpack.c.l.b16 %v470
        %v643 = vunpack.c.l.b16 %v471
        %v644 = vunpack.c.l.b16 %v472
        %v645 = vunpack.c.l.b16 %v473
        %v646 = vunpack.c.l.b16 %v474
        %v647 = vunpack.c.l.b16 %v475
        %v648 = vunpack.c.l.b16 %v476
        %v649 = vunpack.c.l.b16 %v477
        %v650 = vunpack.c.l.b16 %v478
        %v651 = vunpack.c.l.b16 %v479
        %v652 = vunpack.c.l.b16 %v480
        %v653 = vunpack.c.l.b16 %v481
        %v654 = vunpack.c.l.b16 %v482
        %v655 = vunpack.c.l.b16 %v483
        %v656 = vunpack.c.l.b16 %v484
        %v657 = vunpack.c.l.b16 %v485
        %v658 = vunpack.c.l.b16 %v486
        %v659 = vunpack.c.l.b16 %v487
        %v660 = vunpack.c.l.b16 %v488
        %v661 = vunpack.c.l.b16 %v489
        %v662 = vunpack.c.l.b16 %v490
        %v663 = vunpack.c.l.b16 %v491
        %v664 = vunpack.c.l.b16 %v492
        %v665 = vunpack.c.l.b16 %v493
        %v666 = vunpack.c.l.b16 %v494
        %v667 = vunpack.c.l.b16 %v495
        %v668 = vunpack.c.l.b16 %v496
        %v669 = vunpack.c.l.b16 %v497
        %v670 = vpack.c.b16 %v633, %v632
        %v671 = vpack.c.b16 %v635, %v634
        %v672 = vpack.c.b16 %v637, %v636
        %v673 = vpack.c.b16 %v639, %v638
        %v674 = vpack.c.b16 %v641, %v640
        %v675 = vpack.c.b16 %v643, %v642
        %v676 = vpack.c.b16 %v645, %v644
        %v677 = vpack.c.b16 %v647, %v646
        %v678 = vpack.c.b16 %v649, %v648
        %v679 = vpack.c.b16 %v651, %v650
        %v680 = vpack.c.b16 %v653, %v652
        %v681 = vpack.c.b16 %v655, %v654
        %v682 = vpack.c.b16 %v657, %v656
        %v683 = vpack.c.b16 %v659, %v658
        %v684 = vpack.c.b16 %v661, %v660
        %v685 = vpack.c.b16 %v663, %v662
        %v686 = vpack.c.b16 %v665, %v664
        %v687 = vpack.c.b16 %v667, %v666
        %v688 = vpack.c.b16 %v669, %v668
        %v708 = vld [vmem:[%s361] sm:$0xff]
        %v709 = vld [vmem:[%s361 + $0x8] sm:$0xff]
        %v710 = vld [vmem:[%s361 + $0x10] sm:$0xff]
        %v711 = vld [vmem:[%s361 + $0x18] sm:$0xff]
        %v712 = vld [vmem:[%s361 + $0x20] sm:$0xff]
        %v713 = vld [vmem:[%s361 + $0x28] sm:$0xff]
        %v714 = vld [vmem:[%s361 + $0x30] sm:$0xff]
        %v715 = vld [vmem:[%s361 + $0x38] sm:$0xff]
        %v716 = vld [vmem:[%s361 + $0x40] sm:$0xff]
        %v717 = vld [vmem:[%s361 + $0x48] sm:$0xff]
        %v718 = vld [vmem:[%s361 + $0x50] sm:$0xff]
        %v719 = vld [vmem:[%s361 + $0x58] sm:$0xff]
        %v720 = vld [vmem:[%s361 + $0x60] sm:$0xff]
        %v721 = vld [vmem:[%s361 + $0x68] sm:$0xff]
        %v722 = vld [vmem:[%s361 + $0x70] sm:$0xff]
        %v723 = vld [vmem:[%s361 + $0x78] sm:$0xff]
        %v724 = vld [vmem:[%s361 + $0x80] sm:$0xff]
        %v725 = vld [vmem:[%s361 + $0x88] sm:$0xff]
        %v726 = vld [vmem:[%s361 + $0x90] sm:$0xff]
        %v727 = vld [vmem:[%s361 + $0x98] sm:$0xff]
        %v728 = vld [vmem:[%s361 + $0xa0] sm:$0xff]
        %v729 = vld [vmem:[%s361 + $0xa8] sm:$0xff]
        %v730 = vld [vmem:[%s361 + $0xb0] sm:$0xff]
        %v731 = vld [vmem:[%s361 + $0xb8] sm:$0xff]
        %v732 = vld [vmem:[%s361 + $0xc0] sm:$0xff]
        %v733 = vld [vmem:[%s361 + $0xc8] sm:$0xff]
        %v734 = vld [vmem:[%s361 + $0xd0] sm:$0xff]
        %v735 = vld [vmem:[%s361 + $0xd8] sm:$0xff]
        %v736 = vld [vmem:[%s361 + $0xe0] sm:$0xff]
        %v737 = vld [vmem:[%s361 + $0xe8] sm:$0xff]
        %v738 = vld [vmem:[%s361 + $0xf0] sm:$0xff]
        %v739 = vld [vmem:[%s361 + $0xf8] sm:$0xff]
        %v740 = vld [vmem:[%s361 + $0x100] sm:$0xff]
        %v741 = vld [vmem:[%s361 + $0x108] sm:$0xff]
        %v742 = vld [vmem:[%s361 + $0x110] sm:$0xff]
        %v743 = vld [vmem:[%s361 + $0x118] sm:$0xff]
        %v744 = vld [vmem:[%s361 + $0x120] sm:$0xff]
        %v745 = vld [vmem:[%s361 + $0x128] sm:$0xff]
        %v746 = vld [vmem:[%s361 + $0x130] sm:$0xff]
        %v747 = vld [vmem:[%s361 + $0x138] sm:$0xff]
        %v748 = vld [vmem:[%s361 + $0x140] sm:$0xff]
        %v749 = vld [vmem:[%s361 + $0x148] sm:$0xff]
        %v750 = vld [vmem:[%s361 + $0x150] sm:$0xff]
        %v751 = vld [vmem:[%s361 + $0x158] sm:$0xff]
        %v752 = vld [vmem:[%s361 + $0x160] sm:$0xff]
        %v753 = vld [vmem:[%s361 + $0x168] sm:$0xff]
        %v754 = vld [vmem:[%s361 + $0x170] sm:$0xff]
        %v755 = vld [vmem:[%s361 + $0x178] sm:$0xff]
        %v756 = vld [vmem:[%s361 + $0x180] sm:$0xff]
        %v757 = vld [vmem:[%s361 + $0x188] sm:$0xff]
        %v758 = vld [vmem:[%s361 + $0x190] sm:$0xff]
        %v759 = vld [vmem:[%s361 + $0x198] sm:$0xff]
        %v760 = vld [vmem:[%s361 + $0x1a0] sm:$0xff]
        %v761 = vld [vmem:[%s361 + $0x1a8] sm:$0xff]
        %v762 = vld [vmem:[%s361 + $0x1b0] sm:$0xff]
        %v763 = vld [vmem:[%s361 + $0x1b8] sm:$0xff]
        %v764 = vld [vmem:[%s361 + $0x1c0] sm:$0xff]
        %v765 = vld [vmem:[%s361 + $0x1c8] sm:$0xff]
        %v766 = vld [vmem:[%s361 + $0x1d0] sm:$0xff]
        %v767 = vld [vmem:[%s361 + $0x1d8] sm:$0xff]
        %v768 = vld [vmem:[%s361 + $0x1e0] sm:$0xff]
        %v769 = vld [vmem:[%s361 + $0x1e8] sm:$0xff]
        %v770 = vld [vmem:[%s361 + $0x1f0] sm:$0xff]
        %v771 = vld [vmem:[%s361 + $0x1f8] sm:$0xff]
        %v772 = vld [vmem:[%s361 + $0x200] sm:$0xff]
        %v773 = vld [vmem:[%s361 + $0x208] sm:$0xff]
        %v774 = vld [vmem:[%s361 + $0x210] sm:$0xff]
        %v775 = vld [vmem:[%s361 + $0x218] sm:$0xff]
        %v776 = vld [vmem:[%s361 + $0x220] sm:$0xff]
        %v777 = vld [vmem:[%s361 + $0x228] sm:$0xff]
        %v778 = vld [vmem:[%s361 + $0x230] sm:$0xff]
        %v779 = vld [vmem:[%s361 + $0x238] sm:$0xff]
        %v780 = vld [vmem:[%s361 + $0x240] sm:$0xff]
        %v781 = vld [vmem:[%s361 + $0x248] sm:$0xff]
        %v782 = vld [vmem:[%s361 + $0x250] sm:$0xff]
        %v783 = vld [vmem:[%s361 + $0x258] sm:$0xff]
        %v784 = vld [vmem:[%s361 + $0x260] sm:$0xff]
        %v785 = vld [vmem:[%s361 + $0x268] sm:$0xff]
        %v786 = vld [vmem:[%s361 + $0x270] sm:$0xff]
        %v787 = vld [vmem:[%s361 + $0x278] sm:$0xff]
        %v788 = vld [vmem:[%s361 + $0x280] sm:$0xff]
        %v789 = vld [vmem:[%s361 + $0x288] sm:$0xff]
        %v790 = vld [vmem:[%s361 + $0x290] sm:$0xff]
        %v791 = vld [vmem:[%s361 + $0x298] sm:$0xff]
        %v792 = vld [vmem:[%s361 + $0x2a0] sm:$0xff]
        %v793 = vld [vmem:[%s361 + $0x2a8] sm:$0xff]
        %v794 = vld [vmem:[%s361 + $0x2b0] sm:$0xff]
        %v795 = vld [vmem:[%s361 + $0x2b8] sm:$0xff]
        %v796 = vld [vmem:[%s361 + $0x2c0] sm:$0xff]
        %v797 = vld [vmem:[%s361 + $0x2c8] sm:$0xff]
        %v798 = vld [vmem:[%s361 + $0x2d0] sm:$0xff]
        %v799 = vld [vmem:[%s361 + $0x2d8] sm:$0xff]
        %v800 = vld [vmem:[%s361 + $0x2e0] sm:$0xff]
        %v801 = vld [vmem:[%s361 + $0x2e8] sm:$0xff]
        %v802 = vld [vmem:[%s361 + $0x2f0] sm:$0xff]
        %v803 = vld [vmem:[%s361 + $0x2f8] sm:$0xff]
        %v804 = vld [vmem:[%s361 + $0x300] sm:$0xff]
        %v805 = vld [vmem:[%s361 + $0x308] sm:$0xff]
        %v806 = vld [vmem:[%s361 + $0x310] sm:$0xff]
        %v807 = vld [vmem:[%s361 + $0x318] sm:$0xff]
        %v808 = vld [vmem:[%s361 + $0x320] sm:$0xff]
        %v809 = vld [vmem:[%s361 + $0x328] sm:$0xff]
        %v810 = vld [vmem:[%s361 + $0x330] sm:$0xff]
        %v811 = vld [vmem:[%s361 + $0x338] sm:$0xff]
        %v812 = vld [vmem:[%s361 + $0x340] sm:$0xff]
        %v813 = vld [vmem:[%s361 + $0x348] sm:$0xff]
        %v814 = vld [vmem:[%s361 + $0x350] sm:$0xff]
        %v815 = vld [vmem:[%s361 + $0x358] sm:$0xff]
        %v816 = vld [vmem:[%s361 + $0x360] sm:$0xff]
        %v817 = vld [vmem:[%s361 + $0x368] sm:$0xff]
        %v818 = vld [vmem:[%s361 + $0x370] sm:$0xff]
        %v819 = vld [vmem:[%s361 + $0x378] sm:$0xff]
        %v820 = vld [vmem:[%s361 + $0x380] sm:$0xff]
        %v821 = vld [vmem:[%s361 + $0x388] sm:$0xff]
        %v822 = vld [vmem:[%s361 + $0x390] sm:$0xff]
        %v823 = vld [vmem:[%s361 + $0x398] sm:$0xff]
        %v824 = vld [vmem:[%s361 + $0x3a0] sm:$0xff]
        %v825 = vld [vmem:[%s361 + $0x3a8] sm:$0xff]
        %v826 = vld [vmem:[%s361 + $0x3b0] sm:$0xff]
        %v827 = vld [vmem:[%s361 + $0x3b8] sm:$0xff]
        %v828 = vld [vmem:[%s361 + $0x3c0] sm:$0xff]
        %v829 = vld [vmem:[%s361 + $0x3c8] sm:$0xff]
        %v830 = vld [vmem:[%s361 + $0x3d0] sm:$0xff]
        %v831 = vld [vmem:[%s361 + $0x3d8] sm:$0xff]
        %v832 = vld [vmem:[%s361 + $0x3e0] sm:$0xff]
        %v833 = vld [vmem:[%s361 + $0x3e8] sm:$0xff]
        %v834 = vld [vmem:[%s361 + $0x3f0] sm:$0xff]
        %v835 = vld [vmem:[%s361 + $0x3f8] sm:$0xff]
        %v836 = vld [vmem:[%s361 + $0x400] sm:$0xff]
        %v837 = vld [vmem:[%s361 + $0x408] sm:$0xff]
        %v838 = vld [vmem:[%s361 + $0x410] sm:$0xff]
        %v839 = vld [vmem:[%s361 + $0x418] sm:$0xff]
        %v840 = vld [vmem:[%s361 + $0x420] sm:$0xff]
        %v841 = vld [vmem:[%s361 + $0x428] sm:$0xff]
        %v842 = vld [vmem:[%s361 + $0x430] sm:$0xff]
        %v843 = vld [vmem:[%s361 + $0x438] sm:$0xff]
        %v844 = vld [vmem:[%s361 + $0x440] sm:$0xff]
        %v845 = vld [vmem:[%s361 + $0x448] sm:$0xff]
        %v846 = vld [vmem:[%s361 + $0x450] sm:$0xff]
        %v847 = vld [vmem:[%s361 + $0x458] sm:$0xff]
        %v848 = vld [vmem:[%s361 + $0x460] sm:$0xff]
        %v849 = vld [vmem:[%s361 + $0x468] sm:$0xff]
        %v850 = vld [vmem:[%s361 + $0x470] sm:$0xff]
        %v851 = vld [vmem:[%s361 + $0x478] sm:$0xff]
        %v852 = vld [vmem:[%s361 + $0x480] sm:$0xff]
        %v853 = vld [vmem:[%s361 + $0x488] sm:$0xff]
        %v854 = vld [vmem:[%s361 + $0x490] sm:$0xff]
        %v855 = vld [vmem:[%s361 + $0x498] sm:$0xff]
        %v856 = vld [vmem:[%s361 + $0x4a0] sm:$0xff]
        %v857 = vld [vmem:[%s361 + $0x4a8] sm:$0xff]
        %v858 = vld [vmem:[%s361 + $0x4b0] sm:$0xff]
        %v859 = vld [vmem:[%s361 + $0x4b8] sm:$0xff]
        %v860 = vld [vmem:[%s361 + $0x4c0] sm:$0xff]
        %v861 = vld [vmem:[%s361 + $0x4c8] sm:$0xff]
        %v862 = vld [vmem:[%s361 + $0x4d0] sm:$0xff]
        %v863 = vld [vmem:[%s361 + $0x4d8] sm:$0xff]
        %v864 = vld [vmem:[%s361 + $0x4e0] sm:$0xff]
        %v865 = vld [vmem:[%s361 + $0x4e8] sm:$0xff]
        %v866 = vld [vmem:[%s361 + $0x4f0] sm:$0xff]
        %v867 = vld [vmem:[%s361 + $0x4f8] sm:$0xff]
        %v868 = vld [vmem:[%s361 + $0x500] sm:$0xff]
        %v869 = vld [vmem:[%s361 + $0x508] sm:$0xff]
        %v870 = vld [vmem:[%s361 + $0x510] sm:$0xff]
        %v871 = vld [vmem:[%s361 + $0x518] sm:$0xff]
        %v872 = vld [vmem:[%s361 + $0x520] sm:$0xff]
        %v873 = vld [vmem:[%s361 + $0x528] sm:$0xff]
        %v874 = vld [vmem:[%s361 + $0x530] sm:$0xff]
        %v875 = vld [vmem:[%s361 + $0x538] sm:$0xff]
        %v876 = vld [vmem:[%s361 + $0x540] sm:$0xff]
        %v877 = vld [vmem:[%s361 + $0x548] sm:$0xff]
        %v878 = vld [vmem:[%s361 + $0x550] sm:$0xff]
        %v879 = vld [vmem:[%s361 + $0x558] sm:$0xff]
        %v880 = vld [vmem:[%s361 + $0x560] sm:$0xff]
        %v881 = vld [vmem:[%s361 + $0x568] sm:$0xff]
        %v882 = vld [vmem:[%s361 + $0x570] sm:$0xff]
        %v883 = vld [vmem:[%s361 + $0x578] sm:$0xff]
        %v884 = vld [vmem:[%s361 + $0x580] sm:$0xff]
        %v885 = vld [vmem:[%s361 + $0x588] sm:$0xff]
        %v886 = vld [vmem:[%s361 + $0x590] sm:$0xff]
        %v887 = vld [vmem:[%s361 + $0x598] sm:$0xff]
        %v888 = vld [vmem:[%s361 + $0x5a0] sm:$0xff]
        %v889 = vld [vmem:[%s361 + $0x5a8] sm:$0xff]
        %v890 = vld [vmem:[%s361 + $0x5b0] sm:$0xff]
        %v891 = vld [vmem:[%s361 + $0x5b8] sm:$0xff]
        %v892 = vld [vmem:[%s361 + $0x5c0] sm:$0xff]
        %v893 = vld [vmem:[%s361 + $0x5c8] sm:$0xff]
        %v894 = vld [vmem:[%s361 + $0x5d0] sm:$0xff]
        %v895 = vld [vmem:[%s361 + $0x5d8] sm:$0xff]
        %v896 = vld [vmem:[%s361 + $0x5e0] sm:$0xff]
        %v897 = vld [vmem:[%s361 + $0x5e8] sm:$0xff]
        %v898 = vld [vmem:[%s361 + $0x5f0] sm:$0xff]
        %v899 = vld [vmem:[%s361 + $0x5f8] sm:$0xff]
        %v900 = vld [vmem:[%s361 + $0x600] sm:$0xff]
        %v901 = vld [vmem:[%s361 + $0x608] sm:$0xff]
        %v902 = vld [vmem:[%s361 + $0x610] sm:$0xff]
        %v903 = vld [vmem:[%s361 + $0x618] sm:$0xff]
        %v904 = vld [vmem:[%s361 + $0x620] sm:$0xff]
        %v905 = vld [vmem:[%s361 + $0x628] sm:$0xff]
        %v906 = vld [vmem:[%s361 + $0x630] sm:$0xff]
        %v907 = vld [vmem:[%s361 + $0x638] sm:$0xff]
        %v908 = vld [vmem:[%s361 + $0x640] sm:$0xff]
        %v909 = vld [vmem:[%s361 + $0x648] sm:$0xff]
        %v910 = vld [vmem:[%s361 + $0x650] sm:$0xff]
        %v911 = vld [vmem:[%s361 + $0x658] sm:$0xff]
        %v912 = vld [vmem:[%s361 + $0x660] sm:$0xff]
        %v913 = vld [vmem:[%s361 + $0x668] sm:$0xff]
        %v914 = vld [vmem:[%s361 + $0x670] sm:$0xff]
        %v915 = vld [vmem:[%s361 + $0x678] sm:$0xff]
        %v916 = vld [vmem:[%s361 + $0x680] sm:$0xff]
        %v917 = vld [vmem:[%s361 + $0x688] sm:$0xff]
        %v918 = vld [vmem:[%s361 + $0x690] sm:$0xff]
        %v919 = vld [vmem:[%s361 + $0x698] sm:$0xff]
        %v920 = vld [vmem:[%s361 + $0x6a0] sm:$0xff]
        %v921 = vld [vmem:[%s361 + $0x6a8] sm:$0xff]
        %v922 = vld [vmem:[%s361 + $0x6b0] sm:$0xff]
        %v923 = vld [vmem:[%s361 + $0x6b8] sm:$0xff]
        %v924 = vld [vmem:[%s361 + $0x6c0] sm:$0xff]
        %v925 = vld [vmem:[%s361 + $0x6c8] sm:$0xff]
        %v926 = vld [vmem:[%s361 + $0x6d0] sm:$0xff]
        %v927 = vld [vmem:[%s361 + $0x6d8] sm:$0xff]
        %v928 = vld [vmem:[%s361 + $0x6e0] sm:$0xff]
        %v929 = vld [vmem:[%s361 + $0x6e8] sm:$0xff]
        %v930 = vld [vmem:[%s361 + $0x6f0] sm:$0xff]
        %v931 = vld [vmem:[%s361 + $0x6f8] sm:$0xff]
        %v932 = vld [vmem:[%s361 + $0x700] sm:$0xff]
        %v933 = vld [vmem:[%s361 + $0x708] sm:$0xff]
        %v934 = vld [vmem:[%s361 + $0x710] sm:$0xff]
        %v935 = vld [vmem:[%s361 + $0x718] sm:$0xff]
        %v936 = vld [vmem:[%s361 + $0x720] sm:$0xff]
        %v937 = vld [vmem:[%s361 + $0x728] sm:$0xff]
        %v938 = vld [vmem:[%s361 + $0x730] sm:$0xff]
        %v939 = vld [vmem:[%s361 + $0x738] sm:$0xff]
        %v940 = vld [vmem:[%s361 + $0x740] sm:$0xff]
        %v941 = vld [vmem:[%s361 + $0x748] sm:$0xff]
        %v942 = vld [vmem:[%s361 + $0x750] sm:$0xff]
        %v943 = vld [vmem:[%s361 + $0x758] sm:$0xff]
        %v944 = vld [vmem:[%s361 + $0x760] sm:$0xff]
        %v945 = vld [vmem:[%s361 + $0x768] sm:$0xff]
        %v946 = vld [vmem:[%s361 + $0x770] sm:$0xff]
        %v947 = vld [vmem:[%s361 + $0x778] sm:$0xff]
        %v948 = vld [vmem:[%s361 + $0x780] sm:$0xff]
        %v949 = vld [vmem:[%s361 + $0x788] sm:$0xff]
        %v950 = vld [vmem:[%s361 + $0x790] sm:$0xff]
        %v951 = vld [vmem:[%s361 + $0x798] sm:$0xff]
        %v952 = vld [vmem:[%s361 + $0x7a0] sm:$0xff]
        %v953 = vld [vmem:[%s361 + $0x7a8] sm:$0xff]
        %v954 = vld [vmem:[%s361 + $0x7b0] sm:$0xff]
        %v955 = vld [vmem:[%s361 + $0x7b8] sm:$0xff]
        %v956 = vld [vmem:[%s361 + $0x7c0] sm:$0xff]
        %v957 = vld [vmem:[%s361 + $0x7c8] sm:$0xff]
        %v958 = vld [vmem:[%s361 + $0x7d0] sm:$0xff]
        %v959 = vld [vmem:[%s361 + $0x7d8] sm:$0xff]
        %v960 = vld [vmem:[%s361 + $0x7e0] sm:$0xff]
        %v961 = vld [vmem:[%s361 + $0x7e8] sm:$0xff]
        %v962 = vld [vmem:[%s361 + $0x7f0] sm:$0xff]
        %v963 = vld [vmem:[%s361 + $0x7f8] sm:$0xff]
        %v964 = vld [vmem:[%s361 + $0x800] sm:$0xff]
        %v965 = vld [vmem:[%s361 + $0x808] sm:$0xff]
        %v966 = vld [vmem:[%s361 + $0x810] sm:$0xff]
        %v967 = vld [vmem:[%s361 + $0x818] sm:$0xff]
        %v968 = vld [vmem:[%s361 + $0x820] sm:$0xff]
        %v969 = vld [vmem:[%s361 + $0x828] sm:$0xff]
        %v970 = vld [vmem:[%s361 + $0x830] sm:$0xff]
        %v971 = vld [vmem:[%s361 + $0x838] sm:$0xff]
        %v972 = vld [vmem:[%s361 + $0x840] sm:$0xff]
        %v973 = vld [vmem:[%s361 + $0x848] sm:$0xff]
        %v974 = vld [vmem:[%s361 + $0x850] sm:$0xff]
        %v975 = vld [vmem:[%s361 + $0x858] sm:$0xff]
        %v976 = vld [vmem:[%s361 + $0x860] sm:$0xff]
        %v977 = vld [vmem:[%s361 + $0x868] sm:$0xff]
        %v978 = vld [vmem:[%s361 + $0x870] sm:$0xff]
        %v979 = vld [vmem:[%s361 + $0x878] sm:$0xff]
        %v980 = vld [vmem:[%s361 + $0x880] sm:$0xff]
        %v981 = vld [vmem:[%s361 + $0x888] sm:$0xff]
        %v982 = vld [vmem:[%s361 + $0x890] sm:$0xff]
        %v983 = vld [vmem:[%s361 + $0x898] sm:$0xff]
        %v984 = vld [vmem:[%s361 + $0x8a0] sm:$0xff]
        %v985 = vld [vmem:[%s361 + $0x8a8] sm:$0xff]
        %v986 = vld [vmem:[%s361 + $0x8b0] sm:$0xff]
        %v987 = vld [vmem:[%s361 + $0x8b8] sm:$0xff]
        %v988 = vld [vmem:[%s361 + $0x8c0] sm:$0xff]
        %v989 = vld [vmem:[%s361 + $0x8c8] sm:$0xff]
        %v990 = vld [vmem:[%s361 + $0x8d0] sm:$0xff]
        %v991 = vld [vmem:[%s361 + $0x8d8] sm:$0xff]
        %v992 = vld [vmem:[%s361 + $0x8e0] sm:$0xff]
        %v993 = vld [vmem:[%s361 + $0x8e8] sm:$0xff]
        %v994 = vld [vmem:[%s361 + $0x8f0] sm:$0xff]
        %v995 = vld [vmem:[%s361 + $0x8f8] sm:$0xff]
        %v996 = vld [vmem:[%s361 + $0x900] sm:$0xff]
        %v997 = vld [vmem:[%s361 + $0x908] sm:$0xff]
        %v998 = vld [vmem:[%s361 + $0x910] sm:$0xff]
        %v999 = vld [vmem:[%s361 + $0x918] sm:$0xff]
        %v1000 = vld [vmem:[%s361 + $0x920] sm:$0xff]
        %v1001 = vld [vmem:[%s361 + $0x928] sm:$0xff]
        %v1002 = vld [vmem:[%s361 + $0x930] sm:$0xff]
        %v1003 = vld [vmem:[%s361 + $0x938] sm:$0xff]
        %v1004 = vld [vmem:[%s361 + $0x940] sm:$0xff]
        %v1005 = vld [vmem:[%s361 + $0x948] sm:$0xff]
        %v1006 = vld [vmem:[%s361 + $0x950] sm:$0xff]
        %v1007 = vld [vmem:[%s361 + $0x958] sm:$0xff]
        %v1008 = vld [vmem:[%s361 + $0x960] sm:$0xff]
        %v1009 = vld [vmem:[%s361 + $0x968] sm:$0xff]
        %v1010 = vld [vmem:[%s361 + $0x970] sm:$0xff]
        %v1011 = vld [vmem:[%s361 + $0x978] sm:$0xff]
        %v1012 = vld [vmem:[%s361 + $0x980] sm:$0xff]
        %v1013 = vld [vmem:[%s361 + $0x988] sm:$0xff]
        %v1014 = vld [vmem:[%s361 + $0x990] sm:$0xff]
        %v1015 = vld [vmem:[%s361 + $0x998] sm:$0xff]
        %v1016 = vld [vmem:[%s361 + $0x9a0] sm:$0xff]
        %v1017 = vld [vmem:[%s361 + $0x9a8] sm:$0xff]
        %v1018 = vld [vmem:[%s361 + $0x9b0] sm:$0xff]
        %v1019 = vld [vmem:[%s361 + $0x9b8] sm:$0xff]
        %v1020 = vld [vmem:[%s361 + $0x9c0] sm:$0xff]
        %v1021 = vld [vmem:[%s361 + $0x9c8] sm:$0xff]
        %v1022 = vld [vmem:[%s361 + $0x9d0] sm:$0xff]
        %v1023 = vld [vmem:[%s361 + $0x9d8] sm:$0xff]
        %v1024 = vld [vmem:[%s361 + $0x9e0] sm:$0xff]
        %v1025 = vld [vmem:[%s361 + $0x9e8] sm:$0xff]
        %v1026 = vld [vmem:[%s361 + $0x9f0] sm:$0xff]
        %v1027 = vld [vmem:[%s361 + $0x9f8] sm:$0xff]
        %v1028 = vld [vmem:[%s361 + $0xa00] sm:$0xff]
        %v1029 = vld [vmem:[%s361 + $0xa08] sm:$0xff]
        %v1030 = vld [vmem:[%s361 + $0xa10] sm:$0xff]
        %v1031 = vld [vmem:[%s361 + $0xa18] sm:$0xff]
        %v1032 = vld [vmem:[%s361 + $0xa20] sm:$0xff]
        %v1033 = vld [vmem:[%s361 + $0xa28] sm:$0xff]
        %v1034 = vld [vmem:[%s361 + $0xa30] sm:$0xff]
        %v1035 = vld [vmem:[%s361 + $0xa38] sm:$0xff]
        %v1036 = vld [vmem:[%s361 + $0xa40] sm:$0xff]
        %v1037 = vld [vmem:[%s361 + $0xa48] sm:$0xff]
        %v1038 = vld [vmem:[%s361 + $0xa50] sm:$0xff]
        %v1039 = vld [vmem:[%s361 + $0xa58] sm:$0xff]
        %v1040 = vld [vmem:[%s361 + $0xa60] sm:$0xff]
        %v1041 = vld [vmem:[%s361 + $0xa68] sm:$0xff]
        %v1042 = vld [vmem:[%s361 + $0xa70] sm:$0xff]
        %v1043 = vld [vmem:[%s361 + $0xa78] sm:$0xff]
        %v1044 = vld [vmem:[%s361 + $0xa80] sm:$0xff]
        %v1045 = vld [vmem:[%s361 + $0xa88] sm:$0xff]
        %v1046 = vld [vmem:[%s361 + $0xa90] sm:$0xff]
        %v1047 = vld [vmem:[%s361 + $0xa98] sm:$0xff]
        %v1048 = vld [vmem:[%s361 + $0xaa0] sm:$0xff]
        %v1049 = vld [vmem:[%s361 + $0xaa8] sm:$0xff]
        %v1050 = vld [vmem:[%s361 + $0xab0] sm:$0xff]
        %v1051 = vld [vmem:[%s361 + $0xab8] sm:$0xff]
        %v1052 = vld [vmem:[%s361 + $0xac0] sm:$0xff]
        %v1053 = vld [vmem:[%s361 + $0xac8] sm:$0xff]
        %v1054 = vld [vmem:[%s361 + $0xad0] sm:$0xff]
        %v1055 = vld [vmem:[%s361 + $0xad8] sm:$0xff]
        %v1056 = vld [vmem:[%s361 + $0xae0] sm:$0xff]
        %v1057 = vld [vmem:[%s361 + $0xae8] sm:$0xff]
        %v1058 = vld [vmem:[%s361 + $0xaf0] sm:$0xff]
        %v1059 = vld [vmem:[%s361 + $0xaf8] sm:$0xff]
        %v1060 = vld [vmem:[%s361 + $0xb00] sm:$0xff]
        %v1061 = vld [vmem:[%s361 + $0xb08] sm:$0xff]
        %v1062 = vld [vmem:[%s361 + $0xb10] sm:$0xff]
        %v1063 = vld [vmem:[%s361 + $0xb18] sm:$0xff]
        %v1064 = vld [vmem:[%s361 + $0xb20] sm:$0xff]
        %v1065 = vld [vmem:[%s361 + $0xb28] sm:$0xff]
        %v1066 = vld [vmem:[%s361 + $0xb30] sm:$0xff]
        %v1067 = vld [vmem:[%s361 + $0xb38] sm:$0xff]
        %v1068 = vld [vmem:[%s361 + $0xb40] sm:$0xff]
        %v1069 = vld [vmem:[%s361 + $0xb48] sm:$0xff]
        %v1070 = vld [vmem:[%s361 + $0xb50] sm:$0xff]
        %v1071 = vld [vmem:[%s361 + $0xb58] sm:$0xff]
        %v1072 = vld [vmem:[%s361 + $0xb60] sm:$0xff]
        %v1073 = vld [vmem:[%s361 + $0xb68] sm:$0xff]
        %v1074 = vld [vmem:[%s361 + $0xb70] sm:$0xff]
        %v1075 = vld [vmem:[%s361 + $0xb78] sm:$0xff]
        %v1076 = vld [vmem:[%s361 + $0xb80] sm:$0xff]
        %v1077 = vld [vmem:[%s361 + $0xb88] sm:$0xff]
        %v1078 = vld [vmem:[%s361 + $0xb90] sm:$0xff]
        %v1079 = vld [vmem:[%s361 + $0xb98] sm:$0xff]
        %v1080 = vld [vmem:[%s361 + $0xba0] sm:$0xff]
        %v1081 = vld [vmem:[%s361 + $0xba8] sm:$0xff]
        %v1082 = vld [vmem:[%s361 + $0xbb0] sm:$0xff]
        %v1083 = vld [vmem:[%s361 + $0xbb8] sm:$0xff]
        %v1084 = vld [vmem:[%s361 + $0xbc0] sm:$0xff]
        %v1085 = vld [vmem:[%s361 + $0xbc8] sm:$0xff]
        %v1086 = vld [vmem:[%s361 + $0xbd0] sm:$0xff]
        %v1087 = vld [vmem:[%s361 + $0xbd8] sm:$0xff]
        %v1088 = vld [vmem:[%s361 + $0xbe0] sm:$0xff]
        %v1089 = vld [vmem:[%s361 + $0xbe8] sm:$0xff]
        %v1090 = vld [vmem:[%s361 + $0xbf0] sm:$0xff]
        %v1091 = vld [vmem:[%s361 + $0xbf8] sm:$0xff]
        %v1092 = vld [vmem:[%s361 + $0xc00] sm:$0xff]
        %v1093 = vld [vmem:[%s361 + $0xc08] sm:$0xff]
        %v1094 = vld [vmem:[%s361 + $0xc10] sm:$0xff]
        %v1095 = vld [vmem:[%s361 + $0xc18] sm:$0xff]
        %v1096 = vld [vmem:[%s361 + $0xc20] sm:$0xff]
        %v1097 = vld [vmem:[%s361 + $0xc28] sm:$0xff]
        %v1098 = vld [vmem:[%s361 + $0xc30] sm:$0xff]
        %v1099 = vld [vmem:[%s361 + $0xc38] sm:$0xff]
        %v1100 = vld [vmem:[%s361 + $0xc40] sm:$0xff]
        %v1101 = vld [vmem:[%s361 + $0xc48] sm:$0xff]
        %v1102 = vld [vmem:[%s361 + $0xc50] sm:$0xff]
        %v1103 = vld [vmem:[%s361 + $0xc58] sm:$0xff]
        %v1104 = vld [vmem:[%s361 + $0xc60] sm:$0xff]
        %v1105 = vld [vmem:[%s361 + $0xc68] sm:$0xff]
        %v1106 = vld [vmem:[%s361 + $0xc70] sm:$0xff]
        %v1107 = vld [vmem:[%s361 + $0xc78] sm:$0xff]
        %v1108 = vld [vmem:[%s361 + $0xc80] sm:$0xff]
        %v1109 = vld [vmem:[%s361 + $0xc88] sm:$0xff]
        %v1110 = vld [vmem:[%s361 + $0xc90] sm:$0xff]
        %v1111 = vld [vmem:[%s361 + $0xc98] sm:$0xff]
        %v1112 = vld [vmem:[%s361 + $0xca0] sm:$0xff]
        %v1113 = vld [vmem:[%s361 + $0xca8] sm:$0xff]
        %v1114 = vld [vmem:[%s361 + $0xcb0] sm:$0xff]
        %v1115 = vld [vmem:[%s361 + $0xcb8] sm:$0xff]
        %v1116 = vld [vmem:[%s361 + $0xcc0] sm:$0xff]
        %v1117 = vld [vmem:[%s361 + $0xcc8] sm:$0xff]
        %v1118 = vld [vmem:[%s361 + $0xcd0] sm:$0xff]
        %v1119 = vld [vmem:[%s361 + $0xcd8] sm:$0xff]
        %v1120 = vld [vmem:[%s361 + $0xce0] sm:$0xff]
        %v1121 = vld [vmem:[%s361 + $0xce8] sm:$0xff]
        %v1122 = vld [vmem:[%s361 + $0xcf0] sm:$0xff]
        %v1123 = vld [vmem:[%s361 + $0xcf8] sm:$0xff]
        %v1124 = vld [vmem:[%s361 + $0xd00] sm:$0xff]
        %v1125 = vld [vmem:[%s361 + $0xd08] sm:$0xff]
        %v1126 = vld [vmem:[%s361 + $0xd10] sm:$0xff]
        %v1127 = vld [vmem:[%s361 + $0xd18] sm:$0xff]
        %v1128 = vld [vmem:[%s361 + $0xd20] sm:$0xff]
        %v1129 = vld [vmem:[%s361 + $0xd28] sm:$0xff]
        %v1130 = vld [vmem:[%s361 + $0xd30] sm:$0xff]
        %v1131 = vld [vmem:[%s361 + $0xd38] sm:$0xff]
        %v1132 = vld [vmem:[%s361 + $0xd40] sm:$0xff]
        %v1133 = vld [vmem:[%s361 + $0xd48] sm:$0xff]
        %v1134 = vld [vmem:[%s361 + $0xd50] sm:$0xff]
        %v1135 = vld [vmem:[%s361 + $0xd58] sm:$0xff]
        %v1136 = vld [vmem:[%s361 + $0xd60] sm:$0xff]
        %v1137 = vld [vmem:[%s361 + $0xd68] sm:$0xff]
        %v1138 = vld [vmem:[%s361 + $0xd70] sm:$0xff]
        %v1139 = vld [vmem:[%s361 + $0xd78] sm:$0xff]
        %v1140 = vld [vmem:[%s361 + $0xd80] sm:$0xff]
        %v1141 = vld [vmem:[%s361 + $0xd88] sm:$0xff]
        %v1142 = vld [vmem:[%s361 + $0xd90] sm:$0xff]
        %v1143 = vld [vmem:[%s361 + $0xd98] sm:$0xff]
        %v1144 = vld [vmem:[%s361 + $0xda0] sm:$0xff]
        %v1145 = vld [vmem:[%s361 + $0xda8] sm:$0xff]
        %v1146 = vld [vmem:[%s361 + $0xdb0] sm:$0xff]
        %v1147 = vld [vmem:[%s361 + $0xdb8] sm:$0xff]
        %v1148 = vld [vmem:[%s361 + $0xdc0] sm:$0xff]
        %v1149 = vld [vmem:[%s361 + $0xdc8] sm:$0xff]
        %v1150 = vld [vmem:[%s361 + $0xdd0] sm:$0xff]
        %v1151 = vld [vmem:[%s361 + $0xdd8] sm:$0xff]
        %v1152 = vld [vmem:[%s361 + $0xde0] sm:$0xff]
        %v1153 = vld [vmem:[%s361 + $0xde8] sm:$0xff]
        %v1154 = vld [vmem:[%s361 + $0xdf0] sm:$0xff]
        %v1155 = vld [vmem:[%s361 + $0xdf8] sm:$0xff]
        %v1156 = vld [vmem:[%s361 + $0xe00] sm:$0xff]
        %v1157 = vld [vmem:[%s361 + $0xe08] sm:$0xff]
        %v1158 = vld [vmem:[%s361 + $0xe10] sm:$0xff]
        %v1159 = vld [vmem:[%s361 + $0xe18] sm:$0xff]
        %v1160 = vld [vmem:[%s361 + $0xe20] sm:$0xff]
        %v1161 = vld [vmem:[%s361 + $0xe28] sm:$0xff]
        %v1162 = vld [vmem:[%s361 + $0xe30] sm:$0xff]
        %v1163 = vld [vmem:[%s361 + $0xe38] sm:$0xff]
        %v1164 = vld [vmem:[%s361 + $0xe40] sm:$0xff]
        %v1165 = vld [vmem:[%s361 + $0xe48] sm:$0xff]
        %v1166 = vld [vmem:[%s361 + $0xe50] sm:$0xff]
        %v1167 = vld [vmem:[%s361 + $0xe58] sm:$0xff]
        %v1168 = vld [vmem:[%s361 + $0xe60] sm:$0xff]
        %v1169 = vld [vmem:[%s361 + $0xe68] sm:$0xff]
        %v1170 = vld [vmem:[%s361 + $0xe70] sm:$0xff]
        %v1171 = vld [vmem:[%s361 + $0xe78] sm:$0xff]
        %v1172 = vld [vmem:[%s361 + $0xe80] sm:$0xff]
        %v1173 = vld [vmem:[%s361 + $0xe88] sm:$0xff]
        %v1174 = vld [vmem:[%s361 + $0xe90] sm:$0xff]
        %v1175 = vld [vmem:[%s361 + $0xe98] sm:$0xff]
        %v1176 = vld [vmem:[%s361 + $0xea0] sm:$0xff]
        %v1177 = vld [vmem:[%s361 + $0xea8] sm:$0xff]
        %v1178 = vld [vmem:[%s361 + $0xeb0] sm:$0xff]
        %v1179 = vld [vmem:[%s361 + $0xeb8] sm:$0xff]
        %v1180 = vld [vmem:[%s361 + $0xec0] sm:$0xff]
        %v1181 = vld [vmem:[%s361 + $0xec8] sm:$0xff]
        %v1182 = vld [vmem:[%s361 + $0xed0] sm:$0xff]
        %v1183 = vld [vmem:[%s361 + $0xed8] sm:$0xff]
        %v1184 = vld [vmem:[%s361 + $0xee0] sm:$0xff]
        %v1185 = vld [vmem:[%s361 + $0xee8] sm:$0xff]
        %v1186 = vld [vmem:[%s361 + $0xef0] sm:$0xff]
        %v1187 = vld [vmem:[%s361 + $0xef8] sm:$0xff]
        %v1188 = vld [vmem:[%s361 + $0xf00] sm:$0xff]
        %v1189 = vld [vmem:[%s361 + $0xf08] sm:$0xff]
        %v1190 = vld [vmem:[%s361 + $0xf10] sm:$0xff]
        %v1191 = vld [vmem:[%s361 + $0xf18] sm:$0xff]
        %v1192 = vld [vmem:[%s361 + $0xf20] sm:$0xff]
        %v1193 = vld [vmem:[%s361 + $0xf28] sm:$0xff]
        %v1194 = vld [vmem:[%s361 + $0xf30] sm:$0xff]
        %v1195 = vld [vmem:[%s361 + $0xf38] sm:$0xff]
        %v1196 = vld [vmem:[%s361 + $0xf40] sm:$0xff]
        %v1197 = vld [vmem:[%s361 + $0xf48] sm:$0xff]
        %v1198 = vld [vmem:[%s361 + $0xf50] sm:$0xff]
        %v1199 = vld [vmem:[%s361 + $0xf58] sm:$0xff]
        %v1200 = vld [vmem:[%s361 + $0xf60] sm:$0xff]
        %v1201 = vld [vmem:[%s361 + $0xf68] sm:$0xff]
        %v1202 = vld [vmem:[%s361 + $0xf70] sm:$0xff]
        %v1203 = vld [vmem:[%s361 + $0xf78] sm:$0xff]
        %v1204 = vld [vmem:[%s361 + $0xf80] sm:$0xff]
        %v1205 = vld [vmem:[%s361 + $0xf88] sm:$0xff]
        %v1206 = vld [vmem:[%s361 + $0xf90] sm:$0xff]
        %v1207 = vld [vmem:[%s361 + $0xf98] sm:$0xff]
        %v1208 = vld [vmem:[%s361 + $0xfa0] sm:$0xff]
        %v1209 = vld [vmem:[%s361 + $0xfa8] sm:$0xff]
        %v1210 = vld [vmem:[%s361 + $0xfb0] sm:$0xff]
        %v1211 = vld [vmem:[%s361 + $0xfb8] sm:$0xff]
        %v1212 = vld [vmem:[%s361 + $0xfc0] sm:$0xff]
        %v1213 = vld [vmem:[%s361 + $0xfc8] sm:$0xff]
        %v1214 = vld [vmem:[%s361 + $0xfd0] sm:$0xff]
        %v1215 = vld [vmem:[%s361 + $0xfd8] sm:$0xff]
        %v1216 = vld [vmem:[%s361 + $0xfe0] sm:$0xff]
        %v1217 = vld [vmem:[%s361 + $0xfe8] sm:$0xff]
        %v1218 = vld [vmem:[%s361 + $0xff0] sm:$0xff]
        %v1219 = vld [vmem:[%s361 + $0xff8] sm:$0xff]
        %v1220 = vld [vmem:[%s361 + $0x1000] sm:$0xff]
        %v1221 = vld [vmem:[%s361 + $0x1008] sm:$0xff]
        %v1222 = vld [vmem:[%s361 + $0x1010] sm:$0xff]
        %v1223 = vld [vmem:[%s361 + $0x1018] sm:$0xff]
        %v1224 = vld [vmem:[%s361 + $0x1020] sm:$0xff]
        %v1225 = vld [vmem:[%s361 + $0x1028] sm:$0xff]
        %v1226 = vld [vmem:[%s361 + $0x1030] sm:$0xff]
        %v1227 = vld [vmem:[%s361 + $0x1038] sm:$0xff]
        %v1228 = vld [vmem:[%s361 + $0x1040] sm:$0xff]
        %v1229 = vld [vmem:[%s361 + $0x1048] sm:$0xff]
        %v1230 = vld [vmem:[%s361 + $0x1050] sm:$0xff]
        %v1231 = vld [vmem:[%s361 + $0x1058] sm:$0xff]
        %v1232 = vld [vmem:[%s361 + $0x1060] sm:$0xff]
        %v1233 = vld [vmem:[%s361 + $0x1068] sm:$0xff]
        %v1234 = vld [vmem:[%s361 + $0x1070] sm:$0xff]
        %v1235 = vld [vmem:[%s361 + $0x1078] sm:$0xff]
        %v1236 = vld [vmem:[%s361 + $0x1080] sm:$0xff]
        %v1237 = vld [vmem:[%s361 + $0x1088] sm:$0xff]
        %v1238 = vld [vmem:[%s361 + $0x1090] sm:$0xff]
        %v1239 = vld [vmem:[%s361 + $0x1098] sm:$0xff]
        %v1240 = vld [vmem:[%s361 + $0x10a0] sm:$0xff]
        %v1241 = vld [vmem:[%s361 + $0x10a8] sm:$0xff]
        %v1242 = vld [vmem:[%s361 + $0x10b0] sm:$0xff]
        %v1243 = vld [vmem:[%s361 + $0x10b8] sm:$0xff]
        %v1244 = vld [vmem:[%s361 + $0x10c0] sm:$0xff]
        %v1245 = vld [vmem:[%s361 + $0x10c8] sm:$0xff]
        %v1246 = vld [vmem:[%s361 + $0x10d0] sm:$0xff]
        %v1247 = vld [vmem:[%s361 + $0x10d8] sm:$0xff]
        %v1248 = vld [vmem:[%s361 + $0x10e0] sm:$0xff]
        %v1249 = vld [vmem:[%s361 + $0x10e8] sm:$0xff]
        %v1250 = vld [vmem:[%s361 + $0x10f0] sm:$0xff]
        %v1251 = vld [vmem:[%s361 + $0x10f8] sm:$0xff]
        %v1252 = vld [vmem:[%s361 + $0x1100] sm:$0xff]
        %v1253 = vld [vmem:[%s361 + $0x1108] sm:$0xff]
        %v1254 = vld [vmem:[%s361 + $0x1110] sm:$0xff]
        %v1255 = vld [vmem:[%s361 + $0x1118] sm:$0xff]
        %v1256 = vld [vmem:[%s361 + $0x1120] sm:$0xff]
        %v1257 = vld [vmem:[%s361 + $0x1128] sm:$0xff]
        %v1258 = vld [vmem:[%s361 + $0x1130] sm:$0xff]
        %v1259 = vld [vmem:[%s361 + $0x1138] sm:$0xff]
        %v1260 = vld [vmem:[%s361 + $0x1140] sm:$0xff]
        %v1261 = vld [vmem:[%s361 + $0x1148] sm:$0xff]
        %v1262 = vld [vmem:[%s361 + $0x1150] sm:$0xff]
        %v1263 = vld [vmem:[%s361 + $0x1158] sm:$0xff]
        %v1264 = vld [vmem:[%s361 + $0x1160] sm:$0xff]
        %v1265 = vld [vmem:[%s361 + $0x1168] sm:$0xff]
        %v1266 = vld [vmem:[%s361 + $0x1170] sm:$0xff]
        %v1267 = vld [vmem:[%s361 + $0x1178] sm:$0xff]
        %v1268 = vld [vmem:[%s361 + $0x1180] sm:$0xff]
        %v1269 = vld [vmem:[%s361 + $0x1188] sm:$0xff]
        %v1270 = vld [vmem:[%s361 + $0x1190] sm:$0xff]
        %v1271 = vld [vmem:[%s361 + $0x1198] sm:$0xff]
        %v1272 = vld [vmem:[%s361 + $0x11a0] sm:$0xff]
        %v1273 = vld [vmem:[%s361 + $0x11a8] sm:$0xff]
        %v1274 = vld [vmem:[%s361 + $0x11b0] sm:$0xff]
        %v1275 = vld [vmem:[%s361 + $0x11b8] sm:$0xff]
        %v1276 = vld [vmem:[%s361 + $0x11c0] sm:$0xff]
        %v1277 = vld [vmem:[%s361 + $0x11c8] sm:$0xff]
        %v1278 = vld [vmem:[%s361 + $0x11d0] sm:$0xff]
        %v1279 = vld [vmem:[%s361 + $0x11d8] sm:$0xff]
        %v1280 = vld [vmem:[%s361 + $0x11e0] sm:$0xff]
        %v1281 = vld [vmem:[%s361 + $0x11e8] sm:$0xff]
        %v1282 = vld [vmem:[%s361 + $0x11f0] sm:$0xff]
        %v1283 = vld [vmem:[%s361 + $0x11f8] sm:$0xff]
        %v1284 = vld [vmem:[%s361 + $0x1200] sm:$0xff]
        %v1285 = vld [vmem:[%s361 + $0x1208] sm:$0xff]
        %v1286 = vld [vmem:[%s361 + $0x1210] sm:$0xff]
        %v1287 = vld [vmem:[%s361 + $0x1218] sm:$0xff]
        %v1288 = vld [vmem:[%s361 + $0x1220] sm:$0xff]
        %v1289 = vld [vmem:[%s361 + $0x1228] sm:$0xff]
        %v1290 = vld [vmem:[%s361 + $0x1230] sm:$0xff]
        %v1291 = vld [vmem:[%s361 + $0x1238] sm:$0xff]
        %v1292 = vld [vmem:[%s361 + $0x1240] sm:$0xff]
        %v1293 = vld [vmem:[%s361 + $0x1248] sm:$0xff]
        %v1294 = vld [vmem:[%s361 + $0x1250] sm:$0xff]
        %v1295 = vld [vmem:[%s361 + $0x1258] sm:$0xff]
        %v1296 = vld [vmem:[%s361 + $0x1260] sm:$0xff]
        %v1297 = vld [vmem:[%s361 + $0x1268] sm:$0xff]
        %v1298 = vld [vmem:[%s361 + $0x1270] sm:$0xff]
        %v1299 = vld [vmem:[%s361 + $0x1278] sm:$0xff]
        %v1300 = vld [vmem:[%s361 + $0x1280] sm:$0xff]
        %v1301 = vld [vmem:[%s361 + $0x1288] sm:$0xff]
        %v1302 = vld [vmem:[%s361 + $0x1290] sm:$0xff]
        %v1303 = vld [vmem:[%s361 + $0x1298] sm:$0xff]
        %v1304 = vld [vmem:[%s361 + $0x12a0] sm:$0xff]
        %v1305 = vld [vmem:[%s361 + $0x12a8] sm:$0xff]
        %v1306 = vld [vmem:[%s361 + $0x12b0] sm:$0xff]
        %v1307 = vld [vmem:[%s361 + $0x12b8] sm:$0xff]
        %v1308 = vld [vmem:[%s361 + $0x12c0] sm:$0xff]
        %v1309 = vld [vmem:[%s361 + $0x12c8] sm:$0xff]
        %v1310 = vld [vmem:[%s361 + $0x12d0] sm:$0xff]
        %v1311 = vld [vmem:[%s361 + $0x12d8] sm:$0xff]
        %v1312 = vld [vmem:[%s361 + $0x12e0] sm:$0xff]
        %v1313 = vld [vmem:[%s361 + $0x12e8] sm:$0xff]
        %v1314 = vld [vmem:[%s361 + $0x12f0] sm:$0xff]
        %v1315 = vld [vmem:[%s361 + $0x12f8] sm:$0xff]
        %v1316 = vld [vmem:[%s361 + $0x1300] sm:$0xff]
        %v1317 = vld [vmem:[%s361 + $0x1308] sm:$0xff]
        %v1318 = vld [vmem:[%s361 + $0x1310] sm:$0xff]
        %v1319 = vld [vmem:[%s361 + $0x1318] sm:$0xff]
        %v1320 = vld [vmem:[%s361 + $0x1320] sm:$0xff]
        %v1321 = vld [vmem:[%s361 + $0x1328] sm:$0xff]
        %v1322 = vld [vmem:[%s361 + $0x1330] sm:$0xff]
        %v1323 = vld [vmem:[%s361 + $0x1338] sm:$0xff]
        %v1324 = vld [vmem:[%s361 + $0x1340] sm:$0xff]
        %v1325 = vld [vmem:[%s361 + $0x1348] sm:$0xff]
        %v1326 = vld [vmem:[%s361 + $0x1350] sm:$0xff]
        %v1327 = vld [vmem:[%s361 + $0x1358] sm:$0xff]
        %v1328 = vld [vmem:[%s361 + $0x1360] sm:$0xff]
        %v1329 = vld [vmem:[%s361 + $0x1368] sm:$0xff]
        %v1330 = vld [vmem:[%s361 + $0x1370] sm:$0xff]
        %v1331 = vld [vmem:[%s361 + $0x1378] sm:$0xff]
        %v1332 = vld [vmem:[%s361 + $0x1380] sm:$0xff]
        %v1333 = vld [vmem:[%s361 + $0x1388] sm:$0xff]
        %v1334 = vld [vmem:[%s361 + $0x1390] sm:$0xff]
        %v1335 = vld [vmem:[%s361 + $0x1398] sm:$0xff]
        %v1336 = vld [vmem:[%s361 + $0x13a0] sm:$0xff]
        %v1337 = vld [vmem:[%s361 + $0x13a8] sm:$0xff]
        %v1338 = vld [vmem:[%s361 + $0x13b0] sm:$0xff]
        %v1339 = vld [vmem:[%s361 + $0x13b8] sm:$0xff]
        %v1340 = vld [vmem:[%s361 + $0x13c0] sm:$0xff]
        %v1341 = vld [vmem:[%s361 + $0x13c8] sm:$0xff]
        %v1342 = vld [vmem:[%s361 + $0x13d0] sm:$0xff]
        %v1343 = vld [vmem:[%s361 + $0x13d8] sm:$0xff]
        %v1344 = vld [vmem:[%s361 + $0x13e0] sm:$0xff]
        %v1345 = vld [vmem:[%s361 + $0x13e8] sm:$0xff]
        %v1346 = vld [vmem:[%s361 + $0x13f0] sm:$0xff]
        %v1347 = vld [vmem:[%s361 + $0x13f8] sm:$0xff]
        %v1348 = vld [vmem:[%s361 + $0x1400] sm:$0xff]
        %v1349 = vld [vmem:[%s361 + $0x1408] sm:$0xff]
        %v1350 = vld [vmem:[%s361 + $0x1410] sm:$0xff]
        %v1351 = vld [vmem:[%s361 + $0x1418] sm:$0xff]
        %v1352 = vld [vmem:[%s361 + $0x1420] sm:$0xff]
        %v1353 = vld [vmem:[%s361 + $0x1428] sm:$0xff]
        %v1354 = vld [vmem:[%s361 + $0x1430] sm:$0xff]
        %v1355 = vld [vmem:[%s361 + $0x1438] sm:$0xff]
        %v1356 = vld [vmem:[%s361 + $0x1440] sm:$0xff]
        %v1357 = vld [vmem:[%s361 + $0x1448] sm:$0xff]
        %v1358 = vld [vmem:[%s361 + $0x1450] sm:$0xff]
        %v1359 = vld [vmem:[%s361 + $0x1458] sm:$0xff]
        %v1360 = vld [vmem:[%s361 + $0x1460] sm:$0xff]
        %v1361 = vld [vmem:[%s361 + $0x1468] sm:$0xff]
        %v1362 = vld [vmem:[%s361 + $0x1470] sm:$0xff]
        %v1363 = vld [vmem:[%s361 + $0x1478] sm:$0xff]
        %v1364 = vld [vmem:[%s361 + $0x1480] sm:$0xff]
        %v1365 = vld [vmem:[%s361 + $0x1488] sm:$0xff]
        %v1366 = vld [vmem:[%s361 + $0x1490] sm:$0xff]
        %v1367 = vld [vmem:[%s361 + $0x1498] sm:$0xff]
        %v1368 = vld [vmem:[%s361 + $0x14a0] sm:$0xff]
        %v1369 = vld [vmem:[%s361 + $0x14a8] sm:$0xff]
        %v1370 = vld [vmem:[%s361 + $0x14b0] sm:$0xff]
        %v1371 = vld [vmem:[%s361 + $0x14b8] sm:$0xff]
        %v1372 = vld [vmem:[%s361 + $0x14c0] sm:$0xff]
        %v1373 = vld [vmem:[%s361 + $0x14c8] sm:$0xff]
        %v1374 = vld [vmem:[%s361 + $0x14d0] sm:$0xff]
        %v1375 = vld [vmem:[%s361 + $0x14d8] sm:$0xff]
        %v1376 = vld [vmem:[%s361 + $0x14e0] sm:$0xff]
        %v1377 = vld [vmem:[%s361 + $0x14e8] sm:$0xff]
        %v1378 = vld [vmem:[%s361 + $0x14f0] sm:$0xff]
        %v1379 = vld [vmem:[%s361 + $0x14f8] sm:$0xff]
        %v1380 = vld [vmem:[%s361 + $0x1500] sm:$0xff]
        %v1381 = vld [vmem:[%s361 + $0x1508] sm:$0xff]
        %v1382 = vld [vmem:[%s361 + $0x1510] sm:$0xff]
        %v1383 = vld [vmem:[%s361 + $0x1518] sm:$0xff]
        %v1384 = vld [vmem:[%s361 + $0x1520] sm:$0xff]
        %v1385 = vld [vmem:[%s361 + $0x1528] sm:$0xff]
        %v1386 = vld [vmem:[%s361 + $0x1530] sm:$0xff]
        %v1387 = vld [vmem:[%s361 + $0x1538] sm:$0xff]
        %v1388 = vld [vmem:[%s361 + $0x1540] sm:$0xff]
        %v1389 = vld [vmem:[%s361 + $0x1548] sm:$0xff]
        %v1390 = vld [vmem:[%s361 + $0x1550] sm:$0xff]
        %v1391 = vld [vmem:[%s361 + $0x1558] sm:$0xff]
        %v1392 = vld [vmem:[%s361 + $0x1560] sm:$0xff]
        %v1393 = vld [vmem:[%s361 + $0x1568] sm:$0xff]
        %v1394 = vld [vmem:[%s361 + $0x1570] sm:$0xff]
        %v1395 = vld [vmem:[%s361 + $0x1578] sm:$0xff]
        %v1396 = vld [vmem:[%s361 + $0x1580] sm:$0xff]
        %v1397 = vld [vmem:[%s361 + $0x1588] sm:$0xff]
        %v1398 = vld [vmem:[%s361 + $0x1590] sm:$0xff]
        %v1399 = vld [vmem:[%s361 + $0x1598] sm:$0xff]
        %v1400 = vld [vmem:[%s361 + $0x15a0] sm:$0xff]
        %v1401 = vld [vmem:[%s361 + $0x15a8] sm:$0xff]
        %v1402 = vld [vmem:[%s361 + $0x15b0] sm:$0xff]
        %v1403 = vld [vmem:[%s361 + $0x15b8] sm:$0xff]
        %v1404 = vld [vmem:[%s361 + $0x15c0] sm:$0xff]
        %v1405 = vld [vmem:[%s361 + $0x15c8] sm:$0xff]
        %v1406 = vld [vmem:[%s361 + $0x15d0] sm:$0xff]
        %v1407 = vld [vmem:[%s361 + $0x15d8] sm:$0xff]
        %v1408 = vld [vmem:[%s361 + $0x15e0] sm:$0xff]
        %v1409 = vld [vmem:[%s361 + $0x15e8] sm:$0xff]
        %v1410 = vld [vmem:[%s361 + $0x15f0] sm:$0xff]
        %v1411 = vld [vmem:[%s361 + $0x15f8] sm:$0xff]
        %v1412 = vld [vmem:[%s361 + $0x1600] sm:$0xff]
        %v1413 = vld [vmem:[%s361 + $0x1608] sm:$0xff]
        %v1414 = vld [vmem:[%s361 + $0x1610] sm:$0xff]
        %v1415 = vld [vmem:[%s361 + $0x1618] sm:$0xff]
        %v1416 = vld [vmem:[%s361 + $0x1620] sm:$0xff]
        %v1417 = vld [vmem:[%s361 + $0x1628] sm:$0xff]
        %v1418 = vld [vmem:[%s361 + $0x1630] sm:$0xff]
        %v1419 = vld [vmem:[%s361 + $0x1638] sm:$0xff]
        %v1420 = vld [vmem:[%s361 + $0x1640] sm:$0xff]
        %v1421 = vld [vmem:[%s361 + $0x1648] sm:$0xff]
        %v1422 = vld [vmem:[%s361 + $0x1650] sm:$0xff]
        %v1423 = vld [vmem:[%s361 + $0x1658] sm:$0xff]
        %v1424 = vld [vmem:[%s361 + $0x1660] sm:$0xff]
        %v1425 = vld [vmem:[%s361 + $0x1668] sm:$0xff]
        %v1426 = vld [vmem:[%s361 + $0x1670] sm:$0xff]
        %v1427 = vld [vmem:[%s361 + $0x1678] sm:$0xff]
        %v1428 = vld [vmem:[%s361 + $0x1680] sm:$0xff]
        %v1429 = vld [vmem:[%s361 + $0x1688] sm:$0xff]
        %v1430 = vld [vmem:[%s361 + $0x1690] sm:$0xff]
        %v1431 = vld [vmem:[%s361 + $0x1698] sm:$0xff]
        %v1432 = vld [vmem:[%s361 + $0x16a0] sm:$0xff]
        %v1433 = vld [vmem:[%s361 + $0x16a8] sm:$0xff]
        %v1434 = vld [vmem:[%s361 + $0x16b0] sm:$0xff]
        %v1435 = vld [vmem:[%s361 + $0x16b8] sm:$0xff]
        %v1436 = vld [vmem:[%s361 + $0x16c0] sm:$0xff]
        %v1437 = vld [vmem:[%s361 + $0x16c8] sm:$0xff]
        %v1438 = vld [vmem:[%s361 + $0x16d0] sm:$0xff]
        %v1439 = vld [vmem:[%s361 + $0x16d8] sm:$0xff]
        %v1440 = vld [vmem:[%s361 + $0x16e0] sm:$0xff]
        %v1441 = vld [vmem:[%s361 + $0x16e8] sm:$0xff]
        %v1442 = vld [vmem:[%s361 + $0x16f0] sm:$0xff]
        %v1443 = vld [vmem:[%s361 + $0x16f8] sm:$0xff]
        %v1444 = vld [vmem:[%s361 + $0x1700] sm:$0xff]
        %v1445 = vld [vmem:[%s361 + $0x1708] sm:$0xff]
        %v1446 = vld [vmem:[%s361 + $0x1710] sm:$0xff]
        %v1447 = vld [vmem:[%s361 + $0x1718] sm:$0xff]
        %v1448 = vld [vmem:[%s361 + $0x1720] sm:$0xff]
        %v1449 = vld [vmem:[%s361 + $0x1728] sm:$0xff]
        %v1450 = vld [vmem:[%s361 + $0x1730] sm:$0xff]
        %v1451 = vld [vmem:[%s361 + $0x1738] sm:$0xff]
        %v1452 = vld [vmem:[%s361 + $0x1740] sm:$0xff]
        %v1453 = vld [vmem:[%s361 + $0x1748] sm:$0xff]
        %v1454 = vld [vmem:[%s361 + $0x1750] sm:$0xff]
        %v1455 = vld [vmem:[%s361 + $0x1758] sm:$0xff]
        %v1456 = vld [vmem:[%s361 + $0x1760] sm:$0xff]
        %v1457 = vld [vmem:[%s361 + $0x1768] sm:$0xff]
        %v1458 = vld [vmem:[%s361 + $0x1770] sm:$0xff]
        %v1459 = vld [vmem:[%s361 + $0x1778] sm:$0xff]
        %v1460 = vld [vmem:[%s361 + $0x1780] sm:$0xff]
        %v1461 = vld [vmem:[%s361 + $0x1788] sm:$0xff]
        %v1462 = vld [vmem:[%s361 + $0x1790] sm:$0xff]
        %v1463 = vld [vmem:[%s361 + $0x1798] sm:$0xff]
        %v1464 = vld [vmem:[%s361 + $0x17a0] sm:$0xff]
        %v1465 = vld [vmem:[%s361 + $0x17a8] sm:$0xff]
        %v1466 = vld [vmem:[%s361 + $0x17b0] sm:$0xff]
        %v1467 = vld [vmem:[%s361 + $0x17b8] sm:$0xff]
        %v1468 = vld [vmem:[%s361 + $0x17c0] sm:$0xff]
        %v1469 = vld [vmem:[%s361 + $0x17c8] sm:$0xff]
        %v1470 = vld [vmem:[%s361 + $0x17d0] sm:$0xff]
        %v1471 = vld [vmem:[%s361 + $0x17d8] sm:$0xff]
        %v1472 = vld [vmem:[%s361 + $0x17e0] sm:$0xff]
        %v1473 = vld [vmem:[%s361 + $0x17e8] sm:$0xff]
        %v1474 = vld [vmem:[%s361 + $0x17f0] sm:$0xff]
        %v1475 = vld [vmem:[%s361 + $0x17f8] sm:$0xff]
        %v1476 = vld [vmem:[%s361 + $0x1800] sm:$0xff]
        %v1477 = vld [vmem:[%s361 + $0x1808] sm:$0xff]
        %v1478 = vld [vmem:[%s361 + $0x1810] sm:$0xff]
        %v1479 = vld [vmem:[%s361 + $0x1818] sm:$0xff]
        %v1480 = vld [vmem:[%s361 + $0x1820] sm:$0xff]
        %v1481 = vld [vmem:[%s361 + $0x1828] sm:$0xff]
        %v1482 = vld [vmem:[%s361 + $0x1830] sm:$0xff]
        %v1483 = vld [vmem:[%s361 + $0x1838] sm:$0xff]
        %v1484 = vld [vmem:[%s361 + $0x1840] sm:$0xff]
        %v1485 = vld [vmem:[%s361 + $0x1848] sm:$0xff]
        %v1486 = vld [vmem:[%s361 + $0x1850] sm:$0xff]
        %v1487 = vld [vmem:[%s361 + $0x1858] sm:$0xff]
        %v1488 = vld [vmem:[%s361 + $0x1860] sm:$0xff]
        %v1489 = vld [vmem:[%s361 + $0x1868] sm:$0xff]
        %v1490 = vld [vmem:[%s361 + $0x1870] sm:$0xff]
        %v1491 = vld [vmem:[%s361 + $0x1878] sm:$0xff]
        %v1492 = vld [vmem:[%s361 + $0x1880] sm:$0xff]
        %v1493 = vld [vmem:[%s361 + $0x1888] sm:$0xff]
        %v1494 = vld [vmem:[%s361 + $0x1890] sm:$0xff]
        %v1495 = vld [vmem:[%s361 + $0x1898] sm:$0xff]
        %v1496 = vld [vmem:[%s361 + $0x18a0] sm:$0xff]
        %v1497 = vld [vmem:[%s361 + $0x18a8] sm:$0xff]
        %v1498 = vld [vmem:[%s361 + $0x18b0] sm:$0xff]
        %v1499 = vld [vmem:[%s361 + $0x18b8] sm:$0xff]
        %v1500 = vld [vmem:[%s361 + $0x18c0] sm:$0xff]
        %v1501 = vld [vmem:[%s361 + $0x18c8] sm:$0xff]
        %v1502 = vld [vmem:[%s361 + $0x18d0] sm:$0xff]
        %v1503 = vld [vmem:[%s361 + $0x18d8] sm:$0xff]
        %v1504 = vld [vmem:[%s361 + $0x18e0] sm:$0xff]
        %v1505 = vld [vmem:[%s361 + $0x18e8] sm:$0xff]
        %v1506 = vld [vmem:[%s361 + $0x18f0] sm:$0xff]
        %v1507 = vld [vmem:[%s361 + $0x18f8] sm:$0xff]
        %v2308 = vunpack.c.l.b16 %v708
        %v2309 = vunpack.c.h.b16 %v708
        %v2310 = vunpack.c.l.b16 %v709
        %v2311 = vunpack.c.h.b16 %v709
        %v2312 = vunpack.c.l.b16 %v710
        %v2313 = vunpack.c.h.b16 %v710
        %v2314 = vunpack.c.l.b16 %v711
        %v2315 = vunpack.c.h.b16 %v711
        %v2316 = vunpack.c.l.b16 %v712
        %v2317 = vunpack.c.h.b16 %v712
        %v2318 = vunpack.c.l.b16 %v713
        %v2319 = vunpack.c.h.b16 %v713
        %v2320 = vunpack.c.l.b16 %v714
        %v2321 = vunpack.c.h.b16 %v714
        %v2322 = vunpack.c.l.b16 %v715
        %v2323 = vunpack.c.h.b16 %v715
        %v2324 = vunpack.c.l.b16 %v716
        %v2325 = vunpack.c.h.b16 %v716
        %v2326 = vunpack.c.l.b16 %v717
        %v2327 = vunpack.c.h.b16 %v717
        %v2328 = vunpack.c.l.b16 %v718
        %v2329 = vunpack.c.h.b16 %v718
        %v2330 = vunpack.c.l.b16 %v719
        %v2331 = vunpack.c.h.b16 %v719
        %v2332 = vunpack.c.l.b16 %v720
        %v2333 = vunpack.c.h.b16 %v720
        %v2334 = vunpack.c.l.b16 %v721
        %v2335 = vunpack.c.h.b16 %v721
        %v2336 = vunpack.c.l.b16 %v722
        %v2337 = vunpack.c.h.b16 %v722
        %v2338 = vunpack.c.l.b16 %v723
        %v2339 = vunpack.c.h.b16 %v723
        %v2340 = vunpack.c.l.b16 %v724
        %v2341 = vunpack.c.h.b16 %v724
        %v2342 = vunpack.c.l.b16 %v725
        %v2343 = vunpack.c.h.b16 %v725
        %v2344 = vunpack.c.l.b16 %v726
        %v2345 = vunpack.c.h.b16 %v726
        %v2346 = vunpack.c.l.b16 %v727
        %v2347 = vunpack.c.h.b16 %v727
        %v2348 = vunpack.c.l.b16 %v728
        %v2349 = vunpack.c.h.b16 %v728
        %v2350 = vunpack.c.l.b16 %v729
        %v2351 = vunpack.c.h.b16 %v729
        %v2352 = vunpack.c.l.b16 %v730
        %v2353 = vunpack.c.h.b16 %v730
        %v2354 = vunpack.c.l.b16 %v731
        %v2355 = vunpack.c.h.b16 %v731
        %v2356 = vunpack.c.l.b16 %v732
        %v2357 = vunpack.c.h.b16 %v732
        %v2358 = vunpack.c.l.b16 %v733
        %v2359 = vunpack.c.h.b16 %v733
        %v2360 = vunpack.c.l.b16 %v734
        %v2361 = vunpack.c.h.b16 %v734
        %v2362 = vunpack.c.l.b16 %v735
        %v2363 = vunpack.c.h.b16 %v735
        %v2364 = vunpack.c.l.b16 %v736
        %v2365 = vunpack.c.h.b16 %v736
        %v2366 = vunpack.c.l.b16 %v737
        %v2367 = vunpack.c.h.b16 %v737
        %v2368 = vunpack.c.l.b16 %v738
        %v2369 = vunpack.c.h.b16 %v738
        %v2370 = vunpack.c.l.b16 %v739
        %v2371 = vunpack.c.h.b16 %v739
        %v2372 = vunpack.c.l.b16 %v740
        %v2373 = vunpack.c.h.b16 %v740
        %v2374 = vunpack.c.l.b16 %v741
        %v2375 = vunpack.c.h.b16 %v741
        %v2376 = vunpack.c.l.b16 %v742
        %v2377 = vunpack.c.h.b16 %v742
        %v2378 = vunpack.c.l.b16 %v743
        %v2379 = vunpack.c.h.b16 %v743
        %v2380 = vunpack.c.l.b16 %v744
        %v2381 = vunpack.c.h.b16 %v744
        %v2382 = vunpack.c.l.b16 %v745
        %v2383 = vunpack.c.h.b16 %v745
        %v2384 = vunpack.c.l.b16 %v746
        %v2385 = vunpack.c.h.b16 %v746
        %v2386 = vunpack.c.l.b16 %v747
        %v2387 = vunpack.c.h.b16 %v747
        %v2388 = vunpack.c.l.b16 %v748
        %v2389 = vunpack.c.h.b16 %v748
        %v2390 = vunpack.c.l.b16 %v749
        %v2391 = vunpack.c.h.b16 %v749
        %v2392 = vunpack.c.l.b16 %v750
        %v2393 = vunpack.c.h.b16 %v750
        %v2394 = vunpack.c.l.b16 %v751
        %v2395 = vunpack.c.h.b16 %v751
        %v2396 = vunpack.c.l.b16 %v752
        %v2397 = vunpack.c.h.b16 %v752
        %v2398 = vunpack.c.l.b16 %v753
        %v2399 = vunpack.c.h.b16 %v753
        %v2400 = vunpack.c.l.b16 %v754
        %v2401 = vunpack.c.h.b16 %v754
        %v2402 = vunpack.c.l.b16 %v755
        %v2403 = vunpack.c.h.b16 %v755
        %v2404 = vunpack.c.l.b16 %v756
        %v2405 = vunpack.c.h.b16 %v756
        %v2406 = vunpack.c.l.b16 %v757
        %v2407 = vunpack.c.h.b16 %v757
        %v2408 = vunpack.c.l.b16 %v758
        %v2409 = vunpack.c.h.b16 %v758
        %v2410 = vunpack.c.l.b16 %v759
        %v2411 = vunpack.c.h.b16 %v759
        %v2412 = vunpack.c.l.b16 %v760
        %v2413 = vunpack.c.h.b16 %v760
        %v2414 = vunpack.c.l.b16 %v761
        %v2415 = vunpack.c.h.b16 %v761
        %v2416 = vunpack.c.l.b16 %v762
        %v2417 = vunpack.c.h.b16 %v762
        %v2418 = vunpack.c.l.b16 %v763
        %v2419 = vunpack.c.h.b16 %v763
        %v2420 = vunpack.c.l.b16 %v764
        %v2421 = vunpack.c.h.b16 %v764
        %v2422 = vunpack.c.l.b16 %v765
        %v2423 = vunpack.c.h.b16 %v765
        %v2424 = vunpack.c.l.b16 %v766
        %v2425 = vunpack.c.h.b16 %v766
        %v2426 = vunpack.c.l.b16 %v767
        %v2427 = vunpack.c.h.b16 %v767
        %v2428 = vunpack.c.l.b16 %v768
        %v2429 = vunpack.c.h.b16 %v768
        %v2430 = vunpack.c.l.b16 %v769
        %v2431 = vunpack.c.h.b16 %v769
        %v2432 = vunpack.c.l.b16 %v770
        %v2433 = vunpack.c.h.b16 %v770
        %v2434 = vunpack.c.l.b16 %v771
        %v2435 = vunpack.c.h.b16 %v771
        %v2436 = vunpack.c.l.b16 %v772
        %v2437 = vunpack.c.h.b16 %v772
        %v2438 = vunpack.c.l.b16 %v773
        %v2439 = vunpack.c.h.b16 %v773
        %v2440 = vunpack.c.l.b16 %v774
        %v2441 = vunpack.c.h.b16 %v774
        %v2442 = vunpack.c.l.b16 %v775
        %v2443 = vunpack.c.h.b16 %v775
        %v2444 = vunpack.c.l.b16 %v776
        %v2445 = vunpack.c.h.b16 %v776
        %v2446 = vunpack.c.l.b16 %v777
        %v2447 = vunpack.c.h.b16 %v777
        %v2448 = vunpack.c.l.b16 %v778
        %v2449 = vunpack.c.h.b16 %v778
        %v2450 = vunpack.c.l.b16 %v779
        %v2451 = vunpack.c.h.b16 %v779
        %v2452 = vunpack.c.l.b16 %v780
        %v2453 = vunpack.c.h.b16 %v780
        %v2454 = vunpack.c.l.b16 %v781
        %v2455 = vunpack.c.h.b16 %v781
        %v2456 = vunpack.c.l.b16 %v782
        %v2457 = vunpack.c.h.b16 %v782
        %v2458 = vunpack.c.l.b16 %v783
        %v2459 = vunpack.c.h.b16 %v783
        %v2460 = vunpack.c.l.b16 %v784
        %v2461 = vunpack.c.h.b16 %v784
        %v2462 = vunpack.c.l.b16 %v785
        %v2463 = vunpack.c.h.b16 %v785
        %v2464 = vunpack.c.l.b16 %v786
        %v2465 = vunpack.c.h.b16 %v786
        %v2466 = vunpack.c.l.b16 %v787
        %v2467 = vunpack.c.h.b16 %v787
        %v2468 = vunpack.c.l.b16 %v788
        %v2469 = vunpack.c.h.b16 %v788
        %v2470 = vunpack.c.l.b16 %v789
        %v2471 = vunpack.c.h.b16 %v789
        %v2472 = vunpack.c.l.b16 %v790
        %v2473 = vunpack.c.h.b16 %v790
        %v2474 = vunpack.c.l.b16 %v791
        %v2475 = vunpack.c.h.b16 %v791
        %v2476 = vunpack.c.l.b16 %v792
        %v2477 = vunpack.c.h.b16 %v792
        %v2478 = vunpack.c.l.b16 %v793
        %v2479 = vunpack.c.h.b16 %v793
        %v2480 = vunpack.c.l.b16 %v794
        %v2481 = vunpack.c.h.b16 %v794
        %v2482 = vunpack.c.l.b16 %v795
        %v2483 = vunpack.c.h.b16 %v795
        %v2484 = vunpack.c.l.b16 %v796
        %v2485 = vunpack.c.h.b16 %v796
        %v2486 = vunpack.c.l.b16 %v797
        %v2487 = vunpack.c.h.b16 %v797
        %v2488 = vunpack.c.l.b16 %v798
        %v2489 = vunpack.c.h.b16 %v798
        %v2490 = vunpack.c.l.b16 %v799
        %v2491 = vunpack.c.h.b16 %v799
        %v2492 = vunpack.c.l.b16 %v800
        %v2493 = vunpack.c.h.b16 %v800
        %v2494 = vunpack.c.l.b16 %v801
        %v2495 = vunpack.c.h.b16 %v801
        %v2496 = vunpack.c.l.b16 %v802
        %v2497 = vunpack.c.h.b16 %v802
        %v2498 = vunpack.c.l.b16 %v803
        %v2499 = vunpack.c.h.b16 %v803
        %v2500 = vunpack.c.l.b16 %v804
        %v2501 = vunpack.c.h.b16 %v804
        %v2502 = vunpack.c.l.b16 %v805
        %v2503 = vunpack.c.h.b16 %v805
        %v2504 = vunpack.c.l.b16 %v806
        %v2505 = vunpack.c.h.b16 %v806
        %v2506 = vunpack.c.l.b16 %v807
        %v2507 = vunpack.c.h.b16 %v807
        %v2508 = vunpack.c.l.b16 %v808
        %v2509 = vunpack.c.h.b16 %v808
        %v2510 = vunpack.c.l.b16 %v809
        %v2511 = vunpack.c.h.b16 %v809
        %v2512 = vunpack.c.l.b16 %v810
        %v2513 = vunpack.c.h.b16 %v810
        %v2514 = vunpack.c.l.b16 %v811
        %v2515 = vunpack.c.h.b16 %v811
        %v2516 = vunpack.c.l.b16 %v812
        %v2517 = vunpack.c.h.b16 %v812
        %v2518 = vunpack.c.l.b16 %v813
        %v2519 = vunpack.c.h.b16 %v813
        %v2520 = vunpack.c.l.b16 %v814
        %v2521 = vunpack.c.h.b16 %v814
        %v2522 = vunpack.c.l.b16 %v815
        %v2523 = vunpack.c.h.b16 %v815
        %v2524 = vunpack.c.l.b16 %v816
        %v2525 = vunpack.c.h.b16 %v816
        %v2526 = vunpack.c.l.b16 %v817
        %v2527 = vunpack.c.h.b16 %v817
        %v2528 = vunpack.c.l.b16 %v818
        %v2529 = vunpack.c.h.b16 %v818
        %v2530 = vunpack.c.l.b16 %v819
        %v2531 = vunpack.c.h.b16 %v819
        %v2532 = vunpack.c.l.b16 %v820
        %v2533 = vunpack.c.h.b16 %v820
        %v2534 = vunpack.c.l.b16 %v821
        %v2535 = vunpack.c.h.b16 %v821
        %v2536 = vunpack.c.l.b16 %v822
        %v2537 = vunpack.c.h.b16 %v822
        %v2538 = vunpack.c.l.b16 %v823
        %v2539 = vunpack.c.h.b16 %v823
        %v2540 = vunpack.c.l.b16 %v824
        %v2541 = vunpack.c.h.b16 %v824
        %v2542 = vunpack.c.l.b16 %v825
        %v2543 = vunpack.c.h.b16 %v825
        %v2544 = vunpack.c.l.b16 %v826
        %v2545 = vunpack.c.h.b16 %v826
        %v2546 = vunpack.c.l.b16 %v827
        %v2547 = vunpack.c.h.b16 %v827
        %v2548 = vunpack.c.l.b16 %v828
        %v2549 = vunpack.c.h.b16 %v828
        %v2550 = vunpack.c.l.b16 %v829
        %v2551 = vunpack.c.h.b16 %v829
        %v2552 = vunpack.c.l.b16 %v830
        %v2553 = vunpack.c.h.b16 %v830
        %v2554 = vunpack.c.l.b16 %v831
        %v2555 = vunpack.c.h.b16 %v831
        %v2556 = vunpack.c.l.b16 %v832
        %v2557 = vunpack.c.h.b16 %v832
        %v2558 = vunpack.c.l.b16 %v833
        %v2559 = vunpack.c.h.b16 %v833
        %v2560 = vunpack.c.l.b16 %v834
        %v2561 = vunpack.c.h.b16 %v834
        %v2562 = vunpack.c.l.b16 %v835
        %v2563 = vunpack.c.h.b16 %v835
        %v2564 = vunpack.c.l.b16 %v836
        %v2565 = vunpack.c.h.b16 %v836
        %v2566 = vunpack.c.l.b16 %v837
        %v2567 = vunpack.c.h.b16 %v837
        %v2568 = vunpack.c.l.b16 %v838
        %v2569 = vunpack.c.h.b16 %v838
        %v2570 = vunpack.c.l.b16 %v839
        %v2571 = vunpack.c.h.b16 %v839
        %v2572 = vunpack.c.l.b16 %v840
        %v2573 = vunpack.c.h.b16 %v840
        %v2574 = vunpack.c.l.b16 %v841
        %v2575 = vunpack.c.h.b16 %v841
        %v2576 = vunpack.c.l.b16 %v842
        %v2577 = vunpack.c.h.b16 %v842
        %v2578 = vunpack.c.l.b16 %v843
        %v2579 = vunpack.c.h.b16 %v843
        %v2580 = vunpack.c.l.b16 %v844
        %v2581 = vunpack.c.h.b16 %v844
        %v2582 = vunpack.c.l.b16 %v845
        %v2583 = vunpack.c.h.b16 %v845
        %v2584 = vunpack.c.l.b16 %v846
        %v2585 = vunpack.c.h.b16 %v846
        %v2586 = vunpack.c.l.b16 %v847
        %v2587 = vunpack.c.h.b16 %v847
        %v2588 = vunpack.c.l.b16 %v848
        %v2589 = vunpack.c.h.b16 %v848
        %v2590 = vunpack.c.l.b16 %v849
        %v2591 = vunpack.c.h.b16 %v849
        %v2592 = vunpack.c.l.b16 %v850
        %v2593 = vunpack.c.h.b16 %v850
        %v2594 = vunpack.c.l.b16 %v851
        %v2595 = vunpack.c.h.b16 %v851
        %v2596 = vunpack.c.l.b16 %v852
        %v2597 = vunpack.c.h.b16 %v852
        %v2598 = vunpack.c.l.b16 %v853
        %v2599 = vunpack.c.h.b16 %v853
        %v2600 = vunpack.c.l.b16 %v854
        %v2601 = vunpack.c.h.b16 %v854
        %v2602 = vunpack.c.l.b16 %v855
        %v2603 = vunpack.c.h.b16 %v855
        %v2604 = vunpack.c.l.b16 %v856
        %v2605 = vunpack.c.h.b16 %v856
        %v2606 = vunpack.c.l.b16 %v857
        %v2607 = vunpack.c.h.b16 %v857
        %v2608 = vunpack.c.l.b16 %v858
        %v2609 = vunpack.c.h.b16 %v858
        %v2610 = vunpack.c.l.b16 %v859
        %v2611 = vunpack.c.h.b16 %v859
        %v2612 = vunpack.c.l.b16 %v860
        %v2613 = vunpack.c.h.b16 %v860
        %v2614 = vunpack.c.l.b16 %v861
        %v2615 = vunpack.c.h.b16 %v861
        %v2616 = vunpack.c.l.b16 %v862
        %v2617 = vunpack.c.h.b16 %v862
        %v2618 = vunpack.c.l.b16 %v863
        %v2619 = vunpack.c.h.b16 %v863
        %v2620 = vunpack.c.l.b16 %v864
        %v2621 = vunpack.c.h.b16 %v864
        %v2622 = vunpack.c.l.b16 %v865
        %v2623 = vunpack.c.h.b16 %v865
        %v2624 = vunpack.c.l.b16 %v866
        %v2625 = vunpack.c.h.b16 %v866
        %v2626 = vunpack.c.l.b16 %v867
        %v2627 = vunpack.c.h.b16 %v867
        %v2628 = vunpack.c.l.b16 %v868
        %v2629 = vunpack.c.h.b16 %v868
        %v2630 = vunpack.c.l.b16 %v869
        %v2631 = vunpack.c.h.b16 %v869
        %v2632 = vunpack.c.l.b16 %v870
        %v2633 = vunpack.c.h.b16 %v870
        %v2634 = vunpack.c.l.b16 %v871
        %v2635 = vunpack.c.h.b16 %v871
        %v2636 = vunpack.c.l.b16 %v872
        %v2637 = vunpack.c.h.b16 %v872
        %v2638 = vunpack.c.l.b16 %v873
        %v2639 = vunpack.c.h.b16 %v873
        %v2640 = vunpack.c.l.b16 %v874
        %v2641 = vunpack.c.h.b16 %v874
        %v2642 = vunpack.c.l.b16 %v875
        %v2643 = vunpack.c.h.b16 %v875
        %v2644 = vunpack.c.l.b16 %v876
        %v2645 = vunpack.c.h.b16 %v876
        %v2646 = vunpack.c.l.b16 %v877
        %v2647 = vunpack.c.h.b16 %v877
        %v2648 = vunpack.c.l.b16 %v878
        %v2649 = vunpack.c.h.b16 %v878
        %v2650 = vunpack.c.l.b16 %v879
        %v2651 = vunpack.c.h.b16 %v879
        %v2652 = vunpack.c.l.b16 %v880
        %v2653 = vunpack.c.h.b16 %v880
        %v2654 = vunpack.c.l.b16 %v881
        %v2655 = vunpack.c.h.b16 %v881
        %v2656 = vunpack.c.l.b16 %v882
        %v2657 = vunpack.c.h.b16 %v882
        %v2658 = vunpack.c.l.b16 %v883
        %v2659 = vunpack.c.h.b16 %v883
        %v2660 = vunpack.c.l.b16 %v884
        %v2661 = vunpack.c.h.b16 %v884
        %v2662 = vunpack.c.l.b16 %v885
        %v2663 = vunpack.c.h.b16 %v885
        %v2664 = vunpack.c.l.b16 %v886
        %v2665 = vunpack.c.h.b16 %v886
        %v2666 = vunpack.c.l.b16 %v887
        %v2667 = vunpack.c.h.b16 %v887
        %v2668 = vunpack.c.l.b16 %v888
        %v2669 = vunpack.c.h.b16 %v888
        %v2670 = vunpack.c.l.b16 %v889
        %v2671 = vunpack.c.h.b16 %v889
        %v2672 = vunpack.c.l.b16 %v890
        %v2673 = vunpack.c.h.b16 %v890
        %v2674 = vunpack.c.l.b16 %v891
        %v2675 = vunpack.c.h.b16 %v891
        %v2676 = vunpack.c.l.b16 %v892
        %v2677 = vunpack.c.h.b16 %v892
        %v2678 = vunpack.c.l.b16 %v893
        %v2679 = vunpack.c.h.b16 %v893
        %v2680 = vunpack.c.l.b16 %v894
        %v2681 = vunpack.c.h.b16 %v894
        %v2682 = vunpack.c.l.b16 %v895
        %v2683 = vunpack.c.h.b16 %v895
        %v2684 = vunpack.c.l.b16 %v896
        %v2685 = vunpack.c.h.b16 %v896
        %v2686 = vunpack.c.l.b16 %v897
        %v2687 = vunpack.c.h.b16 %v897
        %v2688 = vunpack.c.l.b16 %v898
        %v2689 = vunpack.c.h.b16 %v898
        %v2690 = vunpack.c.l.b16 %v899
        %v2691 = vunpack.c.h.b16 %v899
        %v2692 = vunpack.c.l.b16 %v900
        %v2693 = vunpack.c.h.b16 %v900
        %v2694 = vunpack.c.l.b16 %v901
        %v2695 = vunpack.c.h.b16 %v901
        %v2696 = vunpack.c.l.b16 %v902
        %v2697 = vunpack.c.h.b16 %v902
        %v2698 = vunpack.c.l.b16 %v903
        %v2699 = vunpack.c.h.b16 %v903
        %v2700 = vunpack.c.l.b16 %v904
        %v2701 = vunpack.c.h.b16 %v904
        %v2702 = vunpack.c.l.b16 %v905
        %v2703 = vunpack.c.h.b16 %v905
        %v2704 = vunpack.c.l.b16 %v906
        %v2705 = vunpack.c.h.b16 %v906
        %v2706 = vunpack.c.l.b16 %v907
        %v2707 = vunpack.c.h.b16 %v907
        %v2708 = vunpack.c.l.b16 %v908
        %v2709 = vunpack.c.h.b16 %v908
        %v2710 = vunpack.c.l.b16 %v909
        %v2711 = vunpack.c.h.b16 %v909
        %v2712 = vunpack.c.l.b16 %v910
        %v2713 = vunpack.c.h.b16 %v910
        %v2714 = vunpack.c.l.b16 %v911
        %v2715 = vunpack.c.h.b16 %v911
        %v2716 = vunpack.c.l.b16 %v912
        %v2717 = vunpack.c.h.b16 %v912
        %v2718 = vunpack.c.l.b16 %v913
        %v2719 = vunpack.c.h.b16 %v913
        %v2720 = vunpack.c.l.b16 %v914
        %v2721 = vunpack.c.h.b16 %v914
        %v2722 = vunpack.c.l.b16 %v915
        %v2723 = vunpack.c.h.b16 %v915
        %v2724 = vunpack.c.l.b16 %v916
        %v2725 = vunpack.c.h.b16 %v916
        %v2726 = vunpack.c.l.b16 %v917
        %v2727 = vunpack.c.h.b16 %v917
        %v2728 = vunpack.c.l.b16 %v918
        %v2729 = vunpack.c.h.b16 %v918
        %v2730 = vunpack.c.l.b16 %v919
        %v2731 = vunpack.c.h.b16 %v919
        %v2732 = vunpack.c.l.b16 %v920
        %v2733 = vunpack.c.h.b16 %v920
        %v2734 = vunpack.c.l.b16 %v921
        %v2735 = vunpack.c.h.b16 %v921
        %v2736 = vunpack.c.l.b16 %v922
        %v2737 = vunpack.c.h.b16 %v922
        %v2738 = vunpack.c.l.b16 %v923
        %v2739 = vunpack.c.h.b16 %v923
        %v2740 = vunpack.c.l.b16 %v924
        %v2741 = vunpack.c.h.b16 %v924
        %v2742 = vunpack.c.l.b16 %v925
        %v2743 = vunpack.c.h.b16 %v925
        %v2744 = vunpack.c.l.b16 %v926
        %v2745 = vunpack.c.h.b16 %v926
        %v2746 = vunpack.c.l.b16 %v927
        %v2747 = vunpack.c.h.b16 %v927
        %v2748 = vunpack.c.l.b16 %v928
        %v2749 = vunpack.c.h.b16 %v928
        %v2750 = vunpack.c.l.b16 %v929
        %v2751 = vunpack.c.h.b16 %v929
        %v2752 = vunpack.c.l.b16 %v930
        %v2753 = vunpack.c.h.b16 %v930
        %v2754 = vunpack.c.l.b16 %v931
        %v2755 = vunpack.c.h.b16 %v931
        %v2756 = vunpack.c.l.b16 %v932
        %v2757 = vunpack.c.h.b16 %v932
        %v2758 = vunpack.c.l.b16 %v933
        %v2759 = vunpack.c.h.b16 %v933
        %v2760 = vunpack.c.l.b16 %v934
        %v2761 = vunpack.c.h.b16 %v934
        %v2762 = vunpack.c.l.b16 %v935
        %v2763 = vunpack.c.h.b16 %v935
        %v2764 = vunpack.c.l.b16 %v936
        %v2765 = vunpack.c.h.b16 %v936
        %v2766 = vunpack.c.l.b16 %v937
        %v2767 = vunpack.c.h.b16 %v937
        %v2768 = vunpack.c.l.b16 %v938
        %v2769 = vunpack.c.h.b16 %v938
        %v2770 = vunpack.c.l.b16 %v939
        %v2771 = vunpack.c.h.b16 %v939
        %v2772 = vunpack.c.l.b16 %v940
        %v2773 = vunpack.c.h.b16 %v940
        %v2774 = vunpack.c.l.b16 %v941
        %v2775 = vunpack.c.h.b16 %v941
        %v2776 = vunpack.c.l.b16 %v942
        %v2777 = vunpack.c.h.b16 %v942
        %v2778 = vunpack.c.l.b16 %v943
        %v2779 = vunpack.c.h.b16 %v943
        %v2780 = vunpack.c.l.b16 %v944
        %v2781 = vunpack.c.h.b16 %v944
        %v2782 = vunpack.c.l.b16 %v945
        %v2783 = vunpack.c.h.b16 %v945
        %v2784 = vunpack.c.l.b16 %v946
        %v2785 = vunpack.c.h.b16 %v946
        %v2786 = vunpack.c.l.b16 %v947
        %v2787 = vunpack.c.h.b16 %v947
        %v2788 = vunpack.c.l.b16 %v948
        %v2789 = vunpack.c.h.b16 %v948
        %v2790 = vunpack.c.l.b16 %v949
        %v2791 = vunpack.c.h.b16 %v949
        %v2792 = vunpack.c.l.b16 %v950
        %v2793 = vunpack.c.h.b16 %v950
        %v2794 = vunpack.c.l.b16 %v951
        %v2795 = vunpack.c.h.b16 %v951
        %v2796 = vunpack.c.l.b16 %v952
        %v2797 = vunpack.c.h.b16 %v952
        %v2798 = vunpack.c.l.b16 %v953
        %v2799 = vunpack.c.h.b16 %v953
        %v2800 = vunpack.c.l.b16 %v954
        %v2801 = vunpack.c.h.b16 %v954
        %v2802 = vunpack.c.l.b16 %v955
        %v2803 = vunpack.c.h.b16 %v955
        %v2804 = vunpack.c.l.b16 %v956
        %v2805 = vunpack.c.h.b16 %v956
        %v2806 = vunpack.c.l.b16 %v957
        %v2807 = vunpack.c.h.b16 %v957
        %v2808 = vunpack.c.l.b16 %v958
        %v2809 = vunpack.c.h.b16 %v958
        %v2810 = vunpack.c.l.b16 %v959
        %v2811 = vunpack.c.h.b16 %v959
        %v2812 = vunpack.c.l.b16 %v960
        %v2813 = vunpack.c.h.b16 %v960
        %v2814 = vunpack.c.l.b16 %v961
        %v2815 = vunpack.c.h.b16 %v961
        %v2816 = vunpack.c.l.b16 %v962
        %v2817 = vunpack.c.h.b16 %v962
        %v2818 = vunpack.c.l.b16 %v963
        %v2819 = vunpack.c.h.b16 %v963
        %v2820 = vunpack.c.l.b16 %v964
        %v2821 = vunpack.c.h.b16 %v964
        %v2822 = vunpack.c.l.b16 %v965
        %v2823 = vunpack.c.h.b16 %v965
        %v2824 = vunpack.c.l.b16 %v966
        %v2825 = vunpack.c.h.b16 %v966
        %v2826 = vunpack.c.l.b16 %v967
        %v2827 = vunpack.c.h.b16 %v967
        %v2828 = vunpack.c.l.b16 %v968
        %v2829 = vunpack.c.h.b16 %v968
        %v2830 = vunpack.c.l.b16 %v969
        %v2831 = vunpack.c.h.b16 %v969
        %v2832 = vunpack.c.l.b16 %v970
        %v2833 = vunpack.c.h.b16 %v970
        %v2834 = vunpack.c.l.b16 %v971
        %v2835 = vunpack.c.h.b16 %v971
        %v2836 = vunpack.c.l.b16 %v972
        %v2837 = vunpack.c.h.b16 %v972
        %v2838 = vunpack.c.l.b16 %v973
        %v2839 = vunpack.c.h.b16 %v973
        %v2840 = vunpack.c.l.b16 %v974
        %v2841 = vunpack.c.h.b16 %v974
        %v2842 = vunpack.c.l.b16 %v975
        %v2843 = vunpack.c.h.b16 %v975
        %v2844 = vunpack.c.l.b16 %v976
        %v2845 = vunpack.c.h.b16 %v976
        %v2846 = vunpack.c.l.b16 %v977
        %v2847 = vunpack.c.h.b16 %v977
        %v2848 = vunpack.c.l.b16 %v978
        %v2849 = vunpack.c.h.b16 %v978
        %v2850 = vunpack.c.l.b16 %v979
        %v2851 = vunpack.c.h.b16 %v979
        %v2852 = vunpack.c.l.b16 %v980
        %v2853 = vunpack.c.h.b16 %v980
        %v2854 = vunpack.c.l.b16 %v981
        %v2855 = vunpack.c.h.b16 %v981
        %v2856 = vunpack.c.l.b16 %v982
        %v2857 = vunpack.c.h.b16 %v982
        %v2858 = vunpack.c.l.b16 %v983
        %v2859 = vunpack.c.h.b16 %v983
        %v2860 = vunpack.c.l.b16 %v984
        %v2861 = vunpack.c.h.b16 %v984
        %v2862 = vunpack.c.l.b16 %v985
        %v2863 = vunpack.c.h.b16 %v985
        %v2864 = vunpack.c.l.b16 %v986
        %v2865 = vunpack.c.h.b16 %v986
        %v2866 = vunpack.c.l.b16 %v987
        %v2867 = vunpack.c.h.b16 %v987
        %v2868 = vunpack.c.l.b16 %v988
        %v2869 = vunpack.c.h.b16 %v988
        %v2870 = vunpack.c.l.b16 %v989
        %v2871 = vunpack.c.h.b16 %v989
        %v2872 = vunpack.c.l.b16 %v990
        %v2873 = vunpack.c.h.b16 %v990
        %v2874 = vunpack.c.l.b16 %v991
        %v2875 = vunpack.c.h.b16 %v991
        %v2876 = vunpack.c.l.b16 %v992
        %v2877 = vunpack.c.h.b16 %v992
        %v2878 = vunpack.c.l.b16 %v993
        %v2879 = vunpack.c.h.b16 %v993
        %v2880 = vunpack.c.l.b16 %v994
        %v2881 = vunpack.c.h.b16 %v994
        %v2882 = vunpack.c.l.b16 %v995
        %v2883 = vunpack.c.h.b16 %v995
        %v2884 = vunpack.c.l.b16 %v996
        %v2885 = vunpack.c.h.b16 %v996
        %v2886 = vunpack.c.l.b16 %v997
        %v2887 = vunpack.c.h.b16 %v997
        %v2888 = vunpack.c.l.b16 %v998
        %v2889 = vunpack.c.h.b16 %v998
        %v2890 = vunpack.c.l.b16 %v999
        %v2891 = vunpack.c.h.b16 %v999
        %v2892 = vunpack.c.l.b16 %v1000
        %v2893 = vunpack.c.h.b16 %v1000
        %v2894 = vunpack.c.l.b16 %v1001
        %v2895 = vunpack.c.h.b16 %v1001
        %v2896 = vunpack.c.l.b16 %v1002
        %v2897 = vunpack.c.h.b16 %v1002
        %v2898 = vunpack.c.l.b16 %v1003
        %v2899 = vunpack.c.h.b16 %v1003
        %v2900 = vunpack.c.l.b16 %v1004
        %v2901 = vunpack.c.h.b16 %v1004
        %v2902 = vunpack.c.l.b16 %v1005
        %v2903 = vunpack.c.h.b16 %v1005
        %v2904 = vunpack.c.l.b16 %v1006
        %v2905 = vunpack.c.h.b16 %v1006
        %v2906 = vunpack.c.l.b16 %v1007
        %v2907 = vunpack.c.h.b16 %v1007
        %v2908 = vunpack.c.l.b16 %v1008
        %v2909 = vunpack.c.h.b16 %v1008
        %v2910 = vunpack.c.l.b16 %v1009
        %v2911 = vunpack.c.h.b16 %v1009
        %v2912 = vunpack.c.l.b16 %v1010
        %v2913 = vunpack.c.h.b16 %v1010
        %v2914 = vunpack.c.l.b16 %v1011
        %v2915 = vunpack.c.h.b16 %v1011
        %v2916 = vunpack.c.l.b16 %v1012
        %v2917 = vunpack.c.h.b16 %v1012
        %v2918 = vunpack.c.l.b16 %v1013
        %v2919 = vunpack.c.h.b16 %v1013
        %v2920 = vunpack.c.l.b16 %v1014
        %v2921 = vunpack.c.h.b16 %v1014
        %v2922 = vunpack.c.l.b16 %v1015
        %v2923 = vunpack.c.h.b16 %v1015
        %v2924 = vunpack.c.l.b16 %v1016
        %v2925 = vunpack.c.h.b16 %v1016
        %v2926 = vunpack.c.l.b16 %v1017
        %v2927 = vunpack.c.h.b16 %v1017
        %v2928 = vunpack.c.l.b16 %v1018
        %v2929 = vunpack.c.h.b16 %v1018
        %v2930 = vunpack.c.l.b16 %v1019
        %v2931 = vunpack.c.h.b16 %v1019
        %v2932 = vunpack.c.l.b16 %v1020
        %v2933 = vunpack.c.h.b16 %v1020
        %v2934 = vunpack.c.l.b16 %v1021
        %v2935 = vunpack.c.h.b16 %v1021
        %v2936 = vunpack.c.l.b16 %v1022
        %v2937 = vunpack.c.h.b16 %v1022
        %v2938 = vunpack.c.l.b16 %v1023
        %v2939 = vunpack.c.h.b16 %v1023
        %v2940 = vunpack.c.l.b16 %v1024
        %v2941 = vunpack.c.h.b16 %v1024
        %v2942 = vunpack.c.l.b16 %v1025
        %v2943 = vunpack.c.h.b16 %v1025
        %v2944 = vunpack.c.l.b16 %v1026
        %v2945 = vunpack.c.h.b16 %v1026
        %v2946 = vunpack.c.l.b16 %v1027
        %v2947 = vunpack.c.h.b16 %v1027
        %v2948 = vunpack.c.l.b16 %v1028
        %v2949 = vunpack.c.h.b16 %v1028
        %v2950 = vunpack.c.l.b16 %v1029
        %v2951 = vunpack.c.h.b16 %v1029
        %v2952 = vunpack.c.l.b16 %v1030
        %v2953 = vunpack.c.h.b16 %v1030
        %v2954 = vunpack.c.l.b16 %v1031
        %v2955 = vunpack.c.h.b16 %v1031
        %v2956 = vunpack.c.l.b16 %v1032
        %v2957 = vunpack.c.h.b16 %v1032
        %v2958 = vunpack.c.l.b16 %v1033
        %v2959 = vunpack.c.h.b16 %v1033
        %v2960 = vunpack.c.l.b16 %v1034
        %v2961 = vunpack.c.h.b16 %v1034
        %v2962 = vunpack.c.l.b16 %v1035
        %v2963 = vunpack.c.h.b16 %v1035
        %v2964 = vunpack.c.l.b16 %v1036
        %v2965 = vunpack.c.h.b16 %v1036
        %v2966 = vunpack.c.l.b16 %v1037
        %v2967 = vunpack.c.h.b16 %v1037
        %v2968 = vunpack.c.l.b16 %v1038
        %v2969 = vunpack.c.h.b16 %v1038
        %v2970 = vunpack.c.l.b16 %v1039
        %v2971 = vunpack.c.h.b16 %v1039
        %v2972 = vunpack.c.l.b16 %v1040
        %v2973 = vunpack.c.h.b16 %v1040
        %v2974 = vunpack.c.l.b16 %v1041
        %v2975 = vunpack.c.h.b16 %v1041
        %v2976 = vunpack.c.l.b16 %v1042
        %v2977 = vunpack.c.h.b16 %v1042
        %v2978 = vunpack.c.l.b16 %v1043
        %v2979 = vunpack.c.h.b16 %v1043
        %v2980 = vunpack.c.l.b16 %v1044
        %v2981 = vunpack.c.h.b16 %v1044
        %v2982 = vunpack.c.l.b16 %v1045
        %v2983 = vunpack.c.h.b16 %v1045
        %v2984 = vunpack.c.l.b16 %v1046
        %v2985 = vunpack.c.h.b16 %v1046
        %v2986 = vunpack.c.l.b16 %v1047
        %v2987 = vunpack.c.h.b16 %v1047
        %v2988 = vunpack.c.l.b16 %v1048
        %v2989 = vunpack.c.h.b16 %v1048
        %v2990 = vunpack.c.l.b16 %v1049
        %v2991 = vunpack.c.h.b16 %v1049
        %v2992 = vunpack.c.l.b16 %v1050
        %v2993 = vunpack.c.h.b16 %v1050
        %v2994 = vunpack.c.l.b16 %v1051
        %v2995 = vunpack.c.h.b16 %v1051
        %v2996 = vunpack.c.l.b16 %v1052
        %v2997 = vunpack.c.h.b16 %v1052
        %v2998 = vunpack.c.l.b16 %v1053
        %v2999 = vunpack.c.h.b16 %v1053
        %v3000 = vunpack.c.l.b16 %v1054
        %v3001 = vunpack.c.h.b16 %v1054
        %v3002 = vunpack.c.l.b16 %v1055
        %v3003 = vunpack.c.h.b16 %v1055
        %v3004 = vunpack.c.l.b16 %v1056
        %v3005 = vunpack.c.h.b16 %v1056
        %v3006 = vunpack.c.l.b16 %v1057
        %v3007 = vunpack.c.h.b16 %v1057
        %v3008 = vunpack.c.l.b16 %v1058
        %v3009 = vunpack.c.h.b16 %v1058
        %v3010 = vunpack.c.l.b16 %v1059
        %v3011 = vunpack.c.h.b16 %v1059
        %v3012 = vunpack.c.l.b16 %v1060
        %v3013 = vunpack.c.h.b16 %v1060
        %v3014 = vunpack.c.l.b16 %v1061
        %v3015 = vunpack.c.h.b16 %v1061
        %v3016 = vunpack.c.l.b16 %v1062
        %v3017 = vunpack.c.h.b16 %v1062
        %v3018 = vunpack.c.l.b16 %v1063
        %v3019 = vunpack.c.h.b16 %v1063
        %v3020 = vunpack.c.l.b16 %v1064
        %v3021 = vunpack.c.h.b16 %v1064
        %v3022 = vunpack.c.l.b16 %v1065
        %v3023 = vunpack.c.h.b16 %v1065
        %v3024 = vunpack.c.l.b16 %v1066
        %v3025 = vunpack.c.h.b16 %v1066
        %v3026 = vunpack.c.l.b16 %v1067
        %v3027 = vunpack.c.h.b16 %v1067
        %v3028 = vunpack.c.l.b16 %v1068
        %v3029 = vunpack.c.h.b16 %v1068
        %v3030 = vunpack.c.l.b16 %v1069
        %v3031 = vunpack.c.h.b16 %v1069
        %v3032 = vunpack.c.l.b16 %v1070
        %v3033 = vunpack.c.h.b16 %v1070
        %v3034 = vunpack.c.l.b16 %v1071
        %v3035 = vunpack.c.h.b16 %v1071
        %v3036 = vunpack.c.l.b16 %v1072
        %v3037 = vunpack.c.h.b16 %v1072
        %v3038 = vunpack.c.l.b16 %v1073
        %v3039 = vunpack.c.h.b16 %v1073
        %v3040 = vunpack.c.l.b16 %v1074
        %v3041 = vunpack.c.h.b16 %v1074
        %v3042 = vunpack.c.l.b16 %v1075
        %v3043 = vunpack.c.h.b16 %v1075
        %v3044 = vunpack.c.l.b16 %v1076
        %v3045 = vunpack.c.h.b16 %v1076
        %v3046 = vunpack.c.l.b16 %v1077
        %v3047 = vunpack.c.h.b16 %v1077
        %v3048 = vunpack.c.l.b16 %v1078
        %v3049 = vunpack.c.h.b16 %v1078
        %v3050 = vunpack.c.l.b16 %v1079
        %v3051 = vunpack.c.h.b16 %v1079
        %v3052 = vunpack.c.l.b16 %v1080
        %v3053 = vunpack.c.h.b16 %v1080
        %v3054 = vunpack.c.l.b16 %v1081
        %v3055 = vunpack.c.h.b16 %v1081
        %v3056 = vunpack.c.l.b16 %v1082
        %v3057 = vunpack.c.h.b16 %v1082
        %v3058 = vunpack.c.l.b16 %v1083
        %v3059 = vunpack.c.h.b16 %v1083
        %v3060 = vunpack.c.l.b16 %v1084
        %v3061 = vunpack.c.h.b16 %v1084
        %v3062 = vunpack.c.l.b16 %v1085
        %v3063 = vunpack.c.h.b16 %v1085
        %v3064 = vunpack.c.l.b16 %v1086
        %v3065 = vunpack.c.h.b16 %v1086
        %v3066 = vunpack.c.l.b16 %v1087
        %v3067 = vunpack.c.h.b16 %v1087
        %v3068 = vunpack.c.l.b16 %v1088
        %v3069 = vunpack.c.h.b16 %v1088
        %v3070 = vunpack.c.l.b16 %v1089
        %v3071 = vunpack.c.h.b16 %v1089
        %v3072 = vunpack.c.l.b16 %v1090
        %v3073 = vunpack.c.h.b16 %v1090
        %v3074 = vunpack.c.l.b16 %v1091
        %v3075 = vunpack.c.h.b16 %v1091
        %v3076 = vunpack.c.l.b16 %v1092
        %v3077 = vunpack.c.h.b16 %v1092
        %v3078 = vunpack.c.l.b16 %v1093
        %v3079 = vunpack.c.h.b16 %v1093
        %v3080 = vunpack.c.l.b16 %v1094
        %v3081 = vunpack.c.h.b16 %v1094
        %v3082 = vunpack.c.l.b16 %v1095
        %v3083 = vunpack.c.h.b16 %v1095
        %v3084 = vunpack.c.l.b16 %v1096
        %v3085 = vunpack.c.h.b16 %v1096
        %v3086 = vunpack.c.l.b16 %v1097
        %v3087 = vunpack.c.h.b16 %v1097
        %v3088 = vunpack.c.l.b16 %v1098
        %v3089 = vunpack.c.h.b16 %v1098
        %v3090 = vunpack.c.l.b16 %v1099
        %v3091 = vunpack.c.h.b16 %v1099
        %v3092 = vunpack.c.l.b16 %v1100
        %v3093 = vunpack.c.h.b16 %v1100
        %v3094 = vunpack.c.l.b16 %v1101
        %v3095 = vunpack.c.h.b16 %v1101
        %v3096 = vunpack.c.l.b16 %v1102
        %v3097 = vunpack.c.h.b16 %v1102
        %v3098 = vunpack.c.l.b16 %v1103
        %v3099 = vunpack.c.h.b16 %v1103
        %v3100 = vunpack.c.l.b16 %v1104
        %v3101 = vunpack.c.h.b16 %v1104
        %v3102 = vunpack.c.l.b16 %v1105
        %v3103 = vunpack.c.h.b16 %v1105
        %v3104 = vunpack.c.l.b16 %v1106
        %v3105 = vunpack.c.h.b16 %v1106
        %v3106 = vunpack.c.l.b16 %v1107
        %v3107 = vunpack.c.h.b16 %v1107
        %v3108 = vunpack.c.l.b16 %v1108
        %v3109 = vunpack.c.h.b16 %v1108
        %v3110 = vunpack.c.l.b16 %v1109
        %v3111 = vunpack.c.h.b16 %v1109
        %v3112 = vunpack.c.l.b16 %v1110
        %v3113 = vunpack.c.h.b16 %v1110
        %v3114 = vunpack.c.l.b16 %v1111
        %v3115 = vunpack.c.h.b16 %v1111
        %v3116 = vunpack.c.l.b16 %v1112
        %v3117 = vunpack.c.h.b16 %v1112
        %v3118 = vunpack.c.l.b16 %v1113
        %v3119 = vunpack.c.h.b16 %v1113
        %v3120 = vunpack.c.l.b16 %v1114
        %v3121 = vunpack.c.h.b16 %v1114
        %v3122 = vunpack.c.l.b16 %v1115
        %v3123 = vunpack.c.h.b16 %v1115
        %v3124 = vunpack.c.l.b16 %v1116
        %v3125 = vunpack.c.h.b16 %v1116
        %v3126 = vunpack.c.l.b16 %v1117
        %v3127 = vunpack.c.h.b16 %v1117
        %v3128 = vunpack.c.l.b16 %v1118
        %v3129 = vunpack.c.h.b16 %v1118
        %v3130 = vunpack.c.l.b16 %v1119
        %v3131 = vunpack.c.h.b16 %v1119
        %v3132 = vunpack.c.l.b16 %v1120
        %v3133 = vunpack.c.h.b16 %v1120
        %v3134 = vunpack.c.l.b16 %v1121
        %v3135 = vunpack.c.h.b16 %v1121
        %v3136 = vunpack.c.l.b16 %v1122
        %v3137 = vunpack.c.h.b16 %v1122
        %v3138 = vunpack.c.l.b16 %v1123
        %v3139 = vunpack.c.h.b16 %v1123
        %v3140 = vunpack.c.l.b16 %v1124
        %v3141 = vunpack.c.h.b16 %v1124
        %v3142 = vunpack.c.l.b16 %v1125
        %v3143 = vunpack.c.h.b16 %v1125
        %v3144 = vunpack.c.l.b16 %v1126
        %v3145 = vunpack.c.h.b16 %v1126
        %v3146 = vunpack.c.l.b16 %v1127
        %v3147 = vunpack.c.h.b16 %v1127
        %v3148 = vunpack.c.l.b16 %v1128
        %v3149 = vunpack.c.h.b16 %v1128
        %v3150 = vunpack.c.l.b16 %v1129
        %v3151 = vunpack.c.h.b16 %v1129
        %v3152 = vunpack.c.l.b16 %v1130
        %v3153 = vunpack.c.h.b16 %v1130
        %v3154 = vunpack.c.l.b16 %v1131
        %v3155 = vunpack.c.h.b16 %v1131
        %v3156 = vunpack.c.l.b16 %v1132
        %v3157 = vunpack.c.h.b16 %v1132
        %v3158 = vunpack.c.l.b16 %v1133
        %v3159 = vunpack.c.h.b16 %v1133
        %v3160 = vunpack.c.l.b16 %v1134
        %v3161 = vunpack.c.h.b16 %v1134
        %v3162 = vunpack.c.l.b16 %v1135
        %v3163 = vunpack.c.h.b16 %v1135
        %v3164 = vunpack.c.l.b16 %v1136
        %v3165 = vunpack.c.h.b16 %v1136
        %v3166 = vunpack.c.l.b16 %v1137
        %v3167 = vunpack.c.h.b16 %v1137
        %v3168 = vunpack.c.l.b16 %v1138
        %v3169 = vunpack.c.h.b16 %v1138
        %v3170 = vunpack.c.l.b16 %v1139
        %v3171 = vunpack.c.h.b16 %v1139
        %v3172 = vunpack.c.l.b16 %v1140
        %v3173 = vunpack.c.h.b16 %v1140
        %v3174 = vunpack.c.l.b16 %v1141
        %v3175 = vunpack.c.h.b16 %v1141
        %v3176 = vunpack.c.l.b16 %v1142
        %v3177 = vunpack.c.h.b16 %v1142
        %v3178 = vunpack.c.l.b16 %v1143
        %v3179 = vunpack.c.h.b16 %v1143
        %v3180 = vunpack.c.l.b16 %v1144
        %v3181 = vunpack.c.h.b16 %v1144
        %v3182 = vunpack.c.l.b16 %v1145
        %v3183 = vunpack.c.h.b16 %v1145
        %v3184 = vunpack.c.l.b16 %v1146
        %v3185 = vunpack.c.h.b16 %v1146
        %v3186 = vunpack.c.l.b16 %v1147
        %v3187 = vunpack.c.h.b16 %v1147
        %v3188 = vunpack.c.l.b16 %v1148
        %v3189 = vunpack.c.h.b16 %v1148
        %v3190 = vunpack.c.l.b16 %v1149
        %v3191 = vunpack.c.h.b16 %v1149
        %v3192 = vunpack.c.l.b16 %v1150
        %v3193 = vunpack.c.h.b16 %v1150
        %v3194 = vunpack.c.l.b16 %v1151
        %v3195 = vunpack.c.h.b16 %v1151
        %v3196 = vunpack.c.l.b16 %v1152
        %v3197 = vunpack.c.h.b16 %v1152
        %v3198 = vunpack.c.l.b16 %v1153
        %v3199 = vunpack.c.h.b16 %v1153
        %v3200 = vunpack.c.l.b16 %v1154
        %v3201 = vunpack.c.h.b16 %v1154
        %v3202 = vunpack.c.l.b16 %v1155
        %v3203 = vunpack.c.h.b16 %v1155
        %v3204 = vunpack.c.l.b16 %v1156
        %v3205 = vunpack.c.h.b16 %v1156
        %v3206 = vunpack.c.l.b16 %v1157
        %v3207 = vunpack.c.h.b16 %v1157
        %v3208 = vunpack.c.l.b16 %v1158
        %v3209 = vunpack.c.h.b16 %v1158
        %v3210 = vunpack.c.l.b16 %v1159
        %v3211 = vunpack.c.h.b16 %v1159
        %v3212 = vunpack.c.l.b16 %v1160
        %v3213 = vunpack.c.h.b16 %v1160
        %v3214 = vunpack.c.l.b16 %v1161
        %v3215 = vunpack.c.h.b16 %v1161
        %v3216 = vunpack.c.l.b16 %v1162
        %v3217 = vunpack.c.h.b16 %v1162
        %v3218 = vunpack.c.l.b16 %v1163
        %v3219 = vunpack.c.h.b16 %v1163
        %v3220 = vunpack.c.l.b16 %v1164
        %v3221 = vunpack.c.h.b16 %v1164
        %v3222 = vunpack.c.l.b16 %v1165
        %v3223 = vunpack.c.h.b16 %v1165
        %v3224 = vunpack.c.l.b16 %v1166
        %v3225 = vunpack.c.h.b16 %v1166
        %v3226 = vunpack.c.l.b16 %v1167
        %v3227 = vunpack.c.h.b16 %v1167
        %v3228 = vunpack.c.l.b16 %v1168
        %v3229 = vunpack.c.h.b16 %v1168
        %v3230 = vunpack.c.l.b16 %v1169
        %v3231 = vunpack.c.h.b16 %v1169
        %v3232 = vunpack.c.l.b16 %v1170
        %v3233 = vunpack.c.h.b16 %v1170
        %v3234 = vunpack.c.l.b16 %v1171
        %v3235 = vunpack.c.h.b16 %v1171
        %v3236 = vunpack.c.l.b16 %v1172
        %v3237 = vunpack.c.h.b16 %v1172
        %v3238 = vunpack.c.l.b16 %v1173
        %v3239 = vunpack.c.h.b16 %v1173
        %v3240 = vunpack.c.l.b16 %v1174
        %v3241 = vunpack.c.h.b16 %v1174
        %v3242 = vunpack.c.l.b16 %v1175
        %v3243 = vunpack.c.h.b16 %v1175
        %v3244 = vunpack.c.l.b16 %v1176
        %v3245 = vunpack.c.h.b16 %v1176
        %v3246 = vunpack.c.l.b16 %v1177
        %v3247 = vunpack.c.h.b16 %v1177
        %v3248 = vunpack.c.l.b16 %v1178
        %v3249 = vunpack.c.h.b16 %v1178
        %v3250 = vunpack.c.l.b16 %v1179
        %v3251 = vunpack.c.h.b16 %v1179
        %v3252 = vunpack.c.l.b16 %v1180
        %v3253 = vunpack.c.h.b16 %v1180
        %v3254 = vunpack.c.l.b16 %v1181
        %v3255 = vunpack.c.h.b16 %v1181
        %v3256 = vunpack.c.l.b16 %v1182
        %v3257 = vunpack.c.h.b16 %v1182
        %v3258 = vunpack.c.l.b16 %v1183
        %v3259 = vunpack.c.h.b16 %v1183
        %v3260 = vunpack.c.l.b16 %v1184
        %v3261 = vunpack.c.h.b16 %v1184
        %v3262 = vunpack.c.l.b16 %v1185
        %v3263 = vunpack.c.h.b16 %v1185
        %v3264 = vunpack.c.l.b16 %v1186
        %v3265 = vunpack.c.h.b16 %v1186
        %v3266 = vunpack.c.l.b16 %v1187
        %v3267 = vunpack.c.h.b16 %v1187
        %v3268 = vunpack.c.l.b16 %v1188
        %v3269 = vunpack.c.h.b16 %v1188
        %v3270 = vunpack.c.l.b16 %v1189
        %v3271 = vunpack.c.h.b16 %v1189
        %v3272 = vunpack.c.l.b16 %v1190
        %v3273 = vunpack.c.h.b16 %v1190
        %v3274 = vunpack.c.l.b16 %v1191
        %v3275 = vunpack.c.h.b16 %v1191
        %v3276 = vunpack.c.l.b16 %v1192
        %v3277 = vunpack.c.h.b16 %v1192
        %v3278 = vunpack.c.l.b16 %v1193
        %v3279 = vunpack.c.h.b16 %v1193
        %v3280 = vunpack.c.l.b16 %v1194
        %v3281 = vunpack.c.h.b16 %v1194
        %v3282 = vunpack.c.l.b16 %v1195
        %v3283 = vunpack.c.h.b16 %v1195
        %v3284 = vunpack.c.l.b16 %v1196
        %v3285 = vunpack.c.h.b16 %v1196
        %v3286 = vunpack.c.l.b16 %v1197
        %v3287 = vunpack.c.h.b16 %v1197
        %v3288 = vunpack.c.l.b16 %v1198
        %v3289 = vunpack.c.h.b16 %v1198
        %v3290 = vunpack.c.l.b16 %v1199
        %v3291 = vunpack.c.h.b16 %v1199
        %v3292 = vunpack.c.l.b16 %v1200
        %v3293 = vunpack.c.h.b16 %v1200
        %v3294 = vunpack.c.l.b16 %v1201
        %v3295 = vunpack.c.h.b16 %v1201
        %v3296 = vunpack.c.l.b16 %v1202
        %v3297 = vunpack.c.h.b16 %v1202
        %v3298 = vunpack.c.l.b16 %v1203
        %v3299 = vunpack.c.h.b16 %v1203
        %v3300 = vunpack.c.l.b16 %v1204
        %v3301 = vunpack.c.h.b16 %v1204
        %v3302 = vunpack.c.l.b16 %v1205
        %v3303 = vunpack.c.h.b16 %v1205
        %v3304 = vunpack.c.l.b16 %v1206
        %v3305 = vunpack.c.h.b16 %v1206
        %v3306 = vunpack.c.l.b16 %v1207
        %v3307 = vunpack.c.h.b16 %v1207
        %v3308 = vunpack.c.l.b16 %v1208
        %v3309 = vunpack.c.h.b16 %v1208
        %v3310 = vunpack.c.l.b16 %v1209
        %v3311 = vunpack.c.h.b16 %v1209
        %v3312 = vunpack.c.l.b16 %v1210
        %v3313 = vunpack.c.h.b16 %v1210
        %v3314 = vunpack.c.l.b16 %v1211
        %v3315 = vunpack.c.h.b16 %v1211
        %v3316 = vunpack.c.l.b16 %v1212
        %v3317 = vunpack.c.h.b16 %v1212
        %v3318 = vunpack.c.l.b16 %v1213
        %v3319 = vunpack.c.h.b16 %v1213
        %v3320 = vunpack.c.l.b16 %v1214
        %v3321 = vunpack.c.h.b16 %v1214
        %v3322 = vunpack.c.l.b16 %v1215
        %v3323 = vunpack.c.h.b16 %v1215
        %v3324 = vunpack.c.l.b16 %v1216
        %v3325 = vunpack.c.h.b16 %v1216
        %v3326 = vunpack.c.l.b16 %v1217
        %v3327 = vunpack.c.h.b16 %v1217
        %v3328 = vunpack.c.l.b16 %v1218
        %v3329 = vunpack.c.h.b16 %v1218
        %v3330 = vunpack.c.l.b16 %v1219
        %v3331 = vunpack.c.h.b16 %v1219
        %v3332 = vunpack.c.l.b16 %v1220
        %v3333 = vunpack.c.h.b16 %v1220
        %v3334 = vunpack.c.l.b16 %v1221
        %v3335 = vunpack.c.h.b16 %v1221
        %v3336 = vunpack.c.l.b16 %v1222
        %v3337 = vunpack.c.h.b16 %v1222
        %v3338 = vunpack.c.l.b16 %v1223
        %v3339 = vunpack.c.h.b16 %v1223
        %v3340 = vunpack.c.l.b16 %v1224
        %v3341 = vunpack.c.h.b16 %v1224
        %v3342 = vunpack.c.l.b16 %v1225
        %v3343 = vunpack.c.h.b16 %v1225
        %v3344 = vunpack.c.l.b16 %v1226
        %v3345 = vunpack.c.h.b16 %v1226
        %v3346 = vunpack.c.l.b16 %v1227
        %v3347 = vunpack.c.h.b16 %v1227
        %v3348 = vunpack.c.l.b16 %v1228
        %v3349 = vunpack.c.h.b16 %v1228
        %v3350 = vunpack.c.l.b16 %v1229
        %v3351 = vunpack.c.h.b16 %v1229
        %v3352 = vunpack.c.l.b16 %v1230
        %v3353 = vunpack.c.h.b16 %v1230
        %v3354 = vunpack.c.l.b16 %v1231
        %v3355 = vunpack.c.h.b16 %v1231
        %v3356 = vunpack.c.l.b16 %v1232
        %v3357 = vunpack.c.h.b16 %v1232
        %v3358 = vunpack.c.l.b16 %v1233
        %v3359 = vunpack.c.h.b16 %v1233
        %v3360 = vunpack.c.l.b16 %v1234
        %v3361 = vunpack.c.h.b16 %v1234
        %v3362 = vunpack.c.l.b16 %v1235
        %v3363 = vunpack.c.h.b16 %v1235
        %v3364 = vunpack.c.l.b16 %v1236
        %v3365 = vunpack.c.h.b16 %v1236
        %v3366 = vunpack.c.l.b16 %v1237
        %v3367 = vunpack.c.h.b16 %v1237
        %v3368 = vunpack.c.l.b16 %v1238
        %v3369 = vunpack.c.h.b16 %v1238
        %v3370 = vunpack.c.l.b16 %v1239
        %v3371 = vunpack.c.h.b16 %v1239
        %v3372 = vunpack.c.l.b16 %v1240
        %v3373 = vunpack.c.h.b16 %v1240
        %v3374 = vunpack.c.l.b16 %v1241
        %v3375 = vunpack.c.h.b16 %v1241
        %v3376 = vunpack.c.l.b16 %v1242
        %v3377 = vunpack.c.h.b16 %v1242
        %v3378 = vunpack.c.l.b16 %v1243
        %v3379 = vunpack.c.h.b16 %v1243
        %v3380 = vunpack.c.l.b16 %v1244
        %v3381 = vunpack.c.h.b16 %v1244
        %v3382 = vunpack.c.l.b16 %v1245
        %v3383 = vunpack.c.h.b16 %v1245
        %v3384 = vunpack.c.l.b16 %v1246
        %v3385 = vunpack.c.h.b16 %v1246
        %v3386 = vunpack.c.l.b16 %v1247
        %v3387 = vunpack.c.h.b16 %v1247
        %v3388 = vunpack.c.l.b16 %v1248
        %v3389 = vunpack.c.h.b16 %v1248
        %v3390 = vunpack.c.l.b16 %v1249
        %v3391 = vunpack.c.h.b16 %v1249
        %v3392 = vunpack.c.l.b16 %v1250
        %v3393 = vunpack.c.h.b16 %v1250
        %v3394 = vunpack.c.l.b16 %v1251
        %v3395 = vunpack.c.h.b16 %v1251
        %v3396 = vunpack.c.l.b16 %v1252
        %v3397 = vunpack.c.h.b16 %v1252
        %v3398 = vunpack.c.l.b16 %v1253
        %v3399 = vunpack.c.h.b16 %v1253
        %v3400 = vunpack.c.l.b16 %v1254
        %v3401 = vunpack.c.h.b16 %v1254
        %v3402 = vunpack.c.l.b16 %v1255
        %v3403 = vunpack.c.h.b16 %v1255
        %v3404 = vunpack.c.l.b16 %v1256
        %v3405 = vunpack.c.h.b16 %v1256
        %v3406 = vunpack.c.l.b16 %v1257
        %v3407 = vunpack.c.h.b16 %v1257
        %v3408 = vunpack.c.l.b16 %v1258
        %v3409 = vunpack.c.h.b16 %v1258
        %v3410 = vunpack.c.l.b16 %v1259
        %v3411 = vunpack.c.h.b16 %v1259
        %v3412 = vunpack.c.l.b16 %v1260
        %v3413 = vunpack.c.h.b16 %v1260
        %v3414 = vunpack.c.l.b16 %v1261
        %v3415 = vunpack.c.h.b16 %v1261
        %v3416 = vunpack.c.l.b16 %v1262
        %v3417 = vunpack.c.h.b16 %v1262
        %v3418 = vunpack.c.l.b16 %v1263
        %v3419 = vunpack.c.h.b16 %v1263
        %v3420 = vunpack.c.l.b16 %v1264
        %v3421 = vunpack.c.h.b16 %v1264
        %v3422 = vunpack.c.l.b16 %v1265
        %v3423 = vunpack.c.h.b16 %v1265
        %v3424 = vunpack.c.l.b16 %v1266
        %v3425 = vunpack.c.h.b16 %v1266
        %v3426 = vunpack.c.l.b16 %v1267
        %v3427 = vunpack.c.h.b16 %v1267
        %v3428 = vunpack.c.l.b16 %v1268
        %v3429 = vunpack.c.h.b16 %v1268
        %v3430 = vunpack.c.l.b16 %v1269
        %v3431 = vunpack.c.h.b16 %v1269
        %v3432 = vunpack.c.l.b16 %v1270
        %v3433 = vunpack.c.h.b16 %v1270
        %v3434 = vunpack.c.l.b16 %v1271
        %v3435 = vunpack.c.h.b16 %v1271
        %v3436 = vunpack.c.l.b16 %v1272
        %v3437 = vunpack.c.h.b16 %v1272
        %v3438 = vunpack.c.l.b16 %v1273
        %v3439 = vunpack.c.h.b16 %v1273
        %v3440 = vunpack.c.l.b16 %v1274
        %v3441 = vunpack.c.h.b16 %v1274
        %v3442 = vunpack.c.l.b16 %v1275
        %v3443 = vunpack.c.h.b16 %v1275
        %v3444 = vunpack.c.l.b16 %v1276
        %v3445 = vunpack.c.h.b16 %v1276
        %v3446 = vunpack.c.l.b16 %v1277
        %v3447 = vunpack.c.h.b16 %v1277
        %v3448 = vunpack.c.l.b16 %v1278
        %v3449 = vunpack.c.h.b16 %v1278
        %v3450 = vunpack.c.l.b16 %v1279
        %v3451 = vunpack.c.h.b16 %v1279
        %v3452 = vunpack.c.l.b16 %v1280
        %v3453 = vunpack.c.h.b16 %v1280
        %v3454 = vunpack.c.l.b16 %v1281
        %v3455 = vunpack.c.h.b16 %v1281
        %v3456 = vunpack.c.l.b16 %v1282
        %v3457 = vunpack.c.h.b16 %v1282
        %v3458 = vunpack.c.l.b16 %v1283
        %v3459 = vunpack.c.h.b16 %v1283
        %v3460 = vunpack.c.l.b16 %v1284
        %v3461 = vunpack.c.h.b16 %v1284
        %v3462 = vunpack.c.l.b16 %v1285
        %v3463 = vunpack.c.h.b16 %v1285
        %v3464 = vunpack.c.l.b16 %v1286
        %v3465 = vunpack.c.h.b16 %v1286
        %v3466 = vunpack.c.l.b16 %v1287
        %v3467 = vunpack.c.h.b16 %v1287
        %v3468 = vunpack.c.l.b16 %v1288
        %v3469 = vunpack.c.h.b16 %v1288
        %v3470 = vunpack.c.l.b16 %v1289
        %v3471 = vunpack.c.h.b16 %v1289
        %v3472 = vunpack.c.l.b16 %v1290
        %v3473 = vunpack.c.h.b16 %v1290
        %v3474 = vunpack.c.l.b16 %v1291
        %v3475 = vunpack.c.h.b16 %v1291
        %v3476 = vunpack.c.l.b16 %v1292
        %v3477 = vunpack.c.h.b16 %v1292
        %v3478 = vunpack.c.l.b16 %v1293
        %v3479 = vunpack.c.h.b16 %v1293
        %v3480 = vunpack.c.l.b16 %v1294
        %v3481 = vunpack.c.h.b16 %v1294
        %v3482 = vunpack.c.l.b16 %v1295
        %v3483 = vunpack.c.h.b16 %v1295
        %v3484 = vunpack.c.l.b16 %v1296
        %v3485 = vunpack.c.h.b16 %v1296
        %v3486 = vunpack.c.l.b16 %v1297
        %v3487 = vunpack.c.h.b16 %v1297
        %v3488 = vunpack.c.l.b16 %v1298
        %v3489 = vunpack.c.h.b16 %v1298
        %v3490 = vunpack.c.l.b16 %v1299
        %v3491 = vunpack.c.h.b16 %v1299
        %v3492 = vunpack.c.l.b16 %v1300
        %v3493 = vunpack.c.h.b16 %v1300
        %v3494 = vunpack.c.l.b16 %v1301
        %v3495 = vunpack.c.h.b16 %v1301
        %v3496 = vunpack.c.l.b16 %v1302
        %v3497 = vunpack.c.h.b16 %v1302
        %v3498 = vunpack.c.l.b16 %v1303
        %v3499 = vunpack.c.h.b16 %v1303
        %v3500 = vunpack.c.l.b16 %v1304
        %v3501 = vunpack.c.h.b16 %v1304
        %v3502 = vunpack.c.l.b16 %v1305
        %v3503 = vunpack.c.h.b16 %v1305
        %v3504 = vunpack.c.l.b16 %v1306
        %v3505 = vunpack.c.h.b16 %v1306
        %v3506 = vunpack.c.l.b16 %v1307
        %v3507 = vunpack.c.h.b16 %v1307
        %v3508 = vunpack.c.l.b16 %v1308
        %v3509 = vunpack.c.h.b16 %v1308
        %v3510 = vunpack.c.l.b16 %v1309
        %v3511 = vunpack.c.h.b16 %v1309
        %v3512 = vunpack.c.l.b16 %v1310
        %v3513 = vunpack.c.h.b16 %v1310
        %v3514 = vunpack.c.l.b16 %v1311
        %v3515 = vunpack.c.h.b16 %v1311
        %v3516 = vunpack.c.l.b16 %v1312
        %v3517 = vunpack.c.h.b16 %v1312
        %v3518 = vunpack.c.l.b16 %v1313
        %v3519 = vunpack.c.h.b16 %v1313
        %v3520 = vunpack.c.l.b16 %v1314
        %v3521 = vunpack.c.h.b16 %v1314
        %v3522 = vunpack.c.l.b16 %v1315
        %v3523 = vunpack.c.h.b16 %v1315
        %v3524 = vunpack.c.l.b16 %v1316
        %v3525 = vunpack.c.h.b16 %v1316
        %v3526 = vunpack.c.l.b16 %v1317
        %v3527 = vunpack.c.h.b16 %v1317
        %v3528 = vunpack.c.l.b16 %v1318
        %v3529 = vunpack.c.h.b16 %v1318
        %v3530 = vunpack.c.l.b16 %v1319
        %v3531 = vunpack.c.h.b16 %v1319
        %v3532 = vunpack.c.l.b16 %v1320
        %v3533 = vunpack.c.h.b16 %v1320
        %v3534 = vunpack.c.l.b16 %v1321
        %v3535 = vunpack.c.h.b16 %v1321
        %v3536 = vunpack.c.l.b16 %v1322
        %v3537 = vunpack.c.h.b16 %v1322
        %v3538 = vunpack.c.l.b16 %v1323
        %v3539 = vunpack.c.h.b16 %v1323
        %v3540 = vunpack.c.l.b16 %v1324
        %v3541 = vunpack.c.h.b16 %v1324
        %v3542 = vunpack.c.l.b16 %v1325
        %v3543 = vunpack.c.h.b16 %v1325
        %v3544 = vunpack.c.l.b16 %v1326
        %v3545 = vunpack.c.h.b16 %v1326
        %v3546 = vunpack.c.l.b16 %v1327
        %v3547 = vunpack.c.h.b16 %v1327
        %v3548 = vunpack.c.l.b16 %v1328
        %v3549 = vunpack.c.h.b16 %v1328
        %v3550 = vunpack.c.l.b16 %v1329
        %v3551 = vunpack.c.h.b16 %v1329
        %v3552 = vunpack.c.l.b16 %v1330
        %v3553 = vunpack.c.h.b16 %v1330
        %v3554 = vunpack.c.l.b16 %v1331
        %v3555 = vunpack.c.h.b16 %v1331
        %v3556 = vunpack.c.l.b16 %v1332
        %v3557 = vunpack.c.h.b16 %v1332
        %v3558 = vunpack.c.l.b16 %v1333
        %v3559 = vunpack.c.h.b16 %v1333
        %v3560 = vunpack.c.l.b16 %v1334
        %v3561 = vunpack.c.h.b16 %v1334
        %v3562 = vunpack.c.l.b16 %v1335
        %v3563 = vunpack.c.h.b16 %v1335
        %v3564 = vunpack.c.l.b16 %v1336
        %v3565 = vunpack.c.h.b16 %v1336
        %v3566 = vunpack.c.l.b16 %v1337
        %v3567 = vunpack.c.h.b16 %v1337
        %v3568 = vunpack.c.l.b16 %v1338
        %v3569 = vunpack.c.h.b16 %v1338
        %v3570 = vunpack.c.l.b16 %v1339
        %v3571 = vunpack.c.h.b16 %v1339
        %v3572 = vunpack.c.l.b16 %v1340
        %v3573 = vunpack.c.h.b16 %v1340
        %v3574 = vunpack.c.l.b16 %v1341
        %v3575 = vunpack.c.h.b16 %v1341
        %v3576 = vunpack.c.l.b16 %v1342
        %v3577 = vunpack.c.h.b16 %v1342
        %v3578 = vunpack.c.l.b16 %v1343
        %v3579 = vunpack.c.h.b16 %v1343
        %v3580 = vunpack.c.l.b16 %v1344
        %v3581 = vunpack.c.h.b16 %v1344
        %v3582 = vunpack.c.l.b16 %v1345
        %v3583 = vunpack.c.h.b16 %v1345
        %v3584 = vunpack.c.l.b16 %v1346
        %v3585 = vunpack.c.h.b16 %v1346
        %v3586 = vunpack.c.l.b16 %v1347
        %v3587 = vunpack.c.h.b16 %v1347
        %v3588 = vunpack.c.l.b16 %v1348
        %v3589 = vunpack.c.h.b16 %v1348
        %v3590 = vunpack.c.l.b16 %v1349
        %v3591 = vunpack.c.h.b16 %v1349
        %v3592 = vunpack.c.l.b16 %v1350
        %v3593 = vunpack.c.h.b16 %v1350
        %v3594 = vunpack.c.l.b16 %v1351
        %v3595 = vunpack.c.h.b16 %v1351
        %v3596 = vunpack.c.l.b16 %v1352
        %v3597 = vunpack.c.h.b16 %v1352
        %v3598 = vunpack.c.l.b16 %v1353
        %v3599 = vunpack.c.h.b16 %v1353
        %v3600 = vunpack.c.l.b16 %v1354
        %v3601 = vunpack.c.h.b16 %v1354
        %v3602 = vunpack.c.l.b16 %v1355
        %v3603 = vunpack.c.h.b16 %v1355
        %v3604 = vunpack.c.l.b16 %v1356
        %v3605 = vunpack.c.h.b16 %v1356
        %v3606 = vunpack.c.l.b16 %v1357
        %v3607 = vunpack.c.h.b16 %v1357
        %v3608 = vunpack.c.l.b16 %v1358
        %v3609 = vunpack.c.h.b16 %v1358
        %v3610 = vunpack.c.l.b16 %v1359
        %v3611 = vunpack.c.h.b16 %v1359
        %v3612 = vunpack.c.l.b16 %v1360
        %v3613 = vunpack.c.h.b16 %v1360
        %v3614 = vunpack.c.l.b16 %v1361
        %v3615 = vunpack.c.h.b16 %v1361
        %v3616 = vunpack.c.l.b16 %v1362
        %v3617 = vunpack.c.h.b16 %v1362
        %v3618 = vunpack.c.l.b16 %v1363
        %v3619 = vunpack.c.h.b16 %v1363
        %v3620 = vunpack.c.l.b16 %v1364
        %v3621 = vunpack.c.h.b16 %v1364
        %v3622 = vunpack.c.l.b16 %v1365
        %v3623 = vunpack.c.h.b16 %v1365
        %v3624 = vunpack.c.l.b16 %v1366
        %v3625 = vunpack.c.h.b16 %v1366
        %v3626 = vunpack.c.l.b16 %v1367
        %v3627 = vunpack.c.h.b16 %v1367
        %v3628 = vunpack.c.l.b16 %v1368
        %v3629 = vunpack.c.h.b16 %v1368
        %v3630 = vunpack.c.l.b16 %v1369
        %v3631 = vunpack.c.h.b16 %v1369
        %v3632 = vunpack.c.l.b16 %v1370
        %v3633 = vunpack.c.h.b16 %v1370
        %v3634 = vunpack.c.l.b16 %v1371
        %v3635 = vunpack.c.h.b16 %v1371
        %v3636 = vunpack.c.l.b16 %v1372
        %v3637 = vunpack.c.h.b16 %v1372
        %v3638 = vunpack.c.l.b16 %v1373
        %v3639 = vunpack.c.h.b16 %v1373
        %v3640 = vunpack.c.l.b16 %v1374
        %v3641 = vunpack.c.h.b16 %v1374
        %v3642 = vunpack.c.l.b16 %v1375
        %v3643 = vunpack.c.h.b16 %v1375
        %v3644 = vunpack.c.l.b16 %v1376
        %v3645 = vunpack.c.h.b16 %v1376
        %v3646 = vunpack.c.l.b16 %v1377
        %v3647 = vunpack.c.h.b16 %v1377
        %v3648 = vunpack.c.l.b16 %v1378
        %v3649 = vunpack.c.h.b16 %v1378
        %v3650 = vunpack.c.l.b16 %v1379
        %v3651 = vunpack.c.h.b16 %v1379
        %v3652 = vunpack.c.l.b16 %v1380
        %v3653 = vunpack.c.h.b16 %v1380
        %v3654 = vunpack.c.l.b16 %v1381
        %v3655 = vunpack.c.h.b16 %v1381
        %v3656 = vunpack.c.l.b16 %v1382
        %v3657 = vunpack.c.h.b16 %v1382
        %v3658 = vunpack.c.l.b16 %v1383
        %v3659 = vunpack.c.h.b16 %v1383
        %v3660 = vunpack.c.l.b16 %v1384
        %v3661 = vunpack.c.h.b16 %v1384
        %v3662 = vunpack.c.l.b16 %v1385
        %v3663 = vunpack.c.h.b16 %v1385
        %v3664 = vunpack.c.l.b16 %v1386
        %v3665 = vunpack.c.h.b16 %v1386
        %v3666 = vunpack.c.l.b16 %v1387
        %v3667 = vunpack.c.h.b16 %v1387
        %v3668 = vunpack.c.l.b16 %v1388
        %v3669 = vunpack.c.h.b16 %v1388
        %v3670 = vunpack.c.l.b16 %v1389
        %v3671 = vunpack.c.h.b16 %v1389
        %v3672 = vunpack.c.l.b16 %v1390
        %v3673 = vunpack.c.h.b16 %v1390
        %v3674 = vunpack.c.l.b16 %v1391
        %v3675 = vunpack.c.h.b16 %v1391
        %v3676 = vunpack.c.l.b16 %v1392
        %v3677 = vunpack.c.h.b16 %v1392
        %v3678 = vunpack.c.l.b16 %v1393
        %v3679 = vunpack.c.h.b16 %v1393
        %v3680 = vunpack.c.l.b16 %v1394
        %v3681 = vunpack.c.h.b16 %v1394
        %v3682 = vunpack.c.l.b16 %v1395
        %v3683 = vunpack.c.h.b16 %v1395
        %v3684 = vunpack.c.l.b16 %v1396
        %v3685 = vunpack.c.h.b16 %v1396
        %v3686 = vunpack.c.l.b16 %v1397
        %v3687 = vunpack.c.h.b16 %v1397
        %v3688 = vunpack.c.l.b16 %v1398
        %v3689 = vunpack.c.h.b16 %v1398
        %v3690 = vunpack.c.l.b16 %v1399
        %v3691 = vunpack.c.h.b16 %v1399
        %v3692 = vunpack.c.l.b16 %v1400
        %v3693 = vunpack.c.h.b16 %v1400
        %v3694 = vunpack.c.l.b16 %v1401
        %v3695 = vunpack.c.h.b16 %v1401
        %v3696 = vunpack.c.l.b16 %v1402
        %v3697 = vunpack.c.h.b16 %v1402
        %v3698 = vunpack.c.l.b16 %v1403
        %v3699 = vunpack.c.h.b16 %v1403
        %v3700 = vunpack.c.l.b16 %v1404
        %v3701 = vunpack.c.h.b16 %v1404
        %v3702 = vunpack.c.l.b16 %v1405
        %v3703 = vunpack.c.h.b16 %v1405
        %v3704 = vunpack.c.l.b16 %v1406
        %v3705 = vunpack.c.h.b16 %v1406
        %v3706 = vunpack.c.l.b16 %v1407
        %v3707 = vunpack.c.h.b16 %v1407
        %v3708 = vunpack.c.l.b16 %v1408
        %v3709 = vunpack.c.h.b16 %v1408
        %v3710 = vunpack.c.l.b16 %v1409
        %v3711 = vunpack.c.h.b16 %v1409
        %v3712 = vunpack.c.l.b16 %v1410
        %v3713 = vunpack.c.h.b16 %v1410
        %v3714 = vunpack.c.l.b16 %v1411
        %v3715 = vunpack.c.h.b16 %v1411
        %v3716 = vunpack.c.l.b16 %v1412
        %v3717 = vunpack.c.h.b16 %v1412
        %v3718 = vunpack.c.l.b16 %v1413
        %v3719 = vunpack.c.h.b16 %v1413
        %v3720 = vunpack.c.l.b16 %v1414
        %v3721 = vunpack.c.h.b16 %v1414
        %v3722 = vunpack.c.l.b16 %v1415
        %v3723 = vunpack.c.h.b16 %v1415
        %v3724 = vunpack.c.l.b16 %v1416
        %v3725 = vunpack.c.h.b16 %v1416
        %v3726 = vunpack.c.l.b16 %v1417
        %v3727 = vunpack.c.h.b16 %v1417
        %v3728 = vunpack.c.l.b16 %v1418
        %v3729 = vunpack.c.h.b16 %v1418
        %v3730 = vunpack.c.l.b16 %v1419
        %v3731 = vunpack.c.h.b16 %v1419
        %v3732 = vunpack.c.l.b16 %v1420
        %v3733 = vunpack.c.h.b16 %v1420
        %v3734 = vunpack.c.l.b16 %v1421
        %v3735 = vunpack.c.h.b16 %v1421
        %v3736 = vunpack.c.l.b16 %v1422
        %v3737 = vunpack.c.h.b16 %v1422
        %v3738 = vunpack.c.l.b16 %v1423
        %v3739 = vunpack.c.h.b16 %v1423
        %v3740 = vunpack.c.l.b16 %v1424
        %v3741 = vunpack.c.h.b16 %v1424
        %v3742 = vunpack.c.l.b16 %v1425
        %v3743 = vunpack.c.h.b16 %v1425
        %v3744 = vunpack.c.l.b16 %v1426
        %v3745 = vunpack.c.h.b16 %v1426
        %v3746 = vunpack.c.l.b16 %v1427
        %v3747 = vunpack.c.h.b16 %v1427
        %v3748 = vunpack.c.l.b16 %v1428
        %v3749 = vunpack.c.h.b16 %v1428
        %v3750 = vunpack.c.l.b16 %v1429
        %v3751 = vunpack.c.h.b16 %v1429
        %v3752 = vunpack.c.l.b16 %v1430
        %v3753 = vunpack.c.h.b16 %v1430
        %v3754 = vunpack.c.l.b16 %v1431
        %v3755 = vunpack.c.h.b16 %v1431
        %v3756 = vunpack.c.l.b16 %v1432
        %v3757 = vunpack.c.h.b16 %v1432
        %v3758 = vunpack.c.l.b16 %v1433
        %v3759 = vunpack.c.h.b16 %v1433
        %v3760 = vunpack.c.l.b16 %v1434
        %v3761 = vunpack.c.h.b16 %v1434
        %v3762 = vunpack.c.l.b16 %v1435
        %v3763 = vunpack.c.h.b16 %v1435
        %v3764 = vunpack.c.l.b16 %v1436
        %v3765 = vunpack.c.h.b16 %v1436
        %v3766 = vunpack.c.l.b16 %v1437
        %v3767 = vunpack.c.h.b16 %v1437
        %v3768 = vunpack.c.l.b16 %v1438
        %v3769 = vunpack.c.h.b16 %v1438
        %v3770 = vunpack.c.l.b16 %v1439
        %v3771 = vunpack.c.h.b16 %v1439
        %v3772 = vunpack.c.l.b16 %v1440
        %v3773 = vunpack.c.h.b16 %v1440
        %v3774 = vunpack.c.l.b16 %v1441
        %v3775 = vunpack.c.h.b16 %v1441
        %v3776 = vunpack.c.l.b16 %v1442
        %v3777 = vunpack.c.h.b16 %v1442
        %v3778 = vunpack.c.l.b16 %v1443
        %v3779 = vunpack.c.h.b16 %v1443
        %v3780 = vunpack.c.l.b16 %v1444
        %v3781 = vunpack.c.h.b16 %v1444
        %v3782 = vunpack.c.l.b16 %v1445
        %v3783 = vunpack.c.h.b16 %v1445
        %v3784 = vunpack.c.l.b16 %v1446
        %v3785 = vunpack.c.h.b16 %v1446
        %v3786 = vunpack.c.l.b16 %v1447
        %v3787 = vunpack.c.h.b16 %v1447
        %v3788 = vunpack.c.l.b16 %v1448
        %v3789 = vunpack.c.h.b16 %v1448
        %v3790 = vunpack.c.l.b16 %v1449
        %v3791 = vunpack.c.h.b16 %v1449
        %v3792 = vunpack.c.l.b16 %v1450
        %v3793 = vunpack.c.h.b16 %v1450
        %v3794 = vunpack.c.l.b16 %v1451
        %v3795 = vunpack.c.h.b16 %v1451
        %v3796 = vunpack.c.l.b16 %v1452
        %v3797 = vunpack.c.h.b16 %v1452
        %v3798 = vunpack.c.l.b16 %v1453
        %v3799 = vunpack.c.h.b16 %v1453
        %v3800 = vunpack.c.l.b16 %v1454
        %v3801 = vunpack.c.h.b16 %v1454
        %v3802 = vunpack.c.l.b16 %v1455
        %v3803 = vunpack.c.h.b16 %v1455
        %v3804 = vunpack.c.l.b16 %v1456
        %v3805 = vunpack.c.h.b16 %v1456
        %v3806 = vunpack.c.l.b16 %v1457
        %v3807 = vunpack.c.h.b16 %v1457
        %v3808 = vunpack.c.l.b16 %v1458
        %v3809 = vunpack.c.h.b16 %v1458
        %v3810 = vunpack.c.l.b16 %v1459
        %v3811 = vunpack.c.h.b16 %v1459
        %v3812 = vunpack.c.l.b16 %v1460
        %v3813 = vunpack.c.h.b16 %v1460
        %v3814 = vunpack.c.l.b16 %v1461
        %v3815 = vunpack.c.h.b16 %v1461
        %v3816 = vunpack.c.l.b16 %v1462
        %v3817 = vunpack.c.h.b16 %v1462
        %v3818 = vunpack.c.l.b16 %v1463
        %v3819 = vunpack.c.h.b16 %v1463
        %v3820 = vunpack.c.l.b16 %v1464
        %v3821 = vunpack.c.h.b16 %v1464
        %v3822 = vunpack.c.l.b16 %v1465
        %v3823 = vunpack.c.h.b16 %v1465
        %v3824 = vunpack.c.l.b16 %v1466
        %v3825 = vunpack.c.h.b16 %v1466
        %v3826 = vunpack.c.l.b16 %v1467
        %v3827 = vunpack.c.h.b16 %v1467
        %v3828 = vunpack.c.l.b16 %v1468
        %v3829 = vunpack.c.h.b16 %v1468
        %v3830 = vunpack.c.l.b16 %v1469
        %v3831 = vunpack.c.h.b16 %v1469
        %v3832 = vunpack.c.l.b16 %v1470
        %v3833 = vunpack.c.h.b16 %v1470
        %v3834 = vunpack.c.l.b16 %v1471
        %v3835 = vunpack.c.h.b16 %v1471
        %v3836 = vunpack.c.l.b16 %v1472
        %v3837 = vunpack.c.h.b16 %v1472
        %v3838 = vunpack.c.l.b16 %v1473
        %v3839 = vunpack.c.h.b16 %v1473
        %v3840 = vunpack.c.l.b16 %v1474
        %v3841 = vunpack.c.h.b16 %v1474
        %v3842 = vunpack.c.l.b16 %v1475
        %v3843 = vunpack.c.h.b16 %v1475
        %v3844 = vunpack.c.l.b16 %v1476
        %v3845 = vunpack.c.h.b16 %v1476
        %v3846 = vunpack.c.l.b16 %v1477
        %v3847 = vunpack.c.h.b16 %v1477
        %v3848 = vunpack.c.l.b16 %v1478
        %v3849 = vunpack.c.h.b16 %v1478
        %v3850 = vunpack.c.l.b16 %v1479
        %v3851 = vunpack.c.h.b16 %v1479
        %v3852 = vunpack.c.l.b16 %v1480
        %v3853 = vunpack.c.h.b16 %v1480
        %v3854 = vunpack.c.l.b16 %v1481
        %v3855 = vunpack.c.h.b16 %v1481
        %v3856 = vunpack.c.l.b16 %v1482
        %v3857 = vunpack.c.h.b16 %v1482
        %v3858 = vunpack.c.l.b16 %v1483
        %v3859 = vunpack.c.h.b16 %v1483
        %v3860 = vunpack.c.l.b16 %v1484
        %v3861 = vunpack.c.h.b16 %v1484
        %v3862 = vunpack.c.l.b16 %v1485
        %v3863 = vunpack.c.h.b16 %v1485
        %v3864 = vunpack.c.l.b16 %v1486
        %v3865 = vunpack.c.h.b16 %v1486
        %v3866 = vunpack.c.l.b16 %v1487
        %v3867 = vunpack.c.h.b16 %v1487
        %v3868 = vunpack.c.l.b16 %v1488
        %v3869 = vunpack.c.h.b16 %v1488
        %v3870 = vunpack.c.l.b16 %v1489
        %v3871 = vunpack.c.h.b16 %v1489
        %v3872 = vunpack.c.l.b16 %v1490
        %v3873 = vunpack.c.h.b16 %v1490
        %v3874 = vunpack.c.l.b16 %v1491
        %v3875 = vunpack.c.h.b16 %v1491
        %v3876 = vunpack.c.l.b16 %v1492
        %v3877 = vunpack.c.h.b16 %v1492
        %v3878 = vunpack.c.l.b16 %v1493
        %v3879 = vunpack.c.h.b16 %v1493
        %v3880 = vunpack.c.l.b16 %v1494
        %v3881 = vunpack.c.h.b16 %v1494
        %v3882 = vunpack.c.l.b16 %v1495
        %v3883 = vunpack.c.h.b16 %v1495
        %v3884 = vunpack.c.l.b16 %v1496
        %v3885 = vunpack.c.h.b16 %v1496
        %v3886 = vunpack.c.l.b16 %v1497
        %v3887 = vunpack.c.h.b16 %v1497
        %v3888 = vunpack.c.l.b16 %v1498
        %v3889 = vunpack.c.h.b16 %v1498
        %v3890 = vunpack.c.l.b16 %v1499
        %v3891 = vunpack.c.h.b16 %v1499
        %v3892 = vunpack.c.l.b16 %v1500
        %v3893 = vunpack.c.h.b16 %v1500
        %v3894 = vunpack.c.l.b16 %v1501
        %v3895 = vunpack.c.h.b16 %v1501
        %v3896 = vunpack.c.l.b16 %v1502
        %v3897 = vunpack.c.h.b16 %v1502
        %v3898 = vunpack.c.l.b16 %v1503
        %v3899 = vunpack.c.h.b16 %v1503
        %v3900 = vunpack.c.l.b16 %v1504
        %v3901 = vunpack.c.h.b16 %v1504
        %v3902 = vunpack.c.l.b16 %v1505
        %v3903 = vunpack.c.h.b16 %v1505
        %v3904 = vunpack.c.l.b16 %v1506
        %v3905 = vunpack.c.h.b16 %v1506
        %v3906 = vunpack.c.l.b16 %v1507
        %v3907 = vunpack.c.h.b16 %v1507
        %v3908 = vpack.c.b16 %v2318, %v2308
        %v3909 = vpack.c.b16 %v2319, %v2309
        %v3910 = vpack.c.b16 %v2320, %v2310
        %v3911 = vpack.c.b16 %v2321, %v2311
        %v3912 = vpack.c.b16 %v2322, %v2312
        %v3913 = vpack.c.b16 %v2323, %v2313
        %v3914 = vpack.c.b16 %v2324, %v2314
        %v3915 = vpack.c.b16 %v2325, %v2315
        %v3916 = vpack.c.b16 %v2326, %v2316
        %v3917 = vpack.c.b16 %v2327, %v2317
        %v3918 = vpack.c.b16 %v2338, %v2328
        %v3919 = vpack.c.b16 %v2339, %v2329
        %v3920 = vpack.c.b16 %v2340, %v2330
        %v3921 = vpack.c.b16 %v2341, %v2331
        %v3922 = vpack.c.b16 %v2342, %v2332
        %v3923 = vpack.c.b16 %v2343, %v2333
        %v3924 = vpack.c.b16 %v2344, %v2334
        %v3925 = vpack.c.b16 %v2345, %v2335
        %v3926 = vpack.c.b16 %v2346, %v2336
        %v3927 = vpack.c.b16 %v2347, %v2337
        %v3928 = vpack.c.b16 %v2358, %v2348
        %v3929 = vpack.c.b16 %v2359, %v2349
        %v3930 = vpack.c.b16 %v2360, %v2350
        %v3931 = vpack.c.b16 %v2361, %v2351
        %v3932 = vpack.c.b16 %v2362, %v2352
        %v3933 = vpack.c.b16 %v2363, %v2353
        %v3934 = vpack.c.b16 %v2364, %v2354
        %v3935 = vpack.c.b16 %v2365, %v2355
        %v3936 = vpack.c.b16 %v2366, %v2356
        %v3937 = vpack.c.b16 %v2367, %v2357
        %v3938 = vpack.c.b16 %v2378, %v2368
        %v3939 = vpack.c.b16 %v2379, %v2369
        %v3940 = vpack.c.b16 %v2380, %v2370
        %v3941 = vpack.c.b16 %v2381, %v2371
        %v3942 = vpack.c.b16 %v2382, %v2372
        %v3943 = vpack.c.b16 %v2383, %v2373
        %v3944 = vpack.c.b16 %v2384, %v2374
        %v3945 = vpack.c.b16 %v2385, %v2375
        %v3946 = vpack.c.b16 %v2386, %v2376
        %v3947 = vpack.c.b16 %v2387, %v2377
        %v3948 = vpack.c.b16 %v2398, %v2388
        %v3949 = vpack.c.b16 %v2399, %v2389
        %v3950 = vpack.c.b16 %v2400, %v2390
        %v3951 = vpack.c.b16 %v2401, %v2391
        %v3952 = vpack.c.b16 %v2402, %v2392
        %v3953 = vpack.c.b16 %v2403, %v2393
        %v3954 = vpack.c.b16 %v2404, %v2394
        %v3955 = vpack.c.b16 %v2405, %v2395
        %v3956 = vpack.c.b16 %v2406, %v2396
        %v3957 = vpack.c.b16 %v2407, %v2397
        %v3958 = vpack.c.b16 %v2418, %v2408
        %v3959 = vpack.c.b16 %v2419, %v2409
        %v3960 = vpack.c.b16 %v2420, %v2410
        %v3961 = vpack.c.b16 %v2421, %v2411
        %v3962 = vpack.c.b16 %v2422, %v2412
        %v3963 = vpack.c.b16 %v2423, %v2413
        %v3964 = vpack.c.b16 %v2424, %v2414
        %v3965 = vpack.c.b16 %v2425, %v2415
        %v3966 = vpack.c.b16 %v2426, %v2416
        %v3967 = vpack.c.b16 %v2427, %v2417
        %v3968 = vpack.c.b16 %v2438, %v2428
        %v3969 = vpack.c.b16 %v2439, %v2429
        %v3970 = vpack.c.b16 %v2440, %v2430
        %v3971 = vpack.c.b16 %v2441, %v2431
        %v3972 = vpack.c.b16 %v2442, %v2432
        %v3973 = vpack.c.b16 %v2443, %v2433
        %v3974 = vpack.c.b16 %v2444, %v2434
        %v3975 = vpack.c.b16 %v2445, %v2435
        %v3976 = vpack.c.b16 %v2446, %v2436
        %v3977 = vpack.c.b16 %v2447, %v2437
        %v3978 = vpack.c.b16 %v2458, %v2448
        %v3979 = vpack.c.b16 %v2459, %v2449
        %v3980 = vpack.c.b16 %v2460, %v2450
        %v3981 = vpack.c.b16 %v2461, %v2451
        %v3982 = vpack.c.b16 %v2462, %v2452
        %v3983 = vpack.c.b16 %v2463, %v2453
        %v3984 = vpack.c.b16 %v2464, %v2454
        %v3985 = vpack.c.b16 %v2465, %v2455
        %v3986 = vpack.c.b16 %v2466, %v2456
        %v3987 = vpack.c.b16 %v2467, %v2457
        %v3988 = vpack.c.b16 %v2478, %v2468
        %v3989 = vpack.c.b16 %v2479, %v2469
        %v3990 = vpack.c.b16 %v2480, %v2470
        %v3991 = vpack.c.b16 %v2481, %v2471
        %v3992 = vpack.c.b16 %v2482, %v2472
        %v3993 = vpack.c.b16 %v2483, %v2473
        %v3994 = vpack.c.b16 %v2484, %v2474
        %v3995 = vpack.c.b16 %v2485, %v2475
        %v3996 = vpack.c.b16 %v2486, %v2476
        %v3997 = vpack.c.b16 %v2487, %v2477
        %v3998 = vpack.c.b16 %v2498, %v2488
        %v3999 = vpack.c.b16 %v2499, %v2489
        %v4000 = vpack.c.b16 %v2500, %v2490
        %v4001 = vpack.c.b16 %v2501, %v2491
        %v4002 = vpack.c.b16 %v2502, %v2492
        %v4003 = vpack.c.b16 %v2503, %v2493
        %v4004 = vpack.c.b16 %v2504, %v2494
        %v4005 = vpack.c.b16 %v2505, %v2495
        %v4006 = vpack.c.b16 %v2506, %v2496
        %v4007 = vpack.c.b16 %v2507, %v2497
        %v4008 = vpack.c.b16 %v2518, %v2508
        %v4009 = vpack.c.b16 %v2519, %v2509
        %v4010 = vpack.c.b16 %v2520, %v2510
        %v4011 = vpack.c.b16 %v2521, %v2511
        %v4012 = vpack.c.b16 %v2522, %v2512
        %v4013 = vpack.c.b16 %v2523, %v2513
        %v4014 = vpack.c.b16 %v2524, %v2514
        %v4015 = vpack.c.b16 %v2525, %v2515
        %v4016 = vpack.c.b16 %v2526, %v2516
        %v4017 = vpack.c.b16 %v2527, %v2517
        %v4018 = vpack.c.b16 %v2538, %v2528
        %v4019 = vpack.c.b16 %v2539, %v2529
        %v4020 = vpack.c.b16 %v2540, %v2530
        %v4021 = vpack.c.b16 %v2541, %v2531
        %v4022 = vpack.c.b16 %v2542, %v2532
        %v4023 = vpack.c.b16 %v2543, %v2533
        %v4024 = vpack.c.b16 %v2544, %v2534
        %v4025 = vpack.c.b16 %v2545, %v2535
        %v4026 = vpack.c.b16 %v2546, %v2536
        %v4027 = vpack.c.b16 %v2547, %v2537
        %v4028 = vpack.c.b16 %v2558, %v2548
        %v4029 = vpack.c.b16 %v2559, %v2549
        %v4030 = vpack.c.b16 %v2560, %v2550
        %v4031 = vpack.c.b16 %v2561, %v2551
        %v4032 = vpack.c.b16 %v2562, %v2552
        %v4033 = vpack.c.b16 %v2563, %v2553
        %v4034 = vpack.c.b16 %v2564, %v2554
        %v4035 = vpack.c.b16 %v2565, %v2555
        %v4036 = vpack.c.b16 %v2566, %v2556
        %v4037 = vpack.c.b16 %v2567, %v2557
        %v4038 = vpack.c.b16 %v2578, %v2568
        %v4039 = vpack.c.b16 %v2579, %v2569
        %v4040 = vpack.c.b16 %v2580, %v2570
        %v4041 = vpack.c.b16 %v2581, %v2571
        %v4042 = vpack.c.b16 %v2582, %v2572
        %v4043 = vpack.c.b16 %v2583, %v2573
        %v4044 = vpack.c.b16 %v2584, %v2574
        %v4045 = vpack.c.b16 %v2585, %v2575
        %v4046 = vpack.c.b16 %v2586, %v2576
        %v4047 = vpack.c.b16 %v2587, %v2577
        %v4048 = vpack.c.b16 %v2598, %v2588
        %v4049 = vpack.c.b16 %v2599, %v2589
        %v4050 = vpack.c.b16 %v2600, %v2590
        %v4051 = vpack.c.b16 %v2601, %v2591
        %v4052 = vpack.c.b16 %v2602, %v2592
        %v4053 = vpack.c.b16 %v2603, %v2593
        %v4054 = vpack.c.b16 %v2604, %v2594
        %v4055 = vpack.c.b16 %v2605, %v2595
        %v4056 = vpack.c.b16 %v2606, %v2596
        %v4057 = vpack.c.b16 %v2607, %v2597
        %v4058 = vpack.c.b16 %v2618, %v2608
        %v4059 = vpack.c.b16 %v2619, %v2609
        %v4060 = vpack.c.b16 %v2620, %v2610
        %v4061 = vpack.c.b16 %v2621, %v2611
        %v4062 = vpack.c.b16 %v2622, %v2612
        %v4063 = vpack.c.b16 %v2623, %v2613
        %v4064 = vpack.c.b16 %v2624, %v2614
        %v4065 = vpack.c.b16 %v2625, %v2615
        %v4066 = vpack.c.b16 %v2626, %v2616
        %v4067 = vpack.c.b16 %v2627, %v2617
        %v4068 = vpack.c.b16 %v2638, %v2628
        %v4069 = vpack.c.b16 %v2639, %v2629
        %v4070 = vpack.c.b16 %v2640, %v2630
        %v4071 = vpack.c.b16 %v2641, %v2631
        %v4072 = vpack.c.b16 %v2642, %v2632
        %v4073 = vpack.c.b16 %v2643, %v2633
        %v4074 = vpack.c.b16 %v2644, %v2634
        %v4075 = vpack.c.b16 %v2645, %v2635
        %v4076 = vpack.c.b16 %v2646, %v2636
        %v4077 = vpack.c.b16 %v2647, %v2637
        %v4078 = vpack.c.b16 %v2658, %v2648
        %v4079 = vpack.c.b16 %v2659, %v2649
        %v4080 = vpack.c.b16 %v2660, %v2650
        %v4081 = vpack.c.b16 %v2661, %v2651
        %v4082 = vpack.c.b16 %v2662, %v2652
        %v4083 = vpack.c.b16 %v2663, %v2653
        %v4084 = vpack.c.b16 %v2664, %v2654
        %v4085 = vpack.c.b16 %v2665, %v2655
        %v4086 = vpack.c.b16 %v2666, %v2656
        %v4087 = vpack.c.b16 %v2667, %v2657
        %v4088 = vpack.c.b16 %v2678, %v2668
        %v4089 = vpack.c.b16 %v2679, %v2669
        %v4090 = vpack.c.b16 %v2680, %v2670
        %v4091 = vpack.c.b16 %v2681, %v2671
        %v4092 = vpack.c.b16 %v2682, %v2672
        %v4093 = vpack.c.b16 %v2683, %v2673
        %v4094 = vpack.c.b16 %v2684, %v2674
        %v4095 = vpack.c.b16 %v2685, %v2675
        %v4096 = vpack.c.b16 %v2686, %v2676
        %v4097 = vpack.c.b16 %v2687, %v2677
        %v4098 = vpack.c.b16 %v2698, %v2688
        %v4099 = vpack.c.b16 %v2699, %v2689
        %v4100 = vpack.c.b16 %v2700, %v2690
        %v4101 = vpack.c.b16 %v2701, %v2691
        %v4102 = vpack.c.b16 %v2702, %v2692
        %v4103 = vpack.c.b16 %v2703, %v2693
        %v4104 = vpack.c.b16 %v2704, %v2694
        %v4105 = vpack.c.b16 %v2705, %v2695
        %v4106 = vpack.c.b16 %v2706, %v2696
        %v4107 = vpack.c.b16 %v2707, %v2697
        %v4108 = vpack.c.b16 %v2718, %v2708
        %v4109 = vpack.c.b16 %v2719, %v2709
        %v4110 = vpack.c.b16 %v2720, %v2710
        %v4111 = vpack.c.b16 %v2721, %v2711
        %v4112 = vpack.c.b16 %v2722, %v2712
        %v4113 = vpack.c.b16 %v2723, %v2713
        %v4114 = vpack.c.b16 %v2724, %v2714
        %v4115 = vpack.c.b16 %v2725, %v2715
        %v4116 = vpack.c.b16 %v2726, %v2716
        %v4117 = vpack.c.b16 %v2727, %v2717
        %v4118 = vpack.c.b16 %v2738, %v2728
        %v4119 = vpack.c.b16 %v2739, %v2729
        %v4120 = vpack.c.b16 %v2740, %v2730
        %v4121 = vpack.c.b16 %v2741, %v2731
        %v4122 = vpack.c.b16 %v2742, %v2732
        %v4123 = vpack.c.b16 %v2743, %v2733
        %v4124 = vpack.c.b16 %v2744, %v2734
        %v4125 = vpack.c.b16 %v2745, %v2735
        %v4126 = vpack.c.b16 %v2746, %v2736
        %v4127 = vpack.c.b16 %v2747, %v2737
        %v4128 = vpack.c.b16 %v2758, %v2748
        %v4129 = vpack.c.b16 %v2759, %v2749
        %v4130 = vpack.c.b16 %v2760, %v2750
        %v4131 = vpack.c.b16 %v2761, %v2751
        %v4132 = vpack.c.b16 %v2762, %v2752
        %v4133 = vpack.c.b16 %v2763, %v2753
        %v4134 = vpack.c.b16 %v2764, %v2754
        %v4135 = vpack.c.b16 %v2765, %v2755
        %v4136 = vpack.c.b16 %v2766, %v2756
        %v4137 = vpack.c.b16 %v2767, %v2757
        %v4138 = vpack.c.b16 %v2778, %v2768
        %v4139 = vpack.c.b16 %v2779, %v2769
        %v4140 = vpack.c.b16 %v2780, %v2770
        %v4141 = vpack.c.b16 %v2781, %v2771
        %v4142 = vpack.c.b16 %v2782, %v2772
        %v4143 = vpack.c.b16 %v2783, %v2773
        %v4144 = vpack.c.b16 %v2784, %v2774
        %v4145 = vpack.c.b16 %v2785, %v2775
        %v4146 = vpack.c.b16 %v2786, %v2776
        %v4147 = vpack.c.b16 %v2787, %v2777
        %v4148 = vpack.c.b16 %v2798, %v2788
        %v4149 = vpack.c.b16 %v2799, %v2789
        %v4150 = vpack.c.b16 %v2800, %v2790
        %v4151 = vpack.c.b16 %v2801, %v2791
        %v4152 = vpack.c.b16 %v2802, %v2792
        %v4153 = vpack.c.b16 %v2803, %v2793
        %v4154 = vpack.c.b16 %v2804, %v2794
        %v4155 = vpack.c.b16 %v2805, %v2795
        %v4156 = vpack.c.b16 %v2806, %v2796
        %v4157 = vpack.c.b16 %v2807, %v2797
        %v4158 = vpack.c.b16 %v2818, %v2808
        %v4159 = vpack.c.b16 %v2819, %v2809
        %v4160 = vpack.c.b16 %v2820, %v2810
        %v4161 = vpack.c.b16 %v2821, %v2811
        %v4162 = vpack.c.b16 %v2822, %v2812
        %v4163 = vpack.c.b16 %v2823, %v2813
        %v4164 = vpack.c.b16 %v2824, %v2814
        %v4165 = vpack.c.b16 %v2825, %v2815
        %v4166 = vpack.c.b16 %v2826, %v2816
        %v4167 = vpack.c.b16 %v2827, %v2817
        %v4168 = vpack.c.b16 %v2838, %v2828
        %v4169 = vpack.c.b16 %v2839, %v2829
        %v4170 = vpack.c.b16 %v2840, %v2830
        %v4171 = vpack.c.b16 %v2841, %v2831
        %v4172 = vpack.c.b16 %v2842, %v2832
        %v4173 = vpack.c.b16 %v2843, %v2833
        %v4174 = vpack.c.b16 %v2844, %v2834
        %v4175 = vpack.c.b16 %v2845, %v2835
        %v4176 = vpack.c.b16 %v2846, %v2836
        %v4177 = vpack.c.b16 %v2847, %v2837
        %v4178 = vpack.c.b16 %v2858, %v2848
        %v4179 = vpack.c.b16 %v2859, %v2849
        %v4180 = vpack.c.b16 %v2860, %v2850
        %v4181 = vpack.c.b16 %v2861, %v2851
        %v4182 = vpack.c.b16 %v2862, %v2852
        %v4183 = vpack.c.b16 %v2863, %v2853
        %v4184 = vpack.c.b16 %v2864, %v2854
        %v4185 = vpack.c.b16 %v2865, %v2855
        %v4186 = vpack.c.b16 %v2866, %v2856
        %v4187 = vpack.c.b16 %v2867, %v2857
        %v4188 = vpack.c.b16 %v2878, %v2868
        %v4189 = vpack.c.b16 %v2879, %v2869
        %v4190 = vpack.c.b16 %v2880, %v2870
        %v4191 = vpack.c.b16 %v2881, %v2871
        %v4192 = vpack.c.b16 %v2882, %v2872
        %v4193 = vpack.c.b16 %v2883, %v2873
        %v4194 = vpack.c.b16 %v2884, %v2874
        %v4195 = vpack.c.b16 %v2885, %v2875
        %v4196 = vpack.c.b16 %v2886, %v2876
        %v4197 = vpack.c.b16 %v2887, %v2877
        %v4198 = vpack.c.b16 %v2898, %v2888
        %v4199 = vpack.c.b16 %v2899, %v2889
        %v4200 = vpack.c.b16 %v2900, %v2890
        %v4201 = vpack.c.b16 %v2901, %v2891
        %v4202 = vpack.c.b16 %v2902, %v2892
        %v4203 = vpack.c.b16 %v2903, %v2893
        %v4204 = vpack.c.b16 %v2904, %v2894
        %v4205 = vpack.c.b16 %v2905, %v2895
        %v4206 = vpack.c.b16 %v2906, %v2896
        %v4207 = vpack.c.b16 %v2907, %v2897
        %v4208 = vpack.c.b16 %v2918, %v2908
        %v4209 = vpack.c.b16 %v2919, %v2909
        %v4210 = vpack.c.b16 %v2920, %v2910
        %v4211 = vpack.c.b16 %v2921, %v2911
        %v4212 = vpack.c.b16 %v2922, %v2912
        %v4213 = vpack.c.b16 %v2923, %v2913
        %v4214 = vpack.c.b16 %v2924, %v2914
        %v4215 = vpack.c.b16 %v2925, %v2915
        %v4216 = vpack.c.b16 %v2926, %v2916
        %v4217 = vpack.c.b16 %v2927, %v2917
        %v4218 = vpack.c.b16 %v2938, %v2928
        %v4219 = vpack.c.b16 %v2939, %v2929
        %v4220 = vpack.c.b16 %v2940, %v2930
        %v4221 = vpack.c.b16 %v2941, %v2931
        %v4222 = vpack.c.b16 %v2942, %v2932
        %v4223 = vpack.c.b16 %v2943, %v2933
        %v4224 = vpack.c.b16 %v2944, %v2934
        %v4225 = vpack.c.b16 %v2945, %v2935
        %v4226 = vpack.c.b16 %v2946, %v2936
        %v4227 = vpack.c.b16 %v2947, %v2937
        %v4228 = vpack.c.b16 %v2958, %v2948
        %v4229 = vpack.c.b16 %v2959, %v2949
        %v4230 = vpack.c.b16 %v2960, %v2950
        %v4231 = vpack.c.b16 %v2961, %v2951
        %v4232 = vpack.c.b16 %v2962, %v2952
        %v4233 = vpack.c.b16 %v2963, %v2953
        %v4234 = vpack.c.b16 %v2964, %v2954
        %v4235 = vpack.c.b16 %v2965, %v2955
        %v4236 = vpack.c.b16 %v2966, %v2956
        %v4237 = vpack.c.b16 %v2967, %v2957
        %v4238 = vpack.c.b16 %v2978, %v2968
        %v4239 = vpack.c.b16 %v2979, %v2969
        %v4240 = vpack.c.b16 %v2980, %v2970
        %v4241 = vpack.c.b16 %v2981, %v2971
        %v4242 = vpack.c.b16 %v2982, %v2972
        %v4243 = vpack.c.b16 %v2983, %v2973
        %v4244 = vpack.c.b16 %v2984, %v2974
        %v4245 = vpack.c.b16 %v2985, %v2975
        %v4246 = vpack.c.b16 %v2986, %v2976
        %v4247 = vpack.c.b16 %v2987, %v2977
        %v4248 = vpack.c.b16 %v2998, %v2988
        %v4249 = vpack.c.b16 %v2999, %v2989
        %v4250 = vpack.c.b16 %v3000, %v2990
        %v4251 = vpack.c.b16 %v3001, %v2991
        %v4252 = vpack.c.b16 %v3002, %v2992
        %v4253 = vpack.c.b16 %v3003, %v2993
        %v4254 = vpack.c.b16 %v3004, %v2994
        %v4255 = vpack.c.b16 %v3005, %v2995
        %v4256 = vpack.c.b16 %v3006, %v2996
        %v4257 = vpack.c.b16 %v3007, %v2997
        %v4258 = vpack.c.b16 %v3018, %v3008
        %v4259 = vpack.c.b16 %v3019, %v3009
        %v4260 = vpack.c.b16 %v3020, %v3010
        %v4261 = vpack.c.b16 %v3021, %v3011
        %v4262 = vpack.c.b16 %v3022, %v3012
        %v4263 = vpack.c.b16 %v3023, %v3013
        %v4264 = vpack.c.b16 %v3024, %v3014
        %v4265 = vpack.c.b16 %v3025, %v3015
        %v4266 = vpack.c.b16 %v3026, %v3016
        %v4267 = vpack.c.b16 %v3027, %v3017
        %v4268 = vpack.c.b16 %v3038, %v3028
        %v4269 = vpack.c.b16 %v3039, %v3029
        %v4270 = vpack.c.b16 %v3040, %v3030
        %v4271 = vpack.c.b16 %v3041, %v3031
        %v4272 = vpack.c.b16 %v3042, %v3032
        %v4273 = vpack.c.b16 %v3043, %v3033
        %v4274 = vpack.c.b16 %v3044, %v3034
        %v4275 = vpack.c.b16 %v3045, %v3035
        %v4276 = vpack.c.b16 %v3046, %v3036
        %v4277 = vpack.c.b16 %v3047, %v3037
        %v4278 = vpack.c.b16 %v3058, %v3048
        %v4279 = vpack.c.b16 %v3059, %v3049
        %v4280 = vpack.c.b16 %v3060, %v3050
        %v4281 = vpack.c.b16 %v3061, %v3051
        %v4282 = vpack.c.b16 %v3062, %v3052
        %v4283 = vpack.c.b16 %v3063, %v3053
        %v4284 = vpack.c.b16 %v3064, %v3054
        %v4285 = vpack.c.b16 %v3065, %v3055
        %v4286 = vpack.c.b16 %v3066, %v3056
        %v4287 = vpack.c.b16 %v3067, %v3057
        %v4288 = vpack.c.b16 %v3078, %v3068
        %v4289 = vpack.c.b16 %v3079, %v3069
        %v4290 = vpack.c.b16 %v3080, %v3070
        %v4291 = vpack.c.b16 %v3081, %v3071
        %v4292 = vpack.c.b16 %v3082, %v3072
        %v4293 = vpack.c.b16 %v3083, %v3073
        %v4294 = vpack.c.b16 %v3084, %v3074
        %v4295 = vpack.c.b16 %v3085, %v3075
        %v4296 = vpack.c.b16 %v3086, %v3076
        %v4297 = vpack.c.b16 %v3087, %v3077
        %v4298 = vpack.c.b16 %v3098, %v3088
        %v4299 = vpack.c.b16 %v3099, %v3089
        %v4300 = vpack.c.b16 %v3100, %v3090
        %v4301 = vpack.c.b16 %v3101, %v3091
        %v4302 = vpack.c.b16 %v3102, %v3092
        %v4303 = vpack.c.b16 %v3103, %v3093
        %v4304 = vpack.c.b16 %v3104, %v3094
        %v4305 = vpack.c.b16 %v3105, %v3095
        %v4306 = vpack.c.b16 %v3106, %v3096
        %v4307 = vpack.c.b16 %v3107, %v3097
        %v4308 = vpack.c.b16 %v3118, %v3108
        %v4309 = vpack.c.b16 %v3119, %v3109
        %v4310 = vpack.c.b16 %v3120, %v3110
        %v4311 = vpack.c.b16 %v3121, %v3111
        %v4312 = vpack.c.b16 %v3122, %v3112
        %v4313 = vpack.c.b16 %v3123, %v3113
        %v4314 = vpack.c.b16 %v3124, %v3114
        %v4315 = vpack.c.b16 %v3125, %v3115
        %v4316 = vpack.c.b16 %v3126, %v3116
        %v4317 = vpack.c.b16 %v3127, %v3117
        %v4318 = vpack.c.b16 %v3138, %v3128
        %v4319 = vpack.c.b16 %v3139, %v3129
        %v4320 = vpack.c.b16 %v3140, %v3130
        %v4321 = vpack.c.b16 %v3141, %v3131
        %v4322 = vpack.c.b16 %v3142, %v3132
        %v4323 = vpack.c.b16 %v3143, %v3133
        %v4324 = vpack.c.b16 %v3144, %v3134
        %v4325 = vpack.c.b16 %v3145, %v3135
        %v4326 = vpack.c.b16 %v3146, %v3136
        %v4327 = vpack.c.b16 %v3147, %v3137
        %v4328 = vpack.c.b16 %v3158, %v3148
        %v4329 = vpack.c.b16 %v3159, %v3149
        %v4330 = vpack.c.b16 %v3160, %v3150
        %v4331 = vpack.c.b16 %v3161, %v3151
        %v4332 = vpack.c.b16 %v3162, %v3152
        %v4333 = vpack.c.b16 %v3163, %v3153
        %v4334 = vpack.c.b16 %v3164, %v3154
        %v4335 = vpack.c.b16 %v3165, %v3155
        %v4336 = vpack.c.b16 %v3166, %v3156
        %v4337 = vpack.c.b16 %v3167, %v3157
        %v4338 = vpack.c.b16 %v3178, %v3168
        %v4339 = vpack.c.b16 %v3179, %v3169
        %v4340 = vpack.c.b16 %v3180, %v3170
        %v4341 = vpack.c.b16 %v3181, %v3171
        %v4342 = vpack.c.b16 %v3182, %v3172
        %v4343 = vpack.c.b16 %v3183, %v3173
        %v4344 = vpack.c.b16 %v3184, %v3174
        %v4345 = vpack.c.b16 %v3185, %v3175
        %v4346 = vpack.c.b16 %v3186, %v3176
        %v4347 = vpack.c.b16 %v3187, %v3177
        %v4348 = vpack.c.b16 %v3198, %v3188
        %v4349 = vpack.c.b16 %v3199, %v3189
        %v4350 = vpack.c.b16 %v3200, %v3190
        %v4351 = vpack.c.b16 %v3201, %v3191
        %v4352 = vpack.c.b16 %v3202, %v3192
        %v4353 = vpack.c.b16 %v3203, %v3193
        %v4354 = vpack.c.b16 %v3204, %v3194
        %v4355 = vpack.c.b16 %v3205, %v3195
        %v4356 = vpack.c.b16 %v3206, %v3196
        %v4357 = vpack.c.b16 %v3207, %v3197
        %v4358 = vpack.c.b16 %v3218, %v3208
        %v4359 = vpack.c.b16 %v3219, %v3209
        %v4360 = vpack.c.b16 %v3220, %v3210
        %v4361 = vpack.c.b16 %v3221, %v3211
        %v4362 = vpack.c.b16 %v3222, %v3212
        %v4363 = vpack.c.b16 %v3223, %v3213
        %v4364 = vpack.c.b16 %v3224, %v3214
        %v4365 = vpack.c.b16 %v3225, %v3215
        %v4366 = vpack.c.b16 %v3226, %v3216
        %v4367 = vpack.c.b16 %v3227, %v3217
        %v4368 = vpack.c.b16 %v3238, %v3228
        %v4369 = vpack.c.b16 %v3239, %v3229
        %v4370 = vpack.c.b16 %v3240, %v3230
        %v4371 = vpack.c.b16 %v3241, %v3231
        %v4372 = vpack.c.b16 %v3242, %v3232
        %v4373 = vpack.c.b16 %v3243, %v3233
        %v4374 = vpack.c.b16 %v3244, %v3234
        %v4375 = vpack.c.b16 %v3245, %v3235
        %v4376 = vpack.c.b16 %v3246, %v3236
        %v4377 = vpack.c.b16 %v3247, %v3237
        %v4378 = vpack.c.b16 %v3258, %v3248
        %v4379 = vpack.c.b16 %v3259, %v3249
        %v4380 = vpack.c.b16 %v3260, %v3250
        %v4381 = vpack.c.b16 %v3261, %v3251
        %v4382 = vpack.c.b16 %v3262, %v3252
        %v4383 = vpack.c.b16 %v3263, %v3253
        %v4384 = vpack.c.b16 %v3264, %v3254
        %v4385 = vpack.c.b16 %v3265, %v3255
        %v4386 = vpack.c.b16 %v3266, %v3256
        %v4387 = vpack.c.b16 %v3267, %v3257
        %v4388 = vpack.c.b16 %v3278, %v3268
        %v4389 = vpack.c.b16 %v3279, %v3269
        %v4390 = vpack.c.b16 %v3280, %v3270
        %v4391 = vpack.c.b16 %v3281, %v3271
        %v4392 = vpack.c.b16 %v3282, %v3272
        %v4393 = vpack.c.b16 %v3283, %v3273
        %v4394 = vpack.c.b16 %v3284, %v3274
        %v4395 = vpack.c.b16 %v3285, %v3275
        %v4396 = vpack.c.b16 %v3286, %v3276
        %v4397 = vpack.c.b16 %v3287, %v3277
        %v4398 = vpack.c.b16 %v3298, %v3288
        %v4399 = vpack.c.b16 %v3299, %v3289
        %v4400 = vpack.c.b16 %v3300, %v3290
        %v4401 = vpack.c.b16 %v3301, %v3291
        %v4402 = vpack.c.b16 %v3302, %v3292
        %v4403 = vpack.c.b16 %v3303, %v3293
        %v4404 = vpack.c.b16 %v3304, %v3294
        %v4405 = vpack.c.b16 %v3305, %v3295
        %v4406 = vpack.c.b16 %v3306, %v3296
        %v4407 = vpack.c.b16 %v3307, %v3297
        %v4408 = vpack.c.b16 %v3318, %v3308
        %v4409 = vpack.c.b16 %v3319, %v3309
        %v4410 = vpack.c.b16 %v3320, %v3310
        %v4411 = vpack.c.b16 %v3321, %v3311
        %v4412 = vpack.c.b16 %v3322, %v3312
        %v4413 = vpack.c.b16 %v3323, %v3313
        %v4414 = vpack.c.b16 %v3324, %v3314
        %v4415 = vpack.c.b16 %v3325, %v3315
        %v4416 = vpack.c.b16 %v3326, %v3316
        %v4417 = vpack.c.b16 %v3327, %v3317
        %v4418 = vpack.c.b16 %v3338, %v3328
        %v4419 = vpack.c.b16 %v3339, %v3329
        %v4420 = vpack.c.b16 %v3340, %v3330
        %v4421 = vpack.c.b16 %v3341, %v3331
        %v4422 = vpack.c.b16 %v3342, %v3332
        %v4423 = vpack.c.b16 %v3343, %v3333
        %v4424 = vpack.c.b16 %v3344, %v3334
        %v4425 = vpack.c.b16 %v3345, %v3335
        %v4426 = vpack.c.b16 %v3346, %v3336
        %v4427 = vpack.c.b16 %v3347, %v3337
        %v4428 = vpack.c.b16 %v3358, %v3348
        %v4429 = vpack.c.b16 %v3359, %v3349
        %v4430 = vpack.c.b16 %v3360, %v3350
        %v4431 = vpack.c.b16 %v3361, %v3351
        %v4432 = vpack.c.b16 %v3362, %v3352
        %v4433 = vpack.c.b16 %v3363, %v3353
        %v4434 = vpack.c.b16 %v3364, %v3354
        %v4435 = vpack.c.b16 %v3365, %v3355
        %v4436 = vpack.c.b16 %v3366, %v3356
        %v4437 = vpack.c.b16 %v3367, %v3357
        %v4438 = vpack.c.b16 %v3378, %v3368
        %v4439 = vpack.c.b16 %v3379, %v3369
        %v4440 = vpack.c.b16 %v3380, %v3370
        %v4441 = vpack.c.b16 %v3381, %v3371
        %v4442 = vpack.c.b16 %v3382, %v3372
        %v4443 = vpack.c.b16 %v3383, %v3373
        %v4444 = vpack.c.b16 %v3384, %v3374
        %v4445 = vpack.c.b16 %v3385, %v3375
        %v4446 = vpack.c.b16 %v3386, %v3376
        %v4447 = vpack.c.b16 %v3387, %v3377
        %v4448 = vpack.c.b16 %v3398, %v3388
        %v4449 = vpack.c.b16 %v3399, %v3389
        %v4450 = vpack.c.b16 %v3400, %v3390
        %v4451 = vpack.c.b16 %v3401, %v3391
        %v4452 = vpack.c.b16 %v3402, %v3392
        %v4453 = vpack.c.b16 %v3403, %v3393
        %v4454 = vpack.c.b16 %v3404, %v3394
        %v4455 = vpack.c.b16 %v3405, %v3395
        %v4456 = vpack.c.b16 %v3406, %v3396
        %v4457 = vpack.c.b16 %v3407, %v3397
        %v4458 = vpack.c.b16 %v3418, %v3408
        %v4459 = vpack.c.b16 %v3419, %v3409
        %v4460 = vpack.c.b16 %v3420, %v3410
        %v4461 = vpack.c.b16 %v3421, %v3411
        %v4462 = vpack.c.b16 %v3422, %v3412
        %v4463 = vpack.c.b16 %v3423, %v3413
        %v4464 = vpack.c.b16 %v3424, %v3414
        %v4465 = vpack.c.b16 %v3425, %v3415
        %v4466 = vpack.c.b16 %v3426, %v3416
        %v4467 = vpack.c.b16 %v3427, %v3417
        %v4468 = vpack.c.b16 %v3438, %v3428
        %v4469 = vpack.c.b16 %v3439, %v3429
        %v4470 = vpack.c.b16 %v3440, %v3430
        %v4471 = vpack.c.b16 %v3441, %v3431
        %v4472 = vpack.c.b16 %v3442, %v3432
        %v4473 = vpack.c.b16 %v3443, %v3433
        %v4474 = vpack.c.b16 %v3444, %v3434
        %v4475 = vpack.c.b16 %v3445, %v3435
        %v4476 = vpack.c.b16 %v3446, %v3436
        %v4477 = vpack.c.b16 %v3447, %v3437
        %v4478 = vpack.c.b16 %v3458, %v3448
        %v4479 = vpack.c.b16 %v3459, %v3449
        %v4480 = vpack.c.b16 %v3460, %v3450
        %v4481 = vpack.c.b16 %v3461, %v3451
        %v4482 = vpack.c.b16 %v3462, %v3452
        %v4483 = vpack.c.b16 %v3463, %v3453
        %v4484 = vpack.c.b16 %v3464, %v3454
        %v4485 = vpack.c.b16 %v3465, %v3455
        %v4486 = vpack.c.b16 %v3466, %v3456
        %v4487 = vpack.c.b16 %v3467, %v3457
        %v4488 = vpack.c.b16 %v3478, %v3468
        %v4489 = vpack.c.b16 %v3479, %v3469
        %v4490 = vpack.c.b16 %v3480, %v3470
        %v4491 = vpack.c.b16 %v3481, %v3471
        %v4492 = vpack.c.b16 %v3482, %v3472
        %v4493 = vpack.c.b16 %v3483, %v3473
        %v4494 = vpack.c.b16 %v3484, %v3474
        %v4495 = vpack.c.b16 %v3485, %v3475
        %v4496 = vpack.c.b16 %v3486, %v3476
        %v4497 = vpack.c.b16 %v3487, %v3477
        %v4498 = vpack.c.b16 %v3498, %v3488
        %v4499 = vpack.c.b16 %v3499, %v3489
        %v4500 = vpack.c.b16 %v3500, %v3490
        %v4501 = vpack.c.b16 %v3501, %v3491
        %v4502 = vpack.c.b16 %v3502, %v3492
        %v4503 = vpack.c.b16 %v3503, %v3493
        %v4504 = vpack.c.b16 %v3504, %v3494
        %v4505 = vpack.c.b16 %v3505, %v3495
        %v4506 = vpack.c.b16 %v3506, %v3496
        %v4507 = vpack.c.b16 %v3507, %v3497
        %v4508 = vpack.c.b16 %v3518, %v3508
        %v4509 = vpack.c.b16 %v3519, %v3509
        %v4510 = vpack.c.b16 %v3520, %v3510
        %v4511 = vpack.c.b16 %v3521, %v3511
        %v4512 = vpack.c.b16 %v3522, %v3512
        %v4513 = vpack.c.b16 %v3523, %v3513
        %v4514 = vpack.c.b16 %v3524, %v3514
        %v4515 = vpack.c.b16 %v3525, %v3515
        %v4516 = vpack.c.b16 %v3526, %v3516
        %v4517 = vpack.c.b16 %v3527, %v3517
        %v4518 = vpack.c.b16 %v3538, %v3528
        %v4519 = vpack.c.b16 %v3539, %v3529
        %v4520 = vpack.c.b16 %v3540, %v3530
        %v4521 = vpack.c.b16 %v3541, %v3531
        %v4522 = vpack.c.b16 %v3542, %v3532
        %v4523 = vpack.c.b16 %v3543, %v3533
        %v4524 = vpack.c.b16 %v3544, %v3534
        %v4525 = vpack.c.b16 %v3545, %v3535
        %v4526 = vpack.c.b16 %v3546, %v3536
        %v4527 = vpack.c.b16 %v3547, %v3537
        %v4528 = vpack.c.b16 %v3558, %v3548
        %v4529 = vpack.c.b16 %v3559, %v3549
        %v4530 = vpack.c.b16 %v3560, %v3550
        %v4531 = vpack.c.b16 %v3561, %v3551
        %v4532 = vpack.c.b16 %v3562, %v3552
        %v4533 = vpack.c.b16 %v3563, %v3553
        %v4534 = vpack.c.b16 %v3564, %v3554
        %v4535 = vpack.c.b16 %v3565, %v3555
        %v4536 = vpack.c.b16 %v3566, %v3556
        %v4537 = vpack.c.b16 %v3567, %v3557
        %v4538 = vpack.c.b16 %v3578, %v3568
        %v4539 = vpack.c.b16 %v3579, %v3569
        %v4540 = vpack.c.b16 %v3580, %v3570
        %v4541 = vpack.c.b16 %v3581, %v3571
        %v4542 = vpack.c.b16 %v3582, %v3572
        %v4543 = vpack.c.b16 %v3583, %v3573
        %v4544 = vpack.c.b16 %v3584, %v3574
        %v4545 = vpack.c.b16 %v3585, %v3575
        %v4546 = vpack.c.b16 %v3586, %v3576
        %v4547 = vpack.c.b16 %v3587, %v3577
        %v4548 = vpack.c.b16 %v3598, %v3588
        %v4549 = vpack.c.b16 %v3599, %v3589
        %v4550 = vpack.c.b16 %v3600, %v3590
        %v4551 = vpack.c.b16 %v3601, %v3591
        %v4552 = vpack.c.b16 %v3602, %v3592
        %v4553 = vpack.c.b16 %v3603, %v3593
        %v4554 = vpack.c.b16 %v3604, %v3594
        %v4555 = vpack.c.b16 %v3605, %v3595
        %v4556 = vpack.c.b16 %v3606, %v3596
        %v4557 = vpack.c.b16 %v3607, %v3597
        %v4558 = vpack.c.b16 %v3618, %v3608
        %v4559 = vpack.c.b16 %v3619, %v3609
        %v4560 = vpack.c.b16 %v3620, %v3610
        %v4561 = vpack.c.b16 %v3621, %v3611
        %v4562 = vpack.c.b16 %v3622, %v3612
        %v4563 = vpack.c.b16 %v3623, %v3613
        %v4564 = vpack.c.b16 %v3624, %v3614
        %v4565 = vpack.c.b16 %v3625, %v3615
        %v4566 = vpack.c.b16 %v3626, %v3616
        %v4567 = vpack.c.b16 %v3627, %v3617
        %v4568 = vpack.c.b16 %v3638, %v3628
        %v4569 = vpack.c.b16 %v3639, %v3629
        %v4570 = vpack.c.b16 %v3640, %v3630
        %v4571 = vpack.c.b16 %v3641, %v3631
        %v4572 = vpack.c.b16 %v3642, %v3632
        %v4573 = vpack.c.b16 %v3643, %v3633
        %v4574 = vpack.c.b16 %v3644, %v3634
        %v4575 = vpack.c.b16 %v3645, %v3635
        %v4576 = vpack.c.b16 %v3646, %v3636
        %v4577 = vpack.c.b16 %v3647, %v3637
        %v4578 = vpack.c.b16 %v3658, %v3648
        %v4579 = vpack.c.b16 %v3659, %v3649
        %v4580 = vpack.c.b16 %v3660, %v3650
        %v4581 = vpack.c.b16 %v3661, %v3651
        %v4582 = vpack.c.b16 %v3662, %v3652
        %v4583 = vpack.c.b16 %v3663, %v3653
        %v4584 = vpack.c.b16 %v3664, %v3654
        %v4585 = vpack.c.b16 %v3665, %v3655
        %v4586 = vpack.c.b16 %v3666, %v3656
        %v4587 = vpack.c.b16 %v3667, %v3657
        %v4588 = vpack.c.b16 %v3678, %v3668
        %v4589 = vpack.c.b16 %v3679, %v3669
        %v4590 = vpack.c.b16 %v3680, %v3670
        %v4591 = vpack.c.b16 %v3681, %v3671
        %v4592 = vpack.c.b16 %v3682, %v3672
        %v4593 = vpack.c.b16 %v3683, %v3673
        %v4594 = vpack.c.b16 %v3684, %v3674
        %v4595 = vpack.c.b16 %v3685, %v3675
        %v4596 = vpack.c.b16 %v3686, %v3676
        %v4597 = vpack.c.b16 %v3687, %v3677
        %v4598 = vpack.c.b16 %v3698, %v3688
        %v4599 = vpack.c.b16 %v3699, %v3689
        %v4600 = vpack.c.b16 %v3700, %v3690
        %v4601 = vpack.c.b16 %v3701, %v3691
        %v4602 = vpack.c.b16 %v3702, %v3692
        %v4603 = vpack.c.b16 %v3703, %v3693
        %v4604 = vpack.c.b16 %v3704, %v3694
        %v4605 = vpack.c.b16 %v3705, %v3695
        %v4606 = vpack.c.b16 %v3706, %v3696
        %v4607 = vpack.c.b16 %v3707, %v3697
        %v4608 = vpack.c.b16 %v3718, %v3708
        %v4609 = vpack.c.b16 %v3719, %v3709
        %v4610 = vpack.c.b16 %v3720, %v3710
        %v4611 = vpack.c.b16 %v3721, %v3711
        %v4612 = vpack.c.b16 %v3722, %v3712
        %v4613 = vpack.c.b16 %v3723, %v3713
        %v4614 = vpack.c.b16 %v3724, %v3714
        %v4615 = vpack.c.b16 %v3725, %v3715
        %v4616 = vpack.c.b16 %v3726, %v3716
        %v4617 = vpack.c.b16 %v3727, %v3717
        %v4618 = vpack.c.b16 %v3738, %v3728
        %v4619 = vpack.c.b16 %v3739, %v3729
        %v4620 = vpack.c.b16 %v3740, %v3730
        %v4621 = vpack.c.b16 %v3741, %v3731
        %v4622 = vpack.c.b16 %v3742, %v3732
        %v4623 = vpack.c.b16 %v3743, %v3733
        %v4624 = vpack.c.b16 %v3744, %v3734
        %v4625 = vpack.c.b16 %v3745, %v3735
        %v4626 = vpack.c.b16 %v3746, %v3736
        %v4627 = vpack.c.b16 %v3747, %v3737
        %v4628 = vpack.c.b16 %v3758, %v3748
        %v4629 = vpack.c.b16 %v3759, %v3749
        %v4630 = vpack.c.b16 %v3760, %v3750
        %v4631 = vpack.c.b16 %v3761, %v3751
        %v4632 = vpack.c.b16 %v3762, %v3752
        %v4633 = vpack.c.b16 %v3763, %v3753
        %v4634 = vpack.c.b16 %v3764, %v3754
        %v4635 = vpack.c.b16 %v3765, %v3755
        %v4636 = vpack.c.b16 %v3766, %v3756
        %v4637 = vpack.c.b16 %v3767, %v3757
        %v4638 = vpack.c.b16 %v3778, %v3768
        %v4639 = vpack.c.b16 %v3779, %v3769
        %v4640 = vpack.c.b16 %v3780, %v3770
        %v4641 = vpack.c.b16 %v3781, %v3771
        %v4642 = vpack.c.b16 %v3782, %v3772
        %v4643 = vpack.c.b16 %v3783, %v3773
        %v4644 = vpack.c.b16 %v3784, %v3774
        %v4645 = vpack.c.b16 %v3785, %v3775
        %v4646 = vpack.c.b16 %v3786, %v3776
        %v4647 = vpack.c.b16 %v3787, %v3777
        %v4648 = vpack.c.b16 %v3798, %v3788
        %v4649 = vpack.c.b16 %v3799, %v3789
        %v4650 = vpack.c.b16 %v3800, %v3790
        %v4651 = vpack.c.b16 %v3801, %v3791
        %v4652 = vpack.c.b16 %v3802, %v3792
        %v4653 = vpack.c.b16 %v3803, %v3793
        %v4654 = vpack.c.b16 %v3804, %v3794
        %v4655 = vpack.c.b16 %v3805, %v3795
        %v4656 = vpack.c.b16 %v3806, %v3796
        %v4657 = vpack.c.b16 %v3807, %v3797
        %v4658 = vpack.c.b16 %v3818, %v3808
        %v4659 = vpack.c.b16 %v3819, %v3809
        %v4660 = vpack.c.b16 %v3820, %v3810
        %v4661 = vpack.c.b16 %v3821, %v3811
        %v4662 = vpack.c.b16 %v3822, %v3812
        %v4663 = vpack.c.b16 %v3823, %v3813
        %v4664 = vpack.c.b16 %v3824, %v3814
        %v4665 = vpack.c.b16 %v3825, %v3815
        %v4666 = vpack.c.b16 %v3826, %v3816
        %v4667 = vpack.c.b16 %v3827, %v3817
        %v4668 = vpack.c.b16 %v3838, %v3828
        %v4669 = vpack.c.b16 %v3839, %v3829
        %v4670 = vpack.c.b16 %v3840, %v3830
        %v4671 = vpack.c.b16 %v3841, %v3831
        %v4672 = vpack.c.b16 %v3842, %v3832
        %v4673 = vpack.c.b16 %v3843, %v3833
        %v4674 = vpack.c.b16 %v3844, %v3834
        %v4675 = vpack.c.b16 %v3845, %v3835
        %v4676 = vpack.c.b16 %v3846, %v3836
        %v4677 = vpack.c.b16 %v3847, %v3837
        %v4678 = vpack.c.b16 %v3858, %v3848
        %v4679 = vpack.c.b16 %v3859, %v3849
        %v4680 = vpack.c.b16 %v3860, %v3850
        %v4681 = vpack.c.b16 %v3861, %v3851
        %v4682 = vpack.c.b16 %v3862, %v3852
        %v4683 = vpack.c.b16 %v3863, %v3853
        %v4684 = vpack.c.b16 %v3864, %v3854
        %v4685 = vpack.c.b16 %v3865, %v3855
        %v4686 = vpack.c.b16 %v3866, %v3856
        %v4687 = vpack.c.b16 %v3867, %v3857
        %v4688 = vpack.c.b16 %v3878, %v3868
        %v4689 = vpack.c.b16 %v3879, %v3869
        %v4690 = vpack.c.b16 %v3880, %v3870
        %v4691 = vpack.c.b16 %v3881, %v3871
        %v4692 = vpack.c.b16 %v3882, %v3872
        %v4693 = vpack.c.b16 %v3883, %v3873
        %v4694 = vpack.c.b16 %v3884, %v3874
        %v4695 = vpack.c.b16 %v3885, %v3875
        %v4696 = vpack.c.b16 %v3886, %v3876
        %v4697 = vpack.c.b16 %v3887, %v3877
        %v4698 = vpack.c.b16 %v3898, %v3888
        %v4699 = vpack.c.b16 %v3899, %v3889
        %v4700 = vpack.c.b16 %v3900, %v3890
        %v4701 = vpack.c.b16 %v3901, %v3891
        %v4702 = vpack.c.b16 %v3902, %v3892
        %v4703 = vpack.c.b16 %v3903, %v3893
        %v4704 = vpack.c.b16 %v3904, %v3894
        %v4705 = vpack.c.b16 %v3905, %v3895
        %v4706 = vpack.c.b16 %v3906, %v3896
        %v4707 = vpack.c.b16 %v3907, %v3897
        %5508 = vmatprep.subr.bf16.mxu0 %v3979
        %5509 = vmatpush1.bf16.msra.mxu0 %v3978
        %5510 = vmatprep.subr.bf16.mxu0 %v3969
        %5511 = vmatpush1.bf16.msra.mxu0 %v3968
        %5512 = vmatprep.subr.bf16.mxu0 %v3959
        %5513 = vmatpush1.bf16.msra.mxu0 %v3958
        %5514 = vmatprep.subr.bf16.mxu0 %v3949
        %5515 = vmatpush1.bf16.msra.mxu0 %v3948
        %5516 = vmatprep.subr.bf16.mxu0 %v3939
        %5517 = vmatpush1.bf16.msra.mxu0 %v3938
        %5518 = vmatprep.subr.bf16.mxu0 %v3929
        %5519 = vmatpush1.bf16.msra.mxu0 %v3928
        %5520 = vmatprep.subr.bf16.mxu0 %v3919
        %5521 = vmatpush1.bf16.msra.mxu0 %v3918
        %5522 = vmatprep.subr.bf16.mxu0 %v3909
        %5523 = vmatpush1.bf16.msra.mxu0 %v3908
        %5524 = vmatprep.subr.bf16.mxu0 %v4059
        %5525 = vmatpush2.bf16.msra.mxu0 %v4058
        %5526 = vmatprep.subr.bf16.mxu0 %v4049
        %5527 = vmatpush2.bf16.msra.mxu0 %v4048
        %5528 = vmatprep.subr.bf16.mxu0 %v4039
        %5529 = vmatpush2.bf16.msra.mxu0 %v4038
        %5530 = vmatprep.subr.bf16.mxu0 %v4029
        %5531 = vmatpush2.bf16.msra.mxu0 %v4028
        %5532 = vmatprep.subr.bf16.mxu0 %v4019
        %5533 = vmatpush2.bf16.msra.mxu0 %v4018
        %5534 = vmatprep.subr.bf16.mxu0 %v4009
        %5535 = vmatpush2.bf16.msra.mxu0 %v4008
        %5536 = vmatprep.subr.bf16.mxu0 %v3999
        %5537 = vmatpush2.bf16.msra.mxu0 %v3998
        %5538 = vmatprep.subr.bf16.mxu0 %v3989
        %5539 = vmatpush2.bf16.msra.mxu0 %v3988
        %5540 = vmatprep.mubr.bf16.mxu0 %v564
        %5541 = vmatmul.mubr.bf16.gmra.mxu0 %v562
        %v5542 = vpop.f32.mrf.mxu0
        %v5543 = vadd.f32 0.0, %v5542
        %v5544 = vpop.f32.mrf.mxu0
        %v5545 = vadd.f32 0.0, %v5544
        %v5546 = vpop.f32.mrf.mxu0
        %v5547 = vadd.f32 0.0, %v5546
        %v5548 = vpop.f32.mrf.mxu0
        %v5549 = vadd.f32 0.0, %v5548
        %5550 = vmatprep.mubr.bf16.mxu0 %v565
        %5551 = vmatmul.mubr.bf16.gmra.mxu0 %v563
        %v5552 = vpop.f32.mrf.mxu0
        %v5553 = vadd.f32 0.0, %v5552
        %v5554 = vpop.f32.mrf.mxu0
        %v5555 = vadd.f32 0.0, %v5554
        %v5556 = vpop.f32.mrf.mxu0
        %v5557 = vadd.f32 0.0, %v5556
        %v5558 = vpop.f32.mrf.mxu0
        %v5559 = vadd.f32 0.0, %v5558
        %5560 = vmatprep.mubr.bf16.mxu0 %v566
        %5561 = vmatmul.mubr.bf16.gmra.mxu0 %v564
        %v5562 = vpop.f32.mrf.mxu0
        %v5563 = vadd.f32 0.0, %v5562
        %v5564 = vpop.f32.mrf.mxu0
        %v5565 = vadd.f32 0.0, %v5564
        %v5566 = vpop.f32.mrf.mxu0
        %v5567 = vadd.f32 0.0, %v5566
        %v5568 = vpop.f32.mrf.mxu0
        %v5569 = vadd.f32 0.0, %v5568
        %5570 = vmatprep.mubr.bf16.mxu0 %v567
        %5571 = vmatmul.mubr.bf16.gmra.mxu0 %v565
        %v5572 = vpop.f32.mrf.mxu0
        %v5573 = vadd.f32 0.0, %v5572
        %v5574 = vpop.f32.mrf.mxu0
        %v5575 = vadd.f32 0.0, %v5574
        %v5576 = vpop.f32.mrf.mxu0
        %v5577 = vadd.f32 0.0, %v5576
        %v5578 = vpop.f32.mrf.mxu0
        %v5579 = vadd.f32 0.0, %v5578
        %5580 = vmatprep.mubr.bf16.mxu0 %v568
        %5581 = vmatmul.mubr.bf16.gmra.mxu0 %v566
        %v5582 = vpop.f32.mrf.mxu0
        %v5583 = vadd.f32 0.0, %v5582
        %v5584 = vpop.f32.mrf.mxu0
        %v5585 = vadd.f32 0.0, %v5584
        %v5586 = vpop.f32.mrf.mxu0
        %v5587 = vadd.f32 0.0, %v5586
        %v5588 = vpop.f32.mrf.mxu0
        %v5589 = vadd.f32 0.0, %v5588
        %5590 = vmatprep.mubr.bf16.mxu0 %v569
        %5591 = vmatmul.mubr.bf16.gmra.mxu0 %v567
        %v5592 = vpop.f32.mrf.mxu0
        %v5593 = vadd.f32 0.0, %v5592
        %v5594 = vpop.f32.mrf.mxu0
        %v5595 = vadd.f32 0.0, %v5594
        %v5596 = vpop.f32.mrf.mxu0
        %v5597 = vadd.f32 0.0, %v5596
        %v5598 = vpop.f32.mrf.mxu0
        %v5599 = vadd.f32 0.0, %v5598
        %5600 = vmatprep.mubr.bf16.mxu0 %v570
        %5601 = vmatmul.mubr.bf16.gmra.mxu0 %v568
        %v5602 = vpop.f32.mrf.mxu0
        %v5603 = vadd.f32 0.0, %v5602
        %v5604 = vpop.f32.mrf.mxu0
        %v5605 = vadd.f32 0.0, %v5604
        %v5606 = vpop.f32.mrf.mxu0
        %v5607 = vadd.f32 0.0, %v5606
        %v5608 = vpop.f32.mrf.mxu0
        %v5609 = vadd.f32 0.0, %v5608
        %5610 = vmatprep.mubr.bf16.mxu0 %v571
        %5611 = vmatmul.mubr.bf16.gmra.mxu0 %v569
        %v5612 = vpop.f32.mrf.mxu0
        %v5613 = vadd.f32 0.0, %v5612
        %v5614 = vpop.f32.mrf.mxu0
        %v5615 = vadd.f32 0.0, %v5614
        %v5616 = vpop.f32.mrf.mxu0
        %v5617 = vadd.f32 0.0, %v5616
        %v5618 = vpop.f32.mrf.mxu0
        %v5619 = vadd.f32 0.0, %v5618
        %5620 = vmatprep.mubr.bf16.mxu0 %v572
        %5621 = vmatmul.mubr.bf16.gmra.mxu0 %v570
        %v5622 = vpop.f32.mrf.mxu0
        %v5623 = vadd.f32 0.0, %v5622
        %v5624 = vpop.f32.mrf.mxu0
        %v5625 = vadd.f32 0.0, %v5624
        %v5626 = vpop.f32.mrf.mxu0
        %v5627 = vadd.f32 0.0, %v5626
        %v5628 = vpop.f32.mrf.mxu0
        %v5629 = vadd.f32 0.0, %v5628
        %5630 = vmatprep.mubr.bf16.mxu0 %v573
        %5631 = vmatmul.mubr.bf16.gmra.mxu0 %v571
        %v5632 = vpop.f32.mrf.mxu0
        %v5633 = vadd.f32 0.0, %v5632
        %v5634 = vpop.f32.mrf.mxu0
        %v5635 = vadd.f32 0.0, %v5634
        %v5636 = vpop.f32.mrf.mxu0
        %v5637 = vadd.f32 0.0, %v5636
        %v5638 = vpop.f32.mrf.mxu0
        %v5639 = vadd.f32 0.0, %v5638
        %5640 = vmatprep.mubr.bf16.mxu0 %v574
        %5641 = vmatmul.mubr.bf16.gmra.mxu0 %v572
        %v5642 = vpop.f32.mrf.mxu0
        %v5643 = vadd.f32 0.0, %v5642
        %v5644 = vpop.f32.mrf.mxu0
        %v5645 = vadd.f32 0.0, %v5644
        %v5646 = vpop.f32.mrf.mxu0
        %v5647 = vadd.f32 0.0, %v5646
        %v5648 = vpop.f32.mrf.mxu0
        %v5649 = vadd.f32 0.0, %v5648
        %5650 = vmatprep.mubr.bf16.mxu0 %v575
        %5651 = vmatmul.mubr.bf16.gmra.mxu0 %v573
        %v5652 = vpop.f32.mrf.mxu0
        %v5653 = vadd.f32 0.0, %v5652
        %v5654 = vpop.f32.mrf.mxu0
        %v5655 = vadd.f32 0.0, %v5654
        %v5656 = vpop.f32.mrf.mxu0
        %v5657 = vadd.f32 0.0, %v5656
        %v5658 = vpop.f32.mrf.mxu0
        %v5659 = vadd.f32 0.0, %v5658
        %5660 = vmatprep.mubr.bf16.mxu0 %v576
        %5661 = vmatmul.mubr.bf16.gmra.mxu0 %v574
        %v5662 = vpop.f32.mrf.mxu0
        %v5663 = vadd.f32 0.0, %v5662
        %v5664 = vpop.f32.mrf.mxu0
        %v5665 = vadd.f32 0.0, %v5664
        %v5666 = vpop.f32.mrf.mxu0
        %v5667 = vadd.f32 0.0, %v5666
        %v5668 = vpop.f32.mrf.mxu0
        %v5669 = vadd.f32 0.0, %v5668
        %5670 = vmatprep.mubr.bf16.mxu0 %v577
        %5671 = vmatmul.mubr.bf16.gmra.mxu0 %v575
        %v5672 = vpop.f32.mrf.mxu0
        %v5673 = vadd.f32 0.0, %v5672
        %v5674 = vpop.f32.mrf.mxu0
        %v5675 = vadd.f32 0.0, %v5674
        %v5676 = vpop.f32.mrf.mxu0
        %v5677 = vadd.f32 0.0, %v5676
        %v5678 = vpop.f32.mrf.mxu0
        %v5679 = vadd.f32 0.0, %v5678
        %5680 = vmatprep.mubr.bf16.mxu0 %v670
        %5681 = vmatmul.mubr.bf16.gmra.mxu0 %v576
        %v5682 = vpop.f32.mrf.mxu0
        %v5683 = vadd.f32 0.0, %v5682
        %v5684 = vpop.f32.mrf.mxu0
        %v5685 = vadd.f32 0.0, %v5684
        %v5686 = vpop.f32.mrf.mxu0
        %v5687 = vadd.f32 0.0, %v5686
        %v5688 = vpop.f32.mrf.mxu0
        %v5689 = vadd.f32 0.0, %v5688
        %5690 = vmatprep.mubr.bf16.mxu0 %v671
        %5691 = vmatmul.mubr.bf16.gmra.mxu0 %v577
        %v5692 = vpop.f32.mrf.mxu0
        %v5693 = vadd.f32 0.0, %v5692
        %v5694 = vpop.f32.mrf.mxu0
        %v5695 = vadd.f32 0.0, %v5694
        %v5696 = vpop.f32.mrf.mxu0
        %v5697 = vadd.f32 0.0, %v5696
        %v5698 = vpop.f32.mrf.mxu0
        %v5699 = vadd.f32 0.0, %v5698
        %5700 = vmatprep.mubr.bf16.mxu0 %v672
        %5701 = vmatmul.mubr.bf16.gmra.mxu0 %v670
        %v5702 = vpop.f32.mrf.mxu0
        %v5703 = vpop.f32.mrf.mxu0
        %v5704 = vadd.f32 0.0, %v5703
        %v5705 = vpop.f32.mrf.mxu0
        %v5706 = vpop.f32.mrf.mxu0
        %5707 = vdwg.mxu0
        %5708 = vmatprep.subr.bf16.mxu0 %v4139
        %5709 = vmatpush1.bf16.msra.mxu0 %v4138
        %5710 = vmatprep.subr.bf16.mxu0 %v4129
        %5711 = vmatpush1.bf16.msra.mxu0 %v4128
        %5712 = vmatprep.subr.bf16.mxu0 %v4119
        %5713 = vmatpush1.bf16.msra.mxu0 %v4118
        %5714 = vmatprep.subr.bf16.mxu0 %v4109
        %5715 = vmatpush1.bf16.msra.mxu0 %v4108
        %5716 = vmatprep.subr.bf16.mxu0 %v4099
        %5717 = vmatpush1.bf16.msra.mxu0 %v4098
        %5718 = vmatprep.subr.bf16.mxu0 %v4089
        %5719 = vmatpush1.bf16.msra.mxu0 %v4088
        %5720 = vmatprep.subr.bf16.mxu0 %v4079
        %5721 = vmatpush1.bf16.msra.mxu0 %v4078
        %5722 = vmatprep.subr.bf16.mxu0 %v4069
        %5723 = vmatpush1.bf16.msra.mxu0 %v4068
        %5724 = vmatprep.subr.bf16.mxu0 %v4219
        %5725 = vmatpush2.bf16.msra.mxu0 %v4218
        %5726 = vmatprep.subr.bf16.mxu0 %v4209
        %5727 = vmatpush2.bf16.msra.mxu0 %v4208
        %5728 = vmatprep.subr.bf16.mxu0 %v4199
        %5729 = vmatpush2.bf16.msra.mxu0 %v4198
        %5730 = vmatprep.subr.bf16.mxu0 %v4189
        %5731 = vmatpush2.bf16.msra.mxu0 %v4188
        %5732 = vmatprep.subr.bf16.mxu0 %v4179
        %5733 = vmatpush2.bf16.msra.mxu0 %v4178
        %5734 = vmatprep.subr.bf16.mxu0 %v4169
        %5735 = vmatpush2.bf16.msra.mxu0 %v4168
        %5736 = vmatprep.subr.bf16.mxu0 %v4159
        %5737 = vmatpush2.bf16.msra.mxu0 %v4158
        %5738 = vmatprep.subr.bf16.mxu0 %v4149
        %5739 = vmatpush2.bf16.msra.mxu0 %v4148
        %5740 = vmatprep.mubr.bf16.mxu0 %v568
        %5741 = vmatmul.mubr.bf16.gmra.mxu0 %v566
        %v5742 = vpop.f32.mrf.mxu0
        %v5743 = vadd.f32 %v5543, %v5742
        %v5744 = vpop.f32.mrf.mxu0
        %v5745 = vadd.f32 %v5545, %v5744
        %v5746 = vpop.f32.mrf.mxu0
        %v5747 = vadd.f32 %v5547, %v5746
        %v5748 = vpop.f32.mrf.mxu0
        %v5749 = vadd.f32 %v5549, %v5748
        %5750 = vmatprep.mubr.bf16.mxu0 %v569
        %5751 = vmatmul.mubr.bf16.gmra.mxu0 %v567
        %v5752 = vpop.f32.mrf.mxu0
        %v5753 = vadd.f32 %v5553, %v5752
        %v5754 = vpop.f32.mrf.mxu0
        %v5755 = vadd.f32 %v5555, %v5754
        %v5756 = vpop.f32.mrf.mxu0
        %v5757 = vadd.f32 %v5557, %v5756
        %v5758 = vpop.f32.mrf.mxu0
        %v5759 = vadd.f32 %v5559, %v5758
        %5760 = vmatprep.mubr.bf16.mxu0 %v570
        %5761 = vmatmul.mubr.bf16.gmra.mxu0 %v568
        %v5762 = vpop.f32.mrf.mxu0
        %v5763 = vadd.f32 %v5563, %v5762
        %v5764 = vpop.f32.mrf.mxu0
        %v5765 = vadd.f32 %v5565, %v5764
        %v5766 = vpop.f32.mrf.mxu0
        %v5767 = vadd.f32 %v5567, %v5766
        %v5768 = vpop.f32.mrf.mxu0
        %v5769 = vadd.f32 %v5569, %v5768
        %5770 = vmatprep.mubr.bf16.mxu0 %v571
        %5771 = vmatmul.mubr.bf16.gmra.mxu0 %v569
        %v5772 = vpop.f32.mrf.mxu0
        %v5773 = vadd.f32 %v5573, %v5772
        %v5774 = vpop.f32.mrf.mxu0
        %v5775 = vadd.f32 %v5575, %v5774
        %v5776 = vpop.f32.mrf.mxu0
        %v5777 = vadd.f32 %v5577, %v5776
        %v5778 = vpop.f32.mrf.mxu0
        %v5779 = vadd.f32 %v5579, %v5778
        %5780 = vmatprep.mubr.bf16.mxu0 %v572
        %5781 = vmatmul.mubr.bf16.gmra.mxu0 %v570
        %v5782 = vpop.f32.mrf.mxu0
        %v5783 = vadd.f32 %v5583, %v5782
        %v5784 = vpop.f32.mrf.mxu0
        %v5785 = vadd.f32 %v5585, %v5784
        %v5786 = vpop.f32.mrf.mxu0
        %v5787 = vadd.f32 %v5587, %v5786
        %v5788 = vpop.f32.mrf.mxu0
        %v5789 = vadd.f32 %v5589, %v5788
        %5790 = vmatprep.mubr.bf16.mxu0 %v573
        %5791 = vmatmul.mubr.bf16.gmra.mxu0 %v571
        %v5792 = vpop.f32.mrf.mxu0
        %v5793 = vadd.f32 %v5593, %v5792
        %v5794 = vpop.f32.mrf.mxu0
        %v5795 = vadd.f32 %v5595, %v5794
        %v5796 = vpop.f32.mrf.mxu0
        %v5797 = vadd.f32 %v5597, %v5796
        %v5798 = vpop.f32.mrf.mxu0
        %v5799 = vadd.f32 %v5599, %v5798
        %5800 = vmatprep.mubr.bf16.mxu0 %v574
        %5801 = vmatmul.mubr.bf16.gmra.mxu0 %v572
        %v5802 = vpop.f32.mrf.mxu0
        %v5803 = vadd.f32 %v5603, %v5802
        %v5804 = vpop.f32.mrf.mxu0
        %v5805 = vadd.f32 %v5605, %v5804
        %v5806 = vpop.f32.mrf.mxu0
        %v5807 = vadd.f32 %v5607, %v5806
        %v5808 = vpop.f32.mrf.mxu0
        %v5809 = vadd.f32 %v5609, %v5808
        %5810 = vmatprep.mubr.bf16.mxu0 %v575
        %5811 = vmatmul.mubr.bf16.gmra.mxu0 %v573
        %v5812 = vpop.f32.mrf.mxu0
        %v5813 = vadd.f32 %v5613, %v5812
        %v5814 = vpop.f32.mrf.mxu0
        %v5815 = vadd.f32 %v5615, %v5814
        %v5816 = vpop.f32.mrf.mxu0
        %v5817 = vadd.f32 %v5617, %v5816
        %v5818 = vpop.f32.mrf.mxu0
        %v5819 = vadd.f32 %v5619, %v5818
        %5820 = vmatprep.mubr.bf16.mxu0 %v576
        %5821 = vmatmul.mubr.bf16.gmra.mxu0 %v574
        %v5822 = vpop.f32.mrf.mxu0
        %v5823 = vadd.f32 %v5623, %v5822
        %v5824 = vpop.f32.mrf.mxu0
        %v5825 = vadd.f32 %v5625, %v5824
        %v5826 = vpop.f32.mrf.mxu0
        %v5827 = vadd.f32 %v5627, %v5826
        %v5828 = vpop.f32.mrf.mxu0
        %v5829 = vadd.f32 %v5629, %v5828
        %5830 = vmatprep.mubr.bf16.mxu0 %v577
        %5831 = vmatmul.mubr.bf16.gmra.mxu0 %v575
        %v5832 = vpop.f32.mrf.mxu0
        %v5833 = vadd.f32 %v5633, %v5832
        %v5834 = vpop.f32.mrf.mxu0
        %v5835 = vadd.f32 %v5635, %v5834
        %v5836 = vpop.f32.mrf.mxu0
        %v5837 = vadd.f32 %v5637, %v5836
        %v5838 = vpop.f32.mrf.mxu0
        %v5839 = vadd.f32 %v5639, %v5838
        %5840 = vmatprep.mubr.bf16.mxu0 %v670
        %5841 = vmatmul.mubr.bf16.gmra.mxu0 %v576
        %v5842 = vpop.f32.mrf.mxu0
        %v5843 = vadd.f32 %v5643, %v5842
        %v5844 = vpop.f32.mrf.mxu0
        %v5845 = vadd.f32 %v5645, %v5844
        %v5846 = vpop.f32.mrf.mxu0
        %v5847 = vadd.f32 %v5647, %v5846
        %v5848 = vpop.f32.mrf.mxu0
        %v5849 = vadd.f32 %v5649, %v5848
        %5850 = vmatprep.mubr.bf16.mxu0 %v671
        %5851 = vmatmul.mubr.bf16.gmra.mxu0 %v577
        %v5852 = vpop.f32.mrf.mxu0
        %v5853 = vadd.f32 %v5653, %v5852
        %v5854 = vpop.f32.mrf.mxu0
        %v5855 = vadd.f32 %v5655, %v5854
        %v5856 = vpop.f32.mrf.mxu0
        %v5857 = vadd.f32 %v5657, %v5856
        %v5858 = vpop.f32.mrf.mxu0
        %v5859 = vadd.f32 %v5659, %v5858
        %5860 = vmatprep.mubr.bf16.mxu0 %v672
        %5861 = vmatmul.mubr.bf16.gmra.mxu0 %v670
        %v5862 = vpop.f32.mrf.mxu0
        %v5863 = vadd.f32 %v5663, %v5862
        %v5864 = vpop.f32.mrf.mxu0
        %v5865 = vadd.f32 %v5665, %v5864
        %v5866 = vpop.f32.mrf.mxu0
        %v5867 = vadd.f32 %v5667, %v5866
        %v5868 = vpop.f32.mrf.mxu0
        %v5869 = vadd.f32 %v5669, %v5868
        %5870 = vmatprep.mubr.bf16.mxu0 %v673
        %5871 = vmatmul.mubr.bf16.gmra.mxu0 %v671
        %v5872 = vpop.f32.mrf.mxu0
        %v5873 = vadd.f32 %v5673, %v5872
        %v5874 = vpop.f32.mrf.mxu0
        %v5875 = vadd.f32 %v5675, %v5874
        %v5876 = vpop.f32.mrf.mxu0
        %v5877 = vadd.f32 %v5677, %v5876
        %v5878 = vpop.f32.mrf.mxu0
        %v5879 = vadd.f32 %v5679, %v5878
        %5880 = vmatprep.mubr.bf16.mxu0 %v674
        %5881 = vmatmul.mubr.bf16.gmra.mxu0 %v672
        %v5882 = vpop.f32.mrf.mxu0
        %v5883 = vadd.f32 %v5683, %v5882
        %v5884 = vpop.f32.mrf.mxu0
        %v5885 = vadd.f32 %v5685, %v5884
        %v5886 = vpop.f32.mrf.mxu0
        %v5887 = vadd.f32 %v5687, %v5886
        %v5888 = vpop.f32.mrf.mxu0
        %v5889 = vadd.f32 %v5689, %v5888
        %5890 = vmatprep.mubr.bf16.mxu0 %v675
        %5891 = vmatmul.mubr.bf16.gmra.mxu0 %v673
        %v5892 = vpop.f32.mrf.mxu0
        %v5893 = vadd.f32 %v5693, %v5892
        %v5894 = vpop.f32.mrf.mxu0
        %v5895 = vadd.f32 %v5695, %v5894
        %v5896 = vpop.f32.mrf.mxu0
        %v5897 = vadd.f32 %v5697, %v5896
        %v5898 = vpop.f32.mrf.mxu0
        %v5899 = vadd.f32 %v5699, %v5898
        %5900 = vmatprep.mubr.bf16.mxu0 %v676
        %5901 = vmatmul.mubr.bf16.gmra.mxu0 %v674
        %v5902 = vpop.f32.mrf.mxu0
        %v5903 = vpop.f32.mrf.mxu0
        %v5904 = vadd.f32 %v5704, %v5903
        %v5905 = vpop.f32.mrf.mxu0
        %v5906 = vpop.f32.mrf.mxu0
        %5907 = vdwg.mxu0
        %5908 = vmatprep.subr.bf16.mxu0 %v4299
        %5909 = vmatpush1.bf16.msra.mxu0 %v4298
        %5910 = vmatprep.subr.bf16.mxu0 %v4289
        %5911 = vmatpush1.bf16.msra.mxu0 %v4288
        %5912 = vmatprep.subr.bf16.mxu0 %v4279
        %5913 = vmatpush1.bf16.msra.mxu0 %v4278
        %5914 = vmatprep.subr.bf16.mxu0 %v4269
        %5915 = vmatpush1.bf16.msra.mxu0 %v4268
        %5916 = vmatprep.subr.bf16.mxu0 %v4259
        %5917 = vmatpush1.bf16.msra.mxu0 %v4258
        %5918 = vmatprep.subr.bf16.mxu0 %v4249
        %5919 = vmatpush1.bf16.msra.mxu0 %v4248
        %5920 = vmatprep.subr.bf16.mxu0 %v4239
        %5921 = vmatpush1.bf16.msra.mxu0 %v4238
        %5922 = vmatprep.subr.bf16.mxu0 %v4229
        %5923 = vmatpush1.bf16.msra.mxu0 %v4228
        %5924 = vmatprep.subr.bf16.mxu0 %v4379
        %5925 = vmatpush2.bf16.msra.mxu0 %v4378
        %5926 = vmatprep.subr.bf16.mxu0 %v4369
        %5927 = vmatpush2.bf16.msra.mxu0 %v4368
        %5928 = vmatprep.subr.bf16.mxu0 %v4359
        %5929 = vmatpush2.bf16.msra.mxu0 %v4358
        %5930 = vmatprep.subr.bf16.mxu0 %v4349
        %5931 = vmatpush2.bf16.msra.mxu0 %v4348
        %5932 = vmatprep.subr.bf16.mxu0 %v4339
        %5933 = vmatpush2.bf16.msra.mxu0 %v4338
        %5934 = vmatprep.subr.bf16.mxu0 %v4329
        %5935 = vmatpush2.bf16.msra.mxu0 %v4328
        %5936 = vmatprep.subr.bf16.mxu0 %v4319
        %5937 = vmatpush2.bf16.msra.mxu0 %v4318
        %5938 = vmatprep.subr.bf16.mxu0 %v4309
        %5939 = vmatpush2.bf16.msra.mxu0 %v4308
        %5940 = vmatprep.mubr.bf16.mxu0 %v572
        %5941 = vmatmul.mubr.bf16.gmra.mxu0 %v570
        %v5942 = vpop.f32.mrf.mxu0
        %v5943 = vadd.f32 %v5743, %v5942
        %v5944 = vpop.f32.mrf.mxu0
        %v5945 = vadd.f32 %v5745, %v5944
        %v5946 = vpop.f32.mrf.mxu0
        %v5947 = vadd.f32 %v5747, %v5946
        %v5948 = vpop.f32.mrf.mxu0
        %v5949 = vadd.f32 %v5749, %v5948
        %5950 = vmatprep.mubr.bf16.mxu0 %v573
        %5951 = vmatmul.mubr.bf16.gmra.mxu0 %v571
        %v5952 = vpop.f32.mrf.mxu0
        %v5953 = vadd.f32 %v5753, %v5952
        %v5954 = vpop.f32.mrf.mxu0
        %v5955 = vadd.f32 %v5755, %v5954
        %v5956 = vpop.f32.mrf.mxu0
        %v5957 = vadd.f32 %v5757, %v5956
        %v5958 = vpop.f32.mrf.mxu0
        %v5959 = vadd.f32 %v5759, %v5958
        %5960 = vmatprep.mubr.bf16.mxu0 %v574
        %5961 = vmatmul.mubr.bf16.gmra.mxu0 %v572
        %v5962 = vpop.f32.mrf.mxu0
        %v5963 = vadd.f32 %v5763, %v5962
        %v5964 = vpop.f32.mrf.mxu0
        %v5965 = vadd.f32 %v5765, %v5964
        %v5966 = vpop.f32.mrf.mxu0
        %v5967 = vadd.f32 %v5767, %v5966
        %v5968 = vpop.f32.mrf.mxu0
        %v5969 = vadd.f32 %v5769, %v5968
        %5970 = vmatprep.mubr.bf16.mxu0 %v575
        %5971 = vmatmul.mubr.bf16.gmra.mxu0 %v573
        %v5972 = vpop.f32.mrf.mxu0
        %v5973 = vadd.f32 %v5773, %v5972
        %v5974 = vpop.f32.mrf.mxu0
        %v5975 = vadd.f32 %v5775, %v5974
        %v5976 = vpop.f32.mrf.mxu0
        %v5977 = vadd.f32 %v5777, %v5976
        %v5978 = vpop.f32.mrf.mxu0
        %v5979 = vadd.f32 %v5779, %v5978
        %5980 = vmatprep.mubr.bf16.mxu0 %v576
        %5981 = vmatmul.mubr.bf16.gmra.mxu0 %v574
        %v5982 = vpop.f32.mrf.mxu0
        %v5983 = vadd.f32 %v5783, %v5982
        %v5984 = vpop.f32.mrf.mxu0
        %v5985 = vadd.f32 %v5785, %v5984
        %v5986 = vpop.f32.mrf.mxu0
        %v5987 = vadd.f32 %v5787, %v5986
        %v5988 = vpop.f32.mrf.mxu0
        %v5989 = vadd.f32 %v5789, %v5988
        %5990 = vmatprep.mubr.bf16.mxu0 %v577
        %5991 = vmatmul.mubr.bf16.gmra.mxu0 %v575
        %v5992 = vpop.f32.mrf.mxu0
        %v5993 = vadd.f32 %v5793, %v5992
        %v5994 = vpop.f32.mrf.mxu0
        %v5995 = vadd.f32 %v5795, %v5994
        %v5996 = vpop.f32.mrf.mxu0
        %v5997 = vadd.f32 %v5797, %v5996
        %v5998 = vpop.f32.mrf.mxu0
        %v5999 = vadd.f32 %v5799, %v5998
        %6000 = vmatprep.mubr.bf16.mxu0 %v670
        %6001 = vmatmul.mubr.bf16.gmra.mxu0 %v576
        %v6002 = vpop.f32.mrf.mxu0
        %v6003 = vadd.f32 %v5803, %v6002
        %v6004 = vpop.f32.mrf.mxu0
        %v6005 = vadd.f32 %v5805, %v6004
        %v6006 = vpop.f32.mrf.mxu0
        %v6007 = vadd.f32 %v5807, %v6006
        %v6008 = vpop.f32.mrf.mxu0
        %v6009 = vadd.f32 %v5809, %v6008
        %6010 = vmatprep.mubr.bf16.mxu0 %v671
        %6011 = vmatmul.mubr.bf16.gmra.mxu0 %v577
        %v6012 = vpop.f32.mrf.mxu0
        %v6013 = vadd.f32 %v5813, %v6012
        %v6014 = vpop.f32.mrf.mxu0
        %v6015 = vadd.f32 %v5815, %v6014
        %v6016 = vpop.f32.mrf.mxu0
        %v6017 = vadd.f32 %v5817, %v6016
        %v6018 = vpop.f32.mrf.mxu0
        %v6019 = vadd.f32 %v5819, %v6018
        %6020 = vmatprep.mubr.bf16.mxu0 %v672
        %6021 = vmatmul.mubr.bf16.gmra.mxu0 %v670
        %v6022 = vpop.f32.mrf.mxu0
        %v6023 = vadd.f32 %v5823, %v6022
        %v6024 = vpop.f32.mrf.mxu0
        %v6025 = vadd.f32 %v5825, %v6024
        %v6026 = vpop.f32.mrf.mxu0
        %v6027 = vadd.f32 %v5827, %v6026
        %v6028 = vpop.f32.mrf.mxu0
        %v6029 = vadd.f32 %v5829, %v6028
        %6030 = vmatprep.mubr.bf16.mxu0 %v673
        %6031 = vmatmul.mubr.bf16.gmra.mxu0 %v671
        %v6032 = vpop.f32.mrf.mxu0
        %v6033 = vadd.f32 %v5833, %v6032
        %v6034 = vpop.f32.mrf.mxu0
        %v6035 = vadd.f32 %v5835, %v6034
        %v6036 = vpop.f32.mrf.mxu0
        %v6037 = vadd.f32 %v5837, %v6036
        %v6038 = vpop.f32.mrf.mxu0
        %v6039 = vadd.f32 %v5839, %v6038
        %6040 = vmatprep.mubr.bf16.mxu0 %v674
        %6041 = vmatmul.mubr.bf16.gmra.mxu0 %v672
        %v6042 = vpop.f32.mrf.mxu0
        %v6043 = vadd.f32 %v5843, %v6042
        %v6044 = vpop.f32.mrf.mxu0
        %v6045 = vadd.f32 %v5845, %v6044
        %v6046 = vpop.f32.mrf.mxu0
        %v6047 = vadd.f32 %v5847, %v6046
        %v6048 = vpop.f32.mrf.mxu0
        %v6049 = vadd.f32 %v5849, %v6048
        %6050 = vmatprep.mubr.bf16.mxu0 %v675
        %6051 = vmatmul.mubr.bf16.gmra.mxu0 %v673
        %v6052 = vpop.f32.mrf.mxu0
        %v6053 = vadd.f32 %v5853, %v6052
        %v6054 = vpop.f32.mrf.mxu0
        %v6055 = vadd.f32 %v5855, %v6054
        %v6056 = vpop.f32.mrf.mxu0
        %v6057 = vadd.f32 %v5857, %v6056
        %v6058 = vpop.f32.mrf.mxu0
        %v6059 = vadd.f32 %v5859, %v6058
        %6060 = vmatprep.mubr.bf16.mxu0 %v676
        %6061 = vmatmul.mubr.bf16.gmra.mxu0 %v674
        %v6062 = vpop.f32.mrf.mxu0
        %v6063 = vadd.f32 %v5863, %v6062
        %v6064 = vpop.f32.mrf.mxu0
        %v6065 = vadd.f32 %v5865, %v6064
        %v6066 = vpop.f32.mrf.mxu0
        %v6067 = vadd.f32 %v5867, %v6066
        %v6068 = vpop.f32.mrf.mxu0
        %v6069 = vadd.f32 %v5869, %v6068
        %6070 = vmatprep.mubr.bf16.mxu0 %v677
        %6071 = vmatmul.mubr.bf16.gmra.mxu0 %v675
        %v6072 = vpop.f32.mrf.mxu0
        %v6073 = vadd.f32 %v5873, %v6072
        %v6074 = vpop.f32.mrf.mxu0
        %v6075 = vadd.f32 %v5875, %v6074
        %v6076 = vpop.f32.mrf.mxu0
        %v6077 = vadd.f32 %v5877, %v6076
        %v6078 = vpop.f32.mrf.mxu0
        %v6079 = vadd.f32 %v5879, %v6078
        %6080 = vmatprep.mubr.bf16.mxu0 %v678
        %6081 = vmatmul.mubr.bf16.gmra.mxu0 %v676
        %v6082 = vpop.f32.mrf.mxu0
        %v6083 = vadd.f32 %v5883, %v6082
        %v6084 = vpop.f32.mrf.mxu0
        %v6085 = vadd.f32 %v5885, %v6084
        %v6086 = vpop.f32.mrf.mxu0
        %v6087 = vadd.f32 %v5887, %v6086
        %v6088 = vpop.f32.mrf.mxu0
        %v6089 = vadd.f32 %v5889, %v6088
        %6090 = vmatprep.mubr.bf16.mxu0 %v679
        %6091 = vmatmul.mubr.bf16.gmra.mxu0 %v677
        %v6092 = vpop.f32.mrf.mxu0
        %v6093 = vadd.f32 %v5893, %v6092
        %v6094 = vpop.f32.mrf.mxu0
        %v6095 = vadd.f32 %v5895, %v6094
        %v6096 = vpop.f32.mrf.mxu0
        %v6097 = vadd.f32 %v5897, %v6096
        %v6098 = vpop.f32.mrf.mxu0
        %v6099 = vadd.f32 %v5899, %v6098
        %6100 = vmatprep.mubr.bf16.mxu0 %v680
        %6101 = vmatmul.mubr.bf16.gmra.mxu0 %v678
        %v6102 = vpop.f32.mrf.mxu0
        %v6103 = vpop.f32.mrf.mxu0
        %v6104 = vadd.f32 %v5904, %v6103
        %v6105 = vpop.f32.mrf.mxu0
        %v6106 = vpop.f32.mrf.mxu0
        %6107 = vdwg.mxu0
        %6108 = vmatprep.subr.bf16.mxu0 %v4459
        %6109 = vmatpush1.bf16.msra.mxu0 %v4458
        %6110 = vmatprep.subr.bf16.mxu0 %v4449
        %6111 = vmatpush1.bf16.msra.mxu0 %v4448
        %6112 = vmatprep.subr.bf16.mxu0 %v4439
        %6113 = vmatpush1.bf16.msra.mxu0 %v4438
        %6114 = vmatprep.subr.bf16.mxu0 %v4429
        %6115 = vmatpush1.bf16.msra.mxu0 %v4428
        %6116 = vmatprep.subr.bf16.mxu0 %v4419
        %6117 = vmatpush1.bf16.msra.mxu0 %v4418
        %6118 = vmatprep.subr.bf16.mxu0 %v4409
        %6119 = vmatpush1.bf16.msra.mxu0 %v4408
        %6120 = vmatprep.subr.bf16.mxu0 %v4399
        %6121 = vmatpush1.bf16.msra.mxu0 %v4398
        %6122 = vmatprep.subr.bf16.mxu0 %v4389
        %6123 = vmatpush1.bf16.msra.mxu0 %v4388
        %6124 = vmatprep.subr.bf16.mxu0 %v4539
        %6125 = vmatpush2.bf16.msra.mxu0 %v4538
        %6126 = vmatprep.subr.bf16.mxu0 %v4529
        %6127 = vmatpush2.bf16.msra.mxu0 %v4528
        %6128 = vmatprep.subr.bf16.mxu0 %v4519
        %6129 = vmatpush2.bf16.msra.mxu0 %v4518
        %6130 = vmatprep.subr.bf16.mxu0 %v4509
        %6131 = vmatpush2.bf16.msra.mxu0 %v4508
        %6132 = vmatprep.subr.bf16.mxu0 %v4499
        %6133 = vmatpush2.bf16.msra.mxu0 %v4498
        %6134 = vmatprep.subr.bf16.mxu0 %v4489
        %6135 = vmatpush2.bf16.msra.mxu0 %v4488
        %6136 = vmatprep.subr.bf16.mxu0 %v4479
        %6137 = vmatpush2.bf16.msra.mxu0 %v4478
        %6138 = vmatprep.subr.bf16.mxu0 %v4469
        %6139 = vmatpush2.bf16.msra.mxu0 %v4468
        %6140 = vmatprep.mubr.bf16.mxu0 %v576
        %6141 = vmatmul.mubr.bf16.gmra.mxu0 %v574
        %v6142 = vpop.f32.mrf.mxu0
        %v6143 = vadd.f32 %v5943, %v6142
        %v6144 = vpop.f32.mrf.mxu0
        %v6145 = vadd.f32 %v5945, %v6144
        %v6146 = vpop.f32.mrf.mxu0
        %v6147 = vadd.f32 %v5947, %v6146
        %v6148 = vpop.f32.mrf.mxu0
        %v6149 = vadd.f32 %v5949, %v6148
        %6150 = vmatprep.mubr.bf16.mxu0 %v577
        %6151 = vmatmul.mubr.bf16.gmra.mxu0 %v575
        %v6152 = vpop.f32.mrf.mxu0
        %v6153 = vadd.f32 %v5953, %v6152
        %v6154 = vpop.f32.mrf.mxu0
        %v6155 = vadd.f32 %v5955, %v6154
        %v6156 = vpop.f32.mrf.mxu0
        %v6157 = vadd.f32 %v5957, %v6156
        %v6158 = vpop.f32.mrf.mxu0
        %v6159 = vadd.f32 %v5959, %v6158
        %6160 = vmatprep.mubr.bf16.mxu0 %v670
        %6161 = vmatmul.mubr.bf16.gmra.mxu0 %v576
        %v6162 = vpop.f32.mrf.mxu0
        %v6163 = vadd.f32 %v5963, %v6162
        %v6164 = vpop.f32.mrf.mxu0
        %v6165 = vadd.f32 %v5965, %v6164
        %v6166 = vpop.f32.mrf.mxu0
        %v6167 = vadd.f32 %v5967, %v6166
        %v6168 = vpop.f32.mrf.mxu0
        %v6169 = vadd.f32 %v5969, %v6168
        %6170 = vmatprep.mubr.bf16.mxu0 %v671
        %6171 = vmatmul.mubr.bf16.gmra.mxu0 %v577
        %v6172 = vpop.f32.mrf.mxu0
        %v6173 = vadd.f32 %v5973, %v6172
        %v6174 = vpop.f32.mrf.mxu0
        %v6175 = vadd.f32 %v5975, %v6174
        %v6176 = vpop.f32.mrf.mxu0
        %v6177 = vadd.f32 %v5977, %v6176
        %v6178 = vpop.f32.mrf.mxu0
        %v6179 = vadd.f32 %v5979, %v6178
        %6180 = vmatprep.mubr.bf16.mxu0 %v672
        %6181 = vmatmul.mubr.bf16.gmra.mxu0 %v670
        %v6182 = vpop.f32.mrf.mxu0
        %v6183 = vadd.f32 %v5983, %v6182
        %v6184 = vpop.f32.mrf.mxu0
        %v6185 = vadd.f32 %v5985, %v6184
        %v6186 = vpop.f32.mrf.mxu0
        %v6187 = vadd.f32 %v5987, %v6186
        %v6188 = vpop.f32.mrf.mxu0
        %v6189 = vadd.f32 %v5989, %v6188
        %6190 = vmatprep.mubr.bf16.mxu0 %v673
        %6191 = vmatmul.mubr.bf16.gmra.mxu0 %v671
        %v6192 = vpop.f32.mrf.mxu0
        %v6193 = vadd.f32 %v5993, %v6192
        %v6194 = vpop.f32.mrf.mxu0
        %v6195 = vadd.f32 %v5995, %v6194
        %v6196 = vpop.f32.mrf.mxu0
        %v6197 = vadd.f32 %v5997, %v6196
        %v6198 = vpop.f32.mrf.mxu0
        %v6199 = vadd.f32 %v5999, %v6198
        %6200 = vmatprep.mubr.bf16.mxu0 %v674
        %6201 = vmatmul.mubr.bf16.gmra.mxu0 %v672
        %v6202 = vpop.f32.mrf.mxu0
        %v6203 = vadd.f32 %v6003, %v6202
        %v6204 = vpop.f32.mrf.mxu0
        %v6205 = vadd.f32 %v6005, %v6204
        %v6206 = vpop.f32.mrf.mxu0
        %v6207 = vadd.f32 %v6007, %v6206
        %v6208 = vpop.f32.mrf.mxu0
        %v6209 = vadd.f32 %v6009, %v6208
        %6210 = vmatprep.mubr.bf16.mxu0 %v675
        %6211 = vmatmul.mubr.bf16.gmra.mxu0 %v673
        %v6212 = vpop.f32.mrf.mxu0
        %v6213 = vadd.f32 %v6013, %v6212
        %v6214 = vpop.f32.mrf.mxu0
        %v6215 = vadd.f32 %v6015, %v6214
        %v6216 = vpop.f32.mrf.mxu0
        %v6217 = vadd.f32 %v6017, %v6216
        %v6218 = vpop.f32.mrf.mxu0
        %v6219 = vadd.f32 %v6019, %v6218
        %6220 = vmatprep.mubr.bf16.mxu0 %v676
        %6221 = vmatmul.mubr.bf16.gmra.mxu0 %v674
        %v6222 = vpop.f32.mrf.mxu0
        %v6223 = vadd.f32 %v6023, %v6222
        %v6224 = vpop.f32.mrf.mxu0
        %v6225 = vadd.f32 %v6025, %v6224
        %v6226 = vpop.f32.mrf.mxu0
        %v6227 = vadd.f32 %v6027, %v6226
        %v6228 = vpop.f32.mrf.mxu0
        %v6229 = vadd.f32 %v6029, %v6228
        %6230 = vmatprep.mubr.bf16.mxu0 %v677
        %6231 = vmatmul.mubr.bf16.gmra.mxu0 %v675
        %v6232 = vpop.f32.mrf.mxu0
        %v6233 = vadd.f32 %v6033, %v6232
        %v6234 = vpop.f32.mrf.mxu0
        %v6235 = vadd.f32 %v6035, %v6234
        %v6236 = vpop.f32.mrf.mxu0
        %v6237 = vadd.f32 %v6037, %v6236
        %v6238 = vpop.f32.mrf.mxu0
        %v6239 = vadd.f32 %v6039, %v6238
        %6240 = vmatprep.mubr.bf16.mxu0 %v678
        %6241 = vmatmul.mubr.bf16.gmra.mxu0 %v676
        %v6242 = vpop.f32.mrf.mxu0
        %v6243 = vadd.f32 %v6043, %v6242
        %v6244 = vpop.f32.mrf.mxu0
        %v6245 = vadd.f32 %v6045, %v6244
        %v6246 = vpop.f32.mrf.mxu0
        %v6247 = vadd.f32 %v6047, %v6246
        %v6248 = vpop.f32.mrf.mxu0
        %v6249 = vadd.f32 %v6049, %v6248
        %6250 = vmatprep.mubr.bf16.mxu0 %v679
        %6251 = vmatmul.mubr.bf16.gmra.mxu0 %v677
        %v6252 = vpop.f32.mrf.mxu0
        %v6253 = vadd.f32 %v6053, %v6252
        %v6254 = vpop.f32.mrf.mxu0
        %v6255 = vadd.f32 %v6055, %v6254
        %v6256 = vpop.f32.mrf.mxu0
        %v6257 = vadd.f32 %v6057, %v6256
        %v6258 = vpop.f32.mrf.mxu0
        %v6259 = vadd.f32 %v6059, %v6258
        %6260 = vmatprep.mubr.bf16.mxu0 %v680
        %6261 = vmatmul.mubr.bf16.gmra.mxu0 %v678
        %v6262 = vpop.f32.mrf.mxu0
        %v6263 = vadd.f32 %v6063, %v6262
        %v6264 = vpop.f32.mrf.mxu0
        %v6265 = vadd.f32 %v6065, %v6264
        %v6266 = vpop.f32.mrf.mxu0
        %v6267 = vadd.f32 %v6067, %v6266
        %v6268 = vpop.f32.mrf.mxu0
        %v6269 = vadd.f32 %v6069, %v6268
        %6270 = vmatprep.mubr.bf16.mxu0 %v681
        %6271 = vmatmul.mubr.bf16.gmra.mxu0 %v679
        %v6272 = vpop.f32.mrf.mxu0
        %v6273 = vadd.f32 %v6073, %v6272
        %v6274 = vpop.f32.mrf.mxu0
        %v6275 = vadd.f32 %v6075, %v6274
        %v6276 = vpop.f32.mrf.mxu0
        %v6277 = vadd.f32 %v6077, %v6276
        %v6278 = vpop.f32.mrf.mxu0
        %v6279 = vadd.f32 %v6079, %v6278
        %6280 = vmatprep.mubr.bf16.mxu0 %v682
        %6281 = vmatmul.mubr.bf16.gmra.mxu0 %v680
        %v6282 = vpop.f32.mrf.mxu0
        %v6283 = vadd.f32 %v6083, %v6282
        %v6284 = vpop.f32.mrf.mxu0
        %v6285 = vadd.f32 %v6085, %v6284
        %v6286 = vpop.f32.mrf.mxu0
        %v6287 = vadd.f32 %v6087, %v6286
        %v6288 = vpop.f32.mrf.mxu0
        %v6289 = vadd.f32 %v6089, %v6288
        %6290 = vmatprep.mubr.bf16.mxu0 %v683
        %6291 = vmatmul.mubr.bf16.gmra.mxu0 %v681
        %v6292 = vpop.f32.mrf.mxu0
        %v6293 = vadd.f32 %v6093, %v6292
        %v6294 = vpop.f32.mrf.mxu0
        %v6295 = vadd.f32 %v6095, %v6294
        %v6296 = vpop.f32.mrf.mxu0
        %v6297 = vadd.f32 %v6097, %v6296
        %v6298 = vpop.f32.mrf.mxu0
        %v6299 = vadd.f32 %v6099, %v6298
        %6300 = vmatprep.mubr.bf16.mxu0 %v684
        %6301 = vmatmul.mubr.bf16.gmra.mxu0 %v682
        %v6302 = vpop.f32.mrf.mxu0
        %v6303 = vpop.f32.mrf.mxu0
        %v6304 = vadd.f32 %v6104, %v6303
        %v6305 = vpop.f32.mrf.mxu0
        %v6306 = vpop.f32.mrf.mxu0
        %6307 = vdwg.mxu0
        %6308 = vmatprep.subr.bf16.mxu0 %v4619
        %6309 = vmatpush1.bf16.msra.mxu0 %v4618
        %6310 = vmatprep.subr.bf16.mxu0 %v4609
        %6311 = vmatpush1.bf16.msra.mxu0 %v4608
        %6312 = vmatprep.subr.bf16.mxu0 %v4599
        %6313 = vmatpush1.bf16.msra.mxu0 %v4598
        %6314 = vmatprep.subr.bf16.mxu0 %v4589
        %6315 = vmatpush1.bf16.msra.mxu0 %v4588
        %6316 = vmatprep.subr.bf16.mxu0 %v4579
        %6317 = vmatpush1.bf16.msra.mxu0 %v4578
        %6318 = vmatprep.subr.bf16.mxu0 %v4569
        %6319 = vmatpush1.bf16.msra.mxu0 %v4568
        %6320 = vmatprep.subr.bf16.mxu0 %v4559
        %6321 = vmatpush1.bf16.msra.mxu0 %v4558
        %6322 = vmatprep.subr.bf16.mxu0 %v4549
        %6323 = vmatpush1.bf16.msra.mxu0 %v4548
        %6324 = vmatprep.subr.bf16.mxu0 %v4699
        %6325 = vmatpush2.bf16.msra.mxu0 %v4698
        %6326 = vmatprep.subr.bf16.mxu0 %v4689
        %6327 = vmatpush2.bf16.msra.mxu0 %v4688
        %6328 = vmatprep.subr.bf16.mxu0 %v4679
        %6329 = vmatpush2.bf16.msra.mxu0 %v4678
        %6330 = vmatprep.subr.bf16.mxu0 %v4669
        %6331 = vmatpush2.bf16.msra.mxu0 %v4668
        %6332 = vmatprep.subr.bf16.mxu0 %v4659
        %6333 = vmatpush2.bf16.msra.mxu0 %v4658
        %6334 = vmatprep.subr.bf16.mxu0 %v4649
        %6335 = vmatpush2.bf16.msra.mxu0 %v4648
        %6336 = vmatprep.subr.bf16.mxu0 %v4639
        %6337 = vmatpush2.bf16.msra.mxu0 %v4638
        %6338 = vmatprep.subr.bf16.mxu0 %v4629
        %6339 = vmatpush2.bf16.msra.mxu0 %v4628
        %6340 = vmatprep.mubr.bf16.mxu0 %v672
        %6341 = vmatmul.mubr.bf16.gmra.mxu0 %v670
        %v6342 = vpop.f32.mrf.mxu0
        %v6343 = vadd.f32 %v6143, %v6342
        %v6344 = vpop.f32.mrf.mxu0
        %v6345 = vadd.f32 %v6145, %v6344
        %v6346 = vpop.f32.mrf.mxu0
        %v6347 = vadd.f32 %v6147, %v6346
        %v6348 = vpop.f32.mrf.mxu0
        %v6349 = vadd.f32 %v6149, %v6348
        %6350 = vmatprep.mubr.bf16.mxu0 %v673
        %6351 = vmatmul.mubr.bf16.gmra.mxu0 %v671
        %v6352 = vpop.f32.mrf.mxu0
        %v6353 = vadd.f32 %v6153, %v6352
        %v6354 = vpop.f32.mrf.mxu0
        %v6355 = vadd.f32 %v6155, %v6354
        %v6356 = vpop.f32.mrf.mxu0
        %v6357 = vadd.f32 %v6157, %v6356
        %v6358 = vpop.f32.mrf.mxu0
        %v6359 = vadd.f32 %v6159, %v6358
        %6360 = vmatprep.mubr.bf16.mxu0 %v674
        %6361 = vmatmul.mubr.bf16.gmra.mxu0 %v672
        %v6362 = vpop.f32.mrf.mxu0
        %v6363 = vadd.f32 %v6163, %v6362
        %v6364 = vpop.f32.mrf.mxu0
        %v6365 = vadd.f32 %v6165, %v6364
        %v6366 = vpop.f32.mrf.mxu0
        %v6367 = vadd.f32 %v6167, %v6366
        %v6368 = vpop.f32.mrf.mxu0
        %v6369 = vadd.f32 %v6169, %v6368
        %6370 = vmatprep.mubr.bf16.mxu0 %v675
        %6371 = vmatmul.mubr.bf16.gmra.mxu0 %v673
        %v6372 = vpop.f32.mrf.mxu0
        %v6373 = vadd.f32 %v6173, %v6372
        %v6374 = vpop.f32.mrf.mxu0
        %v6375 = vadd.f32 %v6175, %v6374
        %v6376 = vpop.f32.mrf.mxu0
        %v6377 = vadd.f32 %v6177, %v6376
        %v6378 = vpop.f32.mrf.mxu0
        %v6379 = vadd.f32 %v6179, %v6378
        %6380 = vmatprep.mubr.bf16.mxu0 %v676
        %6381 = vmatmul.mubr.bf16.gmra.mxu0 %v674
        %v6382 = vpop.f32.mrf.mxu0
        %v6383 = vadd.f32 %v6183, %v6382
        %v6384 = vpop.f32.mrf.mxu0
        %v6385 = vadd.f32 %v6185, %v6384
        %v6386 = vpop.f32.mrf.mxu0
        %v6387 = vadd.f32 %v6187, %v6386
        %v6388 = vpop.f32.mrf.mxu0
        %v6389 = vadd.f32 %v6189, %v6388
        %6390 = vmatprep.mubr.bf16.mxu0 %v677
        %6391 = vmatmul.mubr.bf16.gmra.mxu0 %v675
        %v6392 = vpop.f32.mrf.mxu0
        %v6393 = vadd.f32 %v6193, %v6392
        %v6394 = vpop.f32.mrf.mxu0
        %v6395 = vadd.f32 %v6195, %v6394
        %v6396 = vpop.f32.mrf.mxu0
        %v6397 = vadd.f32 %v6197, %v6396
        %v6398 = vpop.f32.mrf.mxu0
        %v6399 = vadd.f32 %v6199, %v6398
        %6400 = vmatprep.mubr.bf16.mxu0 %v678
        %6401 = vmatmul.mubr.bf16.gmra.mxu0 %v676
        %v6402 = vpop.f32.mrf.mxu0
        %v6403 = vadd.f32 %v6203, %v6402
        %v6404 = vpop.f32.mrf.mxu0
        %v6405 = vadd.f32 %v6205, %v6404
        %v6406 = vpop.f32.mrf.mxu0
        %v6407 = vadd.f32 %v6207, %v6406
        %v6408 = vpop.f32.mrf.mxu0
        %v6409 = vadd.f32 %v6209, %v6408
        %6410 = vmatprep.mubr.bf16.mxu0 %v679
        %6411 = vmatmul.mubr.bf16.gmra.mxu0 %v677
        %v6412 = vpop.f32.mrf.mxu0
        %v6413 = vadd.f32 %v6213, %v6412
        %v6414 = vpop.f32.mrf.mxu0
        %v6415 = vadd.f32 %v6215, %v6414
        %v6416 = vpop.f32.mrf.mxu0
        %v6417 = vadd.f32 %v6217, %v6416
        %v6418 = vpop.f32.mrf.mxu0
        %v6419 = vadd.f32 %v6219, %v6418
        %6420 = vmatprep.mubr.bf16.mxu0 %v680
        %6421 = vmatmul.mubr.bf16.gmra.mxu0 %v678
        %v6422 = vpop.f32.mrf.mxu0
        %v6423 = vadd.f32 %v6223, %v6422
        %v6424 = vpop.f32.mrf.mxu0
        %v6425 = vadd.f32 %v6225, %v6424
        %v6426 = vpop.f32.mrf.mxu0
        %v6427 = vadd.f32 %v6227, %v6426
        %v6428 = vpop.f32.mrf.mxu0
        %v6429 = vadd.f32 %v6229, %v6428
        %6430 = vmatprep.mubr.bf16.mxu0 %v681
        %6431 = vmatmul.mubr.bf16.gmra.mxu0 %v679
        %v6432 = vpop.f32.mrf.mxu0
        %v6433 = vadd.f32 %v6233, %v6432
        %v6434 = vpop.f32.mrf.mxu0
        %v6435 = vadd.f32 %v6235, %v6434
        %v6436 = vpop.f32.mrf.mxu0
        %v6437 = vadd.f32 %v6237, %v6436
        %v6438 = vpop.f32.mrf.mxu0
        %v6439 = vadd.f32 %v6239, %v6438
        %6440 = vmatprep.mubr.bf16.mxu0 %v682
        %6441 = vmatmul.mubr.bf16.gmra.mxu0 %v680
        %v6442 = vpop.f32.mrf.mxu0
        %v6443 = vadd.f32 %v6243, %v6442
        %v6444 = vpop.f32.mrf.mxu0
        %v6445 = vadd.f32 %v6245, %v6444
        %v6446 = vpop.f32.mrf.mxu0
        %v6447 = vadd.f32 %v6247, %v6446
        %v6448 = vpop.f32.mrf.mxu0
        %v6449 = vadd.f32 %v6249, %v6448
        %6450 = vmatprep.mubr.bf16.mxu0 %v683
        %6451 = vmatmul.mubr.bf16.gmra.mxu0 %v681
        %v6452 = vpop.f32.mrf.mxu0
        %v6453 = vadd.f32 %v6253, %v6452
        %v6454 = vpop.f32.mrf.mxu0
        %v6455 = vadd.f32 %v6255, %v6454
        %v6456 = vpop.f32.mrf.mxu0
        %v6457 = vadd.f32 %v6257, %v6456
        %v6458 = vpop.f32.mrf.mxu0
        %v6459 = vadd.f32 %v6259, %v6458
        %6460 = vmatprep.mubr.bf16.mxu0 %v684
        %6461 = vmatmul.mubr.bf16.gmra.mxu0 %v682
        %v6462 = vpop.f32.mrf.mxu0
        %v6463 = vadd.f32 %v6263, %v6462
        %v6464 = vpop.f32.mrf.mxu0
        %v6465 = vadd.f32 %v6265, %v6464
        %v6466 = vpop.f32.mrf.mxu0
        %v6467 = vadd.f32 %v6267, %v6466
        %v6468 = vpop.f32.mrf.mxu0
        %v6469 = vadd.f32 %v6269, %v6468
        %6470 = vmatprep.mubr.bf16.mxu0 %v685
        %6471 = vmatmul.mubr.bf16.gmra.mxu0 %v683
        %v6472 = vpop.f32.mrf.mxu0
        %v6473 = vadd.f32 %v6273, %v6472
        %v6474 = vpop.f32.mrf.mxu0
        %v6475 = vadd.f32 %v6275, %v6474
        %v6476 = vpop.f32.mrf.mxu0
        %v6477 = vadd.f32 %v6277, %v6476
        %v6478 = vpop.f32.mrf.mxu0
        %v6479 = vadd.f32 %v6279, %v6478
        %6480 = vmatprep.mubr.bf16.mxu0 %v686
        %6481 = vmatmul.mubr.bf16.gmra.mxu0 %v684
        %v6482 = vpop.f32.mrf.mxu0
        %v6483 = vadd.f32 %v6283, %v6482
        %v6484 = vpop.f32.mrf.mxu0
        %v6485 = vadd.f32 %v6285, %v6484
        %v6486 = vpop.f32.mrf.mxu0
        %v6487 = vadd.f32 %v6287, %v6486
        %v6488 = vpop.f32.mrf.mxu0
        %v6489 = vadd.f32 %v6289, %v6488
        %6490 = vmatprep.mubr.bf16.mxu0 %v687
        %6491 = vmatmul.mubr.bf16.gmra.mxu0 %v685
        %v6492 = vpop.f32.mrf.mxu0
        %v6493 = vadd.f32 %v6293, %v6492
        %v6494 = vpop.f32.mrf.mxu0
        %v6495 = vadd.f32 %v6295, %v6494
        %v6496 = vpop.f32.mrf.mxu0
        %v6497 = vadd.f32 %v6297, %v6496
        %v6498 = vpop.f32.mrf.mxu0
        %v6499 = vadd.f32 %v6299, %v6498
        %6500 = vmatprep.mubr.bf16.mxu0 %v688
        %6501 = vmatmul.mubr.bf16.gmra.mxu0 %v686
        %v6502 = vpop.f32.mrf.mxu0
        %v6503 = vpop.f32.mrf.mxu0
        %v6504 = vadd.f32 %v6304, %v6503
        %v6505 = vpop.f32.mrf.mxu0
        %v6506 = vpop.f32.mrf.mxu0
        %6507 = vdwg.mxu0
        %6508 = vmatprep.subr.bf16.mxu0 %v3981
        %6509 = vmatpush1.bf16.msra.mxu0 %v3980
        %6510 = vmatprep.subr.bf16.mxu0 %v3971
        %6511 = vmatpush1.bf16.msra.mxu0 %v3970
        %6512 = vmatprep.subr.bf16.mxu0 %v3961
        %6513 = vmatpush1.bf16.msra.mxu0 %v3960
        %6514 = vmatprep.subr.bf16.mxu0 %v3951
        %6515 = vmatpush1.bf16.msra.mxu0 %v3950
        %6516 = vmatprep.subr.bf16.mxu0 %v3941
        %6517 = vmatpush1.bf16.msra.mxu0 %v3940
        %6518 = vmatprep.subr.bf16.mxu0 %v3931
        %6519 = vmatpush1.bf16.msra.mxu0 %v3930
        %6520 = vmatprep.subr.bf16.mxu0 %v3921
        %6521 = vmatpush1.bf16.msra.mxu0 %v3920
        %6522 = vmatprep.subr.bf16.mxu0 %v3911
        %6523 = vmatpush1.bf16.msra.mxu0 %v3910
        %6524 = vmatprep.subr.bf16.mxu0 %v4061
        %6525 = vmatpush2.bf16.msra.mxu0 %v4060
        %6526 = vmatprep.subr.bf16.mxu0 %v4051
        %6527 = vmatpush2.bf16.msra.mxu0 %v4050
        %6528 = vmatprep.subr.bf16.mxu0 %v4041
        %6529 = vmatpush2.bf16.msra.mxu0 %v4040
        %6530 = vmatprep.subr.bf16.mxu0 %v4031
        %6531 = vmatpush2.bf16.msra.mxu0 %v4030
        %6532 = vmatprep.subr.bf16.mxu0 %v4021
        %6533 = vmatpush2.bf16.msra.mxu0 %v4020
        %6534 = vmatprep.subr.bf16.mxu0 %v4011
        %6535 = vmatpush2.bf16.msra.mxu0 %v4010
        %6536 = vmatprep.subr.bf16.mxu0 %v4001
        %6537 = vmatpush2.bf16.msra.mxu0 %v4000
        %6538 = vmatprep.subr.bf16.mxu0 %v3991
        %6539 = vmatpush2.bf16.msra.mxu0 %v3990
        %6540 = vmatprep.mubr.bf16.mxu0 %v564
        %6541 = vmatmul.mubr.bf16.gmra.mxu0 %v562
        %v6542 = vpop.f32.mrf.mxu0
        %v6543 = vadd.f32 0.0, %v6542
        %v6544 = vpop.f32.mrf.mxu0
        %v6545 = vadd.f32 0.0, %v6544
        %v6546 = vpop.f32.mrf.mxu0
        %v6547 = vadd.f32 0.0, %v6546
        %v6548 = vpop.f32.mrf.mxu0
        %v6549 = vadd.f32 0.0, %v6548
        %6550 = vmatprep.mubr.bf16.mxu0 %v565
        %6551 = vmatmul.mubr.bf16.gmra.mxu0 %v563
        %v6552 = vpop.f32.mrf.mxu0
        %v6553 = vadd.f32 0.0, %v6552
        %v6554 = vpop.f32.mrf.mxu0
        %v6555 = vadd.f32 0.0, %v6554
        %v6556 = vpop.f32.mrf.mxu0
        %v6557 = vadd.f32 0.0, %v6556
        %v6558 = vpop.f32.mrf.mxu0
        %v6559 = vadd.f32 0.0, %v6558
        %6560 = vmatprep.mubr.bf16.mxu0 %v566
        %6561 = vmatmul.mubr.bf16.gmra.mxu0 %v564
        %v6562 = vpop.f32.mrf.mxu0
        %v6563 = vadd.f32 0.0, %v6562
        %v6564 = vpop.f32.mrf.mxu0
        %v6565 = vadd.f32 0.0, %v6564
        %v6566 = vpop.f32.mrf.mxu0
        %v6567 = vadd.f32 0.0, %v6566
        %v6568 = vpop.f32.mrf.mxu0
        %v6569 = vadd.f32 0.0, %v6568
        %6570 = vmatprep.mubr.bf16.mxu0 %v567
        %6571 = vmatmul.mubr.bf16.gmra.mxu0 %v565
        %v6572 = vpop.f32.mrf.mxu0
        %v6573 = vadd.f32 0.0, %v6572
        %v6574 = vpop.f32.mrf.mxu0
        %v6575 = vadd.f32 0.0, %v6574
        %v6576 = vpop.f32.mrf.mxu0
        %v6577 = vadd.f32 0.0, %v6576
        %v6578 = vpop.f32.mrf.mxu0
        %v6579 = vadd.f32 0.0, %v6578
        %6580 = vmatprep.mubr.bf16.mxu0 %v568
        %6581 = vmatmul.mubr.bf16.gmra.mxu0 %v566
        %v6582 = vpop.f32.mrf.mxu0
        %v6583 = vadd.f32 0.0, %v6582
        %v6584 = vpop.f32.mrf.mxu0
        %v6585 = vadd.f32 0.0, %v6584
        %v6586 = vpop.f32.mrf.mxu0
        %v6587 = vadd.f32 0.0, %v6586
        %v6588 = vpop.f32.mrf.mxu0
        %v6589 = vadd.f32 0.0, %v6588
        %6590 = vmatprep.mubr.bf16.mxu0 %v569
        %6591 = vmatmul.mubr.bf16.gmra.mxu0 %v567
        %v6592 = vpop.f32.mrf.mxu0
        %v6593 = vadd.f32 0.0, %v6592
        %v6594 = vpop.f32.mrf.mxu0
        %v6595 = vadd.f32 0.0, %v6594
        %v6596 = vpop.f32.mrf.mxu0
        %v6597 = vadd.f32 0.0, %v6596
        %v6598 = vpop.f32.mrf.mxu0
        %v6599 = vadd.f32 0.0, %v6598
        %6600 = vmatprep.mubr.bf16.mxu0 %v570
        %6601 = vmatmul.mubr.bf16.gmra.mxu0 %v568
        %v6602 = vpop.f32.mrf.mxu0
        %v6603 = vadd.f32 0.0, %v6602
        %v6604 = vpop.f32.mrf.mxu0
        %v6605 = vadd.f32 0.0, %v6604
        %v6606 = vpop.f32.mrf.mxu0
        %v6607 = vadd.f32 0.0, %v6606
        %v6608 = vpop.f32.mrf.mxu0
        %v6609 = vadd.f32 0.0, %v6608
        %6610 = vmatprep.mubr.bf16.mxu0 %v571
        %6611 = vmatmul.mubr.bf16.gmra.mxu0 %v569
        %v6612 = vpop.f32.mrf.mxu0
        %v6613 = vadd.f32 0.0, %v6612
        %v6614 = vpop.f32.mrf.mxu0
        %v6615 = vadd.f32 0.0, %v6614
        %v6616 = vpop.f32.mrf.mxu0
        %v6617 = vadd.f32 0.0, %v6616
        %v6618 = vpop.f32.mrf.mxu0
        %v6619 = vadd.f32 0.0, %v6618
        %6620 = vmatprep.mubr.bf16.mxu0 %v572
        %6621 = vmatmul.mubr.bf16.gmra.mxu0 %v570
        %v6622 = vpop.f32.mrf.mxu0
        %v6623 = vadd.f32 0.0, %v6622
        %v6624 = vpop.f32.mrf.mxu0
        %v6625 = vadd.f32 0.0, %v6624
        %v6626 = vpop.f32.mrf.mxu0
        %v6627 = vadd.f32 0.0, %v6626
        %v6628 = vpop.f32.mrf.mxu0
        %v6629 = vadd.f32 0.0, %v6628
        %6630 = vmatprep.mubr.bf16.mxu0 %v573
        %6631 = vmatmul.mubr.bf16.gmra.mxu0 %v571
        %v6632 = vpop.f32.mrf.mxu0
        %v6633 = vadd.f32 0.0, %v6632
        %v6634 = vpop.f32.mrf.mxu0
        %v6635 = vadd.f32 0.0, %v6634
        %v6636 = vpop.f32.mrf.mxu0
        %v6637 = vadd.f32 0.0, %v6636
        %v6638 = vpop.f32.mrf.mxu0
        %v6639 = vadd.f32 0.0, %v6638
        %6640 = vmatprep.mubr.bf16.mxu0 %v574
        %6641 = vmatmul.mubr.bf16.gmra.mxu0 %v572
        %v6642 = vpop.f32.mrf.mxu0
        %v6643 = vadd.f32 0.0, %v6642
        %v6644 = vpop.f32.mrf.mxu0
        %v6645 = vadd.f32 0.0, %v6644
        %v6646 = vpop.f32.mrf.mxu0
        %v6647 = vadd.f32 0.0, %v6646
        %v6648 = vpop.f32.mrf.mxu0
        %v6649 = vadd.f32 0.0, %v6648
        %6650 = vmatprep.mubr.bf16.mxu0 %v575
        %6651 = vmatmul.mubr.bf16.gmra.mxu0 %v573
        %v6652 = vpop.f32.mrf.mxu0
        %v6653 = vadd.f32 0.0, %v6652
        %v6654 = vpop.f32.mrf.mxu0
        %v6655 = vadd.f32 0.0, %v6654
        %v6656 = vpop.f32.mrf.mxu0
        %v6657 = vadd.f32 0.0, %v6656
        %v6658 = vpop.f32.mrf.mxu0
        %v6659 = vadd.f32 0.0, %v6658
        %6660 = vmatprep.mubr.bf16.mxu0 %v576
        %6661 = vmatmul.mubr.bf16.gmra.mxu0 %v574
        %v6662 = vpop.f32.mrf.mxu0
        %v6663 = vadd.f32 0.0, %v6662
        %v6664 = vpop.f32.mrf.mxu0
        %v6665 = vadd.f32 0.0, %v6664
        %v6666 = vpop.f32.mrf.mxu0
        %v6667 = vadd.f32 0.0, %v6666
        %v6668 = vpop.f32.mrf.mxu0
        %v6669 = vadd.f32 0.0, %v6668
        %6670 = vmatprep.mubr.bf16.mxu0 %v577
        %6671 = vmatmul.mubr.bf16.gmra.mxu0 %v575
        %v6672 = vpop.f32.mrf.mxu0
        %v6673 = vadd.f32 0.0, %v6672
        %v6674 = vpop.f32.mrf.mxu0
        %v6675 = vadd.f32 0.0, %v6674
        %v6676 = vpop.f32.mrf.mxu0
        %v6677 = vadd.f32 0.0, %v6676
        %v6678 = vpop.f32.mrf.mxu0
        %v6679 = vadd.f32 0.0, %v6678
        %6680 = vmatprep.mubr.bf16.mxu0 %v670
        %6681 = vmatmul.mubr.bf16.gmra.mxu0 %v576
        %v6682 = vpop.f32.mrf.mxu0
        %v6683 = vadd.f32 0.0, %v6682
        %v6684 = vpop.f32.mrf.mxu0
        %v6685 = vadd.f32 0.0, %v6684
        %v6686 = vpop.f32.mrf.mxu0
        %v6687 = vadd.f32 0.0, %v6686
        %v6688 = vpop.f32.mrf.mxu0
        %v6689 = vadd.f32 0.0, %v6688
        %6690 = vmatprep.mubr.bf16.mxu0 %v671
        %6691 = vmatmul.mubr.bf16.gmra.mxu0 %v577
        %v6692 = vpop.f32.mrf.mxu0
        %v6693 = vadd.f32 0.0, %v6692
        %v6694 = vpop.f32.mrf.mxu0
        %v6695 = vadd.f32 0.0, %v6694
        %v6696 = vpop.f32.mrf.mxu0
        %v6697 = vadd.f32 0.0, %v6696
        %v6698 = vpop.f32.mrf.mxu0
        %v6699 = vadd.f32 0.0, %v6698
        %6700 = vmatprep.mubr.bf16.mxu0 %v672
        %6701 = vmatmul.mubr.bf16.gmra.mxu0 %v670
        %v6702 = vpop.f32.mrf.mxu0
        %v6703 = vadd.f32 0.0, %v6702
        %v6704 = vpop.f32.mrf.mxu0
        %v6705 = vadd.f32 0.0, %v6704
        %v6706 = vpop.f32.mrf.mxu0
        %v6707 = vpop.f32.mrf.mxu0
        %6708 = vdwg.mxu0
        %6709 = vmatprep.subr.bf16.mxu0 %v4141
        %6710 = vmatpush1.bf16.msra.mxu0 %v4140
        %6711 = vmatprep.subr.bf16.mxu0 %v4131
        %6712 = vmatpush1.bf16.msra.mxu0 %v4130
        %6713 = vmatprep.subr.bf16.mxu0 %v4121
        %6714 = vmatpush1.bf16.msra.mxu0 %v4120
        %6715 = vmatprep.subr.bf16.mxu0 %v4111
        %6716 = vmatpush1.bf16.msra.mxu0 %v4110
        %6717 = vmatprep.subr.bf16.mxu0 %v4101
        %6718 = vmatpush1.bf16.msra.mxu0 %v4100
        %6719 = vmatprep.subr.bf16.mxu0 %v4091
        %6720 = vmatpush1.bf16.msra.mxu0 %v4090
        %6721 = vmatprep.subr.bf16.mxu0 %v4081
        %6722 = vmatpush1.bf16.msra.mxu0 %v4080
        %6723 = vmatprep.subr.bf16.mxu0 %v4071
        %6724 = vmatpush1.bf16.msra.mxu0 %v4070
        %6725 = vmatprep.subr.bf16.mxu0 %v4221
        %6726 = vmatpush2.bf16.msra.mxu0 %v4220
        %6727 = vmatprep.subr.bf16.mxu0 %v4211
        %6728 = vmatpush2.bf16.msra.mxu0 %v4210
        %6729 = vmatprep.subr.bf16.mxu0 %v4201
        %6730 = vmatpush2.bf16.msra.mxu0 %v4200
        %6731 = vmatprep.subr.bf16.mxu0 %v4191
        %6732 = vmatpush2.bf16.msra.mxu0 %v4190
        %6733 = vmatprep.subr.bf16.mxu0 %v4181
        %6734 = vmatpush2.bf16.msra.mxu0 %v4180
        %6735 = vmatprep.subr.bf16.mxu0 %v4171
        %6736 = vmatpush2.bf16.msra.mxu0 %v4170
        %6737 = vmatprep.subr.bf16.mxu0 %v4161
        %6738 = vmatpush2.bf16.msra.mxu0 %v4160
        %6739 = vmatprep.subr.bf16.mxu0 %v4151
        %6740 = vmatpush2.bf16.msra.mxu0 %v4150
        %6741 = vmatprep.mubr.bf16.mxu0 %v568
        %6742 = vmatmul.mubr.bf16.gmra.mxu0 %v566
        %v6743 = vpop.f32.mrf.mxu0
        %v6744 = vadd.f32 %v6543, %v6743
        %v6745 = vpop.f32.mrf.mxu0
        %v6746 = vadd.f32 %v6545, %v6745
        %v6747 = vpop.f32.mrf.mxu0
        %v6748 = vadd.f32 %v6547, %v6747
        %v6749 = vpop.f32.mrf.mxu0
        %v6750 = vadd.f32 %v6549, %v6749
        %6751 = vmatprep.mubr.bf16.mxu0 %v569
        %6752 = vmatmul.mubr.bf16.gmra.mxu0 %v567
        %v6753 = vpop.f32.mrf.mxu0
        %v6754 = vadd.f32 %v6553, %v6753
        %v6755 = vpop.f32.mrf.mxu0
        %v6756 = vadd.f32 %v6555, %v6755
        %v6757 = vpop.f32.mrf.mxu0
        %v6758 = vadd.f32 %v6557, %v6757
        %v6759 = vpop.f32.mrf.mxu0
        %v6760 = vadd.f32 %v6559, %v6759
        %6761 = vmatprep.mubr.bf16.mxu0 %v570
        %6762 = vmatmul.mubr.bf16.gmra.mxu0 %v568
        %v6763 = vpop.f32.mrf.mxu0
        %v6764 = vadd.f32 %v6563, %v6763
        %v6765 = vpop.f32.mrf.mxu0
        %v6766 = vadd.f32 %v6565, %v6765
        %v6767 = vpop.f32.mrf.mxu0
        %v6768 = vadd.f32 %v6567, %v6767
        %v6769 = vpop.f32.mrf.mxu0
        %v6770 = vadd.f32 %v6569, %v6769
        %6771 = vmatprep.mubr.bf16.mxu0 %v571
        %6772 = vmatmul.mubr.bf16.gmra.mxu0 %v569
        %v6773 = vpop.f32.mrf.mxu0
        %v6774 = vadd.f32 %v6573, %v6773
        %v6775 = vpop.f32.mrf.mxu0
        %v6776 = vadd.f32 %v6575, %v6775
        %v6777 = vpop.f32.mrf.mxu0
        %v6778 = vadd.f32 %v6577, %v6777
        %v6779 = vpop.f32.mrf.mxu0
        %v6780 = vadd.f32 %v6579, %v6779
        %6781 = vmatprep.mubr.bf16.mxu0 %v572
        %6782 = vmatmul.mubr.bf16.gmra.mxu0 %v570
        %v6783 = vpop.f32.mrf.mxu0
        %v6784 = vadd.f32 %v6583, %v6783
        %v6785 = vpop.f32.mrf.mxu0
        %v6786 = vadd.f32 %v6585, %v6785
        %v6787 = vpop.f32.mrf.mxu0
        %v6788 = vadd.f32 %v6587, %v6787
        %v6789 = vpop.f32.mrf.mxu0
        %v6790 = vadd.f32 %v6589, %v6789
        %6791 = vmatprep.mubr.bf16.mxu0 %v573
        %6792 = vmatmul.mubr.bf16.gmra.mxu0 %v571
        %v6793 = vpop.f32.mrf.mxu0
        %v6794 = vadd.f32 %v6593, %v6793
        %v6795 = vpop.f32.mrf.mxu0
        %v6796 = vadd.f32 %v6595, %v6795
        %v6797 = vpop.f32.mrf.mxu0
        %v6798 = vadd.f32 %v6597, %v6797
        %v6799 = vpop.f32.mrf.mxu0
        %v6800 = vadd.f32 %v6599, %v6799
        %6801 = vmatprep.mubr.bf16.mxu0 %v574
        %6802 = vmatmul.mubr.bf16.gmra.mxu0 %v572
        %v6803 = vpop.f32.mrf.mxu0
        %v6804 = vadd.f32 %v6603, %v6803
        %v6805 = vpop.f32.mrf.mxu0
        %v6806 = vadd.f32 %v6605, %v6805
        %v6807 = vpop.f32.mrf.mxu0
        %v6808 = vadd.f32 %v6607, %v6807
        %v6809 = vpop.f32.mrf.mxu0
        %v6810 = vadd.f32 %v6609, %v6809
        %6811 = vmatprep.mubr.bf16.mxu0 %v575
        %6812 = vmatmul.mubr.bf16.gmra.mxu0 %v573
        %v6813 = vpop.f32.mrf.mxu0
        %v6814 = vadd.f32 %v6613, %v6813
        %v6815 = vpop.f32.mrf.mxu0
        %v6816 = vadd.f32 %v6615, %v6815
        %v6817 = vpop.f32.mrf.mxu0
        %v6818 = vadd.f32 %v6617, %v6817
        %v6819 = vpop.f32.mrf.mxu0
        %v6820 = vadd.f32 %v6619, %v6819
        %6821 = vmatprep.mubr.bf16.mxu0 %v576
        %6822 = vmatmul.mubr.bf16.gmra.mxu0 %v574
        %v6823 = vpop.f32.mrf.mxu0
        %v6824 = vadd.f32 %v6623, %v6823
        %v6825 = vpop.f32.mrf.mxu0
        %v6826 = vadd.f32 %v6625, %v6825
        %v6827 = vpop.f32.mrf.mxu0
        %v6828 = vadd.f32 %v6627, %v6827
        %v6829 = vpop.f32.mrf.mxu0
        %v6830 = vadd.f32 %v6629, %v6829
        %6831 = vmatprep.mubr.bf16.mxu0 %v577
        %6832 = vmatmul.mubr.bf16.gmra.mxu0 %v575
        %v6833 = vpop.f32.mrf.mxu0
        %v6834 = vadd.f32 %v6633, %v6833
        %v6835 = vpop.f32.mrf.mxu0
        %v6836 = vadd.f32 %v6635, %v6835
        %v6837 = vpop.f32.mrf.mxu0
        %v6838 = vadd.f32 %v6637, %v6837
        %v6839 = vpop.f32.mrf.mxu0
        %v6840 = vadd.f32 %v6639, %v6839
        %6841 = vmatprep.mubr.bf16.mxu0 %v670
        %6842 = vmatmul.mubr.bf16.gmra.mxu0 %v576
        %v6843 = vpop.f32.mrf.mxu0
        %v6844 = vadd.f32 %v6643, %v6843
        %v6845 = vpop.f32.mrf.mxu0
        %v6846 = vadd.f32 %v6645, %v6845
        %v6847 = vpop.f32.mrf.mxu0
        %v6848 = vadd.f32 %v6647, %v6847
        %v6849 = vpop.f32.mrf.mxu0
        %v6850 = vadd.f32 %v6649, %v6849
        %6851 = vmatprep.mubr.bf16.mxu0 %v671
        %6852 = vmatmul.mubr.bf16.gmra.mxu0 %v577
        %v6853 = vpop.f32.mrf.mxu0
        %v6854 = vadd.f32 %v6653, %v6853
        %v6855 = vpop.f32.mrf.mxu0
        %v6856 = vadd.f32 %v6655, %v6855
        %v6857 = vpop.f32.mrf.mxu0
        %v6858 = vadd.f32 %v6657, %v6857
        %v6859 = vpop.f32.mrf.mxu0
        %v6860 = vadd.f32 %v6659, %v6859
        %6861 = vmatprep.mubr.bf16.mxu0 %v672
        %6862 = vmatmul.mubr.bf16.gmra.mxu0 %v670
        %v6863 = vpop.f32.mrf.mxu0
        %v6864 = vadd.f32 %v6663, %v6863
        %v6865 = vpop.f32.mrf.mxu0
        %v6866 = vadd.f32 %v6665, %v6865
        %v6867 = vpop.f32.mrf.mxu0
        %v6868 = vadd.f32 %v6667, %v6867
        %v6869 = vpop.f32.mrf.mxu0
        %v6870 = vadd.f32 %v6669, %v6869
        %6871 = vmatprep.mubr.bf16.mxu0 %v673
        %6872 = vmatmul.mubr.bf16.gmra.mxu0 %v671
        %v6873 = vpop.f32.mrf.mxu0
        %v6874 = vadd.f32 %v6673, %v6873
        %v6875 = vpop.f32.mrf.mxu0
        %v6876 = vadd.f32 %v6675, %v6875
        %v6877 = vpop.f32.mrf.mxu0
        %v6878 = vadd.f32 %v6677, %v6877
        %v6879 = vpop.f32.mrf.mxu0
        %v6880 = vadd.f32 %v6679, %v6879
        %6881 = vmatprep.mubr.bf16.mxu0 %v674
        %6882 = vmatmul.mubr.bf16.gmra.mxu0 %v672
        %v6883 = vpop.f32.mrf.mxu0
        %v6884 = vadd.f32 %v6683, %v6883
        %v6885 = vpop.f32.mrf.mxu0
        %v6886 = vadd.f32 %v6685, %v6885
        %v6887 = vpop.f32.mrf.mxu0
        %v6888 = vadd.f32 %v6687, %v6887
        %v6889 = vpop.f32.mrf.mxu0
        %v6890 = vadd.f32 %v6689, %v6889
        %6891 = vmatprep.mubr.bf16.mxu0 %v675
        %6892 = vmatmul.mubr.bf16.gmra.mxu0 %v673
        %v6893 = vpop.f32.mrf.mxu0
        %v6894 = vadd.f32 %v6693, %v6893
        %v6895 = vpop.f32.mrf.mxu0
        %v6896 = vadd.f32 %v6695, %v6895
        %v6897 = vpop.f32.mrf.mxu0
        %v6898 = vadd.f32 %v6697, %v6897
        %v6899 = vpop.f32.mrf.mxu0
        %v6900 = vadd.f32 %v6699, %v6899
        %6901 = vmatprep.mubr.bf16.mxu0 %v676
        %6902 = vmatmul.mubr.bf16.gmra.mxu0 %v674
        %v6903 = vpop.f32.mrf.mxu0
        %v6904 = vadd.f32 %v6703, %v6903
        %v6905 = vpop.f32.mrf.mxu0
        %v6906 = vadd.f32 %v6705, %v6905
        %v6907 = vpop.f32.mrf.mxu0
        %v6908 = vpop.f32.mrf.mxu0
        %6909 = vdwg.mxu0
        %6910 = vmatprep.subr.bf16.mxu0 %v4301
        %6911 = vmatpush1.bf16.msra.mxu0 %v4300
        %6912 = vmatprep.subr.bf16.mxu0 %v4291
        %6913 = vmatpush1.bf16.msra.mxu0 %v4290
        %6914 = vmatprep.subr.bf16.mxu0 %v4281
        %6915 = vmatpush1.bf16.msra.mxu0 %v4280
        %6916 = vmatprep.subr.bf16.mxu0 %v4271
        %6917 = vmatpush1.bf16.msra.mxu0 %v4270
        %6918 = vmatprep.subr.bf16.mxu0 %v4261
        %6919 = vmatpush1.bf16.msra.mxu0 %v4260
        %6920 = vmatprep.subr.bf16.mxu0 %v4251
        %6921 = vmatpush1.bf16.msra.mxu0 %v4250
        %6922 = vmatprep.subr.bf16.mxu0 %v4241
        %6923 = vmatpush1.bf16.msra.mxu0 %v4240
        %6924 = vmatprep.subr.bf16.mxu0 %v4231
        %6925 = vmatpush1.bf16.msra.mxu0 %v4230
        %6926 = vmatprep.subr.bf16.mxu0 %v4381
        %6927 = vmatpush2.bf16.msra.mxu0 %v4380
        %6928 = vmatprep.subr.bf16.mxu0 %v4371
        %6929 = vmatpush2.bf16.msra.mxu0 %v4370
        %6930 = vmatprep.subr.bf16.mxu0 %v4361
        %6931 = vmatpush2.bf16.msra.mxu0 %v4360
        %6932 = vmatprep.subr.bf16.mxu0 %v4351
        %6933 = vmatpush2.bf16.msra.mxu0 %v4350
        %6934 = vmatprep.subr.bf16.mxu0 %v4341
        %6935 = vmatpush2.bf16.msra.mxu0 %v4340
        %6936 = vmatprep.subr.bf16.mxu0 %v4331
        %6937 = vmatpush2.bf16.msra.mxu0 %v4330
        %6938 = vmatprep.subr.bf16.mxu0 %v4321
        %6939 = vmatpush2.bf16.msra.mxu0 %v4320
        %6940 = vmatprep.subr.bf16.mxu0 %v4311
        %6941 = vmatpush2.bf16.msra.mxu0 %v4310
        %6942 = vmatprep.mubr.bf16.mxu0 %v572
        %6943 = vmatmul.mubr.bf16.gmra.mxu0 %v570
        %v6944 = vpop.f32.mrf.mxu0
        %v6945 = vadd.f32 %v6744, %v6944
        %v6946 = vpop.f32.mrf.mxu0
        %v6947 = vadd.f32 %v6746, %v6946
        %v6948 = vpop.f32.mrf.mxu0
        %v6949 = vadd.f32 %v6748, %v6948
        %v6950 = vpop.f32.mrf.mxu0
        %v6951 = vadd.f32 %v6750, %v6950
        %6952 = vmatprep.mubr.bf16.mxu0 %v573
        %6953 = vmatmul.mubr.bf16.gmra.mxu0 %v571
        %v6954 = vpop.f32.mrf.mxu0
        %v6955 = vadd.f32 %v6754, %v6954
        %v6956 = vpop.f32.mrf.mxu0
        %v6957 = vadd.f32 %v6756, %v6956
        %v6958 = vpop.f32.mrf.mxu0
        %v6959 = vadd.f32 %v6758, %v6958
        %v6960 = vpop.f32.mrf.mxu0
        %v6961 = vadd.f32 %v6760, %v6960
        %6962 = vmatprep.mubr.bf16.mxu0 %v574
        %6963 = vmatmul.mubr.bf16.gmra.mxu0 %v572
        %v6964 = vpop.f32.mrf.mxu0
        %v6965 = vadd.f32 %v6764, %v6964
        %v6966 = vpop.f32.mrf.mxu0
        %v6967 = vadd.f32 %v6766, %v6966
        %v6968 = vpop.f32.mrf.mxu0
        %v6969 = vadd.f32 %v6768, %v6968
        %v6970 = vpop.f32.mrf.mxu0
        %v6971 = vadd.f32 %v6770, %v6970
        %6972 = vmatprep.mubr.bf16.mxu0 %v575
        %6973 = vmatmul.mubr.bf16.gmra.mxu0 %v573
        %v6974 = vpop.f32.mrf.mxu0
        %v6975 = vadd.f32 %v6774, %v6974
        %v6976 = vpop.f32.mrf.mxu0
        %v6977 = vadd.f32 %v6776, %v6976
        %v6978 = vpop.f32.mrf.mxu0
        %v6979 = vadd.f32 %v6778, %v6978
        %v6980 = vpop.f32.mrf.mxu0
        %v6981 = vadd.f32 %v6780, %v6980
        %6982 = vmatprep.mubr.bf16.mxu0 %v576
        %6983 = vmatmul.mubr.bf16.gmra.mxu0 %v574
        %v6984 = vpop.f32.mrf.mxu0
        %v6985 = vadd.f32 %v6784, %v6984
        %v6986 = vpop.f32.mrf.mxu0
        %v6987 = vadd.f32 %v6786, %v6986
        %v6988 = vpop.f32.mrf.mxu0
        %v6989 = vadd.f32 %v6788, %v6988
        %v6990 = vpop.f32.mrf.mxu0
        %v6991 = vadd.f32 %v6790, %v6990
        %6992 = vmatprep.mubr.bf16.mxu0 %v577
        %6993 = vmatmul.mubr.bf16.gmra.mxu0 %v575
        %v6994 = vpop.f32.mrf.mxu0
        %v6995 = vadd.f32 %v6794, %v6994
        %v6996 = vpop.f32.mrf.mxu0
        %v6997 = vadd.f32 %v6796, %v6996
        %v6998 = vpop.f32.mrf.mxu0
        %v6999 = vadd.f32 %v6798, %v6998
        %v7000 = vpop.f32.mrf.mxu0
        %v7001 = vadd.f32 %v6800, %v7000
        %7002 = vmatprep.mubr.bf16.mxu0 %v670
        %7003 = vmatmul.mubr.bf16.gmra.mxu0 %v576
        %v7004 = vpop.f32.mrf.mxu0
        %v7005 = vadd.f32 %v6804, %v7004
        %v7006 = vpop.f32.mrf.mxu0
        %v7007 = vadd.f32 %v6806, %v7006
        %v7008 = vpop.f32.mrf.mxu0
        %v7009 = vadd.f32 %v6808, %v7008
        %v7010 = vpop.f32.mrf.mxu0
        %v7011 = vadd.f32 %v6810, %v7010
        %7012 = vmatprep.mubr.bf16.mxu0 %v671
        %7013 = vmatmul.mubr.bf16.gmra.mxu0 %v577
        %v7014 = vpop.f32.mrf.mxu0
        %v7015 = vadd.f32 %v6814, %v7014
        %v7016 = vpop.f32.mrf.mxu0
        %v7017 = vadd.f32 %v6816, %v7016
        %v7018 = vpop.f32.mrf.mxu0
        %v7019 = vadd.f32 %v6818, %v7018
        %v7020 = vpop.f32.mrf.mxu0
        %v7021 = vadd.f32 %v6820, %v7020
        %7022 = vmatprep.mubr.bf16.mxu0 %v672
        %7023 = vmatmul.mubr.bf16.gmra.mxu0 %v670
        %v7024 = vpop.f32.mrf.mxu0
        %v7025 = vadd.f32 %v6824, %v7024
        %v7026 = vpop.f32.mrf.mxu0
        %v7027 = vadd.f32 %v6826, %v7026
        %v7028 = vpop.f32.mrf.mxu0
        %v7029 = vadd.f32 %v6828, %v7028
        %v7030 = vpop.f32.mrf.mxu0
        %v7031 = vadd.f32 %v6830, %v7030
        %7032 = vmatprep.mubr.bf16.mxu0 %v673
        %7033 = vmatmul.mubr.bf16.gmra.mxu0 %v671
        %v7034 = vpop.f32.mrf.mxu0
        %v7035 = vadd.f32 %v6834, %v7034
        %v7036 = vpop.f32.mrf.mxu0
        %v7037 = vadd.f32 %v6836, %v7036
        %v7038 = vpop.f32.mrf.mxu0
        %v7039 = vadd.f32 %v6838, %v7038
        %v7040 = vpop.f32.mrf.mxu0
        %v7041 = vadd.f32 %v6840, %v7040
        %7042 = vmatprep.mubr.bf16.mxu0 %v674
        %7043 = vmatmul.mubr.bf16.gmra.mxu0 %v672
        %v7044 = vpop.f32.mrf.mxu0
        %v7045 = vadd.f32 %v6844, %v7044
        %v7046 = vpop.f32.mrf.mxu0
        %v7047 = vadd.f32 %v6846, %v7046
        %v7048 = vpop.f32.mrf.mxu0
        %v7049 = vadd.f32 %v6848, %v7048
        %v7050 = vpop.f32.mrf.mxu0
        %v7051 = vadd.f32 %v6850, %v7050
        %7052 = vmatprep.mubr.bf16.mxu0 %v675
        %7053 = vmatmul.mubr.bf16.gmra.mxu0 %v673
        %v7054 = vpop.f32.mrf.mxu0
        %v7055 = vadd.f32 %v6854, %v7054
        %v7056 = vpop.f32.mrf.mxu0
        %v7057 = vadd.f32 %v6856, %v7056
        %v7058 = vpop.f32.mrf.mxu0
        %v7059 = vadd.f32 %v6858, %v7058
        %v7060 = vpop.f32.mrf.mxu0
        %v7061 = vadd.f32 %v6860, %v7060
        %7062 = vmatprep.mubr.bf16.mxu0 %v676
        %7063 = vmatmul.mubr.bf16.gmra.mxu0 %v674
        %v7064 = vpop.f32.mrf.mxu0
        %v7065 = vadd.f32 %v6864, %v7064
        %v7066 = vpop.f32.mrf.mxu0
        %v7067 = vadd.f32 %v6866, %v7066
        %v7068 = vpop.f32.mrf.mxu0
        %v7069 = vadd.f32 %v6868, %v7068
        %v7070 = vpop.f32.mrf.mxu0
        %v7071 = vadd.f32 %v6870, %v7070
        %7072 = vmatprep.mubr.bf16.mxu0 %v677
        %7073 = vmatmul.mubr.bf16.gmra.mxu0 %v675
        %v7074 = vpop.f32.mrf.mxu0
        %v7075 = vadd.f32 %v6874, %v7074
        %v7076 = vpop.f32.mrf.mxu0
        %v7077 = vadd.f32 %v6876, %v7076
        %v7078 = vpop.f32.mrf.mxu0
        %v7079 = vadd.f32 %v6878, %v7078
        %v7080 = vpop.f32.mrf.mxu0
        %v7081 = vadd.f32 %v6880, %v7080
        %7082 = vmatprep.mubr.bf16.mxu0 %v678
        %7083 = vmatmul.mubr.bf16.gmra.mxu0 %v676
        %v7084 = vpop.f32.mrf.mxu0
        %v7085 = vadd.f32 %v6884, %v7084
        %v7086 = vpop.f32.mrf.mxu0
        %v7087 = vadd.f32 %v6886, %v7086
        %v7088 = vpop.f32.mrf.mxu0
        %v7089 = vadd.f32 %v6888, %v7088
        %v7090 = vpop.f32.mrf.mxu0
        %v7091 = vadd.f32 %v6890, %v7090
        %7092 = vmatprep.mubr.bf16.mxu0 %v679
        %7093 = vmatmul.mubr.bf16.gmra.mxu0 %v677
        %v7094 = vpop.f32.mrf.mxu0
        %v7095 = vadd.f32 %v6894, %v7094
        %v7096 = vpop.f32.mrf.mxu0
        %v7097 = vadd.f32 %v6896, %v7096
        %v7098 = vpop.f32.mrf.mxu0
        %v7099 = vadd.f32 %v6898, %v7098
        %v7100 = vpop.f32.mrf.mxu0
        %v7101 = vadd.f32 %v6900, %v7100
        %7102 = vmatprep.mubr.bf16.mxu0 %v680
        %7103 = vmatmul.mubr.bf16.gmra.mxu0 %v678
        %v7104 = vpop.f32.mrf.mxu0
        %v7105 = vadd.f32 %v6904, %v7104
        %v7106 = vpop.f32.mrf.mxu0
        %v7107 = vadd.f32 %v6906, %v7106
        %v7108 = vpop.f32.mrf.mxu0
        %v7109 = vpop.f32.mrf.mxu0
        %7110 = vdwg.mxu0
        %7111 = vmatprep.subr.bf16.mxu0 %v4461
        %7112 = vmatpush1.bf16.msra.mxu0 %v4460
        %7113 = vmatprep.subr.bf16.mxu0 %v4451
        %7114 = vmatpush1.bf16.msra.mxu0 %v4450
        %7115 = vmatprep.subr.bf16.mxu0 %v4441
        %7116 = vmatpush1.bf16.msra.mxu0 %v4440
        %7117 = vmatprep.subr.bf16.mxu0 %v4431
        %7118 = vmatpush1.bf16.msra.mxu0 %v4430
        %7119 = vmatprep.subr.bf16.mxu0 %v4421
        %7120 = vmatpush1.bf16.msra.mxu0 %v4420
        %7121 = vmatprep.subr.bf16.mxu0 %v4411
        %7122 = vmatpush1.bf16.msra.mxu0 %v4410
        %7123 = vmatprep.subr.bf16.mxu0 %v4401
        %7124 = vmatpush1.bf16.msra.mxu0 %v4400
        %7125 = vmatprep.subr.bf16.mxu0 %v4391
        %7126 = vmatpush1.bf16.msra.mxu0 %v4390
        %7127 = vmatprep.subr.bf16.mxu0 %v4541
        %7128 = vmatpush2.bf16.msra.mxu0 %v4540
        %7129 = vmatprep.subr.bf16.mxu0 %v4531
        %7130 = vmatpush2.bf16.msra.mxu0 %v4530
        %7131 = vmatprep.subr.bf16.mxu0 %v4521
        %7132 = vmatpush2.bf16.msra.mxu0 %v4520
        %7133 = vmatprep.subr.bf16.mxu0 %v4511
        %7134 = vmatpush2.bf16.msra.mxu0 %v4510
        %7135 = vmatprep.subr.bf16.mxu0 %v4501
        %7136 = vmatpush2.bf16.msra.mxu0 %v4500
        %7137 = vmatprep.subr.bf16.mxu0 %v4491
        %7138 = vmatpush2.bf16.msra.mxu0 %v4490
        %7139 = vmatprep.subr.bf16.mxu0 %v4481
        %7140 = vmatpush2.bf16.msra.mxu0 %v4480
        %7141 = vmatprep.subr.bf16.mxu0 %v4471
        %7142 = vmatpush2.bf16.msra.mxu0 %v4470
        %7143 = vmatprep.mubr.bf16.mxu0 %v576
        %7144 = vmatmul.mubr.bf16.gmra.mxu0 %v574
        %v7145 = vpop.f32.mrf.mxu0
        %v7146 = vadd.f32 %v6945, %v7145
        %v7147 = vpop.f32.mrf.mxu0
        %v7148 = vadd.f32 %v6947, %v7147
        %v7149 = vpop.f32.mrf.mxu0
        %v7150 = vadd.f32 %v6949, %v7149
        %v7151 = vpop.f32.mrf.mxu0
        %v7152 = vadd.f32 %v6951, %v7151
        %7153 = vmatprep.mubr.bf16.mxu0 %v577
        %7154 = vmatmul.mubr.bf16.gmra.mxu0 %v575
        %v7155 = vpop.f32.mrf.mxu0
        %v7156 = vadd.f32 %v6955, %v7155
        %v7157 = vpop.f32.mrf.mxu0
        %v7158 = vadd.f32 %v6957, %v7157
        %v7159 = vpop.f32.mrf.mxu0
        %v7160 = vadd.f32 %v6959, %v7159
        %v7161 = vpop.f32.mrf.mxu0
        %v7162 = vadd.f32 %v6961, %v7161
        %7163 = vmatprep.mubr.bf16.mxu0 %v670
        %7164 = vmatmul.mubr.bf16.gmra.mxu0 %v576
        %v7165 = vpop.f32.mrf.mxu0
        %v7166 = vadd.f32 %v6965, %v7165
        %v7167 = vpop.f32.mrf.mxu0
        %v7168 = vadd.f32 %v6967, %v7167
        %v7169 = vpop.f32.mrf.mxu0
        %v7170 = vadd.f32 %v6969, %v7169
        %v7171 = vpop.f32.mrf.mxu0
        %v7172 = vadd.f32 %v6971, %v7171
        %7173 = vmatprep.mubr.bf16.mxu0 %v671
        %7174 = vmatmul.mubr.bf16.gmra.mxu0 %v577
        %v7175 = vpop.f32.mrf.mxu0
        %v7176 = vadd.f32 %v6975, %v7175
        %v7177 = vpop.f32.mrf.mxu0
        %v7178 = vadd.f32 %v6977, %v7177
        %v7179 = vpop.f32.mrf.mxu0
        %v7180 = vadd.f32 %v6979, %v7179
        %v7181 = vpop.f32.mrf.mxu0
        %v7182 = vadd.f32 %v6981, %v7181
        %7183 = vmatprep.mubr.bf16.mxu0 %v672
        %7184 = vmatmul.mubr.bf16.gmra.mxu0 %v670
        %v7185 = vpop.f32.mrf.mxu0
        %v7186 = vadd.f32 %v6985, %v7185
        %v7187 = vpop.f32.mrf.mxu0
        %v7188 = vadd.f32 %v6987, %v7187
        %v7189 = vpop.f32.mrf.mxu0
        %v7190 = vadd.f32 %v6989, %v7189
        %v7191 = vpop.f32.mrf.mxu0
        %v7192 = vadd.f32 %v6991, %v7191
        %7193 = vmatprep.mubr.bf16.mxu0 %v673
        %7194 = vmatmul.mubr.bf16.gmra.mxu0 %v671
        %v7195 = vpop.f32.mrf.mxu0
        %v7196 = vadd.f32 %v6995, %v7195
        %v7197 = vpop.f32.mrf.mxu0
        %v7198 = vadd.f32 %v6997, %v7197
        %v7199 = vpop.f32.mrf.mxu0
        %v7200 = vadd.f32 %v6999, %v7199
        %v7201 = vpop.f32.mrf.mxu0
        %v7202 = vadd.f32 %v7001, %v7201
        %7203 = vmatprep.mubr.bf16.mxu0 %v674
        %7204 = vmatmul.mubr.bf16.gmra.mxu0 %v672
        %v7205 = vpop.f32.mrf.mxu0
        %v7206 = vadd.f32 %v7005, %v7205
        %v7207 = vpop.f32.mrf.mxu0
        %v7208 = vadd.f32 %v7007, %v7207
        %v7209 = vpop.f32.mrf.mxu0
        %v7210 = vadd.f32 %v7009, %v7209
        %v7211 = vpop.f32.mrf.mxu0
        %v7212 = vadd.f32 %v7011, %v7211
        %7213 = vmatprep.mubr.bf16.mxu0 %v675
        %7214 = vmatmul.mubr.bf16.gmra.mxu0 %v673
        %v7215 = vpop.f32.mrf.mxu0
        %v7216 = vadd.f32 %v7015, %v7215
        %v7217 = vpop.f32.mrf.mxu0
        %v7218 = vadd.f32 %v7017, %v7217
        %v7219 = vpop.f32.mrf.mxu0
        %v7220 = vadd.f32 %v7019, %v7219
        %v7221 = vpop.f32.mrf.mxu0
        %v7222 = vadd.f32 %v7021, %v7221
        %7223 = vmatprep.mubr.bf16.mxu0 %v676
        %7224 = vmatmul.mubr.bf16.gmra.mxu0 %v674
        %v7225 = vpop.f32.mrf.mxu0
        %v7226 = vadd.f32 %v7025, %v7225
        %v7227 = vpop.f32.mrf.mxu0
        %v7228 = vadd.f32 %v7027, %v7227
        %v7229 = vpop.f32.mrf.mxu0
        %v7230 = vadd.f32 %v7029, %v7229
        %v7231 = vpop.f32.mrf.mxu0
        %v7232 = vadd.f32 %v7031, %v7231
        %7233 = vmatprep.mubr.bf16.mxu0 %v677
        %7234 = vmatmul.mubr.bf16.gmra.mxu0 %v675
        %v7235 = vpop.f32.mrf.mxu0
        %v7236 = vadd.f32 %v7035, %v7235
        %v7237 = vpop.f32.mrf.mxu0
        %v7238 = vadd.f32 %v7037, %v7237
        %v7239 = vpop.f32.mrf.mxu0
        %v7240 = vadd.f32 %v7039, %v7239
        %v7241 = vpop.f32.mrf.mxu0
        %v7242 = vadd.f32 %v7041, %v7241
        %7243 = vmatprep.mubr.bf16.mxu0 %v678
        %7244 = vmatmul.mubr.bf16.gmra.mxu0 %v676
        %v7245 = vpop.f32.mrf.mxu0
        %v7246 = vadd.f32 %v7045, %v7245
        %v7247 = vpop.f32.mrf.mxu0
        %v7248 = vadd.f32 %v7047, %v7247
        %v7249 = vpop.f32.mrf.mxu0
        %v7250 = vadd.f32 %v7049, %v7249
        %v7251 = vpop.f32.mrf.mxu0
        %v7252 = vadd.f32 %v7051, %v7251
        %7253 = vmatprep.mubr.bf16.mxu0 %v679
        %7254 = vmatmul.mubr.bf16.gmra.mxu0 %v677
        %v7255 = vpop.f32.mrf.mxu0
        %v7256 = vadd.f32 %v7055, %v7255
        %v7257 = vpop.f32.mrf.mxu0
        %v7258 = vadd.f32 %v7057, %v7257
        %v7259 = vpop.f32.mrf.mxu0
        %v7260 = vadd.f32 %v7059, %v7259
        %v7261 = vpop.f32.mrf.mxu0
        %v7262 = vadd.f32 %v7061, %v7261
        %7263 = vmatprep.mubr.bf16.mxu0 %v680
        %7264 = vmatmul.mubr.bf16.gmra.mxu0 %v678
        %v7265 = vpop.f32.mrf.mxu0
        %v7266 = vadd.f32 %v7065, %v7265
        %v7267 = vpop.f32.mrf.mxu0
        %v7268 = vadd.f32 %v7067, %v7267
        %v7269 = vpop.f32.mrf.mxu0
        %v7270 = vadd.f32 %v7069, %v7269
        %v7271 = vpop.f32.mrf.mxu0
        %v7272 = vadd.f32 %v7071, %v7271
        %7273 = vmatprep.mubr.bf16.mxu0 %v681
        %7274 = vmatmul.mubr.bf16.gmra.mxu0 %v679
        %v7275 = vpop.f32.mrf.mxu0
        %v7276 = vadd.f32 %v7075, %v7275
        %v7277 = vpop.f32.mrf.mxu0
        %v7278 = vadd.f32 %v7077, %v7277
        %v7279 = vpop.f32.mrf.mxu0
        %v7280 = vadd.f32 %v7079, %v7279
        %v7281 = vpop.f32.mrf.mxu0
        %v7282 = vadd.f32 %v7081, %v7281
        %7283 = vmatprep.mubr.bf16.mxu0 %v682
        %7284 = vmatmul.mubr.bf16.gmra.mxu0 %v680
        %v7285 = vpop.f32.mrf.mxu0
        %v7286 = vadd.f32 %v7085, %v7285
        %v7287 = vpop.f32.mrf.mxu0
        %v7288 = vadd.f32 %v7087, %v7287
        %v7289 = vpop.f32.mrf.mxu0
        %v7290 = vadd.f32 %v7089, %v7289
        %v7291 = vpop.f32.mrf.mxu0
        %v7292 = vadd.f32 %v7091, %v7291
        %7293 = vmatprep.mubr.bf16.mxu0 %v683
        %7294 = vmatmul.mubr.bf16.gmra.mxu0 %v681
        %v7295 = vpop.f32.mrf.mxu0
        %v7296 = vadd.f32 %v7095, %v7295
        %v7297 = vpop.f32.mrf.mxu0
        %v7298 = vadd.f32 %v7097, %v7297
        %v7299 = vpop.f32.mrf.mxu0
        %v7300 = vadd.f32 %v7099, %v7299
        %v7301 = vpop.f32.mrf.mxu0
        %v7302 = vadd.f32 %v7101, %v7301
        %7303 = vmatprep.mubr.bf16.mxu0 %v684
        %7304 = vmatmul.mubr.bf16.gmra.mxu0 %v682
        %v7305 = vpop.f32.mrf.mxu0
        %v7306 = vadd.f32 %v7105, %v7305
        %v7307 = vpop.f32.mrf.mxu0
        %v7308 = vadd.f32 %v7107, %v7307
        %v7309 = vpop.f32.mrf.mxu0
        %v7310 = vpop.f32.mrf.mxu0
        %7311 = vdwg.mxu0
        %7312 = vmatprep.subr.bf16.mxu0 %v4621
        %7313 = vmatpush1.bf16.msra.mxu0 %v4620
        %7314 = vmatprep.subr.bf16.mxu0 %v4611
        %7315 = vmatpush1.bf16.msra.mxu0 %v4610
        %7316 = vmatprep.subr.bf16.mxu0 %v4601
        %7317 = vmatpush1.bf16.msra.mxu0 %v4600
        %7318 = vmatprep.subr.bf16.mxu0 %v4591
        %7319 = vmatpush1.bf16.msra.mxu0 %v4590
        %7320 = vmatprep.subr.bf16.mxu0 %v4581
        %7321 = vmatpush1.bf16.msra.mxu0 %v4580
        %7322 = vmatprep.subr.bf16.mxu0 %v4571
        %7323 = vmatpush1.bf16.msra.mxu0 %v4570
        %7324 = vmatprep.subr.bf16.mxu0 %v4561
        %7325 = vmatpush1.bf16.msra.mxu0 %v4560
        %7326 = vmatprep.subr.bf16.mxu0 %v4551
        %7327 = vmatpush1.bf16.msra.mxu0 %v4550
        %7328 = vmatprep.subr.bf16.mxu0 %v4701
        %7329 = vmatpush2.bf16.msra.mxu0 %v4700
        %7330 = vmatprep.subr.bf16.mxu0 %v4691
        %7331 = vmatpush2.bf16.msra.mxu0 %v4690
        %7332 = vmatprep.subr.bf16.mxu0 %v4681
        %7333 = vmatpush2.bf16.msra.mxu0 %v4680
        %7334 = vmatprep.subr.bf16.mxu0 %v4671
        %7335 = vmatpush2.bf16.msra.mxu0 %v4670
        %7336 = vmatprep.subr.bf16.mxu0 %v4661
        %7337 = vmatpush2.bf16.msra.mxu0 %v4660
        %7338 = vmatprep.subr.bf16.mxu0 %v4651
        %7339 = vmatpush2.bf16.msra.mxu0 %v4650
        %7340 = vmatprep.subr.bf16.mxu0 %v4641
        %7341 = vmatpush2.bf16.msra.mxu0 %v4640
        %7342 = vmatprep.subr.bf16.mxu0 %v4631
        %7343 = vmatpush2.bf16.msra.mxu0 %v4630
        %7344 = vmatprep.mubr.bf16.mxu0 %v672
        %7345 = vmatmul.mubr.bf16.gmra.mxu0 %v670
        %v7346 = vpop.f32.mrf.mxu0
        %v7347 = vadd.f32 %v7146, %v7346
        %v7348 = vpop.f32.mrf.mxu0
        %v7349 = vadd.f32 %v7148, %v7348
        %v7350 = vpop.f32.mrf.mxu0
        %v7351 = vadd.f32 %v7150, %v7350
        %v7352 = vpop.f32.mrf.mxu0
        %v7353 = vadd.f32 %v7152, %v7352
        %7354 = vmatprep.mubr.bf16.mxu0 %v673
        %7355 = vmatmul.mubr.bf16.gmra.mxu0 %v671
        %v7356 = vpop.f32.mrf.mxu0
        %v7357 = vadd.f32 %v7156, %v7356
        %v7358 = vpop.f32.mrf.mxu0
        %v7359 = vadd.f32 %v7158, %v7358
        %v7360 = vpop.f32.mrf.mxu0
        %v7361 = vadd.f32 %v7160, %v7360
        %v7362 = vpop.f32.mrf.mxu0
        %v7363 = vadd.f32 %v7162, %v7362
        %7364 = vmatprep.mubr.bf16.mxu0 %v674
        %7365 = vmatmul.mubr.bf16.gmra.mxu0 %v672
        %v7366 = vpop.f32.mrf.mxu0
        %v7367 = vadd.f32 %v7166, %v7366
        %v7368 = vpop.f32.mrf.mxu0
        %v7369 = vadd.f32 %v7168, %v7368
        %v7370 = vpop.f32.mrf.mxu0
        %v7371 = vadd.f32 %v7170, %v7370
        %v7372 = vpop.f32.mrf.mxu0
        %v7373 = vadd.f32 %v7172, %v7372
        %7374 = vmatprep.mubr.bf16.mxu0 %v675
        %7375 = vmatmul.mubr.bf16.gmra.mxu0 %v673
        %v7376 = vpop.f32.mrf.mxu0
        %v7377 = vadd.f32 %v7176, %v7376
        %v7378 = vpop.f32.mrf.mxu0
        %v7379 = vadd.f32 %v7178, %v7378
        %v7380 = vpop.f32.mrf.mxu0
        %v7381 = vadd.f32 %v7180, %v7380
        %v7382 = vpop.f32.mrf.mxu0
        %v7383 = vadd.f32 %v7182, %v7382
        %7384 = vmatprep.mubr.bf16.mxu0 %v676
        %7385 = vmatmul.mubr.bf16.gmra.mxu0 %v674
        %v7386 = vpop.f32.mrf.mxu0
        %v7387 = vadd.f32 %v7186, %v7386
        %v7388 = vpop.f32.mrf.mxu0
        %v7389 = vadd.f32 %v7188, %v7388
        %v7390 = vpop.f32.mrf.mxu0
        %v7391 = vadd.f32 %v7190, %v7390
        %v7392 = vpop.f32.mrf.mxu0
        %v7393 = vadd.f32 %v7192, %v7392
        %7394 = vmatprep.mubr.bf16.mxu0 %v677
        %7395 = vmatmul.mubr.bf16.gmra.mxu0 %v675
        %v7396 = vpop.f32.mrf.mxu0
        %v7397 = vadd.f32 %v7196, %v7396
        %v7398 = vpop.f32.mrf.mxu0
        %v7399 = vadd.f32 %v7198, %v7398
        %v7400 = vpop.f32.mrf.mxu0
        %v7401 = vadd.f32 %v7200, %v7400
        %v7402 = vpop.f32.mrf.mxu0
        %v7403 = vadd.f32 %v7202, %v7402
        %7404 = vmatprep.mubr.bf16.mxu0 %v678
        %7405 = vmatmul.mubr.bf16.gmra.mxu0 %v676
        %v7406 = vpop.f32.mrf.mxu0
        %v7407 = vadd.f32 %v7206, %v7406
        %v7408 = vpop.f32.mrf.mxu0
        %v7409 = vadd.f32 %v7208, %v7408
        %v7410 = vpop.f32.mrf.mxu0
        %v7411 = vadd.f32 %v7210, %v7410
        %v7412 = vpop.f32.mrf.mxu0
        %v7413 = vadd.f32 %v7212, %v7412
        %7414 = vmatprep.mubr.bf16.mxu0 %v679
        %7415 = vmatmul.mubr.bf16.gmra.mxu0 %v677
        %v7416 = vpop.f32.mrf.mxu0
        %v7417 = vadd.f32 %v7216, %v7416
        %v7418 = vpop.f32.mrf.mxu0
        %v7419 = vadd.f32 %v7218, %v7418
        %v7420 = vpop.f32.mrf.mxu0
        %v7421 = vadd.f32 %v7220, %v7420
        %v7422 = vpop.f32.mrf.mxu0
        %v7423 = vadd.f32 %v7222, %v7422
        %7424 = vmatprep.mubr.bf16.mxu0 %v680
        %7425 = vmatmul.mubr.bf16.gmra.mxu0 %v678
        %v7426 = vpop.f32.mrf.mxu0
        %v7427 = vadd.f32 %v7226, %v7426
        %v7428 = vpop.f32.mrf.mxu0
        %v7429 = vadd.f32 %v7228, %v7428
        %v7430 = vpop.f32.mrf.mxu0
        %v7431 = vadd.f32 %v7230, %v7430
        %v7432 = vpop.f32.mrf.mxu0
        %v7433 = vadd.f32 %v7232, %v7432
        %7434 = vmatprep.mubr.bf16.mxu0 %v681
        %7435 = vmatmul.mubr.bf16.gmra.mxu0 %v679
        %v7436 = vpop.f32.mrf.mxu0
        %v7437 = vadd.f32 %v7236, %v7436
        %v7438 = vpop.f32.mrf.mxu0
        %v7439 = vadd.f32 %v7238, %v7438
        %v7440 = vpop.f32.mrf.mxu0
        %v7441 = vadd.f32 %v7240, %v7440
        %v7442 = vpop.f32.mrf.mxu0
        %v7443 = vadd.f32 %v7242, %v7442
        %7444 = vmatprep.mubr.bf16.mxu0 %v682
        %7445 = vmatmul.mubr.bf16.gmra.mxu0 %v680
        %v7446 = vpop.f32.mrf.mxu0
        %v7447 = vadd.f32 %v7246, %v7446
        %v7448 = vpop.f32.mrf.mxu0
        %v7449 = vadd.f32 %v7248, %v7448
        %v7450 = vpop.f32.mrf.mxu0
        %v7451 = vadd.f32 %v7250, %v7450
        %v7452 = vpop.f32.mrf.mxu0
        %v7453 = vadd.f32 %v7252, %v7452
        %7454 = vmatprep.mubr.bf16.mxu0 %v683
        %7455 = vmatmul.mubr.bf16.gmra.mxu0 %v681
        %v7456 = vpop.f32.mrf.mxu0
        %v7457 = vadd.f32 %v7256, %v7456
        %v7458 = vpop.f32.mrf.mxu0
        %v7459 = vadd.f32 %v7258, %v7458
        %v7460 = vpop.f32.mrf.mxu0
        %v7461 = vadd.f32 %v7260, %v7460
        %v7462 = vpop.f32.mrf.mxu0
        %v7463 = vadd.f32 %v7262, %v7462
        %7464 = vmatprep.mubr.bf16.mxu0 %v684
        %7465 = vmatmul.mubr.bf16.gmra.mxu0 %v682
        %v7466 = vpop.f32.mrf.mxu0
        %v7467 = vadd.f32 %v7266, %v7466
        %v7468 = vpop.f32.mrf.mxu0
        %v7469 = vadd.f32 %v7268, %v7468
        %v7470 = vpop.f32.mrf.mxu0
        %v7471 = vadd.f32 %v7270, %v7470
        %v7472 = vpop.f32.mrf.mxu0
        %v7473 = vadd.f32 %v7272, %v7472
        %7474 = vmatprep.mubr.bf16.mxu0 %v685
        %7475 = vmatmul.mubr.bf16.gmra.mxu0 %v683
        %v7476 = vpop.f32.mrf.mxu0
        %v7477 = vadd.f32 %v7276, %v7476
        %v7478 = vpop.f32.mrf.mxu0
        %v7479 = vadd.f32 %v7278, %v7478
        %v7480 = vpop.f32.mrf.mxu0
        %v7481 = vadd.f32 %v7280, %v7480
        %v7482 = vpop.f32.mrf.mxu0
        %v7483 = vadd.f32 %v7282, %v7482
        %7484 = vmatprep.mubr.bf16.mxu0 %v686
        %7485 = vmatmul.mubr.bf16.gmra.mxu0 %v684
        %v7486 = vpop.f32.mrf.mxu0
        %v7487 = vadd.f32 %v7286, %v7486
        %v7488 = vpop.f32.mrf.mxu0
        %v7489 = vadd.f32 %v7288, %v7488
        %v7490 = vpop.f32.mrf.mxu0
        %v7491 = vadd.f32 %v7290, %v7490
        %v7492 = vpop.f32.mrf.mxu0
        %v7493 = vadd.f32 %v7292, %v7492
        %7494 = vmatprep.mubr.bf16.mxu0 %v687
        %7495 = vmatmul.mubr.bf16.gmra.mxu0 %v685
        %v7496 = vpop.f32.mrf.mxu0
        %v7497 = vadd.f32 %v7296, %v7496
        %v7498 = vpop.f32.mrf.mxu0
        %v7499 = vadd.f32 %v7298, %v7498
        %v7500 = vpop.f32.mrf.mxu0
        %v7501 = vadd.f32 %v7300, %v7500
        %v7502 = vpop.f32.mrf.mxu0
        %v7503 = vadd.f32 %v7302, %v7502
        %7504 = vmatprep.mubr.bf16.mxu0 %v688
        %7505 = vmatmul.mubr.bf16.gmra.mxu0 %v686
        %v7506 = vpop.f32.mrf.mxu0
        %v7507 = vadd.f32 %v7306, %v7506
        %v7508 = vpop.f32.mrf.mxu0
        %v7509 = vadd.f32 %v7308, %v7508
        %v7510 = vpop.f32.mrf.mxu0
        %v7511 = vpop.f32.mrf.mxu0
        %7512 = vdwg.mxu0
        %7513 = vmatprep.subr.bf16.mxu0 %v3983
        %7514 = vmatpush1.bf16.msra.mxu0 %v3982
        %7515 = vmatprep.subr.bf16.mxu0 %v3973
        %7516 = vmatpush1.bf16.msra.mxu0 %v3972
        %7517 = vmatprep.subr.bf16.mxu0 %v3963
        %7518 = vmatpush1.bf16.msra.mxu0 %v3962
        %7519 = vmatprep.subr.bf16.mxu0 %v3953
        %7520 = vmatpush1.bf16.msra.mxu0 %v3952
        %7521 = vmatprep.subr.bf16.mxu0 %v3943
        %7522 = vmatpush1.bf16.msra.mxu0 %v3942
        %7523 = vmatprep.subr.bf16.mxu0 %v3933
        %7524 = vmatpush1.bf16.msra.mxu0 %v3932
        %7525 = vmatprep.subr.bf16.mxu0 %v3923
        %7526 = vmatpush1.bf16.msra.mxu0 %v3922
        %7527 = vmatprep.subr.bf16.mxu0 %v3913
        %7528 = vmatpush1.bf16.msra.mxu0 %v3912
        %7529 = vmatprep.subr.bf16.mxu0 %v4063
        %7530 = vmatpush2.bf16.msra.mxu0 %v4062
        %7531 = vmatprep.subr.bf16.mxu0 %v4053
        %7532 = vmatpush2.bf16.msra.mxu0 %v4052
        %7533 = vmatprep.subr.bf16.mxu0 %v4043
        %7534 = vmatpush2.bf16.msra.mxu0 %v4042
        %7535 = vmatprep.subr.bf16.mxu0 %v4033
        %7536 = vmatpush2.bf16.msra.mxu0 %v4032
        %7537 = vmatprep.subr.bf16.mxu0 %v4023
        %7538 = vmatpush2.bf16.msra.mxu0 %v4022
        %7539 = vmatprep.subr.bf16.mxu0 %v4013
        %7540 = vmatpush2.bf16.msra.mxu0 %v4012
        %7541 = vmatprep.subr.bf16.mxu0 %v4003
        %7542 = vmatpush2.bf16.msra.mxu0 %v4002
        %7543 = vmatprep.subr.bf16.mxu0 %v3993
        %7544 = vmatpush2.bf16.msra.mxu0 %v3992
        %7545 = vmatprep.mubr.bf16.mxu0 %v564
        %7546 = vmatmul.mubr.bf16.gmra.mxu0 %v562
        %v7547 = vpop.f32.mrf.mxu0
        %v7548 = vadd.f32 0.0, %v7547
        %v7549 = vpop.f32.mrf.mxu0
        %v7550 = vadd.f32 0.0, %v7549
        %v7551 = vpop.f32.mrf.mxu0
        %v7552 = vadd.f32 0.0, %v7551
        %v7553 = vpop.f32.mrf.mxu0
        %v7554 = vadd.f32 0.0, %v7553
        %7555 = vmatprep.mubr.bf16.mxu0 %v565
        %7556 = vmatmul.mubr.bf16.gmra.mxu0 %v563
        %v7557 = vpop.f32.mrf.mxu0
        %v7558 = vadd.f32 0.0, %v7557
        %v7559 = vpop.f32.mrf.mxu0
        %v7560 = vadd.f32 0.0, %v7559
        %v7561 = vpop.f32.mrf.mxu0
        %v7562 = vadd.f32 0.0, %v7561
        %v7563 = vpop.f32.mrf.mxu0
        %v7564 = vadd.f32 0.0, %v7563
        %7565 = vmatprep.mubr.bf16.mxu0 %v566
        %7566 = vmatmul.mubr.bf16.gmra.mxu0 %v564
        %v7567 = vpop.f32.mrf.mxu0
        %v7568 = vadd.f32 0.0, %v7567
        %v7569 = vpop.f32.mrf.mxu0
        %v7570 = vadd.f32 0.0, %v7569
        %v7571 = vpop.f32.mrf.mxu0
        %v7572 = vadd.f32 0.0, %v7571
        %v7573 = vpop.f32.mrf.mxu0
        %v7574 = vadd.f32 0.0, %v7573
        %7575 = vmatprep.mubr.bf16.mxu0 %v567
        %7576 = vmatmul.mubr.bf16.gmra.mxu0 %v565
        %v7577 = vpop.f32.mrf.mxu0
        %v7578 = vadd.f32 0.0, %v7577
        %v7579 = vpop.f32.mrf.mxu0
        %v7580 = vadd.f32 0.0, %v7579
        %v7581 = vpop.f32.mrf.mxu0
        %v7582 = vadd.f32 0.0, %v7581
        %v7583 = vpop.f32.mrf.mxu0
        %v7584 = vadd.f32 0.0, %v7583
        %7585 = vmatprep.mubr.bf16.mxu0 %v568
        %7586 = vmatmul.mubr.bf16.gmra.mxu0 %v566
        %v7587 = vpop.f32.mrf.mxu0
        %v7588 = vadd.f32 0.0, %v7587
        %v7589 = vpop.f32.mrf.mxu0
        %v7590 = vadd.f32 0.0, %v7589
        %v7591 = vpop.f32.mrf.mxu0
        %v7592 = vadd.f32 0.0, %v7591
        %v7593 = vpop.f32.mrf.mxu0
        %v7594 = vadd.f32 0.0, %v7593
        %7595 = vmatprep.mubr.bf16.mxu0 %v569
        %7596 = vmatmul.mubr.bf16.gmra.mxu0 %v567
        %v7597 = vpop.f32.mrf.mxu0
        %v7598 = vadd.f32 0.0, %v7597
        %v7599 = vpop.f32.mrf.mxu0
        %v7600 = vadd.f32 0.0, %v7599
        %v7601 = vpop.f32.mrf.mxu0
        %v7602 = vadd.f32 0.0, %v7601
        %v7603 = vpop.f32.mrf.mxu0
        %v7604 = vadd.f32 0.0, %v7603
        %7605 = vmatprep.mubr.bf16.mxu0 %v570
        %7606 = vmatmul.mubr.bf16.gmra.mxu0 %v568
        %v7607 = vpop.f32.mrf.mxu0
        %v7608 = vadd.f32 0.0, %v7607
        %v7609 = vpop.f32.mrf.mxu0
        %v7610 = vadd.f32 0.0, %v7609
        %v7611 = vpop.f32.mrf.mxu0
        %v7612 = vadd.f32 0.0, %v7611
        %v7613 = vpop.f32.mrf.mxu0
        %v7614 = vadd.f32 0.0, %v7613
        %7615 = vmatprep.mubr.bf16.mxu0 %v571
        %7616 = vmatmul.mubr.bf16.gmra.mxu0 %v569
        %v7617 = vpop.f32.mrf.mxu0
        %v7618 = vadd.f32 0.0, %v7617
        %v7619 = vpop.f32.mrf.mxu0
        %v7620 = vadd.f32 0.0, %v7619
        %v7621 = vpop.f32.mrf.mxu0
        %v7622 = vadd.f32 0.0, %v7621
        %v7623 = vpop.f32.mrf.mxu0
        %v7624 = vadd.f32 0.0, %v7623
        %7625 = vmatprep.mubr.bf16.mxu0 %v572
        %7626 = vmatmul.mubr.bf16.gmra.mxu0 %v570
        %v7627 = vpop.f32.mrf.mxu0
        %v7628 = vadd.f32 0.0, %v7627
        %v7629 = vpop.f32.mrf.mxu0
        %v7630 = vadd.f32 0.0, %v7629
        %v7631 = vpop.f32.mrf.mxu0
        %v7632 = vadd.f32 0.0, %v7631
        %v7633 = vpop.f32.mrf.mxu0
        %v7634 = vadd.f32 0.0, %v7633
        %7635 = vmatprep.mubr.bf16.mxu0 %v573
        %7636 = vmatmul.mubr.bf16.gmra.mxu0 %v571
        %v7637 = vpop.f32.mrf.mxu0
        %v7638 = vadd.f32 0.0, %v7637
        %v7639 = vpop.f32.mrf.mxu0
        %v7640 = vadd.f32 0.0, %v7639
        %v7641 = vpop.f32.mrf.mxu0
        %v7642 = vadd.f32 0.0, %v7641
        %v7643 = vpop.f32.mrf.mxu0
        %v7644 = vadd.f32 0.0, %v7643
        %7645 = vmatprep.mubr.bf16.mxu0 %v574
        %7646 = vmatmul.mubr.bf16.gmra.mxu0 %v572
        %v7647 = vpop.f32.mrf.mxu0
        %v7648 = vadd.f32 0.0, %v7647
        %v7649 = vpop.f32.mrf.mxu0
        %v7650 = vadd.f32 0.0, %v7649
        %v7651 = vpop.f32.mrf.mxu0
        %v7652 = vadd.f32 0.0, %v7651
        %v7653 = vpop.f32.mrf.mxu0
        %v7654 = vadd.f32 0.0, %v7653
        %7655 = vmatprep.mubr.bf16.mxu0 %v575
        %7656 = vmatmul.mubr.bf16.gmra.mxu0 %v573
        %v7657 = vpop.f32.mrf.mxu0
        %v7658 = vadd.f32 0.0, %v7657
        %v7659 = vpop.f32.mrf.mxu0
        %v7660 = vadd.f32 0.0, %v7659
        %v7661 = vpop.f32.mrf.mxu0
        %v7662 = vadd.f32 0.0, %v7661
        %v7663 = vpop.f32.mrf.mxu0
        %v7664 = vadd.f32 0.0, %v7663
        %7665 = vmatprep.mubr.bf16.mxu0 %v576
        %7666 = vmatmul.mubr.bf16.gmra.mxu0 %v574
        %v7667 = vpop.f32.mrf.mxu0
        %v7668 = vadd.f32 0.0, %v7667
        %v7669 = vpop.f32.mrf.mxu0
        %v7670 = vadd.f32 0.0, %v7669
        %v7671 = vpop.f32.mrf.mxu0
        %v7672 = vadd.f32 0.0, %v7671
        %v7673 = vpop.f32.mrf.mxu0
        %v7674 = vadd.f32 0.0, %v7673
        %7675 = vmatprep.mubr.bf16.mxu0 %v577
        %7676 = vmatmul.mubr.bf16.gmra.mxu0 %v575
        %v7677 = vpop.f32.mrf.mxu0
        %v7678 = vadd.f32 0.0, %v7677
        %v7679 = vpop.f32.mrf.mxu0
        %v7680 = vadd.f32 0.0, %v7679
        %v7681 = vpop.f32.mrf.mxu0
        %v7682 = vadd.f32 0.0, %v7681
        %v7683 = vpop.f32.mrf.mxu0
        %v7684 = vadd.f32 0.0, %v7683
        %7685 = vmatprep.mubr.bf16.mxu0 %v670
        %7686 = vmatmul.mubr.bf16.gmra.mxu0 %v576
        %v7687 = vpop.f32.mrf.mxu0
        %v7688 = vadd.f32 0.0, %v7687
        %v7689 = vpop.f32.mrf.mxu0
        %v7690 = vadd.f32 0.0, %v7689
        %v7691 = vpop.f32.mrf.mxu0
        %v7692 = vadd.f32 0.0, %v7691
        %v7693 = vpop.f32.mrf.mxu0
        %v7694 = vadd.f32 0.0, %v7693
        %7695 = vmatprep.mubr.bf16.mxu0 %v671
        %7696 = vmatmul.mubr.bf16.gmra.mxu0 %v577
        %v7697 = vpop.f32.mrf.mxu0
        %v7698 = vadd.f32 0.0, %v7697
        %v7699 = vpop.f32.mrf.mxu0
        %v7700 = vadd.f32 0.0, %v7699
        %v7701 = vpop.f32.mrf.mxu0
        %v7702 = vadd.f32 0.0, %v7701
        %v7703 = vpop.f32.mrf.mxu0
        %v7704 = vadd.f32 0.0, %v7703
        %7705 = vmatprep.mubr.bf16.mxu0 %v672
        %7706 = vmatmul.mubr.bf16.gmra.mxu0 %v670
        %v7707 = vpop.f32.mrf.mxu0
        %v7708 = vadd.f32 0.0, %v7707
        %v7709 = vpop.f32.mrf.mxu0
        %v7710 = vadd.f32 0.0, %v7709
        %v7711 = vpop.f32.mrf.mxu0
        %v7712 = vpop.f32.mrf.mxu0
        %7713 = vdwg.mxu0
        %7714 = vmatprep.subr.bf16.mxu0 %v4143
        %7715 = vmatpush1.bf16.msra.mxu0 %v4142
        %7716 = vmatprep.subr.bf16.mxu0 %v4133
        %7717 = vmatpush1.bf16.msra.mxu0 %v4132
        %7718 = vmatprep.subr.bf16.mxu0 %v4123
        %7719 = vmatpush1.bf16.msra.mxu0 %v4122
        %7720 = vmatprep.subr.bf16.mxu0 %v4113
        %7721 = vmatpush1.bf16.msra.mxu0 %v4112
        %7722 = vmatprep.subr.bf16.mxu0 %v4103
        %7723 = vmatpush1.bf16.msra.mxu0 %v4102
        %7724 = vmatprep.subr.bf16.mxu0 %v4093
        %7725 = vmatpush1.bf16.msra.mxu0 %v4092
        %7726 = vmatprep.subr.bf16.mxu0 %v4083
        %7727 = vmatpush1.bf16.msra.mxu0 %v4082
        %7728 = vmatprep.subr.bf16.mxu0 %v4073
        %7729 = vmatpush1.bf16.msra.mxu0 %v4072
        %7730 = vmatprep.subr.bf16.mxu0 %v4223
        %7731 = vmatpush2.bf16.msra.mxu0 %v4222
        %7732 = vmatprep.subr.bf16.mxu0 %v4213
        %7733 = vmatpush2.bf16.msra.mxu0 %v4212
        %7734 = vmatprep.subr.bf16.mxu0 %v4203
        %7735 = vmatpush2.bf16.msra.mxu0 %v4202
        %7736 = vmatprep.subr.bf16.mxu0 %v4193
        %7737 = vmatpush2.bf16.msra.mxu0 %v4192
        %7738 = vmatprep.subr.bf16.mxu0 %v4183
        %7739 = vmatpush2.bf16.msra.mxu0 %v4182
        %7740 = vmatprep.subr.bf16.mxu0 %v4173
        %7741 = vmatpush2.bf16.msra.mxu0 %v4172
        %7742 = vmatprep.subr.bf16.mxu0 %v4163
        %7743 = vmatpush2.bf16.msra.mxu0 %v4162
        %7744 = vmatprep.subr.bf16.mxu0 %v4153
        %7745 = vmatpush2.bf16.msra.mxu0 %v4152
        %7746 = vmatprep.mubr.bf16.mxu0 %v568
        %7747 = vmatmul.mubr.bf16.gmra.mxu0 %v566
        %v7748 = vpop.f32.mrf.mxu0
        %v7749 = vadd.f32 %v7548, %v7748
        %v7750 = vpop.f32.mrf.mxu0
        %v7751 = vadd.f32 %v7550, %v7750
        %v7752 = vpop.f32.mrf.mxu0
        %v7753 = vadd.f32 %v7552, %v7752
        %v7754 = vpop.f32.mrf.mxu0
        %v7755 = vadd.f32 %v7554, %v7754
        %7756 = vmatprep.mubr.bf16.mxu0 %v569
        %7757 = vmatmul.mubr.bf16.gmra.mxu0 %v567
        %v7758 = vpop.f32.mrf.mxu0
        %v7759 = vadd.f32 %v7558, %v7758
        %v7760 = vpop.f32.mrf.mxu0
        %v7761 = vadd.f32 %v7560, %v7760
        %v7762 = vpop.f32.mrf.mxu0
        %v7763 = vadd.f32 %v7562, %v7762
        %v7764 = vpop.f32.mrf.mxu0
        %v7765 = vadd.f32 %v7564, %v7764
        %7766 = vmatprep.mubr.bf16.mxu0 %v570
        %7767 = vmatmul.mubr.bf16.gmra.mxu0 %v568
        %v7768 = vpop.f32.mrf.mxu0
        %v7769 = vadd.f32 %v7568, %v7768
        %v7770 = vpop.f32.mrf.mxu0
        %v7771 = vadd.f32 %v7570, %v7770
        %v7772 = vpop.f32.mrf.mxu0
        %v7773 = vadd.f32 %v7572, %v7772
        %v7774 = vpop.f32.mrf.mxu0
        %v7775 = vadd.f32 %v7574, %v7774
        %7776 = vmatprep.mubr.bf16.mxu0 %v571
        %7777 = vmatmul.mubr.bf16.gmra.mxu0 %v569
        %v7778 = vpop.f32.mrf.mxu0
        %v7779 = vadd.f32 %v7578, %v7778
        %v7780 = vpop.f32.mrf.mxu0
        %v7781 = vadd.f32 %v7580, %v7780
        %v7782 = vpop.f32.mrf.mxu0
        %v7783 = vadd.f32 %v7582, %v7782
        %v7784 = vpop.f32.mrf.mxu0
        %v7785 = vadd.f32 %v7584, %v7784
        %7786 = vmatprep.mubr.bf16.mxu0 %v572
        %7787 = vmatmul.mubr.bf16.gmra.mxu0 %v570
        %v7788 = vpop.f32.mrf.mxu0
        %v7789 = vadd.f32 %v7588, %v7788
        %v7790 = vpop.f32.mrf.mxu0
        %v7791 = vadd.f32 %v7590, %v7790
        %v7792 = vpop.f32.mrf.mxu0
        %v7793 = vadd.f32 %v7592, %v7792
        %v7794 = vpop.f32.mrf.mxu0
        %v7795 = vadd.f32 %v7594, %v7794
        %7796 = vmatprep.mubr.bf16.mxu0 %v573
        %7797 = vmatmul.mubr.bf16.gmra.mxu0 %v571
        %v7798 = vpop.f32.mrf.mxu0
        %v7799 = vadd.f32 %v7598, %v7798
        %v7800 = vpop.f32.mrf.mxu0
        %v7801 = vadd.f32 %v7600, %v7800
        %v7802 = vpop.f32.mrf.mxu0
        %v7803 = vadd.f32 %v7602, %v7802
        %v7804 = vpop.f32.mrf.mxu0
        %v7805 = vadd.f32 %v7604, %v7804
        %7806 = vmatprep.mubr.bf16.mxu0 %v574
        %7807 = vmatmul.mubr.bf16.gmra.mxu0 %v572
        %v7808 = vpop.f32.mrf.mxu0
        %v7809 = vadd.f32 %v7608, %v7808
        %v7810 = vpop.f32.mrf.mxu0
        %v7811 = vadd.f32 %v7610, %v7810
        %v7812 = vpop.f32.mrf.mxu0
        %v7813 = vadd.f32 %v7612, %v7812
        %v7814 = vpop.f32.mrf.mxu0
        %v7815 = vadd.f32 %v7614, %v7814
        %7816 = vmatprep.mubr.bf16.mxu0 %v575
        %7817 = vmatmul.mubr.bf16.gmra.mxu0 %v573
        %v7818 = vpop.f32.mrf.mxu0
        %v7819 = vadd.f32 %v7618, %v7818
        %v7820 = vpop.f32.mrf.mxu0
        %v7821 = vadd.f32 %v7620, %v7820
        %v7822 = vpop.f32.mrf.mxu0
        %v7823 = vadd.f32 %v7622, %v7822
        %v7824 = vpop.f32.mrf.mxu0
        %v7825 = vadd.f32 %v7624, %v7824
        %7826 = vmatprep.mubr.bf16.mxu0 %v576
        %7827 = vmatmul.mubr.bf16.gmra.mxu0 %v574
        %v7828 = vpop.f32.mrf.mxu0
        %v7829 = vadd.f32 %v7628, %v7828
        %v7830 = vpop.f32.mrf.mxu0
        %v7831 = vadd.f32 %v7630, %v7830
        %v7832 = vpop.f32.mrf.mxu0
        %v7833 = vadd.f32 %v7632, %v7832
        %v7834 = vpop.f32.mrf.mxu0
        %v7835 = vadd.f32 %v7634, %v7834
        %7836 = vmatprep.mubr.bf16.mxu0 %v577
        %7837 = vmatmul.mubr.bf16.gmra.mxu0 %v575
        %v7838 = vpop.f32.mrf.mxu0
        %v7839 = vadd.f32 %v7638, %v7838
        %v7840 = vpop.f32.mrf.mxu0
        %v7841 = vadd.f32 %v7640, %v7840
        %v7842 = vpop.f32.mrf.mxu0
        %v7843 = vadd.f32 %v7642, %v7842
        %v7844 = vpop.f32.mrf.mxu0
        %v7845 = vadd.f32 %v7644, %v7844
        %7846 = vmatprep.mubr.bf16.mxu0 %v670
        %7847 = vmatmul.mubr.bf16.gmra.mxu0 %v576
        %v7848 = vpop.f32.mrf.mxu0
        %v7849 = vadd.f32 %v7648, %v7848
        %v7850 = vpop.f32.mrf.mxu0
        %v7851 = vadd.f32 %v7650, %v7850
        %v7852 = vpop.f32.mrf.mxu0
        %v7853 = vadd.f32 %v7652, %v7852
        %v7854 = vpop.f32.mrf.mxu0
        %v7855 = vadd.f32 %v7654, %v7854
        %7856 = vmatprep.mubr.bf16.mxu0 %v671
        %7857 = vmatmul.mubr.bf16.gmra.mxu0 %v577
        %v7858 = vpop.f32.mrf.mxu0
        %v7859 = vadd.f32 %v7658, %v7858
        %v7860 = vpop.f32.mrf.mxu0
        %v7861 = vadd.f32 %v7660, %v7860
        %v7862 = vpop.f32.mrf.mxu0
        %v7863 = vadd.f32 %v7662, %v7862
        %v7864 = vpop.f32.mrf.mxu0
        %v7865 = vadd.f32 %v7664, %v7864
        %7866 = vmatprep.mubr.bf16.mxu0 %v672
        %7867 = vmatmul.mubr.bf16.gmra.mxu0 %v670
        %v7868 = vpop.f32.mrf.mxu0
        %v7869 = vadd.f32 %v7668, %v7868
        %v7870 = vpop.f32.mrf.mxu0
        %v7871 = vadd.f32 %v7670, %v7870
        %v7872 = vpop.f32.mrf.mxu0
        %v7873 = vadd.f32 %v7672, %v7872
        %v7874 = vpop.f32.mrf.mxu0
        %v7875 = vadd.f32 %v7674, %v7874
        %7876 = vmatprep.mubr.bf16.mxu0 %v673
        %7877 = vmatmul.mubr.bf16.gmra.mxu0 %v671
        %v7878 = vpop.f32.mrf.mxu0
        %v7879 = vadd.f32 %v7678, %v7878
        %v7880 = vpop.f32.mrf.mxu0
        %v7881 = vadd.f32 %v7680, %v7880
        %v7882 = vpop.f32.mrf.mxu0
        %v7883 = vadd.f32 %v7682, %v7882
        %v7884 = vpop.f32.mrf.mxu0
        %v7885 = vadd.f32 %v7684, %v7884
        %7886 = vmatprep.mubr.bf16.mxu0 %v674
        %7887 = vmatmul.mubr.bf16.gmra.mxu0 %v672
        %v7888 = vpop.f32.mrf.mxu0
        %v7889 = vadd.f32 %v7688, %v7888
        %v7890 = vpop.f32.mrf.mxu0
        %v7891 = vadd.f32 %v7690, %v7890
        %v7892 = vpop.f32.mrf.mxu0
        %v7893 = vadd.f32 %v7692, %v7892
        %v7894 = vpop.f32.mrf.mxu0
        %v7895 = vadd.f32 %v7694, %v7894
        %7896 = vmatprep.mubr.bf16.mxu0 %v675
        %7897 = vmatmul.mubr.bf16.gmra.mxu0 %v673
        %v7898 = vpop.f32.mrf.mxu0
        %v7899 = vadd.f32 %v7698, %v7898
        %v7900 = vpop.f32.mrf.mxu0
        %v7901 = vadd.f32 %v7700, %v7900
        %v7902 = vpop.f32.mrf.mxu0
        %v7903 = vadd.f32 %v7702, %v7902
        %v7904 = vpop.f32.mrf.mxu0
        %v7905 = vadd.f32 %v7704, %v7904
        %7906 = vmatprep.mubr.bf16.mxu0 %v676
        %7907 = vmatmul.mubr.bf16.gmra.mxu0 %v674
        %v7908 = vpop.f32.mrf.mxu0
        %v7909 = vadd.f32 %v7708, %v7908
        %v7910 = vpop.f32.mrf.mxu0
        %v7911 = vadd.f32 %v7710, %v7910
        %v7912 = vpop.f32.mrf.mxu0
        %v7913 = vpop.f32.mrf.mxu0
        %7914 = vdwg.mxu0
        %7915 = vmatprep.subr.bf16.mxu0 %v4303
        %7916 = vmatpush1.bf16.msra.mxu0 %v4302
        %7917 = vmatprep.subr.bf16.mxu0 %v4293
        %7918 = vmatpush1.bf16.msra.mxu0 %v4292
        %7919 = vmatprep.subr.bf16.mxu0 %v4283
        %7920 = vmatpush1.bf16.msra.mxu0 %v4282
        %7921 = vmatprep.subr.bf16.mxu0 %v4273
        %7922 = vmatpush1.bf16.msra.mxu0 %v4272
        %7923 = vmatprep.subr.bf16.mxu0 %v4263
        %7924 = vmatpush1.bf16.msra.mxu0 %v4262
        %7925 = vmatprep.subr.bf16.mxu0 %v4253
        %7926 = vmatpush1.bf16.msra.mxu0 %v4252
        %7927 = vmatprep.subr.bf16.mxu0 %v4243
        %7928 = vmatpush1.bf16.msra.mxu0 %v4242
        %7929 = vmatprep.subr.bf16.mxu0 %v4233
        %7930 = vmatpush1.bf16.msra.mxu0 %v4232
        %7931 = vmatprep.subr.bf16.mxu0 %v4383
        %7932 = vmatpush2.bf16.msra.mxu0 %v4382
        %7933 = vmatprep.subr.bf16.mxu0 %v4373
        %7934 = vmatpush2.bf16.msra.mxu0 %v4372
        %7935 = vmatprep.subr.bf16.mxu0 %v4363
        %7936 = vmatpush2.bf16.msra.mxu0 %v4362
        %7937 = vmatprep.subr.bf16.mxu0 %v4353
        %7938 = vmatpush2.bf16.msra.mxu0 %v4352
        %7939 = vmatprep.subr.bf16.mxu0 %v4343
        %7940 = vmatpush2.bf16.msra.mxu0 %v4342
        %7941 = vmatprep.subr.bf16.mxu0 %v4333
        %7942 = vmatpush2.bf16.msra.mxu0 %v4332
        %7943 = vmatprep.subr.bf16.mxu0 %v4323
        %7944 = vmatpush2.bf16.msra.mxu0 %v4322
        %7945 = vmatprep.subr.bf16.mxu0 %v4313
        %7946 = vmatpush2.bf16.msra.mxu0 %v4312
        %7947 = vmatprep.mubr.bf16.mxu0 %v572
        %7948 = vmatmul.mubr.bf16.gmra.mxu0 %v570
        %v7949 = vpop.f32.mrf.mxu0
        %v7950 = vadd.f32 %v7749, %v7949
        %v7951 = vpop.f32.mrf.mxu0
        %v7952 = vadd.f32 %v7751, %v7951
        %v7953 = vpop.f32.mrf.mxu0
        %v7954 = vadd.f32 %v7753, %v7953
        %v7955 = vpop.f32.mrf.mxu0
        %v7956 = vadd.f32 %v7755, %v7955
        %7957 = vmatprep.mubr.bf16.mxu0 %v573
        %7958 = vmatmul.mubr.bf16.gmra.mxu0 %v571
        %v7959 = vpop.f32.mrf.mxu0
        %v7960 = vadd.f32 %v7759, %v7959
        %v7961 = vpop.f32.mrf.mxu0
        %v7962 = vadd.f32 %v7761, %v7961
        %v7963 = vpop.f32.mrf.mxu0
        %v7964 = vadd.f32 %v7763, %v7963
        %v7965 = vpop.f32.mrf.mxu0
        %v7966 = vadd.f32 %v7765, %v7965
        %7967 = vmatprep.mubr.bf16.mxu0 %v574
        %7968 = vmatmul.mubr.bf16.gmra.mxu0 %v572
        %v7969 = vpop.f32.mrf.mxu0
        %v7970 = vadd.f32 %v7769, %v7969
        %v7971 = vpop.f32.mrf.mxu0
        %v7972 = vadd.f32 %v7771, %v7971
        %v7973 = vpop.f32.mrf.mxu0
        %v7974 = vadd.f32 %v7773, %v7973
        %v7975 = vpop.f32.mrf.mxu0
        %v7976 = vadd.f32 %v7775, %v7975
        %7977 = vmatprep.mubr.bf16.mxu0 %v575
        %7978 = vmatmul.mubr.bf16.gmra.mxu0 %v573
        %v7979 = vpop.f32.mrf.mxu0
        %v7980 = vadd.f32 %v7779, %v7979
        %v7981 = vpop.f32.mrf.mxu0
        %v7982 = vadd.f32 %v7781, %v7981
        %v7983 = vpop.f32.mrf.mxu0
        %v7984 = vadd.f32 %v7783, %v7983
        %v7985 = vpop.f32.mrf.mxu0
        %v7986 = vadd.f32 %v7785, %v7985
        %7987 = vmatprep.mubr.bf16.mxu0 %v576
        %7988 = vmatmul.mubr.bf16.gmra.mxu0 %v574
        %v7989 = vpop.f32.mrf.mxu0
        %v7990 = vadd.f32 %v7789, %v7989
        %v7991 = vpop.f32.mrf.mxu0
        %v7992 = vadd.f32 %v7791, %v7991
        %v7993 = vpop.f32.mrf.mxu0
        %v7994 = vadd.f32 %v7793, %v7993
        %v7995 = vpop.f32.mrf.mxu0
        %v7996 = vadd.f32 %v7795, %v7995
        %7997 = vmatprep.mubr.bf16.mxu0 %v577
        %7998 = vmatmul.mubr.bf16.gmra.mxu0 %v575
        %v7999 = vpop.f32.mrf.mxu0
        %v8000 = vadd.f32 %v7799, %v7999
        %v8001 = vpop.f32.mrf.mxu0
        %v8002 = vadd.f32 %v7801, %v8001
        %v8003 = vpop.f32.mrf.mxu0
        %v8004 = vadd.f32 %v7803, %v8003
        %v8005 = vpop.f32.mrf.mxu0
        %v8006 = vadd.f32 %v7805, %v8005
        %8007 = vmatprep.mubr.bf16.mxu0 %v670
        %8008 = vmatmul.mubr.bf16.gmra.mxu0 %v576
        %v8009 = vpop.f32.mrf.mxu0
        %v8010 = vadd.f32 %v7809, %v8009
        %v8011 = vpop.f32.mrf.mxu0
        %v8012 = vadd.f32 %v7811, %v8011
        %v8013 = vpop.f32.mrf.mxu0
        %v8014 = vadd.f32 %v7813, %v8013
        %v8015 = vpop.f32.mrf.mxu0
        %v8016 = vadd.f32 %v7815, %v8015
        %8017 = vmatprep.mubr.bf16.mxu0 %v671
        %8018 = vmatmul.mubr.bf16.gmra.mxu0 %v577
        %v8019 = vpop.f32.mrf.mxu0
        %v8020 = vadd.f32 %v7819, %v8019
        %v8021 = vpop.f32.mrf.mxu0
        %v8022 = vadd.f32 %v7821, %v8021
        %v8023 = vpop.f32.mrf.mxu0
        %v8024 = vadd.f32 %v7823, %v8023
        %v8025 = vpop.f32.mrf.mxu0
        %v8026 = vadd.f32 %v7825, %v8025
        %8027 = vmatprep.mubr.bf16.mxu0 %v672
        %8028 = vmatmul.mubr.bf16.gmra.mxu0 %v670
        %v8029 = vpop.f32.mrf.mxu0
        %v8030 = vadd.f32 %v7829, %v8029
        %v8031 = vpop.f32.mrf.mxu0
        %v8032 = vadd.f32 %v7831, %v8031
        %v8033 = vpop.f32.mrf.mxu0
        %v8034 = vadd.f32 %v7833, %v8033
        %v8035 = vpop.f32.mrf.mxu0
        %v8036 = vadd.f32 %v7835, %v8035
        %8037 = vmatprep.mubr.bf16.mxu0 %v673
        %8038 = vmatmul.mubr.bf16.gmra.mxu0 %v671
        %v8039 = vpop.f32.mrf.mxu0
        %v8040 = vadd.f32 %v7839, %v8039
        %v8041 = vpop.f32.mrf.mxu0
        %v8042 = vadd.f32 %v7841, %v8041
        %v8043 = vpop.f32.mrf.mxu0
        %v8044 = vadd.f32 %v7843, %v8043
        %v8045 = vpop.f32.mrf.mxu0
        %v8046 = vadd.f32 %v7845, %v8045
        %8047 = vmatprep.mubr.bf16.mxu0 %v674
        %8048 = vmatmul.mubr.bf16.gmra.mxu0 %v672
        %v8049 = vpop.f32.mrf.mxu0
        %v8050 = vadd.f32 %v7849, %v8049
        %v8051 = vpop.f32.mrf.mxu0
        %v8052 = vadd.f32 %v7851, %v8051
        %v8053 = vpop.f32.mrf.mxu0
        %v8054 = vadd.f32 %v7853, %v8053
        %v8055 = vpop.f32.mrf.mxu0
        %v8056 = vadd.f32 %v7855, %v8055
        %8057 = vmatprep.mubr.bf16.mxu0 %v675
        %8058 = vmatmul.mubr.bf16.gmra.mxu0 %v673
        %v8059 = vpop.f32.mrf.mxu0
        %v8060 = vadd.f32 %v7859, %v8059
        %v8061 = vpop.f32.mrf.mxu0
        %v8062 = vadd.f32 %v7861, %v8061
        %v8063 = vpop.f32.mrf.mxu0
        %v8064 = vadd.f32 %v7863, %v8063
        %v8065 = vpop.f32.mrf.mxu0
        %v8066 = vadd.f32 %v7865, %v8065
        %8067 = vmatprep.mubr.bf16.mxu0 %v676
        %8068 = vmatmul.mubr.bf16.gmra.mxu0 %v674
        %v8069 = vpop.f32.mrf.mxu0
        %v8070 = vadd.f32 %v7869, %v8069
        %v8071 = vpop.f32.mrf.mxu0
        %v8072 = vadd.f32 %v7871, %v8071
        %v8073 = vpop.f32.mrf.mxu0
        %v8074 = vadd.f32 %v7873, %v8073
        %v8075 = vpop.f32.mrf.mxu0
        %v8076 = vadd.f32 %v7875, %v8075
        %8077 = vmatprep.mubr.bf16.mxu0 %v677
        %8078 = vmatmul.mubr.bf16.gmra.mxu0 %v675
        %v8079 = vpop.f32.mrf.mxu0
        %v8080 = vadd.f32 %v7879, %v8079
        %v8081 = vpop.f32.mrf.mxu0
        %v8082 = vadd.f32 %v7881, %v8081
        %v8083 = vpop.f32.mrf.mxu0
        %v8084 = vadd.f32 %v7883, %v8083
        %v8085 = vpop.f32.mrf.mxu0
        %v8086 = vadd.f32 %v7885, %v8085
        %8087 = vmatprep.mubr.bf16.mxu0 %v678
        %8088 = vmatmul.mubr.bf16.gmra.mxu0 %v676
        %v8089 = vpop.f32.mrf.mxu0
        %v8090 = vadd.f32 %v7889, %v8089
        %v8091 = vpop.f32.mrf.mxu0
        %v8092 = vadd.f32 %v7891, %v8091
        %v8093 = vpop.f32.mrf.mxu0
        %v8094 = vadd.f32 %v7893, %v8093
        %v8095 = vpop.f32.mrf.mxu0
        %v8096 = vadd.f32 %v7895, %v8095
        %8097 = vmatprep.mubr.bf16.mxu0 %v679
        %8098 = vmatmul.mubr.bf16.gmra.mxu0 %v677
        %v8099 = vpop.f32.mrf.mxu0
        %v8100 = vadd.f32 %v7899, %v8099
        %v8101 = vpop.f32.mrf.mxu0
        %v8102 = vadd.f32 %v7901, %v8101
        %v8103 = vpop.f32.mrf.mxu0
        %v8104 = vadd.f32 %v7903, %v8103
        %v8105 = vpop.f32.mrf.mxu0
        %v8106 = vadd.f32 %v7905, %v8105
        %8107 = vmatprep.mubr.bf16.mxu0 %v680
        %8108 = vmatmul.mubr.bf16.gmra.mxu0 %v678
        %v8109 = vpop.f32.mrf.mxu0
        %v8110 = vadd.f32 %v7909, %v8109
        %v8111 = vpop.f32.mrf.mxu0
        %v8112 = vadd.f32 %v7911, %v8111
        %v8113 = vpop.f32.mrf.mxu0
        %v8114 = vpop.f32.mrf.mxu0
        %8115 = vdwg.mxu0
        %8116 = vmatprep.subr.bf16.mxu0 %v4463
        %8117 = vmatpush1.bf16.msra.mxu0 %v4462
        %8118 = vmatprep.subr.bf16.mxu0 %v4453
        %8119 = vmatpush1.bf16.msra.mxu0 %v4452
        %8120 = vmatprep.subr.bf16.mxu0 %v4443
        %8121 = vmatpush1.bf16.msra.mxu0 %v4442
        %8122 = vmatprep.subr.bf16.mxu0 %v4433
        %8123 = vmatpush1.bf16.msra.mxu0 %v4432
        %8124 = vmatprep.subr.bf16.mxu0 %v4423
        %8125 = vmatpush1.bf16.msra.mxu0 %v4422
        %8126 = vmatprep.subr.bf16.mxu0 %v4413
        %8127 = vmatpush1.bf16.msra.mxu0 %v4412
        %8128 = vmatprep.subr.bf16.mxu0 %v4403
        %8129 = vmatpush1.bf16.msra.mxu0 %v4402
        %8130 = vmatprep.subr.bf16.mxu0 %v4393
        %8131 = vmatpush1.bf16.msra.mxu0 %v4392
        %8132 = vmatprep.subr.bf16.mxu0 %v4543
        %8133 = vmatpush2.bf16.msra.mxu0 %v4542
        %8134 = vmatprep.subr.bf16.mxu0 %v4533
        %8135 = vmatpush2.bf16.msra.mxu0 %v4532
        %8136 = vmatprep.subr.bf16.mxu0 %v4523
        %8137 = vmatpush2.bf16.msra.mxu0 %v4522
        %8138 = vmatprep.subr.bf16.mxu0 %v4513
        %8139 = vmatpush2.bf16.msra.mxu0 %v4512
        %8140 = vmatprep.subr.bf16.mxu0 %v4503
        %8141 = vmatpush2.bf16.msra.mxu0 %v4502
        %8142 = vmatprep.subr.bf16.mxu0 %v4493
        %8143 = vmatpush2.bf16.msra.mxu0 %v4492
        %8144 = vmatprep.subr.bf16.mxu0 %v4483
        %8145 = vmatpush2.bf16.msra.mxu0 %v4482
        %8146 = vmatprep.subr.bf16.mxu0 %v4473
        %8147 = vmatpush2.bf16.msra.mxu0 %v4472
        %8148 = vmatprep.mubr.bf16.mxu0 %v576
        %8149 = vmatmul.mubr.bf16.gmra.mxu0 %v574
        %v8150 = vpop.f32.mrf.mxu0
        %v8151 = vadd.f32 %v7950, %v8150
        %v8152 = vpop.f32.mrf.mxu0
        %v8153 = vadd.f32 %v7952, %v8152
        %v8154 = vpop.f32.mrf.mxu0
        %v8155 = vadd.f32 %v7954, %v8154
        %v8156 = vpop.f32.mrf.mxu0
        %v8157 = vadd.f32 %v7956, %v8156
        %8158 = vmatprep.mubr.bf16.mxu0 %v577
        %8159 = vmatmul.mubr.bf16.gmra.mxu0 %v575
        %v8160 = vpop.f32.mrf.mxu0
        %v8161 = vadd.f32 %v7960, %v8160
        %v8162 = vpop.f32.mrf.mxu0
        %v8163 = vadd.f32 %v7962, %v8162
        %v8164 = vpop.f32.mrf.mxu0
        %v8165 = vadd.f32 %v7964, %v8164
        %v8166 = vpop.f32.mrf.mxu0
        %v8167 = vadd.f32 %v7966, %v8166
        %8168 = vmatprep.mubr.bf16.mxu0 %v670
        %8169 = vmatmul.mubr.bf16.gmra.mxu0 %v576
        %v8170 = vpop.f32.mrf.mxu0
        %v8171 = vadd.f32 %v7970, %v8170
        %v8172 = vpop.f32.mrf.mxu0
        %v8173 = vadd.f32 %v7972, %v8172
        %v8174 = vpop.f32.mrf.mxu0
        %v8175 = vadd.f32 %v7974, %v8174
        %v8176 = vpop.f32.mrf.mxu0
        %v8177 = vadd.f32 %v7976, %v8176
        %8178 = vmatprep.mubr.bf16.mxu0 %v671
        %8179 = vmatmul.mubr.bf16.gmra.mxu0 %v577
        %v8180 = vpop.f32.mrf.mxu0
        %v8181 = vadd.f32 %v7980, %v8180
        %v8182 = vpop.f32.mrf.mxu0
        %v8183 = vadd.f32 %v7982, %v8182
        %v8184 = vpop.f32.mrf.mxu0
        %v8185 = vadd.f32 %v7984, %v8184
        %v8186 = vpop.f32.mrf.mxu0
        %v8187 = vadd.f32 %v7986, %v8186
        %8188 = vmatprep.mubr.bf16.mxu0 %v672
        %8189 = vmatmul.mubr.bf16.gmra.mxu0 %v670
        %v8190 = vpop.f32.mrf.mxu0
        %v8191 = vadd.f32 %v7990, %v8190
        %v8192 = vpop.f32.mrf.mxu0
        %v8193 = vadd.f32 %v7992, %v8192
        %v8194 = vpop.f32.mrf.mxu0
        %v8195 = vadd.f32 %v7994, %v8194
        %v8196 = vpop.f32.mrf.mxu0
        %v8197 = vadd.f32 %v7996, %v8196
        %8198 = vmatprep.mubr.bf16.mxu0 %v673
        %8199 = vmatmul.mubr.bf16.gmra.mxu0 %v671
        %v8200 = vpop.f32.mrf.mxu0
        %v8201 = vadd.f32 %v8000, %v8200
        %v8202 = vpop.f32.mrf.mxu0
        %v8203 = vadd.f32 %v8002, %v8202
        %v8204 = vpop.f32.mrf.mxu0
        %v8205 = vadd.f32 %v8004, %v8204
        %v8206 = vpop.f32.mrf.mxu0
        %v8207 = vadd.f32 %v8006, %v8206
        %8208 = vmatprep.mubr.bf16.mxu0 %v674
        %8209 = vmatmul.mubr.bf16.gmra.mxu0 %v672
        %v8210 = vpop.f32.mrf.mxu0
        %v8211 = vadd.f32 %v8010, %v8210
        %v8212 = vpop.f32.mrf.mxu0
        %v8213 = vadd.f32 %v8012, %v8212
        %v8214 = vpop.f32.mrf.mxu0
        %v8215 = vadd.f32 %v8014, %v8214
        %v8216 = vpop.f32.mrf.mxu0
        %v8217 = vadd.f32 %v8016, %v8216
        %8218 = vmatprep.mubr.bf16.mxu0 %v675
        %8219 = vmatmul.mubr.bf16.gmra.mxu0 %v673
        %v8220 = vpop.f32.mrf.mxu0
        %v8221 = vadd.f32 %v8020, %v8220
        %v8222 = vpop.f32.mrf.mxu0
        %v8223 = vadd.f32 %v8022, %v8222
        %v8224 = vpop.f32.mrf.mxu0
        %v8225 = vadd.f32 %v8024, %v8224
        %v8226 = vpop.f32.mrf.mxu0
        %v8227 = vadd.f32 %v8026, %v8226
        %8228 = vmatprep.mubr.bf16.mxu0 %v676
        %8229 = vmatmul.mubr.bf16.gmra.mxu0 %v674
        %v8230 = vpop.f32.mrf.mxu0
        %v8231 = vadd.f32 %v8030, %v8230
        %v8232 = vpop.f32.mrf.mxu0
        %v8233 = vadd.f32 %v8032, %v8232
        %v8234 = vpop.f32.mrf.mxu0
        %v8235 = vadd.f32 %v8034, %v8234
        %v8236 = vpop.f32.mrf.mxu0
        %v8237 = vadd.f32 %v8036, %v8236
        %8238 = vmatprep.mubr.bf16.mxu0 %v677
        %8239 = vmatmul.mubr.bf16.gmra.mxu0 %v675
        %v8240 = vpop.f32.mrf.mxu0
        %v8241 = vadd.f32 %v8040, %v8240
        %v8242 = vpop.f32.mrf.mxu0
        %v8243 = vadd.f32 %v8042, %v8242
        %v8244 = vpop.f32.mrf.mxu0
        %v8245 = vadd.f32 %v8044, %v8244
        %v8246 = vpop.f32.mrf.mxu0
        %v8247 = vadd.f32 %v8046, %v8246
        %8248 = vmatprep.mubr.bf16.mxu0 %v678
        %8249 = vmatmul.mubr.bf16.gmra.mxu0 %v676
        %v8250 = vpop.f32.mrf.mxu0
        %v8251 = vadd.f32 %v8050, %v8250
        %v8252 = vpop.f32.mrf.mxu0
        %v8253 = vadd.f32 %v8052, %v8252
        %v8254 = vpop.f32.mrf.mxu0
        %v8255 = vadd.f32 %v8054, %v8254
        %v8256 = vpop.f32.mrf.mxu0
        %v8257 = vadd.f32 %v8056, %v8256
        %8258 = vmatprep.mubr.bf16.mxu0 %v679
        %8259 = vmatmul.mubr.bf16.gmra.mxu0 %v677
        %v8260 = vpop.f32.mrf.mxu0
        %v8261 = vadd.f32 %v8060, %v8260
        %v8262 = vpop.f32.mrf.mxu0
        %v8263 = vadd.f32 %v8062, %v8262
        %v8264 = vpop.f32.mrf.mxu0
        %v8265 = vadd.f32 %v8064, %v8264
        %v8266 = vpop.f32.mrf.mxu0
        %v8267 = vadd.f32 %v8066, %v8266
        %8268 = vmatprep.mubr.bf16.mxu0 %v680
        %8269 = vmatmul.mubr.bf16.gmra.mxu0 %v678
        %v8270 = vpop.f32.mrf.mxu0
        %v8271 = vadd.f32 %v8070, %v8270
        %v8272 = vpop.f32.mrf.mxu0
        %v8273 = vadd.f32 %v8072, %v8272
        %v8274 = vpop.f32.mrf.mxu0
        %v8275 = vadd.f32 %v8074, %v8274
        %v8276 = vpop.f32.mrf.mxu0
        %v8277 = vadd.f32 %v8076, %v8276
        %8278 = vmatprep.mubr.bf16.mxu0 %v681
        %8279 = vmatmul.mubr.bf16.gmra.mxu0 %v679
        %v8280 = vpop.f32.mrf.mxu0
        %v8281 = vadd.f32 %v8080, %v8280
        %v8282 = vpop.f32.mrf.mxu0
        %v8283 = vadd.f32 %v8082, %v8282
        %v8284 = vpop.f32.mrf.mxu0
        %v8285 = vadd.f32 %v8084, %v8284
        %v8286 = vpop.f32.mrf.mxu0
        %v8287 = vadd.f32 %v8086, %v8286
        %8288 = vmatprep.mubr.bf16.mxu0 %v682
        %8289 = vmatmul.mubr.bf16.gmra.mxu0 %v680
        %v8290 = vpop.f32.mrf.mxu0
        %v8291 = vadd.f32 %v8090, %v8290
        %v8292 = vpop.f32.mrf.mxu0
        %v8293 = vadd.f32 %v8092, %v8292
        %v8294 = vpop.f32.mrf.mxu0
        %v8295 = vadd.f32 %v8094, %v8294
        %v8296 = vpop.f32.mrf.mxu0
        %v8297 = vadd.f32 %v8096, %v8296
        %8298 = vmatprep.mubr.bf16.mxu0 %v683
        %8299 = vmatmul.mubr.bf16.gmra.mxu0 %v681
        %v8300 = vpop.f32.mrf.mxu0
        %v8301 = vadd.f32 %v8100, %v8300
        %v8302 = vpop.f32.mrf.mxu0
        %v8303 = vadd.f32 %v8102, %v8302
        %v8304 = vpop.f32.mrf.mxu0
        %v8305 = vadd.f32 %v8104, %v8304
        %v8306 = vpop.f32.mrf.mxu0
        %v8307 = vadd.f32 %v8106, %v8306
        %8308 = vmatprep.mubr.bf16.mxu0 %v684
        %8309 = vmatmul.mubr.bf16.gmra.mxu0 %v682
        %v8310 = vpop.f32.mrf.mxu0
        %v8311 = vadd.f32 %v8110, %v8310
        %v8312 = vpop.f32.mrf.mxu0
        %v8313 = vadd.f32 %v8112, %v8312
        %v8314 = vpop.f32.mrf.mxu0
        %v8315 = vpop.f32.mrf.mxu0
        %8316 = vdwg.mxu0
        %8317 = vmatprep.subr.bf16.mxu0 %v4623
        %8318 = vmatpush1.bf16.msra.mxu0 %v4622
        %8319 = vmatprep.subr.bf16.mxu0 %v4613
        %8320 = vmatpush1.bf16.msra.mxu0 %v4612
        %8321 = vmatprep.subr.bf16.mxu0 %v4603
        %8322 = vmatpush1.bf16.msra.mxu0 %v4602
        %8323 = vmatprep.subr.bf16.mxu0 %v4593
        %8324 = vmatpush1.bf16.msra.mxu0 %v4592
        %8325 = vmatprep.subr.bf16.mxu0 %v4583
        %8326 = vmatpush1.bf16.msra.mxu0 %v4582
        %8327 = vmatprep.subr.bf16.mxu0 %v4573
        %8328 = vmatpush1.bf16.msra.mxu0 %v4572
        %8329 = vmatprep.subr.bf16.mxu0 %v4563
        %8330 = vmatpush1.bf16.msra.mxu0 %v4562
        %8331 = vmatprep.subr.bf16.mxu0 %v4553
        %8332 = vmatpush1.bf16.msra.mxu0 %v4552
        %8333 = vmatprep.subr.bf16.mxu0 %v4703
        %8334 = vmatpush2.bf16.msra.mxu0 %v4702
        %8335 = vmatprep.subr.bf16.mxu0 %v4693
        %8336 = vmatpush2.bf16.msra.mxu0 %v4692
        %8337 = vmatprep.subr.bf16.mxu0 %v4683
        %8338 = vmatpush2.bf16.msra.mxu0 %v4682
        %8339 = vmatprep.subr.bf16.mxu0 %v4673
        %8340 = vmatpush2.bf16.msra.mxu0 %v4672
        %8341 = vmatprep.subr.bf16.mxu0 %v4663
        %8342 = vmatpush2.bf16.msra.mxu0 %v4662
        %8343 = vmatprep.subr.bf16.mxu0 %v4653
        %8344 = vmatpush2.bf16.msra.mxu0 %v4652
        %8345 = vmatprep.subr.bf16.mxu0 %v4643
        %8346 = vmatpush2.bf16.msra.mxu0 %v4642
        %8347 = vmatprep.subr.bf16.mxu0 %v4633
        %8348 = vmatpush2.bf16.msra.mxu0 %v4632
        %8349 = vmatprep.mubr.bf16.mxu0 %v672
        %8350 = vmatmul.mubr.bf16.gmra.mxu0 %v670
        %v8351 = vpop.f32.mrf.mxu0
        %v8352 = vadd.f32 %v8151, %v8351
        %v8353 = vpop.f32.mrf.mxu0
        %v8354 = vadd.f32 %v8153, %v8353
        %v8355 = vpop.f32.mrf.mxu0
        %v8356 = vadd.f32 %v8155, %v8355
        %v8357 = vpop.f32.mrf.mxu0
        %v8358 = vadd.f32 %v8157, %v8357
        %8359 = vmatprep.mubr.bf16.mxu0 %v673
        %8360 = vmatmul.mubr.bf16.gmra.mxu0 %v671
        %v8361 = vpop.f32.mrf.mxu0
        %v8362 = vadd.f32 %v8161, %v8361
        %v8363 = vpop.f32.mrf.mxu0
        %v8364 = vadd.f32 %v8163, %v8363
        %v8365 = vpop.f32.mrf.mxu0
        %v8366 = vadd.f32 %v8165, %v8365
        %v8367 = vpop.f32.mrf.mxu0
        %v8368 = vadd.f32 %v8167, %v8367
        %8369 = vmatprep.mubr.bf16.mxu0 %v674
        %8370 = vmatmul.mubr.bf16.gmra.mxu0 %v672
        %v8371 = vpop.f32.mrf.mxu0
        %v8372 = vadd.f32 %v8171, %v8371
        %v8373 = vpop.f32.mrf.mxu0
        %v8374 = vadd.f32 %v8173, %v8373
        %v8375 = vpop.f32.mrf.mxu0
        %v8376 = vadd.f32 %v8175, %v8375
        %v8377 = vpop.f32.mrf.mxu0
        %v8378 = vadd.f32 %v8177, %v8377
        %8379 = vmatprep.mubr.bf16.mxu0 %v675
        %8380 = vmatmul.mubr.bf16.gmra.mxu0 %v673
        %v8381 = vpop.f32.mrf.mxu0
        %v8382 = vadd.f32 %v8181, %v8381
        %v8383 = vpop.f32.mrf.mxu0
        %v8384 = vadd.f32 %v8183, %v8383
        %v8385 = vpop.f32.mrf.mxu0
        %v8386 = vadd.f32 %v8185, %v8385
        %v8387 = vpop.f32.mrf.mxu0
        %v8388 = vadd.f32 %v8187, %v8387
        %8389 = vmatprep.mubr.bf16.mxu0 %v676
        %8390 = vmatmul.mubr.bf16.gmra.mxu0 %v674
        %v8391 = vpop.f32.mrf.mxu0
        %v8392 = vadd.f32 %v8191, %v8391
        %v8393 = vpop.f32.mrf.mxu0
        %v8394 = vadd.f32 %v8193, %v8393
        %v8395 = vpop.f32.mrf.mxu0
        %v8396 = vadd.f32 %v8195, %v8395
        %v8397 = vpop.f32.mrf.mxu0
        %v8398 = vadd.f32 %v8197, %v8397
        %8399 = vmatprep.mubr.bf16.mxu0 %v677
        %8400 = vmatmul.mubr.bf16.gmra.mxu0 %v675
        %v8401 = vpop.f32.mrf.mxu0
        %v8402 = vadd.f32 %v8201, %v8401
        %v8403 = vpop.f32.mrf.mxu0
        %v8404 = vadd.f32 %v8203, %v8403
        %v8405 = vpop.f32.mrf.mxu0
        %v8406 = vadd.f32 %v8205, %v8405
        %v8407 = vpop.f32.mrf.mxu0
        %v8408 = vadd.f32 %v8207, %v8407
        %8409 = vmatprep.mubr.bf16.mxu0 %v678
        %8410 = vmatmul.mubr.bf16.gmra.mxu0 %v676
        %v8411 = vpop.f32.mrf.mxu0
        %v8412 = vadd.f32 %v8211, %v8411
        %v8413 = vpop.f32.mrf.mxu0
        %v8414 = vadd.f32 %v8213, %v8413
        %v8415 = vpop.f32.mrf.mxu0
        %v8416 = vadd.f32 %v8215, %v8415
        %v8417 = vpop.f32.mrf.mxu0
        %v8418 = vadd.f32 %v8217, %v8417
        %8419 = vmatprep.mubr.bf16.mxu0 %v679
        %8420 = vmatmul.mubr.bf16.gmra.mxu0 %v677
        %v8421 = vpop.f32.mrf.mxu0
        %v8422 = vadd.f32 %v8221, %v8421
        %v8423 = vpop.f32.mrf.mxu0
        %v8424 = vadd.f32 %v8223, %v8423
        %v8425 = vpop.f32.mrf.mxu0
        %v8426 = vadd.f32 %v8225, %v8425
        %v8427 = vpop.f32.mrf.mxu0
        %v8428 = vadd.f32 %v8227, %v8427
        %8429 = vmatprep.mubr.bf16.mxu0 %v680
        %8430 = vmatmul.mubr.bf16.gmra.mxu0 %v678
        %v8431 = vpop.f32.mrf.mxu0
        %v8432 = vadd.f32 %v8231, %v8431
        %v8433 = vpop.f32.mrf.mxu0
        %v8434 = vadd.f32 %v8233, %v8433
        %v8435 = vpop.f32.mrf.mxu0
        %v8436 = vadd.f32 %v8235, %v8435
        %v8437 = vpop.f32.mrf.mxu0
        %v8438 = vadd.f32 %v8237, %v8437
        %8439 = vmatprep.mubr.bf16.mxu0 %v681
        %8440 = vmatmul.mubr.bf16.gmra.mxu0 %v679
        %v8441 = vpop.f32.mrf.mxu0
        %v8442 = vadd.f32 %v8241, %v8441
        %v8443 = vpop.f32.mrf.mxu0
        %v8444 = vadd.f32 %v8243, %v8443
        %v8445 = vpop.f32.mrf.mxu0
        %v8446 = vadd.f32 %v8245, %v8445
        %v8447 = vpop.f32.mrf.mxu0
        %v8448 = vadd.f32 %v8247, %v8447
        %8449 = vmatprep.mubr.bf16.mxu0 %v682
        %8450 = vmatmul.mubr.bf16.gmra.mxu0 %v680
        %v8451 = vpop.f32.mrf.mxu0
        %v8452 = vadd.f32 %v8251, %v8451
        %v8453 = vpop.f32.mrf.mxu0
        %v8454 = vadd.f32 %v8253, %v8453
        %v8455 = vpop.f32.mrf.mxu0
        %v8456 = vadd.f32 %v8255, %v8455
        %v8457 = vpop.f32.mrf.mxu0
        %v8458 = vadd.f32 %v8257, %v8457
        %8459 = vmatprep.mubr.bf16.mxu0 %v683
        %8460 = vmatmul.mubr.bf16.gmra.mxu0 %v681
        %v8461 = vpop.f32.mrf.mxu0
        %v8462 = vadd.f32 %v8261, %v8461
        %v8463 = vpop.f32.mrf.mxu0
        %v8464 = vadd.f32 %v8263, %v8463
        %v8465 = vpop.f32.mrf.mxu0
        %v8466 = vadd.f32 %v8265, %v8465
        %v8467 = vpop.f32.mrf.mxu0
        %v8468 = vadd.f32 %v8267, %v8467
        %8469 = vmatprep.mubr.bf16.mxu0 %v684
        %8470 = vmatmul.mubr.bf16.gmra.mxu0 %v682
        %v8471 = vpop.f32.mrf.mxu0
        %v8472 = vadd.f32 %v8271, %v8471
        %v8473 = vpop.f32.mrf.mxu0
        %v8474 = vadd.f32 %v8273, %v8473
        %v8475 = vpop.f32.mrf.mxu0
        %v8476 = vadd.f32 %v8275, %v8475
        %v8477 = vpop.f32.mrf.mxu0
        %v8478 = vadd.f32 %v8277, %v8477
        %8479 = vmatprep.mubr.bf16.mxu0 %v685
        %8480 = vmatmul.mubr.bf16.gmra.mxu0 %v683
        %v8481 = vpop.f32.mrf.mxu0
        %v8482 = vadd.f32 %v8281, %v8481
        %v8483 = vpop.f32.mrf.mxu0
        %v8484 = vadd.f32 %v8283, %v8483
        %v8485 = vpop.f32.mrf.mxu0
        %v8486 = vadd.f32 %v8285, %v8485
        %v8487 = vpop.f32.mrf.mxu0
        %v8488 = vadd.f32 %v8287, %v8487
        %8489 = vmatprep.mubr.bf16.mxu0 %v686
        %8490 = vmatmul.mubr.bf16.gmra.mxu0 %v684
        %v8491 = vpop.f32.mrf.mxu0
        %v8492 = vadd.f32 %v8291, %v8491
        %v8493 = vpop.f32.mrf.mxu0
        %v8494 = vadd.f32 %v8293, %v8493
        %v8495 = vpop.f32.mrf.mxu0
        %v8496 = vadd.f32 %v8295, %v8495
        %v8497 = vpop.f32.mrf.mxu0
        %v8498 = vadd.f32 %v8297, %v8497
        %8499 = vmatprep.mubr.bf16.mxu0 %v687
        %8500 = vmatmul.mubr.bf16.gmra.mxu0 %v685
        %v8501 = vpop.f32.mrf.mxu0
        %v8502 = vadd.f32 %v8301, %v8501
        %v8503 = vpop.f32.mrf.mxu0
        %v8504 = vadd.f32 %v8303, %v8503
        %v8505 = vpop.f32.mrf.mxu0
        %v8506 = vadd.f32 %v8305, %v8505
        %v8507 = vpop.f32.mrf.mxu0
        %v8508 = vadd.f32 %v8307, %v8507
        %8509 = vmatprep.mubr.bf16.mxu0 %v688
        %8510 = vmatmul.mubr.bf16.gmra.mxu0 %v686
        %v8511 = vpop.f32.mrf.mxu0
        %v8512 = vadd.f32 %v8311, %v8511
        %v8513 = vpop.f32.mrf.mxu0
        %v8514 = vadd.f32 %v8313, %v8513
        %v8515 = vpop.f32.mrf.mxu0
        %v8516 = vpop.f32.mrf.mxu0
        %8517 = vdwg.mxu0
        %8518 = vmatprep.subr.bf16.mxu0 %v3985
        %8519 = vmatpush1.bf16.msra.mxu0 %v3984
        %8520 = vmatprep.subr.bf16.mxu0 %v3975
        %8521 = vmatpush1.bf16.msra.mxu0 %v3974
        %8522 = vmatprep.subr.bf16.mxu0 %v3965
        %8523 = vmatpush1.bf16.msra.mxu0 %v3964
        %8524 = vmatprep.subr.bf16.mxu0 %v3955
        %8525 = vmatpush1.bf16.msra.mxu0 %v3954
        %8526 = vmatprep.subr.bf16.mxu0 %v3945
        %8527 = vmatpush1.bf16.msra.mxu0 %v3944
        %8528 = vmatprep.subr.bf16.mxu0 %v3935
        %8529 = vmatpush1.bf16.msra.mxu0 %v3934
        %8530 = vmatprep.subr.bf16.mxu0 %v3925
        %8531 = vmatpush1.bf16.msra.mxu0 %v3924
        %8532 = vmatprep.subr.bf16.mxu0 %v3915
        %8533 = vmatpush1.bf16.msra.mxu0 %v3914
        %8534 = vmatprep.subr.bf16.mxu0 %v4065
        %8535 = vmatpush2.bf16.msra.mxu0 %v4064
        %8536 = vmatprep.subr.bf16.mxu0 %v4055
        %8537 = vmatpush2.bf16.msra.mxu0 %v4054
        %8538 = vmatprep.subr.bf16.mxu0 %v4045
        %8539 = vmatpush2.bf16.msra.mxu0 %v4044
        %8540 = vmatprep.subr.bf16.mxu0 %v4035
        %8541 = vmatpush2.bf16.msra.mxu0 %v4034
        %8542 = vmatprep.subr.bf16.mxu0 %v4025
        %8543 = vmatpush2.bf16.msra.mxu0 %v4024
        %8544 = vmatprep.subr.bf16.mxu0 %v4015
        %8545 = vmatpush2.bf16.msra.mxu0 %v4014
        %8546 = vmatprep.subr.bf16.mxu0 %v4005
        %8547 = vmatpush2.bf16.msra.mxu0 %v4004
        %8548 = vmatprep.subr.bf16.mxu0 %v3995
        %8549 = vmatpush2.bf16.msra.mxu0 %v3994
        %8550 = vmatprep.mubr.bf16.mxu0 %v564
        %8551 = vmatmul.mubr.bf16.gmra.mxu0 %v562
        %v8552 = vpop.f32.mrf.mxu0
        %v8553 = vadd.f32 0.0, %v8552
        %v8554 = vpop.f32.mrf.mxu0
        %v8555 = vadd.f32 0.0, %v8554
        %v8556 = vpop.f32.mrf.mxu0
        %v8557 = vadd.f32 0.0, %v8556
        %v8558 = vpop.f32.mrf.mxu0
        %v8559 = vadd.f32 0.0, %v8558
        %8560 = vmatprep.mubr.bf16.mxu0 %v565
        %8561 = vmatmul.mubr.bf16.gmra.mxu0 %v563
        %v8562 = vpop.f32.mrf.mxu0
        %v8563 = vadd.f32 0.0, %v8562
        %v8564 = vpop.f32.mrf.mxu0
        %v8565 = vadd.f32 0.0, %v8564
        %v8566 = vpop.f32.mrf.mxu0
        %v8567 = vadd.f32 0.0, %v8566
        %v8568 = vpop.f32.mrf.mxu0
        %v8569 = vadd.f32 0.0, %v8568
        %8570 = vmatprep.mubr.bf16.mxu0 %v566
        %8571 = vmatmul.mubr.bf16.gmra.mxu0 %v564
        %v8572 = vpop.f32.mrf.mxu0
        %v8573 = vadd.f32 0.0, %v8572
        %v8574 = vpop.f32.mrf.mxu0
        %v8575 = vadd.f32 0.0, %v8574
        %v8576 = vpop.f32.mrf.mxu0
        %v8577 = vadd.f32 0.0, %v8576
        %v8578 = vpop.f32.mrf.mxu0
        %v8579 = vadd.f32 0.0, %v8578
        %8580 = vmatprep.mubr.bf16.mxu0 %v567
        %8581 = vmatmul.mubr.bf16.gmra.mxu0 %v565
        %v8582 = vpop.f32.mrf.mxu0
        %v8583 = vadd.f32 0.0, %v8582
        %v8584 = vpop.f32.mrf.mxu0
        %v8585 = vadd.f32 0.0, %v8584
        %v8586 = vpop.f32.mrf.mxu0
        %v8587 = vadd.f32 0.0, %v8586
        %v8588 = vpop.f32.mrf.mxu0
        %v8589 = vadd.f32 0.0, %v8588
        %8590 = vmatprep.mubr.bf16.mxu0 %v568
        %8591 = vmatmul.mubr.bf16.gmra.mxu0 %v566
        %v8592 = vpop.f32.mrf.mxu0
        %v8593 = vadd.f32 0.0, %v8592
        %v8594 = vpop.f32.mrf.mxu0
        %v8595 = vadd.f32 0.0, %v8594
        %v8596 = vpop.f32.mrf.mxu0
        %v8597 = vadd.f32 0.0, %v8596
        %v8598 = vpop.f32.mrf.mxu0
        %v8599 = vadd.f32 0.0, %v8598
        %8600 = vmatprep.mubr.bf16.mxu0 %v569
        %8601 = vmatmul.mubr.bf16.gmra.mxu0 %v567
        %v8602 = vpop.f32.mrf.mxu0
        %v8603 = vadd.f32 0.0, %v8602
        %v8604 = vpop.f32.mrf.mxu0
        %v8605 = vadd.f32 0.0, %v8604
        %v8606 = vpop.f32.mrf.mxu0
        %v8607 = vadd.f32 0.0, %v8606
        %v8608 = vpop.f32.mrf.mxu0
        %v8609 = vadd.f32 0.0, %v8608
        %8610 = vmatprep.mubr.bf16.mxu0 %v570
        %8611 = vmatmul.mubr.bf16.gmra.mxu0 %v568
        %v8612 = vpop.f32.mrf.mxu0
        %v8613 = vadd.f32 0.0, %v8612
        %v8614 = vpop.f32.mrf.mxu0
        %v8615 = vadd.f32 0.0, %v8614
        %v8616 = vpop.f32.mrf.mxu0
        %v8617 = vadd.f32 0.0, %v8616
        %v8618 = vpop.f32.mrf.mxu0
        %v8619 = vadd.f32 0.0, %v8618
        %8620 = vmatprep.mubr.bf16.mxu0 %v571
        %8621 = vmatmul.mubr.bf16.gmra.mxu0 %v569
        %v8622 = vpop.f32.mrf.mxu0
        %v8623 = vadd.f32 0.0, %v8622
        %v8624 = vpop.f32.mrf.mxu0
        %v8625 = vadd.f32 0.0, %v8624
        %v8626 = vpop.f32.mrf.mxu0
        %v8627 = vadd.f32 0.0, %v8626
        %v8628 = vpop.f32.mrf.mxu0
        %v8629 = vadd.f32 0.0, %v8628
        %8630 = vmatprep.mubr.bf16.mxu0 %v572
        %8631 = vmatmul.mubr.bf16.gmra.mxu0 %v570
        %v8632 = vpop.f32.mrf.mxu0
        %v8633 = vadd.f32 0.0, %v8632
        %v8634 = vpop.f32.mrf.mxu0
        %v8635 = vadd.f32 0.0, %v8634
        %v8636 = vpop.f32.mrf.mxu0
        %v8637 = vadd.f32 0.0, %v8636
        %v8638 = vpop.f32.mrf.mxu0
        %v8639 = vadd.f32 0.0, %v8638
        %8640 = vmatprep.mubr.bf16.mxu0 %v573
        %8641 = vmatmul.mubr.bf16.gmra.mxu0 %v571
        %v8642 = vpop.f32.mrf.mxu0
        %v8643 = vadd.f32 0.0, %v8642
        %v8644 = vpop.f32.mrf.mxu0
        %v8645 = vadd.f32 0.0, %v8644
        %v8646 = vpop.f32.mrf.mxu0
        %v8647 = vadd.f32 0.0, %v8646
        %v8648 = vpop.f32.mrf.mxu0
        %v8649 = vadd.f32 0.0, %v8648
        %8650 = vmatprep.mubr.bf16.mxu0 %v574
        %8651 = vmatmul.mubr.bf16.gmra.mxu0 %v572
        %v8652 = vpop.f32.mrf.mxu0
        %v8653 = vadd.f32 0.0, %v8652
        %v8654 = vpop.f32.mrf.mxu0
        %v8655 = vadd.f32 0.0, %v8654
        %v8656 = vpop.f32.mrf.mxu0
        %v8657 = vadd.f32 0.0, %v8656
        %v8658 = vpop.f32.mrf.mxu0
        %v8659 = vadd.f32 0.0, %v8658
        %8660 = vmatprep.mubr.bf16.mxu0 %v575
        %8661 = vmatmul.mubr.bf16.gmra.mxu0 %v573
        %v8662 = vpop.f32.mrf.mxu0
        %v8663 = vadd.f32 0.0, %v8662
        %v8664 = vpop.f32.mrf.mxu0
        %v8665 = vadd.f32 0.0, %v8664
        %v8666 = vpop.f32.mrf.mxu0
        %v8667 = vadd.f32 0.0, %v8666
        %v8668 = vpop.f32.mrf.mxu0
        %v8669 = vadd.f32 0.0, %v8668
        %8670 = vmatprep.mubr.bf16.mxu0 %v576
        %8671 = vmatmul.mubr.bf16.gmra.mxu0 %v574
        %v8672 = vpop.f32.mrf.mxu0
        %v8673 = vadd.f32 0.0, %v8672
        %v8674 = vpop.f32.mrf.mxu0
        %v8675 = vadd.f32 0.0, %v8674
        %v8676 = vpop.f32.mrf.mxu0
        %v8677 = vadd.f32 0.0, %v8676
        %v8678 = vpop.f32.mrf.mxu0
        %v8679 = vadd.f32 0.0, %v8678
        %8680 = vmatprep.mubr.bf16.mxu0 %v577
        %8681 = vmatmul.mubr.bf16.gmra.mxu0 %v575
        %v8682 = vpop.f32.mrf.mxu0
        %v8683 = vadd.f32 0.0, %v8682
        %v8684 = vpop.f32.mrf.mxu0
        %v8685 = vadd.f32 0.0, %v8684
        %v8686 = vpop.f32.mrf.mxu0
        %v8687 = vadd.f32 0.0, %v8686
        %v8688 = vpop.f32.mrf.mxu0
        %v8689 = vadd.f32 0.0, %v8688
        %8690 = vmatprep.mubr.bf16.mxu0 %v670
        %8691 = vmatmul.mubr.bf16.gmra.mxu0 %v576
        %v8692 = vpop.f32.mrf.mxu0
        %v8693 = vadd.f32 0.0, %v8692
        %v8694 = vpop.f32.mrf.mxu0
        %v8695 = vadd.f32 0.0, %v8694
        %v8696 = vpop.f32.mrf.mxu0
        %v8697 = vadd.f32 0.0, %v8696
        %v8698 = vpop.f32.mrf.mxu0
        %v8699 = vadd.f32 0.0, %v8698
        %8700 = vmatprep.mubr.bf16.mxu0 %v671
        %8701 = vmatmul.mubr.bf16.gmra.mxu0 %v577
        %v8702 = vpop.f32.mrf.mxu0
        %v8703 = vadd.f32 0.0, %v8702
        %v8704 = vpop.f32.mrf.mxu0
        %v8705 = vadd.f32 0.0, %v8704
        %v8706 = vpop.f32.mrf.mxu0
        %v8707 = vadd.f32 0.0, %v8706
        %v8708 = vpop.f32.mrf.mxu0
        %v8709 = vadd.f32 0.0, %v8708
        %8710 = vmatprep.mubr.bf16.mxu0 %v672
        %8711 = vmatmul.mubr.bf16.gmra.mxu0 %v670
        %v8712 = vpop.f32.mrf.mxu0
        %v8713 = vadd.f32 0.0, %v8712
        %v8714 = vpop.f32.mrf.mxu0
        %v8715 = vadd.f32 0.0, %v8714
        %v8716 = vpop.f32.mrf.mxu0
        %v8717 = vpop.f32.mrf.mxu0
        %8718 = vdwg.mxu0
        %8719 = vmatprep.subr.bf16.mxu0 %v4145
        %8720 = vmatpush1.bf16.msra.mxu0 %v4144
        %8721 = vmatprep.subr.bf16.mxu0 %v4135
        %8722 = vmatpush1.bf16.msra.mxu0 %v4134
        %8723 = vmatprep.subr.bf16.mxu0 %v4125
        %8724 = vmatpush1.bf16.msra.mxu0 %v4124
        %8725 = vmatprep.subr.bf16.mxu0 %v4115
        %8726 = vmatpush1.bf16.msra.mxu0 %v4114
        %8727 = vmatprep.subr.bf16.mxu0 %v4105
        %8728 = vmatpush1.bf16.msra.mxu0 %v4104
        %8729 = vmatprep.subr.bf16.mxu0 %v4095
        %8730 = vmatpush1.bf16.msra.mxu0 %v4094
        %8731 = vmatprep.subr.bf16.mxu0 %v4085
        %8732 = vmatpush1.bf16.msra.mxu0 %v4084
        %8733 = vmatprep.subr.bf16.mxu0 %v4075
        %8734 = vmatpush1.bf16.msra.mxu0 %v4074
        %8735 = vmatprep.subr.bf16.mxu0 %v4225
        %8736 = vmatpush2.bf16.msra.mxu0 %v4224
        %8737 = vmatprep.subr.bf16.mxu0 %v4215
        %8738 = vmatpush2.bf16.msra.mxu0 %v4214
        %8739 = vmatprep.subr.bf16.mxu0 %v4205
        %8740 = vmatpush2.bf16.msra.mxu0 %v4204
        %8741 = vmatprep.subr.bf16.mxu0 %v4195
        %8742 = vmatpush2.bf16.msra.mxu0 %v4194
        %8743 = vmatprep.subr.bf16.mxu0 %v4185
        %8744 = vmatpush2.bf16.msra.mxu0 %v4184
        %8745 = vmatprep.subr.bf16.mxu0 %v4175
        %8746 = vmatpush2.bf16.msra.mxu0 %v4174
        %8747 = vmatprep.subr.bf16.mxu0 %v4165
        %8748 = vmatpush2.bf16.msra.mxu0 %v4164
        %8749 = vmatprep.subr.bf16.mxu0 %v4155
        %8750 = vmatpush2.bf16.msra.mxu0 %v4154
        %8751 = vmatprep.mubr.bf16.mxu0 %v568
        %8752 = vmatmul.mubr.bf16.gmra.mxu0 %v566
        %v8753 = vpop.f32.mrf.mxu0
        %v8754 = vadd.f32 %v8553, %v8753
        %v8755 = vpop.f32.mrf.mxu0
        %v8756 = vadd.f32 %v8555, %v8755
        %v8757 = vpop.f32.mrf.mxu0
        %v8758 = vadd.f32 %v8557, %v8757
        %v8759 = vpop.f32.mrf.mxu0
        %v8760 = vadd.f32 %v8559, %v8759
        %8761 = vmatprep.mubr.bf16.mxu0 %v569
        %8762 = vmatmul.mubr.bf16.gmra.mxu0 %v567
        %v8763 = vpop.f32.mrf.mxu0
        %v8764 = vadd.f32 %v8563, %v8763
        %v8765 = vpop.f32.mrf.mxu0
        %v8766 = vadd.f32 %v8565, %v8765
        %v8767 = vpop.f32.mrf.mxu0
        %v8768 = vadd.f32 %v8567, %v8767
        %v8769 = vpop.f32.mrf.mxu0
        %v8770 = vadd.f32 %v8569, %v8769
        %8771 = vmatprep.mubr.bf16.mxu0 %v570
        %8772 = vmatmul.mubr.bf16.gmra.mxu0 %v568
        %v8773 = vpop.f32.mrf.mxu0
        %v8774 = vadd.f32 %v8573, %v8773
        %v8775 = vpop.f32.mrf.mxu0
        %v8776 = vadd.f32 %v8575, %v8775
        %v8777 = vpop.f32.mrf.mxu0
        %v8778 = vadd.f32 %v8577, %v8777
        %v8779 = vpop.f32.mrf.mxu0
        %v8780 = vadd.f32 %v8579, %v8779
        %8781 = vmatprep.mubr.bf16.mxu0 %v571
        %8782 = vmatmul.mubr.bf16.gmra.mxu0 %v569
        %v8783 = vpop.f32.mrf.mxu0
        %v8784 = vadd.f32 %v8583, %v8783
        %v8785 = vpop.f32.mrf.mxu0
        %v8786 = vadd.f32 %v8585, %v8785
        %v8787 = vpop.f32.mrf.mxu0
        %v8788 = vadd.f32 %v8587, %v8787
        %v8789 = vpop.f32.mrf.mxu0
        %v8790 = vadd.f32 %v8589, %v8789
        %8791 = vmatprep.mubr.bf16.mxu0 %v572
        %8792 = vmatmul.mubr.bf16.gmra.mxu0 %v570
        %v8793 = vpop.f32.mrf.mxu0
        %v8794 = vadd.f32 %v8593, %v8793
        %v8795 = vpop.f32.mrf.mxu0
        %v8796 = vadd.f32 %v8595, %v8795
        %v8797 = vpop.f32.mrf.mxu0
        %v8798 = vadd.f32 %v8597, %v8797
        %v8799 = vpop.f32.mrf.mxu0
        %v8800 = vadd.f32 %v8599, %v8799
        %8801 = vmatprep.mubr.bf16.mxu0 %v573
        %8802 = vmatmul.mubr.bf16.gmra.mxu0 %v571
        %v8803 = vpop.f32.mrf.mxu0
        %v8804 = vadd.f32 %v8603, %v8803
        %v8805 = vpop.f32.mrf.mxu0
        %v8806 = vadd.f32 %v8605, %v8805
        %v8807 = vpop.f32.mrf.mxu0
        %v8808 = vadd.f32 %v8607, %v8807
        %v8809 = vpop.f32.mrf.mxu0
        %v8810 = vadd.f32 %v8609, %v8809
        %8811 = vmatprep.mubr.bf16.mxu0 %v574
        %8812 = vmatmul.mubr.bf16.gmra.mxu0 %v572
        %v8813 = vpop.f32.mrf.mxu0
        %v8814 = vadd.f32 %v8613, %v8813
        %v8815 = vpop.f32.mrf.mxu0
        %v8816 = vadd.f32 %v8615, %v8815
        %v8817 = vpop.f32.mrf.mxu0
        %v8818 = vadd.f32 %v8617, %v8817
        %v8819 = vpop.f32.mrf.mxu0
        %v8820 = vadd.f32 %v8619, %v8819
        %8821 = vmatprep.mubr.bf16.mxu0 %v575
        %8822 = vmatmul.mubr.bf16.gmra.mxu0 %v573
        %v8823 = vpop.f32.mrf.mxu0
        %v8824 = vadd.f32 %v8623, %v8823
        %v8825 = vpop.f32.mrf.mxu0
        %v8826 = vadd.f32 %v8625, %v8825
        %v8827 = vpop.f32.mrf.mxu0
        %v8828 = vadd.f32 %v8627, %v8827
        %v8829 = vpop.f32.mrf.mxu0
        %v8830 = vadd.f32 %v8629, %v8829
        %8831 = vmatprep.mubr.bf16.mxu0 %v576
        %8832 = vmatmul.mubr.bf16.gmra.mxu0 %v574
        %v8833 = vpop.f32.mrf.mxu0
        %v8834 = vadd.f32 %v8633, %v8833
        %v8835 = vpop.f32.mrf.mxu0
        %v8836 = vadd.f32 %v8635, %v8835
        %v8837 = vpop.f32.mrf.mxu0
        %v8838 = vadd.f32 %v8637, %v8837
        %v8839 = vpop.f32.mrf.mxu0
        %v8840 = vadd.f32 %v8639, %v8839
        %8841 = vmatprep.mubr.bf16.mxu0 %v577
        %8842 = vmatmul.mubr.bf16.gmra.mxu0 %v575
        %v8843 = vpop.f32.mrf.mxu0
        %v8844 = vadd.f32 %v8643, %v8843
        %v8845 = vpop.f32.mrf.mxu0
        %v8846 = vadd.f32 %v8645, %v8845
        %v8847 = vpop.f32.mrf.mxu0
        %v8848 = vadd.f32 %v8647, %v8847
        %v8849 = vpop.f32.mrf.mxu0
        %v8850 = vadd.f32 %v8649, %v8849
        %8851 = vmatprep.mubr.bf16.mxu0 %v670
        %8852 = vmatmul.mubr.bf16.gmra.mxu0 %v576
        %v8853 = vpop.f32.mrf.mxu0
        %v8854 = vadd.f32 %v8653, %v8853
        %v8855 = vpop.f32.mrf.mxu0
        %v8856 = vadd.f32 %v8655, %v8855
        %v8857 = vpop.f32.mrf.mxu0
        %v8858 = vadd.f32 %v8657, %v8857
        %v8859 = vpop.f32.mrf.mxu0
        %v8860 = vadd.f32 %v8659, %v8859
        %8861 = vmatprep.mubr.bf16.mxu0 %v671
        %8862 = vmatmul.mubr.bf16.gmra.mxu0 %v577
        %v8863 = vpop.f32.mrf.mxu0
        %v8864 = vadd.f32 %v8663, %v8863
        %v8865 = vpop.f32.mrf.mxu0
        %v8866 = vadd.f32 %v8665, %v8865
        %v8867 = vpop.f32.mrf.mxu0
        %v8868 = vadd.f32 %v8667, %v8867
        %v8869 = vpop.f32.mrf.mxu0
        %v8870 = vadd.f32 %v8669, %v8869
        %8871 = vmatprep.mubr.bf16.mxu0 %v672
        %8872 = vmatmul.mubr.bf16.gmra.mxu0 %v670
        %v8873 = vpop.f32.mrf.mxu0
        %v8874 = vadd.f32 %v8673, %v8873
        %v8875 = vpop.f32.mrf.mxu0
        %v8876 = vadd.f32 %v8675, %v8875
        %v8877 = vpop.f32.mrf.mxu0
        %v8878 = vadd.f32 %v8677, %v8877
        %v8879 = vpop.f32.mrf.mxu0
        %v8880 = vadd.f32 %v8679, %v8879
        %8881 = vmatprep.mubr.bf16.mxu0 %v673
        %8882 = vmatmul.mubr.bf16.gmra.mxu0 %v671
        %v8883 = vpop.f32.mrf.mxu0
        %v8884 = vadd.f32 %v8683, %v8883
        %v8885 = vpop.f32.mrf.mxu0
        %v8886 = vadd.f32 %v8685, %v8885
        %v8887 = vpop.f32.mrf.mxu0
        %v8888 = vadd.f32 %v8687, %v8887
        %v8889 = vpop.f32.mrf.mxu0
        %v8890 = vadd.f32 %v8689, %v8889
        %8891 = vmatprep.mubr.bf16.mxu0 %v674
        %8892 = vmatmul.mubr.bf16.gmra.mxu0 %v672
        %v8893 = vpop.f32.mrf.mxu0
        %v8894 = vadd.f32 %v8693, %v8893
        %v8895 = vpop.f32.mrf.mxu0
        %v8896 = vadd.f32 %v8695, %v8895
        %v8897 = vpop.f32.mrf.mxu0
        %v8898 = vadd.f32 %v8697, %v8897
        %v8899 = vpop.f32.mrf.mxu0
        %v8900 = vadd.f32 %v8699, %v8899
        %8901 = vmatprep.mubr.bf16.mxu0 %v675
        %8902 = vmatmul.mubr.bf16.gmra.mxu0 %v673
        %v8903 = vpop.f32.mrf.mxu0
        %v8904 = vadd.f32 %v8703, %v8903
        %v8905 = vpop.f32.mrf.mxu0
        %v8906 = vadd.f32 %v8705, %v8905
        %v8907 = vpop.f32.mrf.mxu0
        %v8908 = vadd.f32 %v8707, %v8907
        %v8909 = vpop.f32.mrf.mxu0
        %v8910 = vadd.f32 %v8709, %v8909
        %8911 = vmatprep.mubr.bf16.mxu0 %v676
        %8912 = vmatmul.mubr.bf16.gmra.mxu0 %v674
        %v8913 = vpop.f32.mrf.mxu0
        %v8914 = vadd.f32 %v8713, %v8913
        %v8915 = vpop.f32.mrf.mxu0
        %v8916 = vadd.f32 %v8715, %v8915
        %v8917 = vpop.f32.mrf.mxu0
        %v8918 = vpop.f32.mrf.mxu0
        %8919 = vdwg.mxu0
        %8920 = vmatprep.subr.bf16.mxu0 %v4305
        %8921 = vmatpush1.bf16.msra.mxu0 %v4304
        %8922 = vmatprep.subr.bf16.mxu0 %v4295
        %8923 = vmatpush1.bf16.msra.mxu0 %v4294
        %8924 = vmatprep.subr.bf16.mxu0 %v4285
        %8925 = vmatpush1.bf16.msra.mxu0 %v4284
        %8926 = vmatprep.subr.bf16.mxu0 %v4275
        %8927 = vmatpush1.bf16.msra.mxu0 %v4274
        %8928 = vmatprep.subr.bf16.mxu0 %v4265
        %8929 = vmatpush1.bf16.msra.mxu0 %v4264
        %8930 = vmatprep.subr.bf16.mxu0 %v4255
        %8931 = vmatpush1.bf16.msra.mxu0 %v4254
        %8932 = vmatprep.subr.bf16.mxu0 %v4245
        %8933 = vmatpush1.bf16.msra.mxu0 %v4244
        %8934 = vmatprep.subr.bf16.mxu0 %v4235
        %8935 = vmatpush1.bf16.msra.mxu0 %v4234
        %8936 = vmatprep.subr.bf16.mxu0 %v4385
        %8937 = vmatpush2.bf16.msra.mxu0 %v4384
        %8938 = vmatprep.subr.bf16.mxu0 %v4375
        %8939 = vmatpush2.bf16.msra.mxu0 %v4374
        %8940 = vmatprep.subr.bf16.mxu0 %v4365
        %8941 = vmatpush2.bf16.msra.mxu0 %v4364
        %8942 = vmatprep.subr.bf16.mxu0 %v4355
        %8943 = vmatpush2.bf16.msra.mxu0 %v4354
        %8944 = vmatprep.subr.bf16.mxu0 %v4345
        %8945 = vmatpush2.bf16.msra.mxu0 %v4344
        %8946 = vmatprep.subr.bf16.mxu0 %v4335
        %8947 = vmatpush2.bf16.msra.mxu0 %v4334
        %8948 = vmatprep.subr.bf16.mxu0 %v4325
        %8949 = vmatpush2.bf16.msra.mxu0 %v4324
        %8950 = vmatprep.subr.bf16.mxu0 %v4315
        %8951 = vmatpush2.bf16.msra.mxu0 %v4314
        %8952 = vmatprep.mubr.bf16.mxu0 %v572
        %8953 = vmatmul.mubr.bf16.gmra.mxu0 %v570
        %v8954 = vpop.f32.mrf.mxu0
        %v8955 = vadd.f32 %v8754, %v8954
        %v8956 = vpop.f32.mrf.mxu0
        %v8957 = vadd.f32 %v8756, %v8956
        %v8958 = vpop.f32.mrf.mxu0
        %v8959 = vadd.f32 %v8758, %v8958
        %v8960 = vpop.f32.mrf.mxu0
        %v8961 = vadd.f32 %v8760, %v8960
        %8962 = vmatprep.mubr.bf16.mxu0 %v573
        %8963 = vmatmul.mubr.bf16.gmra.mxu0 %v571
        %v8964 = vpop.f32.mrf.mxu0
        %v8965 = vadd.f32 %v8764, %v8964
        %v8966 = vpop.f32.mrf.mxu0
        %v8967 = vadd.f32 %v8766, %v8966
        %v8968 = vpop.f32.mrf.mxu0
        %v8969 = vadd.f32 %v8768, %v8968
        %v8970 = vpop.f32.mrf.mxu0
        %v8971 = vadd.f32 %v8770, %v8970
        %8972 = vmatprep.mubr.bf16.mxu0 %v574
        %8973 = vmatmul.mubr.bf16.gmra.mxu0 %v572
        %v8974 = vpop.f32.mrf.mxu0
        %v8975 = vadd.f32 %v8774, %v8974
        %v8976 = vpop.f32.mrf.mxu0
        %v8977 = vadd.f32 %v8776, %v8976
        %v8978 = vpop.f32.mrf.mxu0
        %v8979 = vadd.f32 %v8778, %v8978
        %v8980 = vpop.f32.mrf.mxu0
        %v8981 = vadd.f32 %v8780, %v8980
        %8982 = vmatprep.mubr.bf16.mxu0 %v575
        %8983 = vmatmul.mubr.bf16.gmra.mxu0 %v573
        %v8984 = vpop.f32.mrf.mxu0
        %v8985 = vadd.f32 %v8784, %v8984
        %v8986 = vpop.f32.mrf.mxu0
        %v8987 = vadd.f32 %v8786, %v8986
        %v8988 = vpop.f32.mrf.mxu0
        %v8989 = vadd.f32 %v8788, %v8988
        %v8990 = vpop.f32.mrf.mxu0
        %v8991 = vadd.f32 %v8790, %v8990
        %8992 = vmatprep.mubr.bf16.mxu0 %v576
        %8993 = vmatmul.mubr.bf16.gmra.mxu0 %v574
        %v8994 = vpop.f32.mrf.mxu0
        %v8995 = vadd.f32 %v8794, %v8994
        %v8996 = vpop.f32.mrf.mxu0
        %v8997 = vadd.f32 %v8796, %v8996
        %v8998 = vpop.f32.mrf.mxu0
        %v8999 = vadd.f32 %v8798, %v8998
        %v9000 = vpop.f32.mrf.mxu0
        %v9001 = vadd.f32 %v8800, %v9000
        %9002 = vmatprep.mubr.bf16.mxu0 %v577
        %9003 = vmatmul.mubr.bf16.gmra.mxu0 %v575
        %v9004 = vpop.f32.mrf.mxu0
        %v9005 = vadd.f32 %v8804, %v9004
        %v9006 = vpop.f32.mrf.mxu0
        %v9007 = vadd.f32 %v8806, %v9006
        %v9008 = vpop.f32.mrf.mxu0
        %v9009 = vadd.f32 %v8808, %v9008
        %v9010 = vpop.f32.mrf.mxu0
        %v9011 = vadd.f32 %v8810, %v9010
        %9012 = vmatprep.mubr.bf16.mxu0 %v670
        %9013 = vmatmul.mubr.bf16.gmra.mxu0 %v576
        %v9014 = vpop.f32.mrf.mxu0
        %v9015 = vadd.f32 %v8814, %v9014
        %v9016 = vpop.f32.mrf.mxu0
        %v9017 = vadd.f32 %v8816, %v9016
        %v9018 = vpop.f32.mrf.mxu0
        %v9019 = vadd.f32 %v8818, %v9018
        %v9020 = vpop.f32.mrf.mxu0
        %v9021 = vadd.f32 %v8820, %v9020
        %9022 = vmatprep.mubr.bf16.mxu0 %v671
        %9023 = vmatmul.mubr.bf16.gmra.mxu0 %v577
        %v9024 = vpop.f32.mrf.mxu0
        %v9025 = vadd.f32 %v8824, %v9024
        %v9026 = vpop.f32.mrf.mxu0
        %v9027 = vadd.f32 %v8826, %v9026
        %v9028 = vpop.f32.mrf.mxu0
        %v9029 = vadd.f32 %v8828, %v9028
        %v9030 = vpop.f32.mrf.mxu0
        %v9031 = vadd.f32 %v8830, %v9030
        %9032 = vmatprep.mubr.bf16.mxu0 %v672
        %9033 = vmatmul.mubr.bf16.gmra.mxu0 %v670
        %v9034 = vpop.f32.mrf.mxu0
        %v9035 = vadd.f32 %v8834, %v9034
        %v9036 = vpop.f32.mrf.mxu0
        %v9037 = vadd.f32 %v8836, %v9036
        %v9038 = vpop.f32.mrf.mxu0
        %v9039 = vadd.f32 %v8838, %v9038
        %v9040 = vpop.f32.mrf.mxu0
        %v9041 = vadd.f32 %v8840, %v9040
        %9042 = vmatprep.mubr.bf16.mxu0 %v673
        %9043 = vmatmul.mubr.bf16.gmra.mxu0 %v671
        %v9044 = vpop.f32.mrf.mxu0
        %v9045 = vadd.f32 %v8844, %v9044
        %v9046 = vpop.f32.mrf.mxu0
        %v9047 = vadd.f32 %v8846, %v9046
        %v9048 = vpop.f32.mrf.mxu0
        %v9049 = vadd.f32 %v8848, %v9048
        %v9050 = vpop.f32.mrf.mxu0
        %v9051 = vadd.f32 %v8850, %v9050
        %9052 = vmatprep.mubr.bf16.mxu0 %v674
        %9053 = vmatmul.mubr.bf16.gmra.mxu0 %v672
        %v9054 = vpop.f32.mrf.mxu0
        %v9055 = vadd.f32 %v8854, %v9054
        %v9056 = vpop.f32.mrf.mxu0
        %v9057 = vadd.f32 %v8856, %v9056
        %v9058 = vpop.f32.mrf.mxu0
        %v9059 = vadd.f32 %v8858, %v9058
        %v9060 = vpop.f32.mrf.mxu0
        %v9061 = vadd.f32 %v8860, %v9060
        %9062 = vmatprep.mubr.bf16.mxu0 %v675
        %9063 = vmatmul.mubr.bf16.gmra.mxu0 %v673
        %v9064 = vpop.f32.mrf.mxu0
        %v9065 = vadd.f32 %v8864, %v9064
        %v9066 = vpop.f32.mrf.mxu0
        %v9067 = vadd.f32 %v8866, %v9066
        %v9068 = vpop.f32.mrf.mxu0
        %v9069 = vadd.f32 %v8868, %v9068
        %v9070 = vpop.f32.mrf.mxu0
        %v9071 = vadd.f32 %v8870, %v9070
        %9072 = vmatprep.mubr.bf16.mxu0 %v676
        %9073 = vmatmul.mubr.bf16.gmra.mxu0 %v674
        %v9074 = vpop.f32.mrf.mxu0
        %v9075 = vadd.f32 %v8874, %v9074
        %v9076 = vpop.f32.mrf.mxu0
        %v9077 = vadd.f32 %v8876, %v9076
        %v9078 = vpop.f32.mrf.mxu0
        %v9079 = vadd.f32 %v8878, %v9078
        %v9080 = vpop.f32.mrf.mxu0
        %v9081 = vadd.f32 %v8880, %v9080
        %9082 = vmatprep.mubr.bf16.mxu0 %v677
        %9083 = vmatmul.mubr.bf16.gmra.mxu0 %v675
        %v9084 = vpop.f32.mrf.mxu0
        %v9085 = vadd.f32 %v8884, %v9084
        %v9086 = vpop.f32.mrf.mxu0
        %v9087 = vadd.f32 %v8886, %v9086
        %v9088 = vpop.f32.mrf.mxu0
        %v9089 = vadd.f32 %v8888, %v9088
        %v9090 = vpop.f32.mrf.mxu0
        %v9091 = vadd.f32 %v8890, %v9090
        %9092 = vmatprep.mubr.bf16.mxu0 %v678
        %9093 = vmatmul.mubr.bf16.gmra.mxu0 %v676
        %v9094 = vpop.f32.mrf.mxu0
        %v9095 = vadd.f32 %v8894, %v9094
        %v9096 = vpop.f32.mrf.mxu0
        %v9097 = vadd.f32 %v8896, %v9096
        %v9098 = vpop.f32.mrf.mxu0
        %v9099 = vadd.f32 %v8898, %v9098
        %v9100 = vpop.f32.mrf.mxu0
        %v9101 = vadd.f32 %v8900, %v9100
        %9102 = vmatprep.mubr.bf16.mxu0 %v679
        %9103 = vmatmul.mubr.bf16.gmra.mxu0 %v677
        %v9104 = vpop.f32.mrf.mxu0
        %v9105 = vadd.f32 %v8904, %v9104
        %v9106 = vpop.f32.mrf.mxu0
        %v9107 = vadd.f32 %v8906, %v9106
        %v9108 = vpop.f32.mrf.mxu0
        %v9109 = vadd.f32 %v8908, %v9108
        %v9110 = vpop.f32.mrf.mxu0
        %v9111 = vadd.f32 %v8910, %v9110
        %9112 = vmatprep.mubr.bf16.mxu0 %v680
        %9113 = vmatmul.mubr.bf16.gmra.mxu0 %v678
        %v9114 = vpop.f32.mrf.mxu0
        %v9115 = vadd.f32 %v8914, %v9114
        %v9116 = vpop.f32.mrf.mxu0
        %v9117 = vadd.f32 %v8916, %v9116
        %v9118 = vpop.f32.mrf.mxu0
        %v9119 = vpop.f32.mrf.mxu0
        %9120 = vdwg.mxu0
        %9121 = vmatprep.subr.bf16.mxu0 %v4465
        %9122 = vmatpush1.bf16.msra.mxu0 %v4464
        %9123 = vmatprep.subr.bf16.mxu0 %v4455
        %9124 = vmatpush1.bf16.msra.mxu0 %v4454
        %9125 = vmatprep.subr.bf16.mxu0 %v4445
        %9126 = vmatpush1.bf16.msra.mxu0 %v4444
        %9127 = vmatprep.subr.bf16.mxu0 %v4435
        %9128 = vmatpush1.bf16.msra.mxu0 %v4434
        %9129 = vmatprep.subr.bf16.mxu0 %v4425
        %9130 = vmatpush1.bf16.msra.mxu0 %v4424
        %9131 = vmatprep.subr.bf16.mxu0 %v4415
        %9132 = vmatpush1.bf16.msra.mxu0 %v4414
        %9133 = vmatprep.subr.bf16.mxu0 %v4405
        %9134 = vmatpush1.bf16.msra.mxu0 %v4404
        %9135 = vmatprep.subr.bf16.mxu0 %v4395
        %9136 = vmatpush1.bf16.msra.mxu0 %v4394
        %9137 = vmatprep.subr.bf16.mxu0 %v4545
        %9138 = vmatpush2.bf16.msra.mxu0 %v4544
        %9139 = vmatprep.subr.bf16.mxu0 %v4535
        %9140 = vmatpush2.bf16.msra.mxu0 %v4534
        %9141 = vmatprep.subr.bf16.mxu0 %v4525
        %9142 = vmatpush2.bf16.msra.mxu0 %v4524
        %9143 = vmatprep.subr.bf16.mxu0 %v4515
        %9144 = vmatpush2.bf16.msra.mxu0 %v4514
        %9145 = vmatprep.subr.bf16.mxu0 %v4505
        %9146 = vmatpush2.bf16.msra.mxu0 %v4504
        %9147 = vmatprep.subr.bf16.mxu0 %v4495
        %9148 = vmatpush2.bf16.msra.mxu0 %v4494
        %9149 = vmatprep.subr.bf16.mxu0 %v4485
        %9150 = vmatpush2.bf16.msra.mxu0 %v4484
        %9151 = vmatprep.subr.bf16.mxu0 %v4475
        %9152 = vmatpush2.bf16.msra.mxu0 %v4474
        %9153 = vmatprep.mubr.bf16.mxu0 %v576
        %9154 = vmatmul.mubr.bf16.gmra.mxu0 %v574
        %v9155 = vpop.f32.mrf.mxu0
        %v9156 = vadd.f32 %v8955, %v9155
        %v9157 = vpop.f32.mrf.mxu0
        %v9158 = vadd.f32 %v8957, %v9157
        %v9159 = vpop.f32.mrf.mxu0
        %v9160 = vadd.f32 %v8959, %v9159
        %v9161 = vpop.f32.mrf.mxu0
        %v9162 = vadd.f32 %v8961, %v9161
        %9163 = vmatprep.mubr.bf16.mxu0 %v577
        %9164 = vmatmul.mubr.bf16.gmra.mxu0 %v575
        %v9165 = vpop.f32.mrf.mxu0
        %v9166 = vadd.f32 %v8965, %v9165
        %v9167 = vpop.f32.mrf.mxu0
        %v9168 = vadd.f32 %v8967, %v9167
        %v9169 = vpop.f32.mrf.mxu0
        %v9170 = vadd.f32 %v8969, %v9169
        %v9171 = vpop.f32.mrf.mxu0
        %v9172 = vadd.f32 %v8971, %v9171
        %9173 = vmatprep.mubr.bf16.mxu0 %v670
        %9174 = vmatmul.mubr.bf16.gmra.mxu0 %v576
        %v9175 = vpop.f32.mrf.mxu0
        %v9176 = vadd.f32 %v8975, %v9175
        %v9177 = vpop.f32.mrf.mxu0
        %v9178 = vadd.f32 %v8977, %v9177
        %v9179 = vpop.f32.mrf.mxu0
        %v9180 = vadd.f32 %v8979, %v9179
        %v9181 = vpop.f32.mrf.mxu0
        %v9182 = vadd.f32 %v8981, %v9181
        %9183 = vmatprep.mubr.bf16.mxu0 %v671
        %9184 = vmatmul.mubr.bf16.gmra.mxu0 %v577
        %v9185 = vpop.f32.mrf.mxu0
        %v9186 = vadd.f32 %v8985, %v9185
        %v9187 = vpop.f32.mrf.mxu0
        %v9188 = vadd.f32 %v8987, %v9187
        %v9189 = vpop.f32.mrf.mxu0
        %v9190 = vadd.f32 %v8989, %v9189
        %v9191 = vpop.f32.mrf.mxu0
        %v9192 = vadd.f32 %v8991, %v9191
        %9193 = vmatprep.mubr.bf16.mxu0 %v672
        %9194 = vmatmul.mubr.bf16.gmra.mxu0 %v670
        %v9195 = vpop.f32.mrf.mxu0
        %v9196 = vadd.f32 %v8995, %v9195
        %v9197 = vpop.f32.mrf.mxu0
        %v9198 = vadd.f32 %v8997, %v9197
        %v9199 = vpop.f32.mrf.mxu0
        %v9200 = vadd.f32 %v8999, %v9199
        %v9201 = vpop.f32.mrf.mxu0
        %v9202 = vadd.f32 %v9001, %v9201
        %9203 = vmatprep.mubr.bf16.mxu0 %v673
        %9204 = vmatmul.mubr.bf16.gmra.mxu0 %v671
        %v9205 = vpop.f32.mrf.mxu0
        %v9206 = vadd.f32 %v9005, %v9205
        %v9207 = vpop.f32.mrf.mxu0
        %v9208 = vadd.f32 %v9007, %v9207
        %v9209 = vpop.f32.mrf.mxu0
        %v9210 = vadd.f32 %v9009, %v9209
        %v9211 = vpop.f32.mrf.mxu0
        %v9212 = vadd.f32 %v9011, %v9211
        %9213 = vmatprep.mubr.bf16.mxu0 %v674
        %9214 = vmatmul.mubr.bf16.gmra.mxu0 %v672
        %v9215 = vpop.f32.mrf.mxu0
        %v9216 = vadd.f32 %v9015, %v9215
        %v9217 = vpop.f32.mrf.mxu0
        %v9218 = vadd.f32 %v9017, %v9217
        %v9219 = vpop.f32.mrf.mxu0
        %v9220 = vadd.f32 %v9019, %v9219
        %v9221 = vpop.f32.mrf.mxu0
        %v9222 = vadd.f32 %v9021, %v9221
        %9223 = vmatprep.mubr.bf16.mxu0 %v675
        %9224 = vmatmul.mubr.bf16.gmra.mxu0 %v673
        %v9225 = vpop.f32.mrf.mxu0
        %v9226 = vadd.f32 %v9025, %v9225
        %v9227 = vpop.f32.mrf.mxu0
        %v9228 = vadd.f32 %v9027, %v9227
        %v9229 = vpop.f32.mrf.mxu0
        %v9230 = vadd.f32 %v9029, %v9229
        %v9231 = vpop.f32.mrf.mxu0
        %v9232 = vadd.f32 %v9031, %v9231
        %9233 = vmatprep.mubr.bf16.mxu0 %v676
        %9234 = vmatmul.mubr.bf16.gmra.mxu0 %v674
        %v9235 = vpop.f32.mrf.mxu0
        %v9236 = vadd.f32 %v9035, %v9235
        %v9237 = vpop.f32.mrf.mxu0
        %v9238 = vadd.f32 %v9037, %v9237
        %v9239 = vpop.f32.mrf.mxu0
        %v9240 = vadd.f32 %v9039, %v9239
        %v9241 = vpop.f32.mrf.mxu0
        %v9242 = vadd.f32 %v9041, %v9241
        %9243 = vmatprep.mubr.bf16.mxu0 %v677
        %9244 = vmatmul.mubr.bf16.gmra.mxu0 %v675
        %v9245 = vpop.f32.mrf.mxu0
        %v9246 = vadd.f32 %v9045, %v9245
        %v9247 = vpop.f32.mrf.mxu0
        %v9248 = vadd.f32 %v9047, %v9247
        %v9249 = vpop.f32.mrf.mxu0
        %v9250 = vadd.f32 %v9049, %v9249
        %v9251 = vpop.f32.mrf.mxu0
        %v9252 = vadd.f32 %v9051, %v9251
        %9253 = vmatprep.mubr.bf16.mxu0 %v678
        %9254 = vmatmul.mubr.bf16.gmra.mxu0 %v676
        %v9255 = vpop.f32.mrf.mxu0
        %v9256 = vadd.f32 %v9055, %v9255
        %v9257 = vpop.f32.mrf.mxu0
        %v9258 = vadd.f32 %v9057, %v9257
        %v9259 = vpop.f32.mrf.mxu0
        %v9260 = vadd.f32 %v9059, %v9259
        %v9261 = vpop.f32.mrf.mxu0
        %v9262 = vadd.f32 %v9061, %v9261
        %9263 = vmatprep.mubr.bf16.mxu0 %v679
        %9264 = vmatmul.mubr.bf16.gmra.mxu0 %v677
        %v9265 = vpop.f32.mrf.mxu0
        %v9266 = vadd.f32 %v9065, %v9265
        %v9267 = vpop.f32.mrf.mxu0
        %v9268 = vadd.f32 %v9067, %v9267
        %v9269 = vpop.f32.mrf.mxu0
        %v9270 = vadd.f32 %v9069, %v9269
        %v9271 = vpop.f32.mrf.mxu0
        %v9272 = vadd.f32 %v9071, %v9271
        %9273 = vmatprep.mubr.bf16.mxu0 %v680
        %9274 = vmatmul.mubr.bf16.gmra.mxu0 %v678
        %v9275 = vpop.f32.mrf.mxu0
        %v9276 = vadd.f32 %v9075, %v9275
        %v9277 = vpop.f32.mrf.mxu0
        %v9278 = vadd.f32 %v9077, %v9277
        %v9279 = vpop.f32.mrf.mxu0
        %v9280 = vadd.f32 %v9079, %v9279
        %v9281 = vpop.f32.mrf.mxu0
        %v9282 = vadd.f32 %v9081, %v9281
        %9283 = vmatprep.mubr.bf16.mxu0 %v681
        %9284 = vmatmul.mubr.bf16.gmra.mxu0 %v679
        %v9285 = vpop.f32.mrf.mxu0
        %v9286 = vadd.f32 %v9085, %v9285
        %v9287 = vpop.f32.mrf.mxu0
        %v9288 = vadd.f32 %v9087, %v9287
        %v9289 = vpop.f32.mrf.mxu0
        %v9290 = vadd.f32 %v9089, %v9289
        %v9291 = vpop.f32.mrf.mxu0
        %v9292 = vadd.f32 %v9091, %v9291
        %9293 = vmatprep.mubr.bf16.mxu0 %v682
        %9294 = vmatmul.mubr.bf16.gmra.mxu0 %v680
        %v9295 = vpop.f32.mrf.mxu0
        %v9296 = vadd.f32 %v9095, %v9295
        %v9297 = vpop.f32.mrf.mxu0
        %v9298 = vadd.f32 %v9097, %v9297
        %v9299 = vpop.f32.mrf.mxu0
        %v9300 = vadd.f32 %v9099, %v9299
        %v9301 = vpop.f32.mrf.mxu0
        %v9302 = vadd.f32 %v9101, %v9301
        %9303 = vmatprep.mubr.bf16.mxu0 %v683
        %9304 = vmatmul.mubr.bf16.gmra.mxu0 %v681
        %v9305 = vpop.f32.mrf.mxu0
        %v9306 = vadd.f32 %v9105, %v9305
        %v9307 = vpop.f32.mrf.mxu0
        %v9308 = vadd.f32 %v9107, %v9307
        %v9309 = vpop.f32.mrf.mxu0
        %v9310 = vadd.f32 %v9109, %v9309
        %v9311 = vpop.f32.mrf.mxu0
        %v9312 = vadd.f32 %v9111, %v9311
        %9313 = vmatprep.mubr.bf16.mxu0 %v684
        %9314 = vmatmul.mubr.bf16.gmra.mxu0 %v682
        %v9315 = vpop.f32.mrf.mxu0
        %v9316 = vadd.f32 %v9115, %v9315
        %v9317 = vpop.f32.mrf.mxu0
        %v9318 = vadd.f32 %v9117, %v9317
        %v9319 = vpop.f32.mrf.mxu0
        %v9320 = vpop.f32.mrf.mxu0
        %9321 = vdwg.mxu0
        %9322 = vmatprep.subr.bf16.mxu0 %v4625
        %9323 = vmatpush1.bf16.msra.mxu0 %v4624
        %9324 = vmatprep.subr.bf16.mxu0 %v4615
        %9325 = vmatpush1.bf16.msra.mxu0 %v4614
        %9326 = vmatprep.subr.bf16.mxu0 %v4605
        %9327 = vmatpush1.bf16.msra.mxu0 %v4604
        %9328 = vmatprep.subr.bf16.mxu0 %v4595
        %9329 = vmatpush1.bf16.msra.mxu0 %v4594
        %9330 = vmatprep.subr.bf16.mxu0 %v4585
        %9331 = vmatpush1.bf16.msra.mxu0 %v4584
        %9332 = vmatprep.subr.bf16.mxu0 %v4575
        %9333 = vmatpush1.bf16.msra.mxu0 %v4574
        %9334 = vmatprep.subr.bf16.mxu0 %v4565
        %9335 = vmatpush1.bf16.msra.mxu0 %v4564
        %9336 = vmatprep.subr.bf16.mxu0 %v4555
        %9337 = vmatpush1.bf16.msra.mxu0 %v4554
        %9338 = vmatprep.subr.bf16.mxu0 %v4705
        %9339 = vmatpush2.bf16.msra.mxu0 %v4704
        %9340 = vmatprep.subr.bf16.mxu0 %v4695
        %9341 = vmatpush2.bf16.msra.mxu0 %v4694
        %9342 = vmatprep.subr.bf16.mxu0 %v4685
        %9343 = vmatpush2.bf16.msra.mxu0 %v4684
        %9344 = vmatprep.subr.bf16.mxu0 %v4675
        %9345 = vmatpush2.bf16.msra.mxu0 %v4674
        %9346 = vmatprep.subr.bf16.mxu0 %v4665
        %9347 = vmatpush2.bf16.msra.mxu0 %v4664
        %9348 = vmatprep.subr.bf16.mxu0 %v4655
        %9349 = vmatpush2.bf16.msra.mxu0 %v4654
        %9350 = vmatprep.subr.bf16.mxu0 %v4645
        %9351 = vmatpush2.bf16.msra.mxu0 %v4644
        %9352 = vmatprep.subr.bf16.mxu0 %v4635
        %9353 = vmatpush2.bf16.msra.mxu0 %v4634
        %9354 = vmatprep.mubr.bf16.mxu0 %v672
        %9355 = vmatmul.mubr.bf16.gmra.mxu0 %v670
        %v9356 = vpop.f32.mrf.mxu0
        %v9357 = vadd.f32 %v9156, %v9356
        %v9358 = vpop.f32.mrf.mxu0
        %v9359 = vadd.f32 %v9158, %v9358
        %v9360 = vpop.f32.mrf.mxu0
        %v9361 = vadd.f32 %v9160, %v9360
        %v9362 = vpop.f32.mrf.mxu0
        %v9363 = vadd.f32 %v9162, %v9362
        %9364 = vmatprep.mubr.bf16.mxu0 %v673
        %9365 = vmatmul.mubr.bf16.gmra.mxu0 %v671
        %v9366 = vpop.f32.mrf.mxu0
        %v9367 = vadd.f32 %v9166, %v9366
        %v9368 = vpop.f32.mrf.mxu0
        %v9369 = vadd.f32 %v9168, %v9368
        %v9370 = vpop.f32.mrf.mxu0
        %v9371 = vadd.f32 %v9170, %v9370
        %v9372 = vpop.f32.mrf.mxu0
        %v9373 = vadd.f32 %v9172, %v9372
        %9374 = vmatprep.mubr.bf16.mxu0 %v674
        %9375 = vmatmul.mubr.bf16.gmra.mxu0 %v672
        %v9376 = vpop.f32.mrf.mxu0
        %v9377 = vadd.f32 %v9176, %v9376
        %v9378 = vpop.f32.mrf.mxu0
        %v9379 = vadd.f32 %v9178, %v9378
        %v9380 = vpop.f32.mrf.mxu0
        %v9381 = vadd.f32 %v9180, %v9380
        %v9382 = vpop.f32.mrf.mxu0
        %v9383 = vadd.f32 %v9182, %v9382
        %9384 = vmatprep.mubr.bf16.mxu0 %v675
        %9385 = vmatmul.mubr.bf16.gmra.mxu0 %v673
        %v9386 = vpop.f32.mrf.mxu0
        %v9387 = vadd.f32 %v9186, %v9386
        %v9388 = vpop.f32.mrf.mxu0
        %v9389 = vadd.f32 %v9188, %v9388
        %v9390 = vpop.f32.mrf.mxu0
        %v9391 = vadd.f32 %v9190, %v9390
        %v9392 = vpop.f32.mrf.mxu0
        %v9393 = vadd.f32 %v9192, %v9392
        %9394 = vmatprep.mubr.bf16.mxu0 %v676
        %9395 = vmatmul.mubr.bf16.gmra.mxu0 %v674
        %v9396 = vpop.f32.mrf.mxu0
        %v9397 = vadd.f32 %v9196, %v9396
        %v9398 = vpop.f32.mrf.mxu0
        %v9399 = vadd.f32 %v9198, %v9398
        %v9400 = vpop.f32.mrf.mxu0
        %v9401 = vadd.f32 %v9200, %v9400
        %v9402 = vpop.f32.mrf.mxu0
        %v9403 = vadd.f32 %v9202, %v9402
        %9404 = vmatprep.mubr.bf16.mxu0 %v677
        %9405 = vmatmul.mubr.bf16.gmra.mxu0 %v675
        %v9406 = vpop.f32.mrf.mxu0
        %v9407 = vadd.f32 %v9206, %v9406
        %v9408 = vpop.f32.mrf.mxu0
        %v9409 = vadd.f32 %v9208, %v9408
        %v9410 = vpop.f32.mrf.mxu0
        %v9411 = vadd.f32 %v9210, %v9410
        %v9412 = vpop.f32.mrf.mxu0
        %v9413 = vadd.f32 %v9212, %v9412
        %9414 = vmatprep.mubr.bf16.mxu0 %v678
        %9415 = vmatmul.mubr.bf16.gmra.mxu0 %v676
        %v9416 = vpop.f32.mrf.mxu0
        %v9417 = vadd.f32 %v9216, %v9416
        %v9418 = vpop.f32.mrf.mxu0
        %v9419 = vadd.f32 %v9218, %v9418
        %v9420 = vpop.f32.mrf.mxu0
        %v9421 = vadd.f32 %v9220, %v9420
        %v9422 = vpop.f32.mrf.mxu0
        %v9423 = vadd.f32 %v9222, %v9422
        %9424 = vmatprep.mubr.bf16.mxu0 %v679
        %9425 = vmatmul.mubr.bf16.gmra.mxu0 %v677
        %v9426 = vpop.f32.mrf.mxu0
        %v9427 = vadd.f32 %v9226, %v9426
        %v9428 = vpop.f32.mrf.mxu0
        %v9429 = vadd.f32 %v9228, %v9428
        %v9430 = vpop.f32.mrf.mxu0
        %v9431 = vadd.f32 %v9230, %v9430
        %v9432 = vpop.f32.mrf.mxu0
        %v9433 = vadd.f32 %v9232, %v9432
        %9434 = vmatprep.mubr.bf16.mxu0 %v680
        %9435 = vmatmul.mubr.bf16.gmra.mxu0 %v678
        %v9436 = vpop.f32.mrf.mxu0
        %v9437 = vadd.f32 %v9236, %v9436
        %v9438 = vpop.f32.mrf.mxu0
        %v9439 = vadd.f32 %v9238, %v9438
        %v9440 = vpop.f32.mrf.mxu0
        %v9441 = vadd.f32 %v9240, %v9440
        %v9442 = vpop.f32.mrf.mxu0
        %v9443 = vadd.f32 %v9242, %v9442
        %9444 = vmatprep.mubr.bf16.mxu0 %v681
        %9445 = vmatmul.mubr.bf16.gmra.mxu0 %v679
        %v9446 = vpop.f32.mrf.mxu0
        %v9447 = vadd.f32 %v9246, %v9446
        %v9448 = vpop.f32.mrf.mxu0
        %v9449 = vadd.f32 %v9248, %v9448
        %v9450 = vpop.f32.mrf.mxu0
        %v9451 = vadd.f32 %v9250, %v9450
        %v9452 = vpop.f32.mrf.mxu0
        %v9453 = vadd.f32 %v9252, %v9452
        %9454 = vmatprep.mubr.bf16.mxu0 %v682
        %9455 = vmatmul.mubr.bf16.gmra.mxu0 %v680
        %v9456 = vpop.f32.mrf.mxu0
        %v9457 = vadd.f32 %v9256, %v9456
        %v9458 = vpop.f32.mrf.mxu0
        %v9459 = vadd.f32 %v9258, %v9458
        %v9460 = vpop.f32.mrf.mxu0
        %v9461 = vadd.f32 %v9260, %v9460
        %v9462 = vpop.f32.mrf.mxu0
        %v9463 = vadd.f32 %v9262, %v9462
        %9464 = vmatprep.mubr.bf16.mxu0 %v683
        %9465 = vmatmul.mubr.bf16.gmra.mxu0 %v681
        %v9466 = vpop.f32.mrf.mxu0
        %v9467 = vadd.f32 %v9266, %v9466
        %v9468 = vpop.f32.mrf.mxu0
        %v9469 = vadd.f32 %v9268, %v9468
        %v9470 = vpop.f32.mrf.mxu0
        %v9471 = vadd.f32 %v9270, %v9470
        %v9472 = vpop.f32.mrf.mxu0
        %v9473 = vadd.f32 %v9272, %v9472
        %9474 = vmatprep.mubr.bf16.mxu0 %v684
        %9475 = vmatmul.mubr.bf16.gmra.mxu0 %v682
        %v9476 = vpop.f32.mrf.mxu0
        %v9477 = vadd.f32 %v9276, %v9476
        %v9478 = vpop.f32.mrf.mxu0
        %v9479 = vadd.f32 %v9278, %v9478
        %v9480 = vpop.f32.mrf.mxu0
        %v9481 = vadd.f32 %v9280, %v9480
        %v9482 = vpop.f32.mrf.mxu0
        %v9483 = vadd.f32 %v9282, %v9482
        %9484 = vmatprep.mubr.bf16.mxu0 %v685
        %9485 = vmatmul.mubr.bf16.gmra.mxu0 %v683
        %v9486 = vpop.f32.mrf.mxu0
        %v9487 = vadd.f32 %v9286, %v9486
        %v9488 = vpop.f32.mrf.mxu0
        %v9489 = vadd.f32 %v9288, %v9488
        %v9490 = vpop.f32.mrf.mxu0
        %v9491 = vadd.f32 %v9290, %v9490
        %v9492 = vpop.f32.mrf.mxu0
        %v9493 = vadd.f32 %v9292, %v9492
        %9494 = vmatprep.mubr.bf16.mxu0 %v686
        %9495 = vmatmul.mubr.bf16.gmra.mxu0 %v684
        %v9496 = vpop.f32.mrf.mxu0
        %v9497 = vadd.f32 %v9296, %v9496
        %v9498 = vpop.f32.mrf.mxu0
        %v9499 = vadd.f32 %v9298, %v9498
        %v9500 = vpop.f32.mrf.mxu0
        %v9501 = vadd.f32 %v9300, %v9500
        %v9502 = vpop.f32.mrf.mxu0
        %v9503 = vadd.f32 %v9302, %v9502
        %9504 = vmatprep.mubr.bf16.mxu0 %v687
        %9505 = vmatmul.mubr.bf16.gmra.mxu0 %v685
        %v9506 = vpop.f32.mrf.mxu0
        %v9507 = vadd.f32 %v9306, %v9506
        %v9508 = vpop.f32.mrf.mxu0
        %v9509 = vadd.f32 %v9308, %v9508
        %v9510 = vpop.f32.mrf.mxu0
        %v9511 = vadd.f32 %v9310, %v9510
        %v9512 = vpop.f32.mrf.mxu0
        %v9513 = vadd.f32 %v9312, %v9512
        %9514 = vmatprep.mubr.bf16.mxu0 %v688
        %9515 = vmatmul.mubr.bf16.gmra.mxu0 %v686
        %v9516 = vpop.f32.mrf.mxu0
        %v9517 = vadd.f32 %v9316, %v9516
        %v9518 = vpop.f32.mrf.mxu0
        %v9519 = vadd.f32 %v9318, %v9518
        %v9520 = vpop.f32.mrf.mxu0
        %v9521 = vpop.f32.mrf.mxu0
        %9522 = vdwg.mxu0
        %9523 = vmatprep.subr.bf16.mxu0 %v3987
        %9524 = vmatpush1.bf16.msra.mxu0 %v3986
        %9525 = vmatprep.subr.bf16.mxu0 %v3977
        %9526 = vmatpush1.bf16.msra.mxu0 %v3976
        %9527 = vmatprep.subr.bf16.mxu0 %v3967
        %9528 = vmatpush1.bf16.msra.mxu0 %v3966
        %9529 = vmatprep.subr.bf16.mxu0 %v3957
        %9530 = vmatpush1.bf16.msra.mxu0 %v3956
        %9531 = vmatprep.subr.bf16.mxu0 %v3947
        %9532 = vmatpush1.bf16.msra.mxu0 %v3946
        %9533 = vmatprep.subr.bf16.mxu0 %v3937
        %9534 = vmatpush1.bf16.msra.mxu0 %v3936
        %9535 = vmatprep.subr.bf16.mxu0 %v3927
        %9536 = vmatpush1.bf16.msra.mxu0 %v3926
        %9537 = vmatprep.subr.bf16.mxu0 %v3917
        %9538 = vmatpush1.bf16.msra.mxu0 %v3916
        %9539 = vmatprep.subr.bf16.mxu0 %v4067
        %9540 = vmatpush2.bf16.msra.mxu0 %v4066
        %9541 = vmatprep.subr.bf16.mxu0 %v4057
        %9542 = vmatpush2.bf16.msra.mxu0 %v4056
        %9543 = vmatprep.subr.bf16.mxu0 %v4047
        %9544 = vmatpush2.bf16.msra.mxu0 %v4046
        %9545 = vmatprep.subr.bf16.mxu0 %v4037
        %9546 = vmatpush2.bf16.msra.mxu0 %v4036
        %9547 = vmatprep.subr.bf16.mxu0 %v4027
        %9548 = vmatpush2.bf16.msra.mxu0 %v4026
        %9549 = vmatprep.subr.bf16.mxu0 %v4017
        %9550 = vmatpush2.bf16.msra.mxu0 %v4016
        %9551 = vmatprep.subr.bf16.mxu0 %v4007
        %9552 = vmatpush2.bf16.msra.mxu0 %v4006
        %9553 = vmatprep.subr.bf16.mxu0 %v3997
        %9554 = vmatpush2.bf16.msra.mxu0 %v3996
        %9555 = vmatprep.mubr.bf16.mxu0 %v564
        %9556 = vmatmul.mubr.bf16.gmra.mxu0 %v562
        %v9557 = vpop.f32.mrf.mxu0
        %v9558 = vpop.f32.mrf.mxu0
        %v9559 = vpop.f32.mrf.mxu0
        %v9560 = vadd.f32 0.0, %v9559
        %v9561 = vpop.f32.mrf.mxu0
        %v9562 = vadd.f32 0.0, %v9561
        %9563 = vmatprep.mubr.bf16.mxu0 %v565
        %9564 = vmatmul.mubr.bf16.gmra.mxu0 %v563
        %v9565 = vpop.f32.mrf.mxu0
        %v9566 = vadd.f32 0.0, %v9565
        %v9567 = vpop.f32.mrf.mxu0
        %v9568 = vadd.f32 0.0, %v9567
        %v9569 = vpop.f32.mrf.mxu0
        %v9570 = vadd.f32 0.0, %v9569
        %v9571 = vpop.f32.mrf.mxu0
        %v9572 = vadd.f32 0.0, %v9571
        %9573 = vmatprep.mubr.bf16.mxu0 %v566
        %9574 = vmatmul.mubr.bf16.gmra.mxu0 %v564
        %v9575 = vpop.f32.mrf.mxu0
        %v9576 = vadd.f32 0.0, %v9575
        %v9577 = vpop.f32.mrf.mxu0
        %v9578 = vadd.f32 0.0, %v9577
        %v9579 = vpop.f32.mrf.mxu0
        %v9580 = vadd.f32 0.0, %v9579
        %v9581 = vpop.f32.mrf.mxu0
        %v9582 = vadd.f32 0.0, %v9581
        %9583 = vmatprep.mubr.bf16.mxu0 %v567
        %9584 = vmatmul.mubr.bf16.gmra.mxu0 %v565
        %v9585 = vpop.f32.mrf.mxu0
        %v9586 = vadd.f32 0.0, %v9585
        %v9587 = vpop.f32.mrf.mxu0
        %v9588 = vadd.f32 0.0, %v9587
        %v9589 = vpop.f32.mrf.mxu0
        %v9590 = vadd.f32 0.0, %v9589
        %v9591 = vpop.f32.mrf.mxu0
        %v9592 = vadd.f32 0.0, %v9591
        %9593 = vmatprep.mubr.bf16.mxu0 %v568
        %9594 = vmatmul.mubr.bf16.gmra.mxu0 %v566
        %v9595 = vpop.f32.mrf.mxu0
        %v9596 = vadd.f32 0.0, %v9595
        %v9597 = vpop.f32.mrf.mxu0
        %v9598 = vadd.f32 0.0, %v9597
        %v9599 = vpop.f32.mrf.mxu0
        %v9600 = vadd.f32 0.0, %v9599
        %v9601 = vpop.f32.mrf.mxu0
        %v9602 = vadd.f32 0.0, %v9601
        %9603 = vmatprep.mubr.bf16.mxu0 %v569
        %9604 = vmatmul.mubr.bf16.gmra.mxu0 %v567
        %v9605 = vpop.f32.mrf.mxu0
        %v9606 = vadd.f32 0.0, %v9605
        %v9607 = vpop.f32.mrf.mxu0
        %v9608 = vadd.f32 0.0, %v9607
        %v9609 = vpop.f32.mrf.mxu0
        %v9610 = vadd.f32 0.0, %v9609
        %v9611 = vpop.f32.mrf.mxu0
        %v9612 = vadd.f32 0.0, %v9611
        %9613 = vmatprep.mubr.bf16.mxu0 %v570
        %9614 = vmatmul.mubr.bf16.gmra.mxu0 %v568
        %v9615 = vpop.f32.mrf.mxu0
        %v9616 = vadd.f32 0.0, %v9615
        %v9617 = vpop.f32.mrf.mxu0
        %v9618 = vadd.f32 0.0, %v9617
        %v9619 = vpop.f32.mrf.mxu0
        %v9620 = vadd.f32 0.0, %v9619
        %v9621 = vpop.f32.mrf.mxu0
        %v9622 = vadd.f32 0.0, %v9621
        %9623 = vmatprep.mubr.bf16.mxu0 %v571
        %9624 = vmatmul.mubr.bf16.gmra.mxu0 %v569
        %v9625 = vpop.f32.mrf.mxu0
        %v9626 = vadd.f32 0.0, %v9625
        %v9627 = vpop.f32.mrf.mxu0
        %v9628 = vadd.f32 0.0, %v9627
        %v9629 = vpop.f32.mrf.mxu0
        %v9630 = vadd.f32 0.0, %v9629
        %v9631 = vpop.f32.mrf.mxu0
        %v9632 = vadd.f32 0.0, %v9631
        %9633 = vmatprep.mubr.bf16.mxu0 %v572
        %9634 = vmatmul.mubr.bf16.gmra.mxu0 %v570
        %v9635 = vpop.f32.mrf.mxu0
        %v9636 = vadd.f32 0.0, %v9635
        %v9637 = vpop.f32.mrf.mxu0
        %v9638 = vadd.f32 0.0, %v9637
        %v9639 = vpop.f32.mrf.mxu0
        %v9640 = vadd.f32 0.0, %v9639
        %v9641 = vpop.f32.mrf.mxu0
        %v9642 = vadd.f32 0.0, %v9641
        %9643 = vmatprep.mubr.bf16.mxu0 %v573
        %9644 = vmatmul.mubr.bf16.gmra.mxu0 %v571
        %v9645 = vpop.f32.mrf.mxu0
        %v9646 = vadd.f32 0.0, %v9645
        %v9647 = vpop.f32.mrf.mxu0
        %v9648 = vadd.f32 0.0, %v9647
        %v9649 = vpop.f32.mrf.mxu0
        %v9650 = vadd.f32 0.0, %v9649
        %v9651 = vpop.f32.mrf.mxu0
        %v9652 = vadd.f32 0.0, %v9651
        %9653 = vmatprep.mubr.bf16.mxu0 %v574
        %9654 = vmatmul.mubr.bf16.gmra.mxu0 %v572
        %v9655 = vpop.f32.mrf.mxu0
        %v9656 = vadd.f32 0.0, %v9655
        %v9657 = vpop.f32.mrf.mxu0
        %v9658 = vadd.f32 0.0, %v9657
        %v9659 = vpop.f32.mrf.mxu0
        %v9660 = vadd.f32 0.0, %v9659
        %v9661 = vpop.f32.mrf.mxu0
        %v9662 = vadd.f32 0.0, %v9661
        %9663 = vmatprep.mubr.bf16.mxu0 %v575
        %9664 = vmatmul.mubr.bf16.gmra.mxu0 %v573
        %v9665 = vpop.f32.mrf.mxu0
        %v9666 = vadd.f32 0.0, %v9665
        %v9667 = vpop.f32.mrf.mxu0
        %v9668 = vadd.f32 0.0, %v9667
        %v9669 = vpop.f32.mrf.mxu0
        %v9670 = vadd.f32 0.0, %v9669
        %v9671 = vpop.f32.mrf.mxu0
        %v9672 = vadd.f32 0.0, %v9671
        %9673 = vmatprep.mubr.bf16.mxu0 %v576
        %9674 = vmatmul.mubr.bf16.gmra.mxu0 %v574
        %v9675 = vpop.f32.mrf.mxu0
        %v9676 = vadd.f32 0.0, %v9675
        %v9677 = vpop.f32.mrf.mxu0
        %v9678 = vadd.f32 0.0, %v9677
        %v9679 = vpop.f32.mrf.mxu0
        %v9680 = vadd.f32 0.0, %v9679
        %v9681 = vpop.f32.mrf.mxu0
        %v9682 = vadd.f32 0.0, %v9681
        %9683 = vmatprep.mubr.bf16.mxu0 %v577
        %9684 = vmatmul.mubr.bf16.gmra.mxu0 %v575
        %v9685 = vpop.f32.mrf.mxu0
        %v9686 = vadd.f32 0.0, %v9685
        %v9687 = vpop.f32.mrf.mxu0
        %v9688 = vadd.f32 0.0, %v9687
        %v9689 = vpop.f32.mrf.mxu0
        %v9690 = vadd.f32 0.0, %v9689
        %v9691 = vpop.f32.mrf.mxu0
        %v9692 = vadd.f32 0.0, %v9691
        %9693 = vmatprep.mubr.bf16.mxu0 %v670
        %9694 = vmatmul.mubr.bf16.gmra.mxu0 %v576
        %v9695 = vpop.f32.mrf.mxu0
        %v9696 = vadd.f32 0.0, %v9695
        %v9697 = vpop.f32.mrf.mxu0
        %v9698 = vadd.f32 0.0, %v9697
        %v9699 = vpop.f32.mrf.mxu0
        %v9700 = vadd.f32 0.0, %v9699
        %v9701 = vpop.f32.mrf.mxu0
        %v9702 = vadd.f32 0.0, %v9701
        %9703 = vmatprep.mubr.bf16.mxu0 %v671
        %9704 = vmatmul.mubr.bf16.gmra.mxu0 %v577
        %v9705 = vpop.f32.mrf.mxu0
        %v9706 = vadd.f32 0.0, %v9705
        %v9707 = vpop.f32.mrf.mxu0
        %v9708 = vadd.f32 0.0, %v9707
        %v9709 = vpop.f32.mrf.mxu0
        %v9710 = vadd.f32 0.0, %v9709
        %v9711 = vpop.f32.mrf.mxu0
        %v9712 = vadd.f32 0.0, %v9711
        %9713 = vmatprep.mubr.bf16.mxu0 %v672
        %9714 = vmatmul.mubr.bf16.gmra.mxu0 %v670
        %v9715 = vpop.f32.mrf.mxu0
        %v9716 = vadd.f32 0.0, %v9715
        %v9717 = vpop.f32.mrf.mxu0
        %v9718 = vadd.f32 0.0, %v9717
        %v9719 = vpop.f32.mrf.mxu0
        %v9720 = vpop.f32.mrf.mxu0
        %v9721 = vadd.f32 0.0, %v9720
        %9722 = vdwg.mxu0
        %9723 = vmatprep.subr.bf16.mxu0 %v4147
        %9724 = vmatpush1.bf16.msra.mxu0 %v4146
        %9725 = vmatprep.subr.bf16.mxu0 %v4137
        %9726 = vmatpush1.bf16.msra.mxu0 %v4136
        %9727 = vmatprep.subr.bf16.mxu0 %v4127
        %9728 = vmatpush1.bf16.msra.mxu0 %v4126
        %9729 = vmatprep.subr.bf16.mxu0 %v4117
        %9730 = vmatpush1.bf16.msra.mxu0 %v4116
        %9731 = vmatprep.subr.bf16.mxu0 %v4107
        %9732 = vmatpush1.bf16.msra.mxu0 %v4106
        %9733 = vmatprep.subr.bf16.mxu0 %v4097
        %9734 = vmatpush1.bf16.msra.mxu0 %v4096
        %9735 = vmatprep.subr.bf16.mxu0 %v4087
        %9736 = vmatpush1.bf16.msra.mxu0 %v4086
        %9737 = vmatprep.subr.bf16.mxu0 %v4077
        %9738 = vmatpush1.bf16.msra.mxu0 %v4076
        %9739 = vmatprep.subr.bf16.mxu0 %v4227
        %9740 = vmatpush2.bf16.msra.mxu0 %v4226
        %9741 = vmatprep.subr.bf16.mxu0 %v4217
        %9742 = vmatpush2.bf16.msra.mxu0 %v4216
        %9743 = vmatprep.subr.bf16.mxu0 %v4207
        %9744 = vmatpush2.bf16.msra.mxu0 %v4206
        %9745 = vmatprep.subr.bf16.mxu0 %v4197
        %9746 = vmatpush2.bf16.msra.mxu0 %v4196
        %9747 = vmatprep.subr.bf16.mxu0 %v4187
        %9748 = vmatpush2.bf16.msra.mxu0 %v4186
        %9749 = vmatprep.subr.bf16.mxu0 %v4177
        %9750 = vmatpush2.bf16.msra.mxu0 %v4176
        %9751 = vmatprep.subr.bf16.mxu0 %v4167
        %9752 = vmatpush2.bf16.msra.mxu0 %v4166
        %9753 = vmatprep.subr.bf16.mxu0 %v4157
        %9754 = vmatpush2.bf16.msra.mxu0 %v4156
        %9755 = vmatprep.mubr.bf16.mxu0 %v568
        %9756 = vmatmul.mubr.bf16.gmra.mxu0 %v566
        %v9757 = vpop.f32.mrf.mxu0
        %v9758 = vpop.f32.mrf.mxu0
        %v9759 = vpop.f32.mrf.mxu0
        %v9760 = vadd.f32 %v9560, %v9759
        %v9761 = vpop.f32.mrf.mxu0
        %v9762 = vadd.f32 %v9562, %v9761
        %9763 = vmatprep.mubr.bf16.mxu0 %v569
        %9764 = vmatmul.mubr.bf16.gmra.mxu0 %v567
        %v9765 = vpop.f32.mrf.mxu0
        %v9766 = vadd.f32 %v9566, %v9765
        %v9767 = vpop.f32.mrf.mxu0
        %v9768 = vadd.f32 %v9568, %v9767
        %v9769 = vpop.f32.mrf.mxu0
        %v9770 = vadd.f32 %v9570, %v9769
        %v9771 = vpop.f32.mrf.mxu0
        %v9772 = vadd.f32 %v9572, %v9771
        %9773 = vmatprep.mubr.bf16.mxu0 %v570
        %9774 = vmatmul.mubr.bf16.gmra.mxu0 %v568
        %v9775 = vpop.f32.mrf.mxu0
        %v9776 = vadd.f32 %v9576, %v9775
        %v9777 = vpop.f32.mrf.mxu0
        %v9778 = vadd.f32 %v9578, %v9777
        %v9779 = vpop.f32.mrf.mxu0
        %v9780 = vadd.f32 %v9580, %v9779
        %v9781 = vpop.f32.mrf.mxu0
        %v9782 = vadd.f32 %v9582, %v9781
        %9783 = vmatprep.mubr.bf16.mxu0 %v571
        %9784 = vmatmul.mubr.bf16.gmra.mxu0 %v569
        %v9785 = vpop.f32.mrf.mxu0
        %v9786 = vadd.f32 %v9586, %v9785
        %v9787 = vpop.f32.mrf.mxu0
        %v9788 = vadd.f32 %v9588, %v9787
        %v9789 = vpop.f32.mrf.mxu0
        %v9790 = vadd.f32 %v9590, %v9789
        %v9791 = vpop.f32.mrf.mxu0
        %v9792 = vadd.f32 %v9592, %v9791
        %9793 = vmatprep.mubr.bf16.mxu0 %v572
        %9794 = vmatmul.mubr.bf16.gmra.mxu0 %v570
        %v9795 = vpop.f32.mrf.mxu0
        %v9796 = vadd.f32 %v9596, %v9795
        %v9797 = vpop.f32.mrf.mxu0
        %v9798 = vadd.f32 %v9598, %v9797
        %v9799 = vpop.f32.mrf.mxu0
        %v9800 = vadd.f32 %v9600, %v9799
        %v9801 = vpop.f32.mrf.mxu0
        %v9802 = vadd.f32 %v9602, %v9801
        %9803 = vmatprep.mubr.bf16.mxu0 %v573
        %9804 = vmatmul.mubr.bf16.gmra.mxu0 %v571
        %v9805 = vpop.f32.mrf.mxu0
        %v9806 = vadd.f32 %v9606, %v9805
        %v9807 = vpop.f32.mrf.mxu0
        %v9808 = vadd.f32 %v9608, %v9807
        %v9809 = vpop.f32.mrf.mxu0
        %v9810 = vadd.f32 %v9610, %v9809
        %v9811 = vpop.f32.mrf.mxu0
        %v9812 = vadd.f32 %v9612, %v9811
        %9813 = vmatprep.mubr.bf16.mxu0 %v574
        %9814 = vmatmul.mubr.bf16.gmra.mxu0 %v572
        %v9815 = vpop.f32.mrf.mxu0
        %v9816 = vadd.f32 %v9616, %v9815
        %v9817 = vpop.f32.mrf.mxu0
        %v9818 = vadd.f32 %v9618, %v9817
        %v9819 = vpop.f32.mrf.mxu0
        %v9820 = vadd.f32 %v9620, %v9819
        %v9821 = vpop.f32.mrf.mxu0
        %v9822 = vadd.f32 %v9622, %v9821
        %9823 = vmatprep.mubr.bf16.mxu0 %v575
        %9824 = vmatmul.mubr.bf16.gmra.mxu0 %v573
        %v9825 = vpop.f32.mrf.mxu0
        %v9826 = vadd.f32 %v9626, %v9825
        %v9827 = vpop.f32.mrf.mxu0
        %v9828 = vadd.f32 %v9628, %v9827
        %v9829 = vpop.f32.mrf.mxu0
        %v9830 = vadd.f32 %v9630, %v9829
        %v9831 = vpop.f32.mrf.mxu0
        %v9832 = vadd.f32 %v9632, %v9831
        %9833 = vmatprep.mubr.bf16.mxu0 %v576
        %9834 = vmatmul.mubr.bf16.gmra.mxu0 %v574
        %v9835 = vpop.f32.mrf.mxu0
        %v9836 = vadd.f32 %v9636, %v9835
        %v9837 = vpop.f32.mrf.mxu0
        %v9838 = vadd.f32 %v9638, %v9837
        %v9839 = vpop.f32.mrf.mxu0
        %v9840 = vadd.f32 %v9640, %v9839
        %v9841 = vpop.f32.mrf.mxu0
        %v9842 = vadd.f32 %v9642, %v9841
        %9843 = vmatprep.mubr.bf16.mxu0 %v577
        %9844 = vmatmul.mubr.bf16.gmra.mxu0 %v575
        %v9845 = vpop.f32.mrf.mxu0
        %v9846 = vadd.f32 %v9646, %v9845
        %v9847 = vpop.f32.mrf.mxu0
        %v9848 = vadd.f32 %v9648, %v9847
        %v9849 = vpop.f32.mrf.mxu0
        %v9850 = vadd.f32 %v9650, %v9849
        %v9851 = vpop.f32.mrf.mxu0
        %v9852 = vadd.f32 %v9652, %v9851
        %9853 = vmatprep.mubr.bf16.mxu0 %v670
        %9854 = vmatmul.mubr.bf16.gmra.mxu0 %v576
        %v9855 = vpop.f32.mrf.mxu0
        %v9856 = vadd.f32 %v9656, %v9855
        %v9857 = vpop.f32.mrf.mxu0
        %v9858 = vadd.f32 %v9658, %v9857
        %v9859 = vpop.f32.mrf.mxu0
        %v9860 = vadd.f32 %v9660, %v9859
        %v9861 = vpop.f32.mrf.mxu0
        %v9862 = vadd.f32 %v9662, %v9861
        %9863 = vmatprep.mubr.bf16.mxu0 %v671
        %9864 = vmatmul.mubr.bf16.gmra.mxu0 %v577
        %v9865 = vpop.f32.mrf.mxu0
        %v9866 = vadd.f32 %v9666, %v9865
        %v9867 = vpop.f32.mrf.mxu0
        %v9868 = vadd.f32 %v9668, %v9867
        %v9869 = vpop.f32.mrf.mxu0
        %v9870 = vadd.f32 %v9670, %v9869
        %v9871 = vpop.f32.mrf.mxu0
        %v9872 = vadd.f32 %v9672, %v9871
        %9873 = vmatprep.mubr.bf16.mxu0 %v672
        %9874 = vmatmul.mubr.bf16.gmra.mxu0 %v670
        %v9875 = vpop.f32.mrf.mxu0
        %v9876 = vadd.f32 %v9676, %v9875
        %v9877 = vpop.f32.mrf.mxu0
        %v9878 = vadd.f32 %v9678, %v9877
        %v9879 = vpop.f32.mrf.mxu0
        %v9880 = vadd.f32 %v9680, %v9879
        %v9881 = vpop.f32.mrf.mxu0
        %v9882 = vadd.f32 %v9682, %v9881
        %9883 = vmatprep.mubr.bf16.mxu0 %v673
        %9884 = vmatmul.mubr.bf16.gmra.mxu0 %v671
        %v9885 = vpop.f32.mrf.mxu0
        %v9886 = vadd.f32 %v9686, %v9885
        %v9887 = vpop.f32.mrf.mxu0
        %v9888 = vadd.f32 %v9688, %v9887
        %v9889 = vpop.f32.mrf.mxu0
        %v9890 = vadd.f32 %v9690, %v9889
        %v9891 = vpop.f32.mrf.mxu0
        %v9892 = vadd.f32 %v9692, %v9891
        %9893 = vmatprep.mubr.bf16.mxu0 %v674
        %9894 = vmatmul.mubr.bf16.gmra.mxu0 %v672
        %v9895 = vpop.f32.mrf.mxu0
        %v9896 = vadd.f32 %v9696, %v9895
        %v9897 = vpop.f32.mrf.mxu0
        %v9898 = vadd.f32 %v9698, %v9897
        %v9899 = vpop.f32.mrf.mxu0
        %v9900 = vadd.f32 %v9700, %v9899
        %v9901 = vpop.f32.mrf.mxu0
        %v9902 = vadd.f32 %v9702, %v9901
        %9903 = vmatprep.mubr.bf16.mxu0 %v675
        %9904 = vmatmul.mubr.bf16.gmra.mxu0 %v673
        %v9905 = vpop.f32.mrf.mxu0
        %v9906 = vadd.f32 %v9706, %v9905
        %v9907 = vpop.f32.mrf.mxu0
        %v9908 = vadd.f32 %v9708, %v9907
        %v9909 = vpop.f32.mrf.mxu0
        %v9910 = vadd.f32 %v9710, %v9909
        %v9911 = vpop.f32.mrf.mxu0
        %v9912 = vadd.f32 %v9712, %v9911
        %9913 = vmatprep.mubr.bf16.mxu0 %v676
        %9914 = vmatmul.mubr.bf16.gmra.mxu0 %v674
        %v9915 = vpop.f32.mrf.mxu0
        %v9916 = vadd.f32 %v9716, %v9915
        %v9917 = vpop.f32.mrf.mxu0
        %v9918 = vadd.f32 %v9718, %v9917
        %v9919 = vpop.f32.mrf.mxu0
        %v9920 = vpop.f32.mrf.mxu0
        %v9921 = vadd.f32 %v9721, %v9920
        %9922 = vdwg.mxu0
        %9923 = vmatprep.subr.bf16.mxu0 %v4307
        %9924 = vmatpush1.bf16.msra.mxu0 %v4306
        %9925 = vmatprep.subr.bf16.mxu0 %v4297
        %9926 = vmatpush1.bf16.msra.mxu0 %v4296
        %9927 = vmatprep.subr.bf16.mxu0 %v4287
        %9928 = vmatpush1.bf16.msra.mxu0 %v4286
        %9929 = vmatprep.subr.bf16.mxu0 %v4277
        %9930 = vmatpush1.bf16.msra.mxu0 %v4276
        %9931 = vmatprep.subr.bf16.mxu0 %v4267
        %9932 = vmatpush1.bf16.msra.mxu0 %v4266
        %9933 = vmatprep.subr.bf16.mxu0 %v4257
        %9934 = vmatpush1.bf16.msra.mxu0 %v4256
        %9935 = vmatprep.subr.bf16.mxu0 %v4247
        %9936 = vmatpush1.bf16.msra.mxu0 %v4246
        %9937 = vmatprep.subr.bf16.mxu0 %v4237
        %9938 = vmatpush1.bf16.msra.mxu0 %v4236
        %9939 = vmatprep.subr.bf16.mxu0 %v4387
        %9940 = vmatpush2.bf16.msra.mxu0 %v4386
        %9941 = vmatprep.subr.bf16.mxu0 %v4377
        %9942 = vmatpush2.bf16.msra.mxu0 %v4376
        %9943 = vmatprep.subr.bf16.mxu0 %v4367
        %9944 = vmatpush2.bf16.msra.mxu0 %v4366
        %9945 = vmatprep.subr.bf16.mxu0 %v4357
        %9946 = vmatpush2.bf16.msra.mxu0 %v4356
        %9947 = vmatprep.subr.bf16.mxu0 %v4347
        %9948 = vmatpush2.bf16.msra.mxu0 %v4346
        %9949 = vmatprep.subr.bf16.mxu0 %v4337
        %9950 = vmatpush2.bf16.msra.mxu0 %v4336
        %9951 = vmatprep.subr.bf16.mxu0 %v4327
        %9952 = vmatpush2.bf16.msra.mxu0 %v4326
        %9953 = vmatprep.subr.bf16.mxu0 %v4317
        %9954 = vmatpush2.bf16.msra.mxu0 %v4316
        %9955 = vmatprep.mubr.bf16.mxu0 %v572
        %9956 = vmatmul.mubr.bf16.gmra.mxu0 %v570
        %v9957 = vpop.f32.mrf.mxu0
        %v9958 = vpop.f32.mrf.mxu0
        %v9959 = vpop.f32.mrf.mxu0
        %v9960 = vadd.f32 %v9760, %v9959
        %v9961 = vpop.f32.mrf.mxu0
        %v9962 = vadd.f32 %v9762, %v9961
        %9963 = vmatprep.mubr.bf16.mxu0 %v573
        %9964 = vmatmul.mubr.bf16.gmra.mxu0 %v571
        %v9965 = vpop.f32.mrf.mxu0
        %v9966 = vadd.f32 %v9766, %v9965
        %v9967 = vpop.f32.mrf.mxu0
        %v9968 = vadd.f32 %v9768, %v9967
        %v9969 = vpop.f32.mrf.mxu0
        %v9970 = vadd.f32 %v9770, %v9969
        %v9971 = vpop.f32.mrf.mxu0
        %v9972 = vadd.f32 %v9772, %v9971
        %9973 = vmatprep.mubr.bf16.mxu0 %v574
        %9974 = vmatmul.mubr.bf16.gmra.mxu0 %v572
        %v9975 = vpop.f32.mrf.mxu0
        %v9976 = vadd.f32 %v9776, %v9975
        %v9977 = vpop.f32.mrf.mxu0
        %v9978 = vadd.f32 %v9778, %v9977
        %v9979 = vpop.f32.mrf.mxu0
        %v9980 = vadd.f32 %v9780, %v9979
        %v9981 = vpop.f32.mrf.mxu0
        %v9982 = vadd.f32 %v9782, %v9981
        %9983 = vmatprep.mubr.bf16.mxu0 %v575
        %9984 = vmatmul.mubr.bf16.gmra.mxu0 %v573
        %v9985 = vpop.f32.mrf.mxu0
        %v9986 = vadd.f32 %v9786, %v9985
        %v9987 = vpop.f32.mrf.mxu0
        %v9988 = vadd.f32 %v9788, %v9987
        %v9989 = vpop.f32.mrf.mxu0
        %v9990 = vadd.f32 %v9790, %v9989
        %v9991 = vpop.f32.mrf.mxu0
        %v9992 = vadd.f32 %v9792, %v9991
        %9993 = vmatprep.mubr.bf16.mxu0 %v576
        %9994 = vmatmul.mubr.bf16.gmra.mxu0 %v574
        %v9995 = vpop.f32.mrf.mxu0
        %v9996 = vadd.f32 %v9796, %v9995
        %v9997 = vpop.f32.mrf.mxu0
        %v9998 = vadd.f32 %v9798, %v9997
        %v9999 = vpop.f32.mrf.mxu0
        %v10000 = vadd.f32 %v9800, %v9999
        %v10001 = vpop.f32.mrf.mxu0
        %v10002 = vadd.f32 %v9802, %v10001
        %10003 = vmatprep.mubr.bf16.mxu0 %v577
        %10004 = vmatmul.mubr.bf16.gmra.mxu0 %v575
        %v10005 = vpop.f32.mrf.mxu0
        %v10006 = vadd.f32 %v9806, %v10005
        %v10007 = vpop.f32.mrf.mxu0
        %v10008 = vadd.f32 %v9808, %v10007
        %v10009 = vpop.f32.mrf.mxu0
        %v10010 = vadd.f32 %v9810, %v10009
        %v10011 = vpop.f32.mrf.mxu0
        %v10012 = vadd.f32 %v9812, %v10011
        %10013 = vmatprep.mubr.bf16.mxu0 %v670
        %10014 = vmatmul.mubr.bf16.gmra.mxu0 %v576
        %v10015 = vpop.f32.mrf.mxu0
        %v10016 = vadd.f32 %v9816, %v10015
        %v10017 = vpop.f32.mrf.mxu0
        %v10018 = vadd.f32 %v9818, %v10017
        %v10019 = vpop.f32.mrf.mxu0
        %v10020 = vadd.f32 %v9820, %v10019
        %v10021 = vpop.f32.mrf.mxu0
        %v10022 = vadd.f32 %v9822, %v10021
        %10023 = vmatprep.mubr.bf16.mxu0 %v671
        %10024 = vmatmul.mubr.bf16.gmra.mxu0 %v577
        %v10025 = vpop.f32.mrf.mxu0
        %v10026 = vadd.f32 %v9826, %v10025
        %v10027 = vpop.f32.mrf.mxu0
        %v10028 = vadd.f32 %v9828, %v10027
        %v10029 = vpop.f32.mrf.mxu0
        %v10030 = vadd.f32 %v9830, %v10029
        %v10031 = vpop.f32.mrf.mxu0
        %v10032 = vadd.f32 %v9832, %v10031
        %10033 = vmatprep.mubr.bf16.mxu0 %v672
        %10034 = vmatmul.mubr.bf16.gmra.mxu0 %v670
        %v10035 = vpop.f32.mrf.mxu0
        %v10036 = vadd.f32 %v9836, %v10035
        %v10037 = vpop.f32.mrf.mxu0
        %v10038 = vadd.f32 %v9838, %v10037
        %v10039 = vpop.f32.mrf.mxu0
        %v10040 = vadd.f32 %v9840, %v10039
        %v10041 = vpop.f32.mrf.mxu0
        %v10042 = vadd.f32 %v9842, %v10041
        %10043 = vmatprep.mubr.bf16.mxu0 %v673
        %10044 = vmatmul.mubr.bf16.gmra.mxu0 %v671
        %v10045 = vpop.f32.mrf.mxu0
        %v10046 = vadd.f32 %v9846, %v10045
        %v10047 = vpop.f32.mrf.mxu0
        %v10048 = vadd.f32 %v9848, %v10047
        %v10049 = vpop.f32.mrf.mxu0
        %v10050 = vadd.f32 %v9850, %v10049
        %v10051 = vpop.f32.mrf.mxu0
        %v10052 = vadd.f32 %v9852, %v10051
        %10053 = vmatprep.mubr.bf16.mxu0 %v674
        %10054 = vmatmul.mubr.bf16.gmra.mxu0 %v672
        %v10055 = vpop.f32.mrf.mxu0
        %v10056 = vadd.f32 %v9856, %v10055
        %v10057 = vpop.f32.mrf.mxu0
        %v10058 = vadd.f32 %v9858, %v10057
        %v10059 = vpop.f32.mrf.mxu0
        %v10060 = vadd.f32 %v9860, %v10059
        %v10061 = vpop.f32.mrf.mxu0
        %v10062 = vadd.f32 %v9862, %v10061
        %10063 = vmatprep.mubr.bf16.mxu0 %v675
        %10064 = vmatmul.mubr.bf16.gmra.mxu0 %v673
        %v10065 = vpop.f32.mrf.mxu0
        %v10066 = vadd.f32 %v9866, %v10065
        %v10067 = vpop.f32.mrf.mxu0
        %v10068 = vadd.f32 %v9868, %v10067
        %v10069 = vpop.f32.mrf.mxu0
        %v10070 = vadd.f32 %v9870, %v10069
        %v10071 = vpop.f32.mrf.mxu0
        %v10072 = vadd.f32 %v9872, %v10071
        %10073 = vmatprep.mubr.bf16.mxu0 %v676
        %10074 = vmatmul.mubr.bf16.gmra.mxu0 %v674
        %v10075 = vpop.f32.mrf.mxu0
        %v10076 = vadd.f32 %v9876, %v10075
        %v10077 = vpop.f32.mrf.mxu0
        %v10078 = vadd.f32 %v9878, %v10077
        %v10079 = vpop.f32.mrf.mxu0
        %v10080 = vadd.f32 %v9880, %v10079
        %v10081 = vpop.f32.mrf.mxu0
        %v10082 = vadd.f32 %v9882, %v10081
        %10083 = vmatprep.mubr.bf16.mxu0 %v677
        %10084 = vmatmul.mubr.bf16.gmra.mxu0 %v675
        %v10085 = vpop.f32.mrf.mxu0
        %v10086 = vadd.f32 %v9886, %v10085
        %v10087 = vpop.f32.mrf.mxu0
        %v10088 = vadd.f32 %v9888, %v10087
        %v10089 = vpop.f32.mrf.mxu0
        %v10090 = vadd.f32 %v9890, %v10089
        %v10091 = vpop.f32.mrf.mxu0
        %v10092 = vadd.f32 %v9892, %v10091
        %10093 = vmatprep.mubr.bf16.mxu0 %v678
        %10094 = vmatmul.mubr.bf16.gmra.mxu0 %v676
        %v10095 = vpop.f32.mrf.mxu0
        %v10096 = vadd.f32 %v9896, %v10095
        %v10097 = vpop.f32.mrf.mxu0
        %v10098 = vadd.f32 %v9898, %v10097
        %v10099 = vpop.f32.mrf.mxu0
        %v10100 = vadd.f32 %v9900, %v10099
        %v10101 = vpop.f32.mrf.mxu0
        %v10102 = vadd.f32 %v9902, %v10101
        %10103 = vmatprep.mubr.bf16.mxu0 %v679
        %10104 = vmatmul.mubr.bf16.gmra.mxu0 %v677
        %v10105 = vpop.f32.mrf.mxu0
        %v10106 = vadd.f32 %v9906, %v10105
        %v10107 = vpop.f32.mrf.mxu0
        %v10108 = vadd.f32 %v9908, %v10107
        %v10109 = vpop.f32.mrf.mxu0
        %v10110 = vadd.f32 %v9910, %v10109
        %v10111 = vpop.f32.mrf.mxu0
        %v10112 = vadd.f32 %v9912, %v10111
        %10113 = vmatprep.mubr.bf16.mxu0 %v680
        %10114 = vmatmul.mubr.bf16.gmra.mxu0 %v678
        %v10115 = vpop.f32.mrf.mxu0
        %v10116 = vadd.f32 %v9916, %v10115
        %v10117 = vpop.f32.mrf.mxu0
        %v10118 = vadd.f32 %v9918, %v10117
        %v10119 = vpop.f32.mrf.mxu0
        %v10120 = vpop.f32.mrf.mxu0
        %v10121 = vadd.f32 %v9921, %v10120
        %10122 = vdwg.mxu0
        %10123 = vmatprep.subr.bf16.mxu0 %v4467
        %10124 = vmatpush1.bf16.msra.mxu0 %v4466
        %10125 = vmatprep.subr.bf16.mxu0 %v4457
        %10126 = vmatpush1.bf16.msra.mxu0 %v4456
        %10127 = vmatprep.subr.bf16.mxu0 %v4447
        %10128 = vmatpush1.bf16.msra.mxu0 %v4446
        %10129 = vmatprep.subr.bf16.mxu0 %v4437
        %10130 = vmatpush1.bf16.msra.mxu0 %v4436
        %10131 = vmatprep.subr.bf16.mxu0 %v4427
        %10132 = vmatpush1.bf16.msra.mxu0 %v4426
        %10133 = vmatprep.subr.bf16.mxu0 %v4417
        %10134 = vmatpush1.bf16.msra.mxu0 %v4416
        %10135 = vmatprep.subr.bf16.mxu0 %v4407
        %10136 = vmatpush1.bf16.msra.mxu0 %v4406
        %10137 = vmatprep.subr.bf16.mxu0 %v4397
        %10138 = vmatpush1.bf16.msra.mxu0 %v4396
        %10139 = vmatprep.subr.bf16.mxu0 %v4547
        %10140 = vmatpush2.bf16.msra.mxu0 %v4546
        %10141 = vmatprep.subr.bf16.mxu0 %v4537
        %10142 = vmatpush2.bf16.msra.mxu0 %v4536
        %10143 = vmatprep.subr.bf16.mxu0 %v4527
        %10144 = vmatpush2.bf16.msra.mxu0 %v4526
        %10145 = vmatprep.subr.bf16.mxu0 %v4517
        %10146 = vmatpush2.bf16.msra.mxu0 %v4516
        %10147 = vmatprep.subr.bf16.mxu0 %v4507
        %10148 = vmatpush2.bf16.msra.mxu0 %v4506
        %10149 = vmatprep.subr.bf16.mxu0 %v4497
        %10150 = vmatpush2.bf16.msra.mxu0 %v4496
        %10151 = vmatprep.subr.bf16.mxu0 %v4487
        %10152 = vmatpush2.bf16.msra.mxu0 %v4486
        %10153 = vmatprep.subr.bf16.mxu0 %v4477
        %10154 = vmatpush2.bf16.msra.mxu0 %v4476
        %10155 = vmatprep.mubr.bf16.mxu0 %v576
        %10156 = vmatmul.mubr.bf16.gmra.mxu0 %v574
        %v10157 = vpop.f32.mrf.mxu0
        %v10158 = vpop.f32.mrf.mxu0
        %v10159 = vpop.f32.mrf.mxu0
        %v10160 = vadd.f32 %v9960, %v10159
        %v10161 = vpop.f32.mrf.mxu0
        %v10162 = vadd.f32 %v9962, %v10161
        %10163 = vmatprep.mubr.bf16.mxu0 %v577
        %10164 = vmatmul.mubr.bf16.gmra.mxu0 %v575
        %v10165 = vpop.f32.mrf.mxu0
        %v10166 = vadd.f32 %v9966, %v10165
        %v10167 = vpop.f32.mrf.mxu0
        %v10168 = vadd.f32 %v9968, %v10167
        %v10169 = vpop.f32.mrf.mxu0
        %v10170 = vadd.f32 %v9970, %v10169
        %v10171 = vpop.f32.mrf.mxu0
        %v10172 = vadd.f32 %v9972, %v10171
        %10173 = vmatprep.mubr.bf16.mxu0 %v670
        %10174 = vmatmul.mubr.bf16.gmra.mxu0 %v576
        %v10175 = vpop.f32.mrf.mxu0
        %v10176 = vadd.f32 %v9976, %v10175
        %v10177 = vpop.f32.mrf.mxu0
        %v10178 = vadd.f32 %v9978, %v10177
        %v10179 = vpop.f32.mrf.mxu0
        %v10180 = vadd.f32 %v9980, %v10179
        %v10181 = vpop.f32.mrf.mxu0
        %v10182 = vadd.f32 %v9982, %v10181
        %10183 = vmatprep.mubr.bf16.mxu0 %v671
        %10184 = vmatmul.mubr.bf16.gmra.mxu0 %v577
        %v10185 = vpop.f32.mrf.mxu0
        %v10186 = vadd.f32 %v9986, %v10185
        %v10187 = vpop.f32.mrf.mxu0
        %v10188 = vadd.f32 %v9988, %v10187
        %v10189 = vpop.f32.mrf.mxu0
        %v10190 = vadd.f32 %v9990, %v10189
        %v10191 = vpop.f32.mrf.mxu0
        %v10192 = vadd.f32 %v9992, %v10191
        %10193 = vmatprep.mubr.bf16.mxu0 %v672
        %10194 = vmatmul.mubr.bf16.gmra.mxu0 %v670
        %v10195 = vpop.f32.mrf.mxu0
        %v10196 = vadd.f32 %v9996, %v10195
        %v10197 = vpop.f32.mrf.mxu0
        %v10198 = vadd.f32 %v9998, %v10197
        %v10199 = vpop.f32.mrf.mxu0
        %v10200 = vadd.f32 %v10000, %v10199
        %v10201 = vpop.f32.mrf.mxu0
        %v10202 = vadd.f32 %v10002, %v10201
        %10203 = vmatprep.mubr.bf16.mxu0 %v673
        %10204 = vmatmul.mubr.bf16.gmra.mxu0 %v671
        %v10205 = vpop.f32.mrf.mxu0
        %v10206 = vadd.f32 %v10006, %v10205
        %v10207 = vpop.f32.mrf.mxu0
        %v10208 = vadd.f32 %v10008, %v10207
        %v10209 = vpop.f32.mrf.mxu0
        %v10210 = vadd.f32 %v10010, %v10209
        %v10211 = vpop.f32.mrf.mxu0
        %v10212 = vadd.f32 %v10012, %v10211
        %10213 = vmatprep.mubr.bf16.mxu0 %v674
        %10214 = vmatmul.mubr.bf16.gmra.mxu0 %v672
        %v10215 = vpop.f32.mrf.mxu0
        %v10216 = vadd.f32 %v10016, %v10215
        %v10217 = vpop.f32.mrf.mxu0
        %v10218 = vadd.f32 %v10018, %v10217
        %v10219 = vpop.f32.mrf.mxu0
        %v10220 = vadd.f32 %v10020, %v10219
        %v10221 = vpop.f32.mrf.mxu0
        %v10222 = vadd.f32 %v10022, %v10221
        %10223 = vmatprep.mubr.bf16.mxu0 %v675
        %10224 = vmatmul.mubr.bf16.gmra.mxu0 %v673
        %v10225 = vpop.f32.mrf.mxu0
        %v10226 = vadd.f32 %v10026, %v10225
        %v10227 = vpop.f32.mrf.mxu0
        %v10228 = vadd.f32 %v10028, %v10227
        %v10229 = vpop.f32.mrf.mxu0
        %v10230 = vadd.f32 %v10030, %v10229
        %v10231 = vpop.f32.mrf.mxu0
        %v10232 = vadd.f32 %v10032, %v10231
        %10233 = vmatprep.mubr.bf16.mxu0 %v676
        %10234 = vmatmul.mubr.bf16.gmra.mxu0 %v674
        %v10235 = vpop.f32.mrf.mxu0
        %v10236 = vadd.f32 %v10036, %v10235
        %v10237 = vpop.f32.mrf.mxu0
        %v10238 = vadd.f32 %v10038, %v10237
        %v10239 = vpop.f32.mrf.mxu0
        %v10240 = vadd.f32 %v10040, %v10239
        %v10241 = vpop.f32.mrf.mxu0
        %v10242 = vadd.f32 %v10042, %v10241
        %10243 = vmatprep.mubr.bf16.mxu0 %v677
        %10244 = vmatmul.mubr.bf16.gmra.mxu0 %v675
        %v10245 = vpop.f32.mrf.mxu0
        %v10246 = vadd.f32 %v10046, %v10245
        %v10247 = vpop.f32.mrf.mxu0
        %v10248 = vadd.f32 %v10048, %v10247
        %v10249 = vpop.f32.mrf.mxu0
        %v10250 = vadd.f32 %v10050, %v10249
        %v10251 = vpop.f32.mrf.mxu0
        %v10252 = vadd.f32 %v10052, %v10251
        %10253 = vmatprep.mubr.bf16.mxu0 %v678
        %10254 = vmatmul.mubr.bf16.gmra.mxu0 %v676
        %v10255 = vpop.f32.mrf.mxu0
        %v10256 = vadd.f32 %v10056, %v10255
        %v10257 = vpop.f32.mrf.mxu0
        %v10258 = vadd.f32 %v10058, %v10257
        %v10259 = vpop.f32.mrf.mxu0
        %v10260 = vadd.f32 %v10060, %v10259
        %v10261 = vpop.f32.mrf.mxu0
        %v10262 = vadd.f32 %v10062, %v10261
        %10263 = vmatprep.mubr.bf16.mxu0 %v679
        %10264 = vmatmul.mubr.bf16.gmra.mxu0 %v677
        %v10265 = vpop.f32.mrf.mxu0
        %v10266 = vadd.f32 %v10066, %v10265
        %v10267 = vpop.f32.mrf.mxu0
        %v10268 = vadd.f32 %v10068, %v10267
        %v10269 = vpop.f32.mrf.mxu0
        %v10270 = vadd.f32 %v10070, %v10269
        %v10271 = vpop.f32.mrf.mxu0
        %v10272 = vadd.f32 %v10072, %v10271
        %10273 = vmatprep.mubr.bf16.mxu0 %v680
        %10274 = vmatmul.mubr.bf16.gmra.mxu0 %v678
        %v10275 = vpop.f32.mrf.mxu0
        %v10276 = vadd.f32 %v10076, %v10275
        %v10277 = vpop.f32.mrf.mxu0
        %v10278 = vadd.f32 %v10078, %v10277
        %v10279 = vpop.f32.mrf.mxu0
        %v10280 = vadd.f32 %v10080, %v10279
        %v10281 = vpop.f32.mrf.mxu0
        %v10282 = vadd.f32 %v10082, %v10281
        %10283 = vmatprep.mubr.bf16.mxu0 %v681
        %10284 = vmatmul.mubr.bf16.gmra.mxu0 %v679
        %v10285 = vpop.f32.mrf.mxu0
        %v10286 = vadd.f32 %v10086, %v10285
        %v10287 = vpop.f32.mrf.mxu0
        %v10288 = vadd.f32 %v10088, %v10287
        %v10289 = vpop.f32.mrf.mxu0
        %v10290 = vadd.f32 %v10090, %v10289
        %v10291 = vpop.f32.mrf.mxu0
        %v10292 = vadd.f32 %v10092, %v10291
        %10293 = vmatprep.mubr.bf16.mxu0 %v682
        %10294 = vmatmul.mubr.bf16.gmra.mxu0 %v680
        %v10295 = vpop.f32.mrf.mxu0
        %v10296 = vadd.f32 %v10096, %v10295
        %v10297 = vpop.f32.mrf.mxu0
        %v10298 = vadd.f32 %v10098, %v10297
        %v10299 = vpop.f32.mrf.mxu0
        %v10300 = vadd.f32 %v10100, %v10299
        %v10301 = vpop.f32.mrf.mxu0
        %v10302 = vadd.f32 %v10102, %v10301
        %10303 = vmatprep.mubr.bf16.mxu0 %v683
        %10304 = vmatmul.mubr.bf16.gmra.mxu0 %v681
        %v10305 = vpop.f32.mrf.mxu0
        %v10306 = vadd.f32 %v10106, %v10305
        %v10307 = vpop.f32.mrf.mxu0
        %v10308 = vadd.f32 %v10108, %v10307
        %v10309 = vpop.f32.mrf.mxu0
        %v10310 = vadd.f32 %v10110, %v10309
        %v10311 = vpop.f32.mrf.mxu0
        %v10312 = vadd.f32 %v10112, %v10311
        %10313 = vmatprep.mubr.bf16.mxu0 %v684
        %10314 = vmatmul.mubr.bf16.gmra.mxu0 %v682
        %v10315 = vpop.f32.mrf.mxu0
        %v10316 = vadd.f32 %v10116, %v10315
        %v10317 = vpop.f32.mrf.mxu0
        %v10318 = vadd.f32 %v10118, %v10317
        %v10319 = vpop.f32.mrf.mxu0
        %v10320 = vpop.f32.mrf.mxu0
        %v10321 = vadd.f32 %v10121, %v10320
        %10322 = vdwg.mxu0
        %10323 = vmatprep.subr.bf16.mxu0 %v4627
        %10324 = vmatpush1.bf16.msra.mxu0 %v4626
        %10325 = vmatprep.subr.bf16.mxu0 %v4617
        %10326 = vmatpush1.bf16.msra.mxu0 %v4616
        %10327 = vmatprep.subr.bf16.mxu0 %v4607
        %10328 = vmatpush1.bf16.msra.mxu0 %v4606
        %10329 = vmatprep.subr.bf16.mxu0 %v4597
        %10330 = vmatpush1.bf16.msra.mxu0 %v4596
        %10331 = vmatprep.subr.bf16.mxu0 %v4587
        %10332 = vmatpush1.bf16.msra.mxu0 %v4586
        %10333 = vmatprep.subr.bf16.mxu0 %v4577
        %10334 = vmatpush1.bf16.msra.mxu0 %v4576
        %10335 = vmatprep.subr.bf16.mxu0 %v4567
        %10336 = vmatpush1.bf16.msra.mxu0 %v4566
        %10337 = vmatprep.subr.bf16.mxu0 %v4557
        %10338 = vmatpush1.bf16.msra.mxu0 %v4556
        %10339 = vmatprep.subr.bf16.mxu0 %v4707
        %10340 = vmatpush2.bf16.msra.mxu0 %v4706
        %10341 = vmatprep.subr.bf16.mxu0 %v4697
        %10342 = vmatpush2.bf16.msra.mxu0 %v4696
        %10343 = vmatprep.subr.bf16.mxu0 %v4687
        %10344 = vmatpush2.bf16.msra.mxu0 %v4686
        %10345 = vmatprep.subr.bf16.mxu0 %v4677
        %10346 = vmatpush2.bf16.msra.mxu0 %v4676
        %10347 = vmatprep.subr.bf16.mxu0 %v4667
        %10348 = vmatpush2.bf16.msra.mxu0 %v4666
        %10349 = vmatprep.subr.bf16.mxu0 %v4657
        %10350 = vmatpush2.bf16.msra.mxu0 %v4656
        %10351 = vmatprep.subr.bf16.mxu0 %v4647
        %10352 = vmatpush2.bf16.msra.mxu0 %v4646
        %10353 = vmatprep.subr.bf16.mxu0 %v4637
        %10354 = vmatpush2.bf16.msra.mxu0 %v4636
        %10355 = vmatprep.mubr.bf16.mxu0 %v672
        %10356 = vmatmul.mubr.bf16.gmra.mxu0 %v670
        %v10357 = vpop.f32.mrf.mxu0
        %v10358 = vpop.f32.mrf.mxu0
        %v10359 = vpop.f32.mrf.mxu0
        %v10360 = vadd.f32 %v10160, %v10359
        %v10361 = vpop.f32.mrf.mxu0
        %v10362 = vadd.f32 %v10162, %v10361
        %10363 = vmatprep.mubr.bf16.mxu0 %v673
        %10364 = vmatmul.mubr.bf16.gmra.mxu0 %v671
        %v10365 = vpop.f32.mrf.mxu0
        %v10366 = vadd.f32 %v10166, %v10365
        %v10367 = vpop.f32.mrf.mxu0
        %v10368 = vadd.f32 %v10168, %v10367
        %v10369 = vpop.f32.mrf.mxu0
        %v10370 = vadd.f32 %v10170, %v10369
        %v10371 = vpop.f32.mrf.mxu0
        %v10372 = vadd.f32 %v10172, %v10371
        %10373 = vmatprep.mubr.bf16.mxu0 %v674
        %10374 = vmatmul.mubr.bf16.gmra.mxu0 %v672
        %v10375 = vpop.f32.mrf.mxu0
        %v10376 = vadd.f32 %v10176, %v10375
        %v10377 = vpop.f32.mrf.mxu0
        %v10378 = vadd.f32 %v10178, %v10377
        %v10379 = vpop.f32.mrf.mxu0
        %v10380 = vadd.f32 %v10180, %v10379
        %v10381 = vpop.f32.mrf.mxu0
        %v10382 = vadd.f32 %v10182, %v10381
        %10383 = vmatprep.mubr.bf16.mxu0 %v675
        %10384 = vmatmul.mubr.bf16.gmra.mxu0 %v673
        %v10385 = vpop.f32.mrf.mxu0
        %v10386 = vadd.f32 %v10186, %v10385
        %v10387 = vpop.f32.mrf.mxu0
        %v10388 = vadd.f32 %v10188, %v10387
        %v10389 = vpop.f32.mrf.mxu0
        %v10390 = vadd.f32 %v10190, %v10389
        %v10391 = vpop.f32.mrf.mxu0
        %v10392 = vadd.f32 %v10192, %v10391
        %10393 = vmatprep.mubr.bf16.mxu0 %v676
        %10394 = vmatmul.mubr.bf16.gmra.mxu0 %v674
        %v10395 = vpop.f32.mrf.mxu0
        %v10396 = vadd.f32 %v10196, %v10395
        %v10397 = vpop.f32.mrf.mxu0
        %v10398 = vadd.f32 %v10198, %v10397
        %v10399 = vpop.f32.mrf.mxu0
        %v10400 = vadd.f32 %v10200, %v10399
        %v10401 = vpop.f32.mrf.mxu0
        %v10402 = vadd.f32 %v10202, %v10401
        %10403 = vmatprep.mubr.bf16.mxu0 %v677
        %10404 = vmatmul.mubr.bf16.gmra.mxu0 %v675
        %v10405 = vpop.f32.mrf.mxu0
        %v10406 = vadd.f32 %v10206, %v10405
        %v10407 = vpop.f32.mrf.mxu0
        %v10408 = vadd.f32 %v10208, %v10407
        %v10409 = vpop.f32.mrf.mxu0
        %v10410 = vadd.f32 %v10210, %v10409
        %v10411 = vpop.f32.mrf.mxu0
        %v10412 = vadd.f32 %v10212, %v10411
        %10413 = vmatprep.mubr.bf16.mxu0 %v678
        %10414 = vmatmul.mubr.bf16.gmra.mxu0 %v676
        %v10415 = vpop.f32.mrf.mxu0
        %v10416 = vadd.f32 %v10216, %v10415
        %v10417 = vpop.f32.mrf.mxu0
        %v10418 = vadd.f32 %v10218, %v10417
        %v10419 = vpop.f32.mrf.mxu0
        %v10420 = vadd.f32 %v10220, %v10419
        %v10421 = vpop.f32.mrf.mxu0
        %v10422 = vadd.f32 %v10222, %v10421
        %10423 = vmatprep.mubr.bf16.mxu0 %v679
        %10424 = vmatmul.mubr.bf16.gmra.mxu0 %v677
        %v10425 = vpop.f32.mrf.mxu0
        %v10426 = vadd.f32 %v10226, %v10425
        %v10427 = vpop.f32.mrf.mxu0
        %v10428 = vadd.f32 %v10228, %v10427
        %v10429 = vpop.f32.mrf.mxu0
        %v10430 = vadd.f32 %v10230, %v10429
        %v10431 = vpop.f32.mrf.mxu0
        %v10432 = vadd.f32 %v10232, %v10431
        %10433 = vmatprep.mubr.bf16.mxu0 %v680
        %10434 = vmatmul.mubr.bf16.gmra.mxu0 %v678
        %v10435 = vpop.f32.mrf.mxu0
        %v10436 = vadd.f32 %v10236, %v10435
        %v10437 = vpop.f32.mrf.mxu0
        %v10438 = vadd.f32 %v10238, %v10437
        %v10439 = vpop.f32.mrf.mxu0
        %v10440 = vadd.f32 %v10240, %v10439
        %v10441 = vpop.f32.mrf.mxu0
        %v10442 = vadd.f32 %v10242, %v10441
        %10443 = vmatprep.mubr.bf16.mxu0 %v681
        %10444 = vmatmul.mubr.bf16.gmra.mxu0 %v679
        %v10445 = vpop.f32.mrf.mxu0
        %v10446 = vadd.f32 %v10246, %v10445
        %v10447 = vpop.f32.mrf.mxu0
        %v10448 = vadd.f32 %v10248, %v10447
        %v10449 = vpop.f32.mrf.mxu0
        %v10450 = vadd.f32 %v10250, %v10449
        %v10451 = vpop.f32.mrf.mxu0
        %v10452 = vadd.f32 %v10252, %v10451
        %10453 = vmatprep.mubr.bf16.mxu0 %v682
        %10454 = vmatmul.mubr.bf16.gmra.mxu0 %v680
        %v10455 = vpop.f32.mrf.mxu0
        %v10456 = vadd.f32 %v10256, %v10455
        %v10457 = vpop.f32.mrf.mxu0
        %v10458 = vadd.f32 %v10258, %v10457
        %v10459 = vpop.f32.mrf.mxu0
        %v10460 = vadd.f32 %v10260, %v10459
        %v10461 = vpop.f32.mrf.mxu0
        %v10462 = vadd.f32 %v10262, %v10461
        %10463 = vmatprep.mubr.bf16.mxu0 %v683
        %10464 = vmatmul.mubr.bf16.gmra.mxu0 %v681
        %v10465 = vpop.f32.mrf.mxu0
        %v10466 = vadd.f32 %v10266, %v10465
        %v10467 = vpop.f32.mrf.mxu0
        %v10468 = vadd.f32 %v10268, %v10467
        %v10469 = vpop.f32.mrf.mxu0
        %v10470 = vadd.f32 %v10270, %v10469
        %v10471 = vpop.f32.mrf.mxu0
        %v10472 = vadd.f32 %v10272, %v10471
        %10473 = vmatprep.mubr.bf16.mxu0 %v684
        %10474 = vmatmul.mubr.bf16.gmra.mxu0 %v682
        %v10475 = vpop.f32.mrf.mxu0
        %v10476 = vadd.f32 %v10276, %v10475
        %v10477 = vpop.f32.mrf.mxu0
        %v10478 = vadd.f32 %v10278, %v10477
        %v10479 = vpop.f32.mrf.mxu0
        %v10480 = vadd.f32 %v10280, %v10479
        %v10481 = vpop.f32.mrf.mxu0
        %v10482 = vadd.f32 %v10282, %v10481
        %10483 = vmatprep.mubr.bf16.mxu0 %v685
        %10484 = vmatmul.mubr.bf16.gmra.mxu0 %v683
        %v10485 = vpop.f32.mrf.mxu0
        %v10486 = vadd.f32 %v10286, %v10485
        %v10487 = vpop.f32.mrf.mxu0
        %v10488 = vadd.f32 %v10288, %v10487
        %v10489 = vpop.f32.mrf.mxu0
        %v10490 = vadd.f32 %v10290, %v10489
        %v10491 = vpop.f32.mrf.mxu0
        %v10492 = vadd.f32 %v10292, %v10491
        %10493 = vmatprep.mubr.bf16.mxu0 %v686
        %10494 = vmatmul.mubr.bf16.gmra.mxu0 %v684
        %v10495 = vpop.f32.mrf.mxu0
        %v10496 = vadd.f32 %v10296, %v10495
        %v10497 = vpop.f32.mrf.mxu0
        %v10498 = vadd.f32 %v10298, %v10497
        %v10499 = vpop.f32.mrf.mxu0
        %v10500 = vadd.f32 %v10300, %v10499
        %v10501 = vpop.f32.mrf.mxu0
        %v10502 = vadd.f32 %v10302, %v10501
        %10503 = vmatprep.mubr.bf16.mxu0 %v687
        %10504 = vmatmul.mubr.bf16.gmra.mxu0 %v685
        %v10505 = vpop.f32.mrf.mxu0
        %v10506 = vadd.f32 %v10306, %v10505
        %v10507 = vpop.f32.mrf.mxu0
        %v10508 = vadd.f32 %v10308, %v10507
        %v10509 = vpop.f32.mrf.mxu0
        %v10510 = vadd.f32 %v10310, %v10509
        %v10511 = vpop.f32.mrf.mxu0
        %v10512 = vadd.f32 %v10312, %v10511
        %10513 = vmatprep.mubr.bf16.mxu0 %v688
        %10514 = vmatmul.mubr.bf16.gmra.mxu0 %v686
        %v10515 = vpop.f32.mrf.mxu0
        %v10516 = vadd.f32 %v10316, %v10515
        %v10517 = vpop.f32.mrf.mxu0
        %v10518 = vadd.f32 %v10318, %v10517
        %v10519 = vpop.f32.mrf.mxu0
        %v10520 = vpop.f32.mrf.mxu0
        %v10521 = vadd.f32 %v10321, %v10520
        %10522 = vdwg.mxu0
        %vm10556 = vcmask 1046528
        %v10557 = vrot.slane %v6345, 1
        %v10558 = vrot.slane %v6349, 1
        %v10559 = vsel %vm10556, %v10557, %v10558
        %v10560 = vrot.slane %v6355, 1
        %v10561 = vsel %vm10556, %v10558, %v10560
        %v10562 = vrot.slane %v6359, 1
        %v10563 = vsel %vm10556, %v10560, %v10562
        %v10564 = vrot.slane %v6365, 1
        %v10565 = vsel %vm10556, %v10562, %v10564
        %v10566 = vrot.slane %v6369, 1
        %v10567 = vsel %vm10556, %v10564, %v10566
        %v10568 = vrot.slane %v6375, 1
        %v10569 = vsel %vm10556, %v10566, %v10568
        %v10570 = vrot.slane %v6379, 1
        %v10571 = vsel %vm10556, %v10568, %v10570
        %v10572 = vrot.slane %v6385, 1
        %v10573 = vsel %vm10556, %v10570, %v10572
        %v10574 = vrot.slane %v6389, 1
        %v10575 = vsel %vm10556, %v10572, %v10574
        %v10576 = vrot.slane %v6395, 1
        %v10577 = vsel %vm10556, %v10574, %v10576
        %v10578 = vrot.slane %v6399, 1
        %v10579 = vsel %vm10556, %v10576, %v10578
        %v10580 = vrot.slane %v6405, 1
        %v10581 = vsel %vm10556, %v10578, %v10580
        %v10582 = vrot.slane %v6409, 1
        %v10583 = vsel %vm10556, %v10580, %v10582
        %v10584 = vrot.slane %v6415, 1
        %v10585 = vsel %vm10556, %v10582, %v10584
        %v10586 = vrot.slane %v6419, 1
        %v10587 = vsel %vm10556, %v10584, %v10586
        %v10588 = vrot.slane %v6425, 1
        %v10589 = vsel %vm10556, %v10586, %v10588
        %v10590 = vrot.slane %v6429, 1
        %v10591 = vsel %vm10556, %v10588, %v10590
        %v10592 = vrot.slane %v6435, 1
        %v10593 = vsel %vm10556, %v10590, %v10592
        %v10594 = vrot.slane %v6439, 1
        %v10595 = vsel %vm10556, %v10592, %v10594
        %v10596 = vrot.slane %v6445, 1
        %v10597 = vsel %vm10556, %v10594, %v10596
        %v10598 = vrot.slane %v6449, 1
        %v10599 = vsel %vm10556, %v10596, %v10598
        %v10600 = vrot.slane %v6455, 1
        %v10601 = vsel %vm10556, %v10598, %v10600
        %v10602 = vrot.slane %v6459, 1
        %v10603 = vsel %vm10556, %v10600, %v10602
        %v10604 = vrot.slane %v6465, 1
        %v10605 = vsel %vm10556, %v10602, %v10604
        %v10606 = vrot.slane %v6469, 1
        %v10607 = vsel %vm10556, %v10604, %v10606
        %v10608 = vrot.slane %v6475, 1
        %v10609 = vsel %vm10556, %v10606, %v10608
        %v10610 = vrot.slane %v6479, 1
        %v10611 = vsel %vm10556, %v10608, %v10610
        %v10612 = vrot.slane %v6485, 1
        %v10613 = vsel %vm10556, %v10610, %v10612
        %v10614 = vrot.slane %v6489, 1
        %v10615 = vsel %vm10556, %v10612, %v10614
        %v10616 = vrot.slane %v6495, 1
        %v10617 = vsel %vm10556, %v10614, %v10616
        %v10618 = vrot.slane %v6499, 1
        %v10619 = vsel %vm10556, %v10616, %v10618
        %v10620 = vrot.slane %v6504, 1
        %v10621 = vsel %vm10556, %v10618, %v10620
        %v10654 = vadd.f32 %v6343, %v10559
        %v10655 = vadd.f32 %v6347, %v10561
        %v10656 = vadd.f32 %v6353, %v10563
        %v10657 = vadd.f32 %v6357, %v10565
        %v10658 = vadd.f32 %v6363, %v10567
        %v10659 = vadd.f32 %v6367, %v10569
        %v10660 = vadd.f32 %v6373, %v10571
        %v10661 = vadd.f32 %v6377, %v10573
        %v10662 = vadd.f32 %v6383, %v10575
        %v10663 = vadd.f32 %v6387, %v10577
        %v10664 = vadd.f32 %v6393, %v10579
        %v10665 = vadd.f32 %v6397, %v10581
        %v10666 = vadd.f32 %v6403, %v10583
        %v10667 = vadd.f32 %v6407, %v10585
        %v10668 = vadd.f32 %v6413, %v10587
        %v10669 = vadd.f32 %v6417, %v10589
        %v10670 = vadd.f32 %v6423, %v10591
        %v10671 = vadd.f32 %v6427, %v10593
        %v10672 = vadd.f32 %v6433, %v10595
        %v10673 = vadd.f32 %v6437, %v10597
        %v10674 = vadd.f32 %v6443, %v10599
        %v10675 = vadd.f32 %v6447, %v10601
        %v10676 = vadd.f32 %v6453, %v10603
        %v10677 = vadd.f32 %v6457, %v10605
        %v10678 = vadd.f32 %v6463, %v10607
        %v10679 = vadd.f32 %v6467, %v10609
        %v10680 = vadd.f32 %v6473, %v10611
        %v10681 = vadd.f32 %v6477, %v10613
        %v10682 = vadd.f32 %v6483, %v10615
        %v10683 = vadd.f32 %v6487, %v10617
        %v10684 = vadd.f32 %v6493, %v10619
        %v10685 = vadd.f32 %v6497, %v10621
        %vm10719 = vcmask 1045504
        %v10720 = vrot.slane %v7347, 2
        %v10721 = vrot.slane %v7351, 2
        %v10722 = vsel %vm10719, %v10720, %v10721
        %v10723 = vrot.slane %v7357, 2
        %v10724 = vsel %vm10719, %v10721, %v10723
        %v10725 = vrot.slane %v7361, 2
        %v10726 = vsel %vm10719, %v10723, %v10725
        %v10727 = vrot.slane %v7367, 2
        %v10728 = vsel %vm10719, %v10725, %v10727
        %v10729 = vrot.slane %v7371, 2
        %v10730 = vsel %vm10719, %v10727, %v10729
        %v10731 = vrot.slane %v7377, 2
        %v10732 = vsel %vm10719, %v10729, %v10731
        %v10733 = vrot.slane %v7381, 2
        %v10734 = vsel %vm10719, %v10731, %v10733
        %v10735 = vrot.slane %v7387, 2
        %v10736 = vsel %vm10719, %v10733, %v10735
        %v10737 = vrot.slane %v7391, 2
        %v10738 = vsel %vm10719, %v10735, %v10737
        %v10739 = vrot.slane %v7397, 2
        %v10740 = vsel %vm10719, %v10737, %v10739
        %v10741 = vrot.slane %v7401, 2
        %v10742 = vsel %vm10719, %v10739, %v10741
        %v10743 = vrot.slane %v7407, 2
        %v10744 = vsel %vm10719, %v10741, %v10743
        %v10745 = vrot.slane %v7411, 2
        %v10746 = vsel %vm10719, %v10743, %v10745
        %v10747 = vrot.slane %v7417, 2
        %v10748 = vsel %vm10719, %v10745, %v10747
        %v10749 = vrot.slane %v7421, 2
        %v10750 = vsel %vm10719, %v10747, %v10749
        %v10751 = vrot.slane %v7427, 2
        %v10752 = vsel %vm10719, %v10749, %v10751
        %v10753 = vrot.slane %v7431, 2
        %v10754 = vsel %vm10719, %v10751, %v10753
        %v10755 = vrot.slane %v7437, 2
        %v10756 = vsel %vm10719, %v10753, %v10755
        %v10757 = vrot.slane %v7441, 2
        %v10758 = vsel %vm10719, %v10755, %v10757
        %v10759 = vrot.slane %v7447, 2
        %v10760 = vsel %vm10719, %v10757, %v10759
        %v10761 = vrot.slane %v7451, 2
        %v10762 = vsel %vm10719, %v10759, %v10761
        %v10763 = vrot.slane %v7457, 2
        %v10764 = vsel %vm10719, %v10761, %v10763
        %v10765 = vrot.slane %v7461, 2
        %v10766 = vsel %vm10719, %v10763, %v10765
        %v10767 = vrot.slane %v7467, 2
        %v10768 = vsel %vm10719, %v10765, %v10767
        %v10769 = vrot.slane %v7471, 2
        %v10770 = vsel %vm10719, %v10767, %v10769
        %v10771 = vrot.slane %v7477, 2
        %v10772 = vsel %vm10719, %v10769, %v10771
        %v10773 = vrot.slane %v7481, 2
        %v10774 = vsel %vm10719, %v10771, %v10773
        %v10775 = vrot.slane %v7487, 2
        %v10776 = vsel %vm10719, %v10773, %v10775
        %v10777 = vrot.slane %v7491, 2
        %v10778 = vsel %vm10719, %v10775, %v10777
        %v10779 = vrot.slane %v7497, 2
        %v10780 = vsel %vm10719, %v10777, %v10779
        %v10781 = vrot.slane %v7501, 2
        %v10782 = vsel %vm10719, %v10779, %v10781
        %v10783 = vrot.slane %v7507, 2
        %v10784 = vsel %vm10719, %v10781, %v10783
        %v10817 = vadd.f32 %v10654, %v10722
        %v10818 = vadd.f32 %v10655, %v10724
        %v10819 = vadd.f32 %v10656, %v10726
        %v10820 = vadd.f32 %v10657, %v10728
        %v10821 = vadd.f32 %v10658, %v10730
        %v10822 = vadd.f32 %v10659, %v10732
        %v10823 = vadd.f32 %v10660, %v10734
        %v10824 = vadd.f32 %v10661, %v10736
        %v10825 = vadd.f32 %v10662, %v10738
        %v10826 = vadd.f32 %v10663, %v10740
        %v10827 = vadd.f32 %v10664, %v10742
        %v10828 = vadd.f32 %v10665, %v10744
        %v10829 = vadd.f32 %v10666, %v10746
        %v10830 = vadd.f32 %v10667, %v10748
        %v10831 = vadd.f32 %v10668, %v10750
        %v10832 = vadd.f32 %v10669, %v10752
        %v10833 = vadd.f32 %v10670, %v10754
        %v10834 = vadd.f32 %v10671, %v10756
        %v10835 = vadd.f32 %v10672, %v10758
        %v10836 = vadd.f32 %v10673, %v10760
        %v10837 = vadd.f32 %v10674, %v10762
        %v10838 = vadd.f32 %v10675, %v10764
        %v10839 = vadd.f32 %v10676, %v10766
        %v10840 = vadd.f32 %v10677, %v10768
        %v10841 = vadd.f32 %v10678, %v10770
        %v10842 = vadd.f32 %v10679, %v10772
        %v10843 = vadd.f32 %v10680, %v10774
        %v10844 = vadd.f32 %v10681, %v10776
        %v10845 = vadd.f32 %v10682, %v10778
        %v10846 = vadd.f32 %v10683, %v10780
        %v10847 = vadd.f32 %v10684, %v10782
        %v10848 = vadd.f32 %v10685, %v10784
        %vm10882 = vcmask 1044480
        %v10883 = vrot.slane %v7349, 3
        %v10884 = vrot.slane %v7353, 3
        %v10885 = vsel %vm10882, %v10883, %v10884
        %v10886 = vrot.slane %v7359, 3
        %v10887 = vsel %vm10882, %v10884, %v10886
        %v10888 = vrot.slane %v7363, 3
        %v10889 = vsel %vm10882, %v10886, %v10888
        %v10890 = vrot.slane %v7369, 3
        %v10891 = vsel %vm10882, %v10888, %v10890
        %v10892 = vrot.slane %v7373, 3
        %v10893 = vsel %vm10882, %v10890, %v10892
        %v10894 = vrot.slane %v7379, 3
        %v10895 = vsel %vm10882, %v10892, %v10894
        %v10896 = vrot.slane %v7383, 3
        %v10897 = vsel %vm10882, %v10894, %v10896
        %v10898 = vrot.slane %v7389, 3
        %v10899 = vsel %vm10882, %v10896, %v10898
        %v10900 = vrot.slane %v7393, 3
        %v10901 = vsel %vm10882, %v10898, %v10900
        %v10902 = vrot.slane %v7399, 3
        %v10903 = vsel %vm10882, %v10900, %v10902
        %v10904 = vrot.slane %v7403, 3
        %v10905 = vsel %vm10882, %v10902, %v10904
        %v10906 = vrot.slane %v7409, 3
        %v10907 = vsel %vm10882, %v10904, %v10906
        %v10908 = vrot.slane %v7413, 3
        %v10909 = vsel %vm10882, %v10906, %v10908
        %v10910 = vrot.slane %v7419, 3
        %v10911 = vsel %vm10882, %v10908, %v10910
        %v10912 = vrot.slane %v7423, 3
        %v10913 = vsel %vm10882, %v10910, %v10912
        %v10914 = vrot.slane %v7429, 3
        %v10915 = vsel %vm10882, %v10912, %v10914
        %v10916 = vrot.slane %v7433, 3
        %v10917 = vsel %vm10882, %v10914, %v10916
        %v10918 = vrot.slane %v7439, 3
        %v10919 = vsel %vm10882, %v10916, %v10918
        %v10920 = vrot.slane %v7443, 3
        %v10921 = vsel %vm10882, %v10918, %v10920
        %v10922 = vrot.slane %v7449, 3
        %v10923 = vsel %vm10882, %v10920, %v10922
        %v10924 = vrot.slane %v7453, 3
        %v10925 = vsel %vm10882, %v10922, %v10924
        %v10926 = vrot.slane %v7459, 3
        %v10927 = vsel %vm10882, %v10924, %v10926
        %v10928 = vrot.slane %v7463, 3
        %v10929 = vsel %vm10882, %v10926, %v10928
        %v10930 = vrot.slane %v7469, 3
        %v10931 = vsel %vm10882, %v10928, %v10930
        %v10932 = vrot.slane %v7473, 3
        %v10933 = vsel %vm10882, %v10930, %v10932
        %v10934 = vrot.slane %v7479, 3
        %v10935 = vsel %vm10882, %v10932, %v10934
        %v10936 = vrot.slane %v7483, 3
        %v10937 = vsel %vm10882, %v10934, %v10936
        %v10938 = vrot.slane %v7489, 3
        %v10939 = vsel %vm10882, %v10936, %v10938
        %v10940 = vrot.slane %v7493, 3
        %v10941 = vsel %vm10882, %v10938, %v10940
        %v10942 = vrot.slane %v7499, 3
        %v10943 = vsel %vm10882, %v10940, %v10942
        %v10944 = vrot.slane %v7503, 3
        %v10945 = vsel %vm10882, %v10942, %v10944
        %v10946 = vrot.slane %v7509, 3
        %v10947 = vsel %vm10882, %v10944, %v10946
        %v10980 = vadd.f32 %v10817, %v10885
        %v10981 = vadd.f32 %v10818, %v10887
        %v10982 = vadd.f32 %v10819, %v10889
        %v10983 = vadd.f32 %v10820, %v10891
        %v10984 = vadd.f32 %v10821, %v10893
        %v10985 = vadd.f32 %v10822, %v10895
        %v10986 = vadd.f32 %v10823, %v10897
        %v10987 = vadd.f32 %v10824, %v10899
        %v10988 = vadd.f32 %v10825, %v10901
        %v10989 = vadd.f32 %v10826, %v10903
        %v10990 = vadd.f32 %v10827, %v10905
        %v10991 = vadd.f32 %v10828, %v10907
        %v10992 = vadd.f32 %v10829, %v10909
        %v10993 = vadd.f32 %v10830, %v10911
        %v10994 = vadd.f32 %v10831, %v10913
        %v10995 = vadd.f32 %v10832, %v10915
        %v10996 = vadd.f32 %v10833, %v10917
        %v10997 = vadd.f32 %v10834, %v10919
        %v10998 = vadd.f32 %v10835, %v10921
        %v10999 = vadd.f32 %v10836, %v10923
        %v11000 = vadd.f32 %v10837, %v10925
        %v11001 = vadd.f32 %v10838, %v10927
        %v11002 = vadd.f32 %v10839, %v10929
        %v11003 = vadd.f32 %v10840, %v10931
        %v11004 = vadd.f32 %v10841, %v10933
        %v11005 = vadd.f32 %v10842, %v10935
        %v11006 = vadd.f32 %v10843, %v10937
        %v11007 = vadd.f32 %v10844, %v10939
        %v11008 = vadd.f32 %v10845, %v10941
        %v11009 = vadd.f32 %v10846, %v10943
        %v11010 = vadd.f32 %v10847, %v10945
        %v11011 = vadd.f32 %v10848, %v10947
        %vm11045 = vcmask 1043456
        %v11046 = vrot.slane %v8352, 4
        %v11047 = vrot.slane %v8356, 4
        %v11048 = vsel %vm11045, %v11046, %v11047
        %v11049 = vrot.slane %v8362, 4
        %v11050 = vsel %vm11045, %v11047, %v11049
        %v11051 = vrot.slane %v8366, 4
        %v11052 = vsel %vm11045, %v11049, %v11051
        %v11053 = vrot.slane %v8372, 4
        %v11054 = vsel %vm11045, %v11051, %v11053
        %v11055 = vrot.slane %v8376, 4
        %v11056 = vsel %vm11045, %v11053, %v11055
        %v11057 = vrot.slane %v8382, 4
        %v11058 = vsel %vm11045, %v11055, %v11057
        %v11059 = vrot.slane %v8386, 4
        %v11060 = vsel %vm11045, %v11057, %v11059
        %v11061 = vrot.slane %v8392, 4
        %v11062 = vsel %vm11045, %v11059, %v11061
        %v11063 = vrot.slane %v8396, 4
        %v11064 = vsel %vm11045, %v11061, %v11063
        %v11065 = vrot.slane %v8402, 4
        %v11066 = vsel %vm11045, %v11063, %v11065
        %v11067 = vrot.slane %v8406, 4
        %v11068 = vsel %vm11045, %v11065, %v11067
        %v11069 = vrot.slane %v8412, 4
        %v11070 = vsel %vm11045, %v11067, %v11069
        %v11071 = vrot.slane %v8416, 4
        %v11072 = vsel %vm11045, %v11069, %v11071
        %v11073 = vrot.slane %v8422, 4
        %v11074 = vsel %vm11045, %v11071, %v11073
        %v11075 = vrot.slane %v8426, 4
        %v11076 = vsel %vm11045, %v11073, %v11075
        %v11077 = vrot.slane %v8432, 4
        %v11078 = vsel %vm11045, %v11075, %v11077
        %v11079 = vrot.slane %v8436, 4
        %v11080 = vsel %vm11045, %v11077, %v11079
        %v11081 = vrot.slane %v8442, 4
        %v11082 = vsel %vm11045, %v11079, %v11081
        %v11083 = vrot.slane %v8446, 4
        %v11084 = vsel %vm11045, %v11081, %v11083
        %v11085 = vrot.slane %v8452, 4
        %v11086 = vsel %vm11045, %v11083, %v11085
        %v11087 = vrot.slane %v8456, 4
        %v11088 = vsel %vm11045, %v11085, %v11087
        %v11089 = vrot.slane %v8462, 4
        %v11090 = vsel %vm11045, %v11087, %v11089
        %v11091 = vrot.slane %v8466, 4
        %v11092 = vsel %vm11045, %v11089, %v11091
        %v11093 = vrot.slane %v8472, 4
        %v11094 = vsel %vm11045, %v11091, %v11093
        %v11095 = vrot.slane %v8476, 4
        %v11096 = vsel %vm11045, %v11093, %v11095
        %v11097 = vrot.slane %v8482, 4
        %v11098 = vsel %vm11045, %v11095, %v11097
        %v11099 = vrot.slane %v8486, 4
        %v11100 = vsel %vm11045, %v11097, %v11099
        %v11101 = vrot.slane %v8492, 4
        %v11102 = vsel %vm11045, %v11099, %v11101
        %v11103 = vrot.slane %v8496, 4
        %v11104 = vsel %vm11045, %v11101, %v11103
        %v11105 = vrot.slane %v8502, 4
        %v11106 = vsel %vm11045, %v11103, %v11105
        %v11107 = vrot.slane %v8506, 4
        %v11108 = vsel %vm11045, %v11105, %v11107
        %v11109 = vrot.slane %v8512, 4
        %v11110 = vsel %vm11045, %v11107, %v11109
        %v11143 = vadd.f32 %v10980, %v11048
        %v11144 = vadd.f32 %v10981, %v11050
        %v11145 = vadd.f32 %v10982, %v11052
        %v11146 = vadd.f32 %v10983, %v11054
        %v11147 = vadd.f32 %v10984, %v11056
        %v11148 = vadd.f32 %v10985, %v11058
        %v11149 = vadd.f32 %v10986, %v11060
        %v11150 = vadd.f32 %v10987, %v11062
        %v11151 = vadd.f32 %v10988, %v11064
        %v11152 = vadd.f32 %v10989, %v11066
        %v11153 = vadd.f32 %v10990, %v11068
        %v11154 = vadd.f32 %v10991, %v11070
        %v11155 = vadd.f32 %v10992, %v11072
        %v11156 = vadd.f32 %v10993, %v11074
        %v11157 = vadd.f32 %v10994, %v11076
        %v11158 = vadd.f32 %v10995, %v11078
        %v11159 = vadd.f32 %v10996, %v11080
        %v11160 = vadd.f32 %v10997, %v11082
        %v11161 = vadd.f32 %v10998, %v11084
        %v11162 = vadd.f32 %v10999, %v11086
        %v11163 = vadd.f32 %v11000, %v11088
        %v11164 = vadd.f32 %v11001, %v11090
        %v11165 = vadd.f32 %v11002, %v11092
        %v11166 = vadd.f32 %v11003, %v11094
        %v11167 = vadd.f32 %v11004, %v11096
        %v11168 = vadd.f32 %v11005, %v11098
        %v11169 = vadd.f32 %v11006, %v11100
        %v11170 = vadd.f32 %v11007, %v11102
        %v11171 = vadd.f32 %v11008, %v11104
        %v11172 = vadd.f32 %v11009, %v11106
        %v11173 = vadd.f32 %v11010, %v11108
        %v11174 = vadd.f32 %v11011, %v11110
        %vm11208 = vcmask 1042432
        %v11209 = vrot.slane %v8354, 5
        %v11210 = vrot.slane %v8358, 5
        %v11211 = vsel %vm11208, %v11209, %v11210
        %v11212 = vrot.slane %v8364, 5
        %v11213 = vsel %vm11208, %v11210, %v11212
        %v11214 = vrot.slane %v8368, 5
        %v11215 = vsel %vm11208, %v11212, %v11214
        %v11216 = vrot.slane %v8374, 5
        %v11217 = vsel %vm11208, %v11214, %v11216
        %v11218 = vrot.slane %v8378, 5
        %v11219 = vsel %vm11208, %v11216, %v11218
        %v11220 = vrot.slane %v8384, 5
        %v11221 = vsel %vm11208, %v11218, %v11220
        %v11222 = vrot.slane %v8388, 5
        %v11223 = vsel %vm11208, %v11220, %v11222
        %v11224 = vrot.slane %v8394, 5
        %v11225 = vsel %vm11208, %v11222, %v11224
        %v11226 = vrot.slane %v8398, 5
        %v11227 = vsel %vm11208, %v11224, %v11226
        %v11228 = vrot.slane %v8404, 5
        %v11229 = vsel %vm11208, %v11226, %v11228
        %v11230 = vrot.slane %v8408, 5
        %v11231 = vsel %vm11208, %v11228, %v11230
        %v11232 = vrot.slane %v8414, 5
        %v11233 = vsel %vm11208, %v11230, %v11232
        %v11234 = vrot.slane %v8418, 5
        %v11235 = vsel %vm11208, %v11232, %v11234
        %v11236 = vrot.slane %v8424, 5
        %v11237 = vsel %vm11208, %v11234, %v11236
        %v11238 = vrot.slane %v8428, 5
        %v11239 = vsel %vm11208, %v11236, %v11238
        %v11240 = vrot.slane %v8434, 5
        %v11241 = vsel %vm11208, %v11238, %v11240
        %v11242 = vrot.slane %v8438, 5
        %v11243 = vsel %vm11208, %v11240, %v11242
        %v11244 = vrot.slane %v8444, 5
        %v11245 = vsel %vm11208, %v11242, %v11244
        %v11246 = vrot.slane %v8448, 5
        %v11247 = vsel %vm11208, %v11244, %v11246
        %v11248 = vrot.slane %v8454, 5
        %v11249 = vsel %vm11208, %v11246, %v11248
        %v11250 = vrot.slane %v8458, 5
        %v11251 = vsel %vm11208, %v11248, %v11250
        %v11252 = vrot.slane %v8464, 5
        %v11253 = vsel %vm11208, %v11250, %v11252
        %v11254 = vrot.slane %v8468, 5
        %v11255 = vsel %vm11208, %v11252, %v11254
        %v11256 = vrot.slane %v8474, 5
        %v11257 = vsel %vm11208, %v11254, %v11256
        %v11258 = vrot.slane %v8478, 5
        %v11259 = vsel %vm11208, %v11256, %v11258
        %v11260 = vrot.slane %v8484, 5
        %v11261 = vsel %vm11208, %v11258, %v11260
        %v11262 = vrot.slane %v8488, 5
        %v11263 = vsel %vm11208, %v11260, %v11262
        %v11264 = vrot.slane %v8494, 5
        %v11265 = vsel %vm11208, %v11262, %v11264
        %v11266 = vrot.slane %v8498, 5
        %v11267 = vsel %vm11208, %v11264, %v11266
        %v11268 = vrot.slane %v8504, 5
        %v11269 = vsel %vm11208, %v11266, %v11268
        %v11270 = vrot.slane %v8508, 5
        %v11271 = vsel %vm11208, %v11268, %v11270
        %v11272 = vrot.slane %v8514, 5
        %v11273 = vsel %vm11208, %v11270, %v11272
        %v11306 = vadd.f32 %v11143, %v11211
        %v11307 = vadd.f32 %v11144, %v11213
        %v11308 = vadd.f32 %v11145, %v11215
        %v11309 = vadd.f32 %v11146, %v11217
        %v11310 = vadd.f32 %v11147, %v11219
        %v11311 = vadd.f32 %v11148, %v11221
        %v11312 = vadd.f32 %v11149, %v11223
        %v11313 = vadd.f32 %v11150, %v11225
        %v11314 = vadd.f32 %v11151, %v11227
        %v11315 = vadd.f32 %v11152, %v11229
        %v11316 = vadd.f32 %v11153, %v11231
        %v11317 = vadd.f32 %v11154, %v11233
        %v11318 = vadd.f32 %v11155, %v11235
        %v11319 = vadd.f32 %v11156, %v11237
        %v11320 = vadd.f32 %v11157, %v11239
        %v11321 = vadd.f32 %v11158, %v11241
        %v11322 = vadd.f32 %v11159, %v11243
        %v11323 = vadd.f32 %v11160, %v11245
        %v11324 = vadd.f32 %v11161, %v11247
        %v11325 = vadd.f32 %v11162, %v11249
        %v11326 = vadd.f32 %v11163, %v11251
        %v11327 = vadd.f32 %v11164, %v11253
        %v11328 = vadd.f32 %v11165, %v11255
        %v11329 = vadd.f32 %v11166, %v11257
        %v11330 = vadd.f32 %v11167, %v11259
        %v11331 = vadd.f32 %v11168, %v11261
        %v11332 = vadd.f32 %v11169, %v11263
        %v11333 = vadd.f32 %v11170, %v11265
        %v11334 = vadd.f32 %v11171, %v11267
        %v11335 = vadd.f32 %v11172, %v11269
        %v11336 = vadd.f32 %v11173, %v11271
        %v11337 = vadd.f32 %v11174, %v11273
        %vm11371 = vcmask 1041408
        %v11372 = vrot.slane %v9357, 6
        %v11373 = vrot.slane %v9361, 6
        %v11374 = vsel %vm11371, %v11372, %v11373
        %v11375 = vrot.slane %v9367, 6
        %v11376 = vsel %vm11371, %v11373, %v11375
        %v11377 = vrot.slane %v9371, 6
        %v11378 = vsel %vm11371, %v11375, %v11377
        %v11379 = vrot.slane %v9377, 6
        %v11380 = vsel %vm11371, %v11377, %v11379
        %v11381 = vrot.slane %v9381, 6
        %v11382 = vsel %vm11371, %v11379, %v11381
        %v11383 = vrot.slane %v9387, 6
        %v11384 = vsel %vm11371, %v11381, %v11383
        %v11385 = vrot.slane %v9391, 6
        %v11386 = vsel %vm11371, %v11383, %v11385
        %v11387 = vrot.slane %v9397, 6
        %v11388 = vsel %vm11371, %v11385, %v11387
        %v11389 = vrot.slane %v9401, 6
        %v11390 = vsel %vm11371, %v11387, %v11389
        %v11391 = vrot.slane %v9407, 6
        %v11392 = vsel %vm11371, %v11389, %v11391
        %v11393 = vrot.slane %v9411, 6
        %v11394 = vsel %vm11371, %v11391, %v11393
        %v11395 = vrot.slane %v9417, 6
        %v11396 = vsel %vm11371, %v11393, %v11395
        %v11397 = vrot.slane %v9421, 6
        %v11398 = vsel %vm11371, %v11395, %v11397
        %v11399 = vrot.slane %v9427, 6
        %v11400 = vsel %vm11371, %v11397, %v11399
        %v11401 = vrot.slane %v9431, 6
        %v11402 = vsel %vm11371, %v11399, %v11401
        %v11403 = vrot.slane %v9437, 6
        %v11404 = vsel %vm11371, %v11401, %v11403
        %v11405 = vrot.slane %v9441, 6
        %v11406 = vsel %vm11371, %v11403, %v11405
        %v11407 = vrot.slane %v9447, 6
        %v11408 = vsel %vm11371, %v11405, %v11407
        %v11409 = vrot.slane %v9451, 6
        %v11410 = vsel %vm11371, %v11407, %v11409
        %v11411 = vrot.slane %v9457, 6
        %v11412 = vsel %vm11371, %v11409, %v11411
        %v11413 = vrot.slane %v9461, 6
        %v11414 = vsel %vm11371, %v11411, %v11413
        %v11415 = vrot.slane %v9467, 6
        %v11416 = vsel %vm11371, %v11413, %v11415
        %v11417 = vrot.slane %v9471, 6
        %v11418 = vsel %vm11371, %v11415, %v11417
        %v11419 = vrot.slane %v9477, 6
        %v11420 = vsel %vm11371, %v11417, %v11419
        %v11421 = vrot.slane %v9481, 6
        %v11422 = vsel %vm11371, %v11419, %v11421
        %v11423 = vrot.slane %v9487, 6
        %v11424 = vsel %vm11371, %v11421, %v11423
        %v11425 = vrot.slane %v9491, 6
        %v11426 = vsel %vm11371, %v11423, %v11425
        %v11427 = vrot.slane %v9497, 6
        %v11428 = vsel %vm11371, %v11425, %v11427
        %v11429 = vrot.slane %v9501, 6
        %v11430 = vsel %vm11371, %v11427, %v11429
        %v11431 = vrot.slane %v9507, 6
        %v11432 = vsel %vm11371, %v11429, %v11431
        %v11433 = vrot.slane %v9511, 6
        %v11434 = vsel %vm11371, %v11431, %v11433
        %v11435 = vrot.slane %v9517, 6
        %v11436 = vsel %vm11371, %v11433, %v11435
        %v11469 = vadd.f32 %v11306, %v11374
        %v11470 = vadd.f32 %v11307, %v11376
        %v11471 = vadd.f32 %v11308, %v11378
        %v11472 = vadd.f32 %v11309, %v11380
        %v11473 = vadd.f32 %v11310, %v11382
        %v11474 = vadd.f32 %v11311, %v11384
        %v11475 = vadd.f32 %v11312, %v11386
        %v11476 = vadd.f32 %v11313, %v11388
        %v11477 = vadd.f32 %v11314, %v11390
        %v11478 = vadd.f32 %v11315, %v11392
        %v11479 = vadd.f32 %v11316, %v11394
        %v11480 = vadd.f32 %v11317, %v11396
        %v11481 = vadd.f32 %v11318, %v11398
        %v11482 = vadd.f32 %v11319, %v11400
        %v11483 = vadd.f32 %v11320, %v11402
        %v11484 = vadd.f32 %v11321, %v11404
        %v11485 = vadd.f32 %v11322, %v11406
        %v11486 = vadd.f32 %v11323, %v11408
        %v11487 = vadd.f32 %v11324, %v11410
        %v11488 = vadd.f32 %v11325, %v11412
        %v11489 = vadd.f32 %v11326, %v11414
        %v11490 = vadd.f32 %v11327, %v11416
        %v11491 = vadd.f32 %v11328, %v11418
        %v11492 = vadd.f32 %v11329, %v11420
        %v11493 = vadd.f32 %v11330, %v11422
        %v11494 = vadd.f32 %v11331, %v11424
        %v11495 = vadd.f32 %v11332, %v11426
        %v11496 = vadd.f32 %v11333, %v11428
        %v11497 = vadd.f32 %v11334, %v11430
        %v11498 = vadd.f32 %v11335, %v11432
        %v11499 = vadd.f32 %v11336, %v11434
        %v11500 = vadd.f32 %v11337, %v11436
        %vm11534 = vcmask 1040384
        %v11535 = vrot.slane %v9359, 7
        %v11536 = vrot.slane %v9363, 7
        %v11537 = vsel %vm11534, %v11535, %v11536
        %v11538 = vrot.slane %v9369, 7
        %v11539 = vsel %vm11534, %v11536, %v11538
        %v11540 = vrot.slane %v9373, 7
        %v11541 = vsel %vm11534, %v11538, %v11540
        %v11542 = vrot.slane %v9379, 7
        %v11543 = vsel %vm11534, %v11540, %v11542
        %v11544 = vrot.slane %v9383, 7
        %v11545 = vsel %vm11534, %v11542, %v11544
        %v11546 = vrot.slane %v9389, 7
        %v11547 = vsel %vm11534, %v11544, %v11546
        %v11548 = vrot.slane %v9393, 7
        %v11549 = vsel %vm11534, %v11546, %v11548
        %v11550 = vrot.slane %v9399, 7
        %v11551 = vsel %vm11534, %v11548, %v11550
        %v11552 = vrot.slane %v9403, 7
        %v11553 = vsel %vm11534, %v11550, %v11552
        %v11554 = vrot.slane %v9409, 7
        %v11555 = vsel %vm11534, %v11552, %v11554
        %v11556 = vrot.slane %v9413, 7
        %v11557 = vsel %vm11534, %v11554, %v11556
        %v11558 = vrot.slane %v9419, 7
        %v11559 = vsel %vm11534, %v11556, %v11558
        %v11560 = vrot.slane %v9423, 7
        %v11561 = vsel %vm11534, %v11558, %v11560
        %v11562 = vrot.slane %v9429, 7
        %v11563 = vsel %vm11534, %v11560, %v11562
        %v11564 = vrot.slane %v9433, 7
        %v11565 = vsel %vm11534, %v11562, %v11564
        %v11566 = vrot.slane %v9439, 7
        %v11567 = vsel %vm11534, %v11564, %v11566
        %v11568 = vrot.slane %v9443, 7
        %v11569 = vsel %vm11534, %v11566, %v11568
        %v11570 = vrot.slane %v9449, 7
        %v11571 = vsel %vm11534, %v11568, %v11570
        %v11572 = vrot.slane %v9453, 7
        %v11573 = vsel %vm11534, %v11570, %v11572
        %v11574 = vrot.slane %v9459, 7
        %v11575 = vsel %vm11534, %v11572, %v11574
        %v11576 = vrot.slane %v9463, 7
        %v11577 = vsel %vm11534, %v11574, %v11576
        %v11578 = vrot.slane %v9469, 7
        %v11579 = vsel %vm11534, %v11576, %v11578
        %v11580 = vrot.slane %v9473, 7
        %v11581 = vsel %vm11534, %v11578, %v11580
        %v11582 = vrot.slane %v9479, 7
        %v11583 = vsel %vm11534, %v11580, %v11582
        %v11584 = vrot.slane %v9483, 7
        %v11585 = vsel %vm11534, %v11582, %v11584
        %v11586 = vrot.slane %v9489, 7
        %v11587 = vsel %vm11534, %v11584, %v11586
        %v11588 = vrot.slane %v9493, 7
        %v11589 = vsel %vm11534, %v11586, %v11588
        %v11590 = vrot.slane %v9499, 7
        %v11591 = vsel %vm11534, %v11588, %v11590
        %v11592 = vrot.slane %v9503, 7
        %v11593 = vsel %vm11534, %v11590, %v11592
        %v11594 = vrot.slane %v9509, 7
        %v11595 = vsel %vm11534, %v11592, %v11594
        %v11596 = vrot.slane %v9513, 7
        %v11597 = vsel %vm11534, %v11594, %v11596
        %v11598 = vrot.slane %v9519, 7
        %v11599 = vsel %vm11534, %v11596, %v11598
        %v11632 = vadd.f32 %v11469, %v11537
        %v11633 = vadd.f32 %v11470, %v11539
        %v11634 = vadd.f32 %v11471, %v11541
        %v11635 = vadd.f32 %v11472, %v11543
        %v11636 = vadd.f32 %v11473, %v11545
        %v11637 = vadd.f32 %v11474, %v11547
        %v11638 = vadd.f32 %v11475, %v11549
        %v11639 = vadd.f32 %v11476, %v11551
        %v11640 = vadd.f32 %v11477, %v11553
        %v11641 = vadd.f32 %v11478, %v11555
        %v11642 = vadd.f32 %v11479, %v11557
        %v11643 = vadd.f32 %v11480, %v11559
        %v11644 = vadd.f32 %v11481, %v11561
        %v11645 = vadd.f32 %v11482, %v11563
        %v11646 = vadd.f32 %v11483, %v11565
        %v11647 = vadd.f32 %v11484, %v11567
        %v11648 = vadd.f32 %v11485, %v11569
        %v11649 = vadd.f32 %v11486, %v11571
        %v11650 = vadd.f32 %v11487, %v11573
        %v11651 = vadd.f32 %v11488, %v11575
        %v11652 = vadd.f32 %v11489, %v11577
        %v11653 = vadd.f32 %v11490, %v11579
        %v11654 = vadd.f32 %v11491, %v11581
        %v11655 = vadd.f32 %v11492, %v11583
        %v11656 = vadd.f32 %v11493, %v11585
        %v11657 = vadd.f32 %v11494, %v11587
        %v11658 = vadd.f32 %v11495, %v11589
        %v11659 = vadd.f32 %v11496, %v11591
        %v11660 = vadd.f32 %v11497, %v11593
        %v11661 = vadd.f32 %v11498, %v11595
        %v11662 = vadd.f32 %v11499, %v11597
        %v11663 = vadd.f32 %v11500, %v11599
        %v11664 = vadd.f32 %v11632, %v10360
        %v11665 = vadd.f32 %v11633, %v10366
        %v11666 = vadd.f32 %v11634, %v10370
        %v11667 = vadd.f32 %v11635, %v10376
        %v11668 = vadd.f32 %v11636, %v10380
        %v11669 = vadd.f32 %v11637, %v10386
        %v11670 = vadd.f32 %v11638, %v10390
        %v11671 = vadd.f32 %v11639, %v10396
        %v11672 = vadd.f32 %v11640, %v10400
        %v11673 = vadd.f32 %v11641, %v10406
        %v11674 = vadd.f32 %v11642, %v10410
        %v11675 = vadd.f32 %v11643, %v10416
        %v11676 = vadd.f32 %v11644, %v10420
        %v11677 = vadd.f32 %v11645, %v10426
        %v11678 = vadd.f32 %v11646, %v10430
        %v11679 = vadd.f32 %v11647, %v10436
        %v11680 = vadd.f32 %v11648, %v10440
        %v11681 = vadd.f32 %v11649, %v10446
        %v11682 = vadd.f32 %v11650, %v10450
        %v11683 = vadd.f32 %v11651, %v10456
        %v11684 = vadd.f32 %v11652, %v10460
        %v11685 = vadd.f32 %v11653, %v10466
        %v11686 = vadd.f32 %v11654, %v10470
        %v11687 = vadd.f32 %v11655, %v10476
        %v11688 = vadd.f32 %v11656, %v10480
        %v11689 = vadd.f32 %v11657, %v10486
        %v11690 = vadd.f32 %v11658, %v10490
        %v11691 = vadd.f32 %v11659, %v10496
        %v11692 = vadd.f32 %v11660, %v10500
        %v11693 = vadd.f32 %v11661, %v10506
        %v11694 = vadd.f32 %v11662, %v10510
        %v11695 = vadd.f32 %v11663, %v10516
        %v11729 = vrot.slane %v10362, 1
        %v11730 = vrot.slane %v10368, 1
        %v11731 = vsel %vm10556, %v11729, %v11730
        %v11732 = vrot.slane %v10372, 1
        %v11733 = vsel %vm10556, %v11730, %v11732
        %v11734 = vrot.slane %v10378, 1
        %v11735 = vsel %vm10556, %v11732, %v11734
        %v11736 = vrot.slane %v10382, 1
        %v11737 = vsel %vm10556, %v11734, %v11736
        %v11738 = vrot.slane %v10388, 1
        %v11739 = vsel %vm10556, %v11736, %v11738
        %v11740 = vrot.slane %v10392, 1
        %v11741 = vsel %vm10556, %v11738, %v11740
        %v11742 = vrot.slane %v10398, 1
        %v11743 = vsel %vm10556, %v11740, %v11742
        %v11744 = vrot.slane %v10402, 1
        %v11745 = vsel %vm10556, %v11742, %v11744
        %v11746 = vrot.slane %v10408, 1
        %v11747 = vsel %vm10556, %v11744, %v11746
        %v11748 = vrot.slane %v10412, 1
        %v11749 = vsel %vm10556, %v11746, %v11748
        %v11750 = vrot.slane %v10418, 1
        %v11751 = vsel %vm10556, %v11748, %v11750
        %v11752 = vrot.slane %v10422, 1
        %v11753 = vsel %vm10556, %v11750, %v11752
        %v11754 = vrot.slane %v10428, 1
        %v11755 = vsel %vm10556, %v11752, %v11754
        %v11756 = vrot.slane %v10432, 1
        %v11757 = vsel %vm10556, %v11754, %v11756
        %v11758 = vrot.slane %v10438, 1
        %v11759 = vsel %vm10556, %v11756, %v11758
        %v11760 = vrot.slane %v10442, 1
        %v11761 = vsel %vm10556, %v11758, %v11760
        %v11762 = vrot.slane %v10448, 1
        %v11763 = vsel %vm10556, %v11760, %v11762
        %v11764 = vrot.slane %v10452, 1
        %v11765 = vsel %vm10556, %v11762, %v11764
        %v11766 = vrot.slane %v10458, 1
        %v11767 = vsel %vm10556, %v11764, %v11766
        %v11768 = vrot.slane %v10462, 1
        %v11769 = vsel %vm10556, %v11766, %v11768
        %v11770 = vrot.slane %v10468, 1
        %v11771 = vsel %vm10556, %v11768, %v11770
        %v11772 = vrot.slane %v10472, 1
        %v11773 = vsel %vm10556, %v11770, %v11772
        %v11774 = vrot.slane %v10478, 1
        %v11775 = vsel %vm10556, %v11772, %v11774
        %v11776 = vrot.slane %v10482, 1
        %v11777 = vsel %vm10556, %v11774, %v11776
        %v11778 = vrot.slane %v10488, 1
        %v11779 = vsel %vm10556, %v11776, %v11778
        %v11780 = vrot.slane %v10492, 1
        %v11781 = vsel %vm10556, %v11778, %v11780
        %v11782 = vrot.slane %v10498, 1
        %v11783 = vsel %vm10556, %v11780, %v11782
        %v11784 = vrot.slane %v10502, 1
        %v11785 = vsel %vm10556, %v11782, %v11784
        %v11786 = vrot.slane %v10508, 1
        %v11787 = vsel %vm10556, %v11784, %v11786
        %v11788 = vrot.slane %v10512, 1
        %v11789 = vsel %vm10556, %v11786, %v11788
        %v11790 = vrot.slane %v10518, 1
        %v11791 = vsel %vm10556, %v11788, %v11790
        %v11792 = vrot.slane %v10521, 1
        %v11793 = vsel %vm10556, %v11790, %v11792
        %v11826 = vadd.f32 %v11664, %v11731
        %v11827 = vadd.f32 %v11665, %v11733
        %v11828 = vadd.f32 %v11666, %v11735
        %v11829 = vadd.f32 %v11667, %v11737
        %v11830 = vadd.f32 %v11668, %v11739
        %v11831 = vadd.f32 %v11669, %v11741
        %v11832 = vadd.f32 %v11670, %v11743
        %v11833 = vadd.f32 %v11671, %v11745
        %v11834 = vadd.f32 %v11672, %v11747
        %v11835 = vadd.f32 %v11673, %v11749
        %v11836 = vadd.f32 %v11674, %v11751
        %v11837 = vadd.f32 %v11675, %v11753
        %v11838 = vadd.f32 %v11676, %v11755
        %v11839 = vadd.f32 %v11677, %v11757
        %v11840 = vadd.f32 %v11678, %v11759
        %v11841 = vadd.f32 %v11679, %v11761
        %v11842 = vadd.f32 %v11680, %v11763
        %v11843 = vadd.f32 %v11681, %v11765
        %v11844 = vadd.f32 %v11682, %v11767
        %v11845 = vadd.f32 %v11683, %v11769
        %v11846 = vadd.f32 %v11684, %v11771
        %v11847 = vadd.f32 %v11685, %v11773
        %v11848 = vadd.f32 %v11686, %v11775
        %v11849 = vadd.f32 %v11687, %v11777
        %v11850 = vadd.f32 %v11688, %v11779
        %v11851 = vadd.f32 %v11689, %v11781
        %v11852 = vadd.f32 %v11690, %v11783
        %v11853 = vadd.f32 %v11691, %v11785
        %v11854 = vadd.f32 %v11692, %v11787
        %v11855 = vadd.f32 %v11693, %v11789
        %v11856 = vadd.f32 %v11694, %v11791
        %v11857 = vadd.f32 %v11695, %v11793
        %p11858 = scmp.eq.s32.totalorder %s32, 0
        // Predicated region
        $region61: #{tpu_custom_call.1} parent=39 // pred_check
          %p11859 = pneg %p11858
        $region62: #{tpu_custom_call.1} parent=39 // pred_check_branch
          %11861 = sbr.rel (%p11859) target = $region64
        $region63: #{tpu_custom_call.1} parent=39 // pred_region
          %11862 = vst [vmem:[#allocation2] sm:$0xff] %v11826
          %11863 = vst [vmem:[#allocation2 + $0x8] sm:$0xff] %v11827
          %11864 = vst [vmem:[#allocation2 + $0x10] sm:$0xff] %v11828
          %11865 = vst [vmem:[#allocation2 + $0x18] sm:$0xff] %v11829
          %11866 = vst [vmem:[#allocation2 + $0x20] sm:$0xff] %v11830
          %11867 = vst [vmem:[#allocation2 + $0x28] sm:$0xff] %v11831
          %11868 = vst [vmem:[#allocation2 + $0x30] sm:$0xff] %v11832
          %11869 = vst [vmem:[#allocation2 + $0x38] sm:$0xff] %v11833
          %11870 = vst [vmem:[#allocation2 + $0x40] sm:$0xff] %v11834
          %11871 = vst [vmem:[#allocation2 + $0x48] sm:$0xff] %v11835
          %11872 = vst [vmem:[#allocation2 + $0x50] sm:$0xff] %v11836
          %11873 = vst [vmem:[#allocation2 + $0x58] sm:$0xff] %v11837
          %11874 = vst [vmem:[#allocation2 + $0x60] sm:$0xff] %v11838
          %11875 = vst [vmem:[#allocation2 + $0x68] sm:$0xff] %v11839
          %11876 = vst [vmem:[#allocation2 + $0x70] sm:$0xff] %v11840
          %11877 = vst [vmem:[#allocation2 + $0x78] sm:$0xff] %v11841
          %11878 = vst [vmem:[#allocation2 + $0x80] sm:$0xff] %v11842
          %11879 = vst [vmem:[#allocation2 + $0x88] sm:$0xff] %v11843
          %11880 = vst [vmem:[#allocation2 + $0x90] sm:$0xff] %v11844
          %11881 = vst [vmem:[#allocation2 + $0x98] sm:$0xff] %v11845
          %11882 = vst [vmem:[#allocation2 + $0xa0] sm:$0xff] %v11846
          %11883 = vst [vmem:[#allocation2 + $0xa8] sm:$0xff] %v11847
          %11884 = vst [vmem:[#allocation2 + $0xb0] sm:$0xff] %v11848
          %11885 = vst [vmem:[#allocation2 + $0xb8] sm:$0xff] %v11849
          %11886 = vst [vmem:[#allocation2 + $0xc0] sm:$0xff] %v11850
          %11887 = vst [vmem:[#allocation2 + $0xc8] sm:$0xff] %v11851
          %11888 = vst [vmem:[#allocation2 + $0xd0] sm:$0xff] %v11852
          %11889 = vst [vmem:[#allocation2 + $0xd8] sm:$0xff] %v11853
          %11890 = vst [vmem:[#allocation2 + $0xe0] sm:$0xff] %v11854
          %11891 = vst [vmem:[#allocation2 + $0xe8] sm:$0xff] %v11855
          %11892 = vst [vmem:[#allocation2 + $0xf0] sm:$0xff] %v11856
          %11893 = vst [vmem:[#allocation2 + $0xf8] sm:$0xff] %v11857
        $region64: #{tpu_custom_call.1} parent=39 // pred_fallthru
          _
        %p11894 = scmp.gt.s32.totalorder %s32, 0
        // Predicated region
        $region65: #{tpu_custom_call.1} parent=39 // pred_check
          %p11895 = pneg %p11894
        $region66: #{tpu_custom_call.1} parent=39 // pred_check_branch
          %11897 = sbr.rel (%p11895) target = $region68
        $region67: #{tpu_custom_call.1} parent=39 // pred_region
          %v11898 = vld [vmem:[#allocation2] sm:$0xff]
          %v11899 = vld [vmem:[#allocation2 + $0x8] sm:$0xff]
          %v11900 = vld [vmem:[#allocation2 + $0x10] sm:$0xff]
          %v11901 = vld [vmem:[#allocation2 + $0x18] sm:$0xff]
          %v11902 = vld [vmem:[#allocation2 + $0x20] sm:$0xff]
          %v11903 = vld [vmem:[#allocation2 + $0x28] sm:$0xff]
          %v11904 = vld [vmem:[#allocation2 + $0x30] sm:$0xff]
          %v11905 = vld [vmem:[#allocation2 + $0x38] sm:$0xff]
          %v11906 = vld [vmem:[#allocation2 + $0x40] sm:$0xff]
          %v11907 = vld [vmem:[#allocation2 + $0x48] sm:$0xff]
          %v11908 = vld [vmem:[#allocation2 + $0x50] sm:$0xff]
          %v11909 = vld [vmem:[#allocation2 + $0x58] sm:$0xff]
          %v11910 = vld [vmem:[#allocation2 + $0x60] sm:$0xff]
          %v11911 = vld [vmem:[#allocation2 + $0x68] sm:$0xff]
          %v11912 = vld [vmem:[#allocation2 + $0x70] sm:$0xff]
          %v11913 = vld [vmem:[#allocation2 + $0x78] sm:$0xff]
          %v11914 = vld [vmem:[#allocation2 + $0x80] sm:$0xff]
          %v11915 = vld [vmem:[#allocation2 + $0x88] sm:$0xff]
          %v11916 = vld [vmem:[#allocation2 + $0x90] sm:$0xff]
          %v11917 = vld [vmem:[#allocation2 + $0x98] sm:$0xff]
          %v11918 = vld [vmem:[#allocation2 + $0xa0] sm:$0xff]
          %v11919 = vld [vmem:[#allocation2 + $0xa8] sm:$0xff]
          %v11920 = vld [vmem:[#allocation2 + $0xb0] sm:$0xff]
          %v11921 = vld [vmem:[#allocation2 + $0xb8] sm:$0xff]
          %v11922 = vld [vmem:[#allocation2 + $0xc0] sm:$0xff]
          %v11923 = vld [vmem:[#allocation2 + $0xc8] sm:$0xff]
          %v11924 = vld [vmem:[#allocation2 + $0xd0] sm:$0xff]
          %v11925 = vld [vmem:[#allocation2 + $0xd8] sm:$0xff]
          %v11926 = vld [vmem:[#allocation2 + $0xe0] sm:$0xff]
          %v11927 = vld [vmem:[#allocation2 + $0xe8] sm:$0xff]
          %v11928 = vld [vmem:[#allocation2 + $0xf0] sm:$0xff]
          %v11929 = vld [vmem:[#allocation2 + $0xf8] sm:$0xff]
          %v11930 = vadd.f32 %v11898, %v11826
          %v11931 = vadd.f32 %v11899, %v11827
          %v11932 = vadd.f32 %v11900, %v11828
          %v11933 = vadd.f32 %v11901, %v11829
          %v11934 = vadd.f32 %v11902, %v11830
          %v11935 = vadd.f32 %v11903, %v11831
          %v11936 = vadd.f32 %v11904, %v11832
          %v11937 = vadd.f32 %v11905, %v11833
          %v11938 = vadd.f32 %v11906, %v11834
          %v11939 = vadd.f32 %v11907, %v11835
          %v11940 = vadd.f32 %v11908, %v11836
          %v11941 = vadd.f32 %v11909, %v11837
          %v11942 = vadd.f32 %v11910, %v11838
          %v11943 = vadd.f32 %v11911, %v11839
          %v11944 = vadd.f32 %v11912, %v11840
          %v11945 = vadd.f32 %v11913, %v11841
          %v11946 = vadd.f32 %v11914, %v11842
          %v11947 = vadd.f32 %v11915, %v11843
          %v11948 = vadd.f32 %v11916, %v11844
          %v11949 = vadd.f32 %v11917, %v11845
          %v11950 = vadd.f32 %v11918, %v11846
          %v11951 = vadd.f32 %v11919, %v11847
          %v11952 = vadd.f32 %v11920, %v11848
          %v11953 = vadd.f32 %v11921, %v11849
          %v11954 = vadd.f32 %v11922, %v11850
          %v11955 = vadd.f32 %v11923, %v11851
          %v11956 = vadd.f32 %v11924, %v11852
          %v11957 = vadd.f32 %v11925, %v11853
          %v11958 = vadd.f32 %v11926, %v11854
          %v11959 = vadd.f32 %v11927, %v11855
          %v11960 = vadd.f32 %v11928, %v11856
          %v11961 = vadd.f32 %v11929, %v11857
          %11962 = vst [vmem:[#allocation2] sm:$0xff] %v11930
          %11963 = vst [vmem:[#allocation2 + $0x8] sm:$0xff] %v11931
          %11964 = vst [vmem:[#allocation2 + $0x10] sm:$0xff] %v11932
          %11965 = vst [vmem:[#allocation2 + $0x18] sm:$0xff] %v11933
          %11966 = vst [vmem:[#allocation2 + $0x20] sm:$0xff] %v11934
          %11967 = vst [vmem:[#allocation2 + $0x28] sm:$0xff] %v11935
          %11968 = vst [vmem:[#allocation2 + $0x30] sm:$0xff] %v11936
          %11969 = vst [vmem:[#allocation2 + $0x38] sm:$0xff] %v11937
          %11970 = vst [vmem:[#allocation2 + $0x40] sm:$0xff] %v11938
          %11971 = vst [vmem:[#allocation2 + $0x48] sm:$0xff] %v11939
          %11972 = vst [vmem:[#allocation2 + $0x50] sm:$0xff] %v11940
          %11973 = vst [vmem:[#allocation2 + $0x58] sm:$0xff] %v11941
          %11974 = vst [vmem:[#allocation2 + $0x60] sm:$0xff] %v11942
          %11975 = vst [vmem:[#allocation2 + $0x68] sm:$0xff] %v11943
          %11976 = vst [vmem:[#allocation2 + $0x70] sm:$0xff] %v11944
          %11977 = vst [vmem:[#allocation2 + $0x78] sm:$0xff] %v11945
          %11978 = vst [vmem:[#allocation2 + $0x80] sm:$0xff] %v11946
          %11979 = vst [vmem:[#allocation2 + $0x88] sm:$0xff] %v11947
          %11980 = vst [vmem:[#allocation2 + $0x90] sm:$0xff] %v11948
          %11981 = vst [vmem:[#allocation2 + $0x98] sm:$0xff] %v11949
          %11982 = vst [vmem:[#allocation2 + $0xa0] sm:$0xff] %v11950
          %11983 = vst [vmem:[#allocation2 + $0xa8] sm:$0xff] %v11951
          %11984 = vst [vmem:[#allocation2 + $0xb0] sm:$0xff] %v11952
          %11985 = vst [vmem:[#allocation2 + $0xb8] sm:$0xff] %v11953
          %11986 = vst [vmem:[#allocation2 + $0xc0] sm:$0xff] %v11954
          %11987 = vst [vmem:[#allocation2 + $0xc8] sm:$0xff] %v11955
          %11988 = vst [vmem:[#allocation2 + $0xd0] sm:$0xff] %v11956
          %11989 = vst [vmem:[#allocation2 + $0xd8] sm:$0xff] %v11957
          %11990 = vst [vmem:[#allocation2 + $0xe0] sm:$0xff] %v11958
          %11991 = vst [vmem:[#allocation2 + $0xe8] sm:$0xff] %v11959
          %11992 = vst [vmem:[#allocation2 + $0xf0] sm:$0xff] %v11960
          %11993 = vst [vmem:[#allocation2 + $0xf8] sm:$0xff] %v11961
        $region68: #{tpu_custom_call.1} parent=39 // pred_fallthru
          _
        %p11994 = scmp.eq.s32.totalorder %s32, 1
        // Predicated region
        $region69: #{tpu_custom_call.1} parent=39 // pred_check
          %p11995 = pneg %p11994
        $region70: #{tpu_custom_call.1} parent=39 // pred_check_branch
          %11997 = sbr.rel (%p11995) target = $region72
        $region71: #{tpu_custom_call.1} parent=39 // pred_region
          %v11998 = vld [vmem:[#allocation2] sm:$0xff]
          %v11999 = vld [vmem:[#allocation2 + $0x8] sm:$0xff]
          %v12000 = vld [vmem:[#allocation2 + $0x10] sm:$0xff]
          %v12001 = vld [vmem:[#allocation2 + $0x20] sm:$0xff]
          %v12002 = vld [vmem:[#allocation2 + $0x28] sm:$0xff]
          %v12003 = vld [vmem:[#allocation2 + $0x30] sm:$0xff]
          %v12004 = vld [vmem:[#allocation2 + $0x40] sm:$0xff]
          %v12005 = vld [vmem:[#allocation2 + $0x48] sm:$0xff]
          %v12006 = vld [vmem:[#allocation2 + $0x50] sm:$0xff]
          %v12007 = vld [vmem:[#allocation2 + $0x60] sm:$0xff]
          %v12008 = vld [vmem:[#allocation2 + $0x68] sm:$0xff]
          %v12009 = vld [vmem:[#allocation2 + $0x70] sm:$0xff]
          %v12010 = vld [vmem:[#allocation2 + $0x80] sm:$0xff]
          %v12011 = vld [vmem:[#allocation2 + $0x88] sm:$0xff]
          %v12012 = vld [vmem:[#allocation2 + $0x90] sm:$0xff]
          %v12013 = vld [vmem:[#allocation2 + $0xa0] sm:$0xff]
          %v12014 = vld [vmem:[#allocation2 + $0xa8] sm:$0xff]
          %v12015 = vld [vmem:[#allocation2 + $0xb0] sm:$0xff]
          %v12016 = vld [vmem:[#allocation2 + $0xc0] sm:$0xff]
          %v12017 = vld [vmem:[#allocation2 + $0xc8] sm:$0xff]
          %v12018 = vld [vmem:[#allocation2 + $0xd0] sm:$0xff]
          %v12019 = vld [vmem:[#allocation2 + $0xe0] sm:$0xff]
          %v12020 = vld [vmem:[#allocation2 + $0xe8] sm:$0xff]
          %v12021 = vld [vmem:[#allocation2 + $0xf0] sm:$0xff]
          %v12022 = vld [vmem:[%s369] sm:$0x1]
          %v12024 = vlaneseq
          %v12025 = vshrl.u32 %v12024, 7
          %v12026 = vsub.s32 0, %v12025
          %v12027 = vrot.slane %v12022, %v12026
          %v12029 = vmul.f32 %v11998, %v12027
          %v12030 = vmul.f32 %v11999, %v12027
          %v12031 = vmul.f32 %v12000, %v12027
          %v12032 = vmul.f32 %v12001, %v12027
          %v12033 = vmul.f32 %v12002, %v12027
          %v12034 = vmul.f32 %v12003, %v12027
          %v12035 = vmul.f32 %v12004, %v12027
          %v12036 = vmul.f32 %v12005, %v12027
          %v12037 = vmul.f32 %v12006, %v12027
          %v12038 = vmul.f32 %v12007, %v12027
          %v12039 = vmul.f32 %v12008, %v12027
          %v12040 = vmul.f32 %v12009, %v12027
          %v12041 = vmul.f32 %v12010, %v12027
          %v12042 = vmul.f32 %v12011, %v12027
          %v12043 = vmul.f32 %v12012, %v12027
          %v12044 = vmul.f32 %v12013, %v12027
          %v12045 = vmul.f32 %v12014, %v12027
          %v12046 = vmul.f32 %v12015, %v12027
          %v12047 = vmul.f32 %v12016, %v12027
          %v12048 = vmul.f32 %v12017, %v12027
          %v12049 = vmul.f32 %v12018, %v12027
          %v12050 = vmul.f32 %v12019, %v12027
          %v12051 = vmul.f32 %v12020, %v12027
          %v12052 = vmul.f32 %v12021, %v12027
          %v12053 = vld [vmem:[%s377] sm:$0x1]
          %v12055 = vlaneseq
          %v12056 = vshrl.u32 %v12055, 7
          %v12057 = vsub.s32 0, %v12056
          %v12058 = vrot.slane %v12053, %v12057
          %v12060 = vadd.f32 %v12029, %v12058
          %v12061 = vadd.f32 %v12030, %v12058
          %v12062 = vadd.f32 %v12031, %v12058
          %v12063 = vadd.f32 %v12032, %v12058
          %v12064 = vadd.f32 %v12033, %v12058
          %v12065 = vadd.f32 %v12034, %v12058
          %v12066 = vadd.f32 %v12035, %v12058
          %v12067 = vadd.f32 %v12036, %v12058
          %v12068 = vadd.f32 %v12037, %v12058
          %v12069 = vadd.f32 %v12038, %v12058
          %v12070 = vadd.f32 %v12039, %v12058
          %v12071 = vadd.f32 %v12040, %v12058
          %v12072 = vadd.f32 %v12041, %v12058
          %v12073 = vadd.f32 %v12042, %v12058
          %v12074 = vadd.f32 %v12043, %v12058
          %v12075 = vadd.f32 %v12044, %v12058
          %v12076 = vadd.f32 %v12045, %v12058
          %v12077 = vadd.f32 %v12046, %v12058
          %v12078 = vadd.f32 %v12047, %v12058
          %v12079 = vadd.f32 %v12048, %v12058
          %v12080 = vadd.f32 %v12049, %v12058
          %v12081 = vadd.f32 %v12050, %v12058
          %v12082 = vadd.f32 %v12051, %v12058
          %v12083 = vadd.f32 %v12052, %v12058
          %vm12084 = vcmp.ge.f32.partialorder %v12060, 0.0
          %vm12085 = vcmp.ge.f32.partialorder %v12061, 0.0
          %vm12086 = vcmp.ge.f32.partialorder %v12062, 0.0
          %vm12087 = vcmp.ge.f32.partialorder %v12063, 0.0
          %vm12088 = vcmp.ge.f32.partialorder %v12064, 0.0
          %vm12089 = vcmp.ge.f32.partialorder %v12065, 0.0
          %vm12090 = vcmp.ge.f32.partialorder %v12066, 0.0
          %vm12091 = vcmp.ge.f32.partialorder %v12067, 0.0
          %vm12092 = vcmp.ge.f32.partialorder %v12068, 0.0
          %vm12093 = vcmp.ge.f32.partialorder %v12069, 0.0
          %vm12094 = vcmp.ge.f32.partialorder %v12070, 0.0
          %vm12095 = vcmp.ge.f32.partialorder %v12071, 0.0
          %vm12096 = vcmp.ge.f32.partialorder %v12072, 0.0
          %vm12097 = vcmp.ge.f32.partialorder %v12073, 0.0
          %vm12098 = vcmp.ge.f32.partialorder %v12074, 0.0
          %vm12099 = vcmp.ge.f32.partialorder %v12075, 0.0
          %vm12100 = vcmp.ge.f32.partialorder %v12076, 0.0
          %vm12101 = vcmp.ge.f32.partialorder %v12077, 0.0
          %vm12102 = vcmp.ge.f32.partialorder %v12078, 0.0
          %vm12103 = vcmp.ge.f32.partialorder %v12079, 0.0
          %vm12104 = vcmp.ge.f32.partialorder %v12080, 0.0
          %vm12105 = vcmp.ge.f32.partialorder %v12081, 0.0
          %vm12106 = vcmp.ge.f32.partialorder %v12082, 0.0
          %vm12107 = vcmp.ge.f32.partialorder %v12083, 0.0
          %v12108 = vmul.f32 %v12060, 0.02
          %v12109 = vmul.f32 %v12061, 0.02
          %v12110 = vmul.f32 %v12062, 0.02
          %v12111 = vmul.f32 %v12063, 0.02
          %v12112 = vmul.f32 %v12064, 0.02
          %v12113 = vmul.f32 %v12065, 0.02
          %v12114 = vmul.f32 %v12066, 0.02
          %v12115 = vmul.f32 %v12067, 0.02
          %v12116 = vmul.f32 %v12068, 0.02
          %v12117 = vmul.f32 %v12069, 0.02
          %v12118 = vmul.f32 %v12070, 0.02
          %v12119 = vmul.f32 %v12071, 0.02
          %v12120 = vmul.f32 %v12072, 0.02
          %v12121 = vmul.f32 %v12073, 0.02
          %v12122 = vmul.f32 %v12074, 0.02
          %v12123 = vmul.f32 %v12075, 0.02
          %v12124 = vmul.f32 %v12076, 0.02
          %v12125 = vmul.f32 %v12077, 0.02
          %v12126 = vmul.f32 %v12078, 0.02
          %v12127 = vmul.f32 %v12079, 0.02
          %v12128 = vmul.f32 %v12080, 0.02
          %v12129 = vmul.f32 %v12081, 0.02
          %v12130 = vmul.f32 %v12082, 0.02
          %v12131 = vmul.f32 %v12083, 0.02
          %v12132 = vsel %vm12084, %v12060, %v12108
          %v12133 = vsel %vm12085, %v12061, %v12109
          %v12134 = vsel %vm12086, %v12062, %v12110
          %v12135 = vsel %vm12087, %v12063, %v12111
          %v12136 = vsel %vm12088, %v12064, %v12112
          %v12137 = vsel %vm12089, %v12065, %v12113
          %v12138 = vsel %vm12090, %v12066, %v12114
          %v12139 = vsel %vm12091, %v12067, %v12115
          %v12140 = vsel %vm12092, %v12068, %v12116
          %v12141 = vsel %vm12093, %v12069, %v12117
          %v12142 = vsel %vm12094, %v12070, %v12118
          %v12143 = vsel %vm12095, %v12071, %v12119
          %v12144 = vsel %vm12096, %v12072, %v12120
          %v12145 = vsel %vm12097, %v12073, %v12121
          %v12146 = vsel %vm12098, %v12074, %v12122
          %v12147 = vsel %vm12099, %v12075, %v12123
          %v12148 = vsel %vm12100, %v12076, %v12124
          %v12149 = vsel %vm12101, %v12077, %v12125
          %v12150 = vsel %vm12102, %v12078, %v12126
          %v12151 = vsel %vm12103, %v12079, %v12127
          %v12152 = vsel %vm12104, %v12080, %v12128
          %v12153 = vsel %vm12105, %v12081, %v12129
          %v12154 = vsel %vm12106, %v12082, %v12130
          %v12155 = vsel %vm12107, %v12083, %v12131
          %12156 = vst [vmem:[%s420] sm:$0xff] %v12132
          %12157 = vst [vmem:[%s420 + $0x8] sm:$0xff] %v12133
          %12158 = vst [vmem:[%s420 + $0x10] sm:$0x1] %v12134
          %12159 = vst [vmem:[%s420 + $0x18] sm:$0xff] %v12135
          %12160 = vst [vmem:[%s420 + $0x20] sm:$0xff] %v12136
          %12161 = vst [vmem:[%s420 + $0x28] sm:$0x1] %v12137
          %12162 = vst [vmem:[%s420 + $0x30] sm:$0xff] %v12138
          %12163 = vst [vmem:[%s420 + $0x38] sm:$0xff] %v12139
          %12164 = vst [vmem:[%s420 + $0x40] sm:$0x1] %v12140
          %12165 = vst [vmem:[%s420 + $0x48] sm:$0xff] %v12141
          %12166 = vst [vmem:[%s420 + $0x50] sm:$0xff] %v12142
          %12167 = vst [vmem:[%s420 + $0x58] sm:$0x1] %v12143
          %12168 = vst [vmem:[%s420 + $0x60] sm:$0xff] %v12144
          %12169 = vst [vmem:[%s420 + $0x68] sm:$0xff] %v12145
          %12170 = vst [vmem:[%s420 + $0x70] sm:$0x1] %v12146
          %12171 = vst [vmem:[%s420 + $0x78] sm:$0xff] %v12147
          %12172 = vst [vmem:[%s420 + $0x80] sm:$0xff] %v12148
          %12173 = vst [vmem:[%s420 + $0x88] sm:$0x1] %v12149
          %12174 = vst [vmem:[%s420 + $0x90] sm:$0xff] %v12150
          %12175 = vst [vmem:[%s420 + $0x98] sm:$0xff] %v12151
          %12176 = vst [vmem:[%s420 + $0xa0] sm:$0x1] %v12152
          %12177 = vst [vmem:[%s420 + $0xa8] sm:$0xff] %v12153
          %12178 = vst [vmem:[%s420 + $0xb0] sm:$0xff] %v12154
          %12179 = vst [vmem:[%s420 + $0xb8] sm:$0x1] %v12155
        $region72: #{tpu_custom_call.1} parent=39 // pred_fallthru
          _
        %s12180 = sand.u32 %s190, 1
        %s12181 = sand.u32 %s190, 1
        %s12182 = smul.addr %s12181, 192
        %s12183 = scalar_lea.vmem [#allocation11], %s12182
        // Predicated region
        $region73: #{tpu_custom_call.1} parent=39 // pred_check
          %p12184 = pneg %p200
        $region74: #{tpu_custom_call.1} parent=39 // pred_check_branch
          %12186 = sbr.rel (%p12184) target = $region76
        $region75: #{tpu_custom_call.1} parent=39 // pred_region
          %s12187 = smul.u32 8, %s30
          %s12188 = smul.addr %s12187, 6
          %s12189 = sadd.s32 %s31, %s12188
          %s12190 = smul.addr %s12189, 8
          %s12191 = scalar_lea.vmem %s5, %s12190
          // Predicated region
          $region77: #{tpu_custom_call.1} parent=75 // pred_check
            _
          $region78: #{tpu_custom_call.1} parent=75 // pred_check_branch
            %12193 = sbr.rel (0) target = $region80
          $region79: #{tpu_custom_call.1} parent=75 // pred_region
            // Predicated region
            $region81: #{tpu_custom_call.1} parent=79 // pred_check
              _
            $region82: #{tpu_custom_call.1} parent=79 // pred_check_branch
              %12195 = sbr.rel (0) target = $region84
            $region83: #{tpu_custom_call.1} parent=79 // pred_region
              // Predicated region
              $region96: #{tpu_custom_call.1} parent=83 // pred_check
                _
              $region97: #{tpu_custom_call.1} parent=83 // pred_check_branch
                %12257 = sbr.rel (0) target = $region99
              $region98: #{tpu_custom_call.1} parent=83 // pred_region
                loop: start=0, step=1, limit=1
                $region100: #{tpu_custom_call.1} parent=98 // loop_pre_header
                  _
                $region101: #{tpu_custom_call.1} parent=98 // loop_header
                  %s12259 = sphi 0, %s12263
                  %p12260 = scmp.ge.s32.totalorder %s12259, 1
                  %s12264 = sphi %s12183, %s12183
                  %s12265 = sphi %s12191, %s12191
                $region102: #{tpu_custom_call.1} parent=98 // loop_header_branch
                  %12262 = sbr.rel (%p12260) target = $region106
                $region103: #{tpu_custom_call.1} parent=98 // loop_body
                  %v12266 = vld [vmem:[%s12264] sm:$0xff]
                  %12267 = vst [vmem:[%s12265] sm:$0xff] %v12266
                  %v12268 = vld [vmem:[%s12264 + $0x8] sm:$0xff]
                  %12269 = vst [vmem:[%s12265 + $0x10] sm:$0xff] %v12268
                  %v12270 = vld [vmem:[%s12264 + $0x10] sm:$0xff]
                  %12271 = vst [vmem:[%s12265 + $0x20] sm:$0xff] %v12270
                  %v12272 = vld [vmem:[%s12264 + $0x18] sm:$0xff]
                  %12273 = vst [vmem:[%s12265 + $0x30] sm:$0xff] %v12272
                  %v12274 = vld [vmem:[%s12264 + $0x20] sm:$0xff]
                  %12275 = vst [vmem:[%s12265 + $0x40] sm:$0xff] %v12274
                  %v12276 = vld [vmem:[%s12264 + $0x28] sm:$0xff]
                  %12277 = vst [vmem:[%s12265 + $0x50] sm:$0xff] %v12276
                  %v12278 = vld [vmem:[%s12264 + $0x30] sm:$0xff]
                  %12279 = vst [vmem:[%s12265 + $0x60] sm:$0xff] %v12278
                  %v12280 = vld [vmem:[%s12264 + $0x38] sm:$0xff]
                  %12281 = vst [vmem:[%s12265 + $0x70] sm:$0xff] %v12280
                  %v12282 = vld [vmem:[%s12264 + $0x40] sm:$0xff]
                  %12283 = vst [vmem:[%s12265 + $0x80] sm:$0xff] %v12282
                  %v12284 = vld [vmem:[%s12264 + $0x48] sm:$0xff]
                  %12285 = vst [vmem:[%s12265 + $0x90] sm:$0xff] %v12284
                  %v12286 = vld [vmem:[%s12264 + $0x50] sm:$0xff]
                  %12287 = vst [vmem:[%s12265 + $0xa0] sm:$0xff] %v12286
                  %v12288 = vld [vmem:[%s12264 + $0x58] sm:$0xff]
                  %12289 = vst [vmem:[%s12265 + $0xb0] sm:$0xff] %v12288
                  %v12290 = vld [vmem:[%s12264 + $0x60] sm:$0xff]
                  %12291 = vst [vmem:[%s12265 + $0xc0] sm:$0xff] %v12290
                  %v12292 = vld [vmem:[%s12264 + $0x68] sm:$0xff]
                  %12293 = vst [vmem:[%s12265 + $0xd0] sm:$0xff] %v12292
                  %v12294 = vld [vmem:[%s12264 + $0x70] sm:$0xff]
                  %12295 = vst [vmem:[%s12265 + $0xe0] sm:$0xff] %v12294
                  %v12296 = vld [vmem:[%s12264 + $0x78] sm:$0xff]
                  %12297 = vst [vmem:[%s12265 + $0xf0] sm:$0xff] %v12296
                  %v12298 = vld [vmem:[%s12264 + $0x80] sm:$0xff]
                  %12299 = vst [vmem:[%s12265 + $0x100] sm:$0xff] %v12298
                  %v12300 = vld [vmem:[%s12264 + $0x88] sm:$0xff]
                  %12301 = vst [vmem:[%s12265 + $0x110] sm:$0xff] %v12300
                  %v12302 = vld [vmem:[%s12264 + $0x90] sm:$0xff]
                  %12303 = vst [vmem:[%s12265 + $0x120] sm:$0xff] %v12302
                  %v12304 = vld [vmem:[%s12264 + $0x98] sm:$0xff]
                  %12305 = vst [vmem:[%s12265 + $0x130] sm:$0xff] %v12304
                  %v12306 = vld [vmem:[%s12264 + $0xa0] sm:$0xff]
                  %12307 = vst [vmem:[%s12265 + $0x140] sm:$0xff] %v12306
                  %v12308 = vld [vmem:[%s12264 + $0xa8] sm:$0xff]
                  %12309 = vst [vmem:[%s12265 + $0x150] sm:$0xff] %v12308
                  %v12310 = vld [vmem:[%s12264 + $0xb0] sm:$0xff]
                  %12311 = vst [vmem:[%s12265 + $0x160] sm:$0xff] %v12310
                  %v12312 = vld [vmem:[%s12264 + $0xb8] sm:$0xff]
                  %12313 = vst [vmem:[%s12265 + $0x170] sm:$0xff] %v12312
                $region104: #{tpu_custom_call.1} parent=98 // loop_footer
                  %s12263 = sadd.s32 1, %s12259
                $region105: #{tpu_custom_call.1} parent=98 // loop_footer_branch
                  %12258 = sbr.rel target = $region101
                $region106: #{tpu_custom_call.1} parent=98 // loop_exit
                  _
              $region99: #{tpu_custom_call.1} parent=83 // pred_fallthru
                _
              // Predicated region
              $region107: #{tpu_custom_call.1} parent=83 // pred_check
                _
              $region108: #{tpu_custom_call.1} parent=83 // pred_check_branch
                %12315 = sbr.rel target = $region110
              $region109: #{tpu_custom_call.1} parent=83 // pred_region
                _
              $region110: #{tpu_custom_call.1} parent=83 // pred_fallthru
                _
            $region84: #{tpu_custom_call.1} parent=79 // pred_fallthru
              _
            // Predicated region
            $region85: #{tpu_custom_call.1} parent=79 // pred_check
              _
            $region86: #{tpu_custom_call.1} parent=79 // pred_check_branch
              %12197 = sbr.rel target = $region88
            $region87: #{tpu_custom_call.1} parent=79 // pred_region
              %s12199 = ssub.s32 256, 1
              loop: start=0, step=1, limit=1
              $region89: #{tpu_custom_call.1} parent=87 // loop_pre_header
                _
              $region90: #{tpu_custom_call.1} parent=87 // loop_header
                %s12201 = sphi 0, %s12205
                %p12202 = scmp.ge.s32.totalorder %s12201, 1
                %s12206 = sphi %s12183, %s12183
                %s12207 = sphi %s12191, %s12191
              $region91: #{tpu_custom_call.1} parent=87 // loop_header_branch
                %12204 = sbr.rel (%p12202) target = $region95
              $region92: #{tpu_custom_call.1} parent=87 // loop_body
                %v12208 = vld [vmem:[%s12206] sm:%s12199]
                %12209 = vst [vmem:[%s12207] sm:%s12199] %v12208
                %v12210 = vld [vmem:[%s12206 + $0x8] sm:%s12199]
                %12211 = vst [vmem:[%s12207 + $0x10] sm:%s12199] %v12210
                %v12212 = vld [vmem:[%s12206 + $0x10] sm:%s12199]
                %12213 = vst [vmem:[%s12207 + $0x20] sm:%s12199] %v12212
                %v12214 = vld [vmem:[%s12206 + $0x18] sm:%s12199]
                %12215 = vst [vmem:[%s12207 + $0x30] sm:%s12199] %v12214
                %v12216 = vld [vmem:[%s12206 + $0x20] sm:%s12199]
                %12217 = vst [vmem:[%s12207 + $0x40] sm:%s12199] %v12216
                %v12218 = vld [vmem:[%s12206 + $0x28] sm:%s12199]
                %12219 = vst [vmem:[%s12207 + $0x50] sm:%s12199] %v12218
                %v12220 = vld [vmem:[%s12206 + $0x30] sm:%s12199]
                %12221 = vst [vmem:[%s12207 + $0x60] sm:%s12199] %v12220
                %v12222 = vld [vmem:[%s12206 + $0x38] sm:%s12199]
                %12223 = vst [vmem:[%s12207 + $0x70] sm:%s12199] %v12222
                %v12224 = vld [vmem:[%s12206 + $0x40] sm:%s12199]
                %12225 = vst [vmem:[%s12207 + $0x80] sm:%s12199] %v12224
                %v12226 = vld [vmem:[%s12206 + $0x48] sm:%s12199]
                %12227 = vst [vmem:[%s12207 + $0x90] sm:%s12199] %v12226
                %v12228 = vld [vmem:[%s12206 + $0x50] sm:%s12199]
                %12229 = vst [vmem:[%s12207 + $0xa0] sm:%s12199] %v12228
                %v12230 = vld [vmem:[%s12206 + $0x58] sm:%s12199]
                %12231 = vst [vmem:[%s12207 + $0xb0] sm:%s12199] %v12230
                %v12232 = vld [vmem:[%s12206 + $0x60] sm:%s12199]
                %12233 = vst [vmem:[%s12207 + $0xc0] sm:%s12199] %v12232
                %v12234 = vld [vmem:[%s12206 + $0x68] sm:%s12199]
                %12235 = vst [vmem:[%s12207 + $0xd0] sm:%s12199] %v12234
                %v12236 = vld [vmem:[%s12206 + $0x70] sm:%s12199]
                %12237 = vst [vmem:[%s12207 + $0xe0] sm:%s12199] %v12236
                %v12238 = vld [vmem:[%s12206 + $0x78] sm:%s12199]
                %12239 = vst [vmem:[%s12207 + $0xf0] sm:%s12199] %v12238
                %v12240 = vld [vmem:[%s12206 + $0x80] sm:%s12199]
                %12241 = vst [vmem:[%s12207 + $0x100] sm:%s12199] %v12240
                %v12242 = vld [vmem:[%s12206 + $0x88] sm:%s12199]
                %12243 = vst [vmem:[%s12207 + $0x110] sm:%s12199] %v12242
                %v12244 = vld [vmem:[%s12206 + $0x90] sm:%s12199]
                %12245 = vst [vmem:[%s12207 + $0x120] sm:%s12199] %v12244
                %v12246 = vld [vmem:[%s12206 + $0x98] sm:%s12199]
                %12247 = vst [vmem:[%s12207 + $0x130] sm:%s12199] %v12246
                %v12248 = vld [vmem:[%s12206 + $0xa0] sm:%s12199]
                %12249 = vst [vmem:[%s12207 + $0x140] sm:%s12199] %v12248
                %v12250 = vld [vmem:[%s12206 + $0xa8] sm:%s12199]
                %12251 = vst [vmem:[%s12207 + $0x150] sm:%s12199] %v12250
                %v12252 = vld [vmem:[%s12206 + $0xb0] sm:%s12199]
                %12253 = vst [vmem:[%s12207 + $0x160] sm:%s12199] %v12252
                %v12254 = vld [vmem:[%s12206 + $0xb8] sm:%s12199]
                %12255 = vst [vmem:[%s12207 + $0x170] sm:%s12199] %v12254
              $region93: #{tpu_custom_call.1} parent=87 // loop_footer
                %s12205 = sadd.s32 1, %s12201
              $region94: #{tpu_custom_call.1} parent=87 // loop_footer_branch
                %12200 = sbr.rel target = $region90
              $region95: #{tpu_custom_call.1} parent=87 // loop_exit
                _
            $region88: #{tpu_custom_call.1} parent=79 // pred_fallthru
              _
          $region80: #{tpu_custom_call.1} parent=75 // pred_fallthru
            _
          %12316 = vnop
        $region76: #{tpu_custom_call.1} parent=39 // pred_fallthru
          _
      $region40: #{tpu_custom_call.1} parent=5 // pred_fallthru
        _
      %p12317 = scmp.le.s32.totalorder 2, %s20
      // Predicated region
      $region111: #{tpu_custom_call.1} parent=5 // pred_check
        %p12318 = pneg %p12317
      $region112: #{tpu_custom_call.1} parent=5 // pred_check_branch
        %12320 = sbr.rel (%p12318) target = $region114
      $region113: #{tpu_custom_call.1} parent=5 // pred_region
        %s12321 = ssub.s32 %s20, 2
        // Predicated region
        $region115: #{tpu_custom_call.1} parent=113 // pred_check
          %p12322 = pneg %p206
        $region116: #{tpu_custom_call.1} parent=113 // pred_check_branch
          %12324 = sbr.rel (%p12322) target = $region118
        $region117: #{tpu_custom_call.1} parent=113 // pred_region
          %s12325 = sand.u32 %s191, 1
          %s12326 = sand.u32 %s191, 1
          %s12327 = smul.addr %s12326, 192
          %s12328 = scalar_lea.vmem [#allocation11], %s12327
        $region118: #{tpu_custom_call.1} parent=113 // pred_fallthru
          _
      $region114: #{tpu_custom_call.1} parent=5 // pred_fallthru
        _
    $region6: #{tpu_custom_call.1} parent=1 // loop_footer
      %s24 = sadd.s32 1, %s20
    $region7: #{tpu_custom_call.1} parent=1 // loop_footer_branch
      %19 = sbr.rel target = $region3
    $region8: #{tpu_custom_call.1} parent=1 // loop_exit
      _
    %12329 = vsyncpa [#allocation4], 1
    %s12330 = scalar_lea.sflag [#allocation4], 1
    %12331 = vsyncpa %s12330, 1
    %12332 = vsyncpa [#allocation6], 1
    %s12333 = scalar_lea.sflag [#allocation6], 1
    %12334 = vsyncpa %s12333, 1
    %12335 = vsyncpa [#allocation9], 1
    %s12336 = scalar_lea.sflag [#allocation9], 1
    %12337 = vsyncpa %s12336, 1

</llo_original>
